<compile_context>
chip_gen: v5e
topology: v5e:2x2
jax: 0.10.0
libtpu: 0.0.40
codegen_flags: <defaults>
</compile_context>

<pallas_src>
import functools

import jax
import jax.numpy as jnp
from jax.experimental import pallas as pl
from jax.experimental.pallas import tpu as pltpu


def _round_up(n, m):
    return ((n + m - 1) // m) * m


def _ffn_kernel(x_ref, w1_ref, b1_ref, w2_ref, b2_ref, o_ref, acc_ref, *, th):
    # x_ref: (tm, C) f32    w1_ref: (C, H) bf16   b1_ref: (1, H) f32
    # w2_ref: (H, C) bf16   b2_ref: (1, C) f32    o_ref/acc_ref: (tm, C) f32
    x = x_ref[...].astype(jnp.bfloat16)          # in-kernel cast (free under MXU)
    H = w1_ref.shape[1]
    for hk in range(H // th):                    # static unroll over hidden panels
        lo = hk * th
        h = jnp.dot(x, w1_ref[:, lo:lo + th],
                    preferred_element_type=jnp.float32)
        h = jnp.maximum(h + b1_ref[:, lo:lo + th], 0.0)      # bias + ReLU in f32
        part = jnp.dot(h.astype(jnp.bfloat16), w2_ref[lo:lo + th, :],
                       preferred_element_type=jnp.float32)
        if hk == 0:
            acc_ref[...] = part
        else:
            acc_ref[...] += part
    # Dropout(0.2) == identity in eval mode.
    o_ref[...] = (acc_ref[...] + b2_ref[...]).astype(o_ref.dtype)


@functools.partial(jax.jit, static_argnames=("tm", "single_buffer_weights"))
def _feed_forward(x, w1, b1, w2, b2, *, tm=512, single_buffer_weights=True):
    B, T, C = x.shape
    H = w1.shape[1]                              # 4 * n_embd
    M = B * T
    out_dtype = x.dtype

    # Hidden-dim panel size: largest nice divisor of H (<= 512, lane aligned).
    th = H
    for cand in (512, 384, 256, 128):
        if H % cand == 0:
            th = cand
            break

    # Row tile: big enough to amortize ~0.35us/grid-step overhead, clamped so
    # (a) the grid keeps >= 2 steps (both v7x TensorCores busy) and
    # (b) tiny inputs are not padded to a full tile.
    tm = min(tm, max(16, _round_up(pl.cdiv(M, 2), 16)))
    tm = min(tm, _round_up(M, 16))

    # bf16 matmul operands; no-op casts when callers pre-convert via prepare_params.
    w1b = w1.astype(jnp.bfloat16)
    w2b = w2.astype(jnp.bfloat16)
    b1f = b1.reshape(1, H).astype(jnp.float32)
    b2f = b2.reshape(1, C).astype(jnp.float32)
    x2d = x.reshape(M, C)                        # stays f32; cast happens in-kernel

    # VMEM budget, derived from the actual chip (v7x: 64 MiB, v5e/v6e: 128 MiB).
    try:
        vmem_cap = int(getattr(pltpu.get_tpu_info(), "vmem_capacity_bytes",
                               64 * 1024 * 1024))
    except Exception:
        vmem_cap = 64 * 1024 * 1024
    budget = vmem_cap // 2                       # leave half for everything else

    wt_bufs = 1 if single_buffer_weights else 2
    weight_bytes = (2 * C * H * 2 + (H + C) * 4) * wt_bufs

    def vmem_needed(tm_):
        tile_io = 2 * 2 * tm_ * C * 4            # x + out tiles, double-buffered
        scratch = tm_ * C * 4                    # f32 accumulator
        inter = tm_ * th * (4 + 2)               # h panel (f32) + bf16 copy
        return weight_bytes + tile_io + scratch + inter

    while vmem_needed(tm) > budget and tm > 64:
        tm = max(64, tm // 2)
    if weight_bytes > budget:
        # TODO(synk): stream W1/W2 panels over an extra "arbitrary" H grid axis
        # (P3 accumulate pattern) once resident weights outgrow VMEM (relevant on
        # v7x at much larger n_embd) instead of keeping them resident.
        raise ValueError("FFN weights exceed the VMEM budget; streamed-weight "
                         "path not implemented.")
    vmem_limit = int(min(budget,
                         max(vmem_needed(tm) + 8 * 1024 * 1024,
                             32 * 1024 * 1024)))

    def const_spec(shape):
        # Weights / biases never change across the row grid; single-buffer them
        # so VMEM holds one copy instead of the default double buffer.
        if single_buffer_weights:
            return pl.BlockSpec(shape, lambda i: (0, 0),
                                pipeline_mode=pl.Buffered(1))
        return pl.BlockSpec(shape, lambda i: (0, 0))

    grid = (pl.cdiv(M, tm),)
    cost = pl.CostEstimate(
        flops=4 * M * C * H,                         # two (M,C,H)-sized matmuls
        transcendentals=0,
        bytes_accessed=(M * C * 4                    # x in (f32)
                        + M * C * 4                  # out (f32)
                        + 2 * C * H * 2              # W1 + W2 (bf16)
                        + (H + C) * 4))              # biases (f32)

    out2d = pl.pallas_call(
        functools.partial(_ffn_kernel, th=th),
        out_shape=jax.ShapeDtypeStruct((M, C), out_dtype),
        grid_spec=pltpu.PrefetchScalarGridSpec(
            num_scalar_prefetch=0,
            grid=grid,
            in_specs=[
                pl.BlockSpec((tm, C), lambda i: (i, 0)),    # x rows (pipelined)
                const_spec((C, H)),                         # W1 (resident)
                const_spec((1, H)),                         # b1
                const_spec((H, C)),                         # W2 (resident)
                const_spec((1, C)),                         # b2
            ],
            out_specs=pl.BlockSpec((tm, C), lambda i: (i, 0)),
            scratch_shapes=[pltpu.VMEM((tm, C), jnp.float32)],
        ),
        compiler_params=pltpu.CompilerParams(
            dimension_semantics=("parallel",),      # shard row grid across TCs
            vmem_limit_bytes=vmem_limit,
        ),
        cost_estimate=cost,
    )(x2d, w1b, b1f, w2b, b2f)
    return out2d.reshape(B, T, C)


_BUFFERED_OK = {"value": hasattr(pl, "Buffered")}


def feed_forward(x, w1, b1, w2, b2, *, tm=512):
    """x: (B, T, C) float32. Weights ideally pre-converted via prepare_params."""
    if _BUFFERED_OK["value"]:
        try:
            return _feed_forward(x, w1, b1, w2, b2, tm=tm,
                                 single_buffer_weights=True)
        except Exception:
            # jax build without pipeline_mode/Buffered support: fall back to the
            # default double-buffered weights (identical math).
            _BUFFERED_OK["value"] = False
    return _feed_forward(x, w1, b1, w2, b2, tm=tm, single_buffer_weights=False)


def init_params(key, n_embd):
    """f32 init matching torch.nn.Linear (U(-1/sqrt(fan_in), +1/sqrt(fan_in)))."""
    k1, k2, k3, k4 = jax.random.split(key, 4)
    h = 4 * n_embd
    bound1 = 1.0 / jnp.sqrt(n_embd)
    bound2 = 1.0 / jnp.sqrt(h)
    w1 = jax.random.uniform(k1, (n_embd, h), jnp.float32, -bound1, bound1)
    b1 = jax.random.uniform(k2, (1, h), jnp.float32, -bound1, bound1)
    w2 = jax.random.uniform(k3, (h, n_embd), jnp.float32, -bound2, bound2)
    b2 = jax.random.uniform(k4, (1, n_embd), jnp.float32, -bound2, bound2)
    return w1, b1, w2, b2


def prepare_params(w1, b1, w2, b2):
    """One-time conversion outside the per-call path: bf16 weights, f32 biases."""
    return (jnp.asarray(w1, jnp.bfloat16), jnp.asarray(b1, jnp.float32),
            jnp.asarray(w2, jnp.bfloat16), jnp.asarray(b2, jnp.float32))


def _reference(x, w1, b1, w2, b2, *, bf16_inputs):
    """Plain-JAX reference. bf16_inputs=True mirrors the kernel's MXU dtypes."""
    B, T, C = x.shape
    if bf16_inputs:
        xr = x.astype(jnp.bfloat16).astype(jnp.float32)
        w1r = w1.astype(jnp.bfloat16).astype(jnp.float32)
        w2r = w2.astype(jnp.bfloat16).astype(jnp.float32)
    else:
        xr, w1r, w2r = x, w1, w2
    h = jnp.maximum(xr.reshape(-1, C) @ w1r + b1, 0.0)
    if bf16_inputs:
        h = h.astype(jnp.bfloat16).astype(jnp.float32)
    return (h @ w2r + b2).reshape(B, T, C)


if __name__ == "__main__":
    n_embd = 384          # as in the reference module
    B, T = 2, 8           # small batch / sequence

    key = jax.random.PRNGKey(0)
    kx, kp = jax.random.split(key)
    x = jax.random.normal(kx, (B, T, n_embd), jnp.float32)
    w1, b1, w2, b2 = init_params(kp, n_embd)
    pw1, pb1, pw2, pb2 = prepare_params(w1, b1, w2, b2)   # bf16 weights, once

    out = jax.block_until_ready(feed_forward(x, pw1, pb1, pw2, pb2))
    assert out.shape == (B, T, n_embd)
    assert out.dtype == x.dtype
    # Tight check vs a reference using the same bf16 operands / f32 accumulation.
    ref_mx = _reference(x, w1, b1, w2, b2, bf16_inputs=True)
    assert jnp.allclose(out, ref_mx, atol=2e-3, rtol=2e-3)
    # Loose check vs the full-f32 module semantics (bf16 rounding tolerance).
    ref_f32 = _reference(x, w1, b1, w2, b2, bf16_inputs=False)
    assert jnp.allclose(out, ref_f32, atol=5e-2, rtol=5e-2)

    # Multi-block path: M=512 -> tm clamps to 256 -> grid of 2 (both v7x TCs busy).
    xb = jax.random.normal(jax.random.PRNGKey(1), (4, 128, n_embd), jnp.float32)
    outb = jax.block_until_ready(feed_forward(xb, pw1, pb1, pw2, pb2))
    refb = _reference(xb, w1, b1, w2, b2, bf16_inputs=True)
    assert jnp.allclose(outb, refb, atol=2e-3, rtol=2e-3)

    print("KERNEL_OK")
</pallas_src>

<mosaic_0001>
module attributes {stable_mosaic.version = 11 : i64} {
  func.func @_ffn_kernel(%arg0: i32, %arg1: memref<16x384xf32, #tpu.memory_space<vmem>>, %arg2: memref<384x1536xbf16, #tpu.memory_space<vmem>>, %arg3: memref<1x1536xf32, #tpu.memory_space<vmem>>, %arg4: memref<1536x384xbf16, #tpu.memory_space<vmem>>, %arg5: memref<1x384xf32, #tpu.memory_space<vmem>>, %arg6: memref<16x384xf32, #tpu.memory_space<vmem>>, %arg7: memref<16x384xf32, #tpu.memory_space<vmem>>) attributes {dimension_semantics = [#tpu.dimension_semantics<parallel>], iteration_bounds = array<i64: 1>, scalar_prefetch = 0 : i64, scratch_operands = 1 : i64, tpu.core_type = #tpu.core_type<tc>, window_params = [{transform_indices = @transform_0, window_bounds = array<i64: 16, 384>}, {pipeline_mode = #tpu.pipeline_mode<synchronous>, transform_indices = @transform_1, window_bounds = array<i64: 384, 1536>}, {pipeline_mode = #tpu.pipeline_mode<synchronous>, transform_indices = @transform_2, window_bounds = array<i64: 1, 1536>}, {pipeline_mode = #tpu.pipeline_mode<synchronous>, transform_indices = @transform_3, window_bounds = array<i64: 1536, 384>}, {pipeline_mode = #tpu.pipeline_mode<synchronous>, transform_indices = @transform_4, window_bounds = array<i64: 1, 384>}, {transform_indices = @transform_5, window_bounds = array<i64: 16, 384>}]} {
    %c0 = arith.constant 0 : index
    %c0_0 = arith.constant 0 : index
    %0 = vector.load %arg1[%c0, %c0_0] : memref<16x384xf32, #tpu.memory_space<vmem>>, vector<16x384xf32>
    %1 = arith.truncf %0 : vector<16x384xf32> to vector<16x384xbf16>
    %c0_1 = arith.constant 0 : index
    %c0_2 = arith.constant 0 : index
    %2 = vector.load %arg2[%c0_1, %c0_2] : memref<384x1536xbf16, #tpu.memory_space<vmem>>, vector<384x512xbf16>
    %cst = arith.constant dense<0.000000e+00> : vector<16x512xf32>
    %3 = tpu.matmul %1, %2, %cst {dimension_numbers = #tpu.dot_dimension_numbers<[1], [0], [0], [1], [0, 0, 1, 1], [], []>} : vector<16x384xbf16>, vector<384x512xbf16>, vector<16x512xf32> -> vector<16x512xf32>
    %c0_3 = arith.constant 0 : index
    %c0_4 = arith.constant 0 : index
    %4 = vector.load %arg3[%c0_3, %c0_4] : memref<1x1536xf32, #tpu.memory_space<vmem>>, vector<1x512xf32>
    %5 = vector.broadcast %4 : vector<1x512xf32> to vector<16x512xf32>
    %6 = arith.addf %3, %5 : vector<16x512xf32>
    %cst_5 = arith.constant 0.000000e+00 : f32
    %7 = vector.broadcast %cst_5 : f32 to vector<16x512xf32>
    %8 = arith.maximumf %6, %7 : vector<16x512xf32>
    %9 = arith.truncf %8 : vector<16x512xf32> to vector<16x512xbf16>
    %c0_6 = arith.constant 0 : index
    %c0_7 = arith.constant 0 : index
    %10 = vector.load %arg4[%c0_6, %c0_7] : memref<1536x384xbf16, #tpu.memory_space<vmem>>, vector<512x384xbf16>
    %cst_8 = arith.constant dense<0.000000e+00> : vector<16x384xf32>
    %11 = tpu.matmul %9, %10, %cst_8 {dimension_numbers = #tpu.dot_dimension_numbers<[1], [0], [0], [1], [0, 0, 1, 1], [], []>} : vector<16x512xbf16>, vector<512x384xbf16>, vector<16x384xf32> -> vector<16x384xf32>
    %c0_9 = arith.constant 0 : index
    %c0_10 = arith.constant 0 : index
    %12 = vector.load %arg7[%c0_9, %c0_10] : memref<16x384xf32, #tpu.memory_space<vmem>>, vector<16x384xf32>
    tpu.vector_store %arg7[%c0_9, %c0_10], %11 {strides = array<i32>} : memref<16x384xf32, #tpu.memory_space<vmem>>, vector<16x384xf32>,
    %c0_11 = arith.constant 0 : index
    %c512 = arith.constant 512 : index
    %13 = vector.load %arg2[%c0_11, %c512] : memref<384x1536xbf16, #tpu.memory_space<vmem>>, vector<384x512xbf16>
    %cst_12 = arith.constant dense<0.000000e+00> : vector<16x512xf32>
    %14 = tpu.matmul %1, %13, %cst_12 {dimension_numbers = #tpu.dot_dimension_numbers<[1], [0], [0], [1], [0, 0, 1, 1], [], []>} : vector<16x384xbf16>, vector<384x512xbf16>, vector<16x512xf32> -> vector<16x512xf32>
    %c0_13 = arith.constant 0 : index
    %c512_14 = arith.constant 512 : index
    %15 = vector.load %arg3[%c0_13, %c512_14] : memref<1x1536xf32, #tpu.memory_space<vmem>>, vector<1x512xf32>
    %16 = vector.broadcast %15 : vector<1x512xf32> to vector<16x512xf32>
    %17 = arith.addf %14, %16 : vector<16x512xf32>
    %cst_15 = arith.constant 0.000000e+00 : f32
    %18 = vector.broadcast %cst_15 : f32 to vector<16x512xf32>
    %19 = arith.maximumf %17, %18 : vector<16x512xf32>
    %20 = arith.truncf %19 : vector<16x512xf32> to vector<16x512xbf16>
    %c512_16 = arith.constant 512 : index
    %c0_17 = arith.constant 0 : index
    %21 = vector.load %arg4[%c512_16, %c0_17] : memref<1536x384xbf16, #tpu.memory_space<vmem>>, vector<512x384xbf16>
    %cst_18 = arith.constant dense<0.000000e+00> : vector<16x384xf32>
    %22 = tpu.matmul %20, %21, %cst_18 {dimension_numbers = #tpu.dot_dimension_numbers<[1], [0], [0], [1], [0, 0, 1, 1], [], []>} : vector<16x512xbf16>, vector<512x384xbf16>, vector<16x384xf32> -> vector<16x384xf32>
    %c0_19 = arith.constant 0 : index
    %c0_20 = arith.constant 0 : index
    %23 = vector.load %arg7[%c0_19, %c0_20] : memref<16x384xf32, #tpu.memory_space<vmem>>, vector<16x384xf32>
    %24 = arith.addf %23, %22 : vector<16x384xf32>
    %c0_21 = arith.constant 0 : index
    %c0_22 = arith.constant 0 : index
    %25 = vector.load %arg7[%c0_21, %c0_22] : memref<16x384xf32, #tpu.memory_space<vmem>>, vector<16x384xf32>
    tpu.vector_store %arg7[%c0_21, %c0_22], %24 {strides = array<i32>} : memref<16x384xf32, #tpu.memory_space<vmem>>, vector<16x384xf32>,
    %c0_23 = arith.constant 0 : index
    %c1024 = arith.constant 1024 : index
    %26 = vector.load %arg2[%c0_23, %c1024] : memref<384x1536xbf16, #tpu.memory_space<vmem>>, vector<384x512xbf16>
    %cst_24 = arith.constant dense<0.000000e+00> : vector<16x512xf32>
    %27 = tpu.matmul %1, %26, %cst_24 {dimension_numbers = #tpu.dot_dimension_numbers<[1], [0], [0], [1], [0, 0, 1, 1], [], []>} : vector<16x384xbf16>, vector<384x512xbf16>, vector<16x512xf32> -> vector<16x512xf32>
    %c0_25 = arith.constant 0 : index
    %c1024_26 = arith.constant 1024 : index
    %28 = vector.load %arg3[%c0_25, %c1024_26] : memref<1x1536xf32, #tpu.memory_space<vmem>>, vector<1x512xf32>
    %29 = vector.broadcast %28 : vector<1x512xf32> to vector<16x512xf32>
    %30 = arith.addf %27, %29 : vector<16x512xf32>
    %cst_27 = arith.constant 0.000000e+00 : f32
    %31 = vector.broadcast %cst_27 : f32 to vector<16x512xf32>
    %32 = arith.maximumf %30, %31 : vector<16x512xf32>
    %33 = arith.truncf %32 : vector<16x512xf32> to vector<16x512xbf16>
    %c1024_28 = arith.constant 1024 : index
    %c0_29 = arith.constant 0 : index
    %34 = vector.load %arg4[%c1024_28, %c0_29] : memref<1536x384xbf16, #tpu.memory_space<vmem>>, vector<512x384xbf16>
    %cst_30 = arith.constant dense<0.000000e+00> : vector<16x384xf32>
    %35 = tpu.matmul %33, %34, %cst_30 {dimension_numbers = #tpu.dot_dimension_numbers<[1], [0], [0], [1], [0, 0, 1, 1], [], []>} : vector<16x512xbf16>, vector<512x384xbf16>, vector<16x384xf32> -> vector<16x384xf32>
    %c0_31 = arith.constant 0 : index
    %c0_32 = arith.constant 0 : index
    %36 = vector.load %arg7[%c0_31, %c0_32] : memref<16x384xf32, #tpu.memory_space<vmem>>, vector<16x384xf32>
    %37 = arith.addf %36, %35 : vector<16x384xf32>
    %c0_33 = arith.constant 0 : index
    %c0_34 = arith.constant 0 : index
    %38 = vector.load %arg7[%c0_33, %c0_34] : memref<16x384xf32, #tpu.memory_space<vmem>>, vector<16x384xf32>
    tpu.vector_store %arg7[%c0_33, %c0_34], %37 {strides = array<i32>} : memref<16x384xf32, #tpu.memory_space<vmem>>, vector<16x384xf32>,
    %c0_35 = arith.constant 0 : index
    %c0_36 = arith.constant 0 : index
    %39 = vector.load %arg7[%c0_35, %c0_36] : memref<16x384xf32, #tpu.memory_space<vmem>>, vector<16x384xf32>
    %c0_37 = arith.constant 0 : index
    %c0_38 = arith.constant 0 : index
    %40 = vector.load %arg5[%c0_37, %c0_38] : memref<1x384xf32, #tpu.memory_space<vmem>>, vector<1x384xf32>
    %41 = vector.broadcast %40 : vector<1x384xf32> to vector<16x384xf32>
    %42 = arith.addf %39, %41 : vector<16x384xf32>
    %c0_39 = arith.constant 0 : index
    %c0_40 = arith.constant 0 : index
    %43 = vector.load %arg6[%c0_39, %c0_40] : memref<16x384xf32, #tpu.memory_space<vmem>>, vector<16x384xf32>
    tpu.vector_store %arg6[%c0_39, %c0_40], %42 {strides = array<i32>} : memref<16x384xf32, #tpu.memory_space<vmem>>, vector<16x384xf32>,
    return
  }
  func.func @transform_0(%arg0: i32) -> (i32, i32) {
    %c0_i32 = arith.constant 0 : i32
    %c0_i32_0 = arith.constant 0 : i32
    return %arg0, %c0_i32 : i32, i32
  }
  func.func @transform_1(%arg0: i32) -> (i32, i32) {
    %c0_i32 = arith.constant 0 : i32
    %c0_i32_0 = arith.constant 0 : i32
    %c0_i32_1 = arith.constant 0 : i32
    return %c0_i32, %c0_i32_0 : i32, i32
  }
  func.func @transform_2(%arg0: i32) -> (i32, i32) {
    %c0_i32 = arith.constant 0 : i32
    %c0_i32_0 = arith.constant 0 : i32
    %c0_i32_1 = arith.constant 0 : i32
    return %c0_i32, %c0_i32_0 : i32, i32
  }
  func.func @transform_3(%arg0: i32) -> (i32, i32) {
    %c0_i32 = arith.constant 0 : i32
    %c0_i32_0 = arith.constant 0 : i32
    %c0_i32_1 = arith.constant 0 : i32
    return %c0_i32, %c0_i32_0 : i32, i32
  }
  func.func @transform_4(%arg0: i32) -> (i32, i32) {
    %c0_i32 = arith.constant 0 : i32
    %c0_i32_0 = arith.constant 0 : i32
    %c0_i32_1 = arith.constant 0 : i32
    return %c0_i32, %c0_i32_0 : i32, i32
  }
  func.func @transform_5(%arg0: i32) -> (i32, i32) {
    %c0_i32 = arith.constant 0 : i32
    %c0_i32_0 = arith.constant 0 : i32
    return %arg0, %c0_i32 : i32, i32
  }
}

module attributes {stable_mosaic.version = 11 : i64} {
  func.func @_ffn_kernel(%arg0: i32, %arg1: memref<16x384xf32, #tpu.memory_space<vmem>>, %arg2: memref<384x1536xbf16, #tpu.memory_space<vmem>>, %arg3: memref<1x1536xf32, #tpu.memory_space<vmem>>, %arg4: memref<1536x384xbf16, #tpu.memory_space<vmem>>, %arg5: memref<1x384xf32, #tpu.memory_space<vmem>>, %arg6: memref<16x384xf32, #tpu.memory_space<vmem>>, %arg7: memref<16x384xf32, #tpu.memory_space<vmem>>) attributes {dimension_semantics = [#tpu.dimension_semantics<parallel>], iteration_bounds = array<i64: 1>, scalar_prefetch = 0 : i64, scratch_operands = 1 : i64, tpu.core_type = #tpu.core_type<tc>, window_params = [{transform_indices = @transform_0, window_bounds = array<i64: 16, 384>}, {pipeline_mode = #tpu.pipeline_mode<synchronous>, transform_indices = @transform_1, window_bounds = array<i64: 384, 1536>}, {pipeline_mode = #tpu.pipeline_mode<synchronous>, transform_indices = @transform_2, window_bounds = array<i64: 1, 1536>}, {pipeline_mode = #tpu.pipeline_mode<synchronous>, transform_indices = @transform_3, window_bounds = array<i64: 1536, 384>}, {pipeline_mode = #tpu.pipeline_mode<synchronous>, transform_indices = @transform_4, window_bounds = array<i64: 1, 384>}, {transform_indices = @transform_5, window_bounds = array<i64: 16, 384>}]} {
    %c0 = arith.constant 0 : index
    %c0_0 = arith.constant 0 : index
    %0 = vector.load %arg1[%c0, %c0_0] : memref<16x384xf32, #tpu.memory_space<vmem>>, vector<16x384xf32>
    %1 = arith.truncf %0 : vector<16x384xf32> to vector<16x384xbf16>
    %c0_1 = arith.constant 0 : index
    %c0_2 = arith.constant 0 : index
    %2 = vector.load %arg2[%c0_1, %c0_2] : memref<384x1536xbf16, #tpu.memory_space<vmem>>, vector<384x512xbf16>
    %cst = arith.constant dense<0.000000e+00> : vector<16x512xf32>
    %3 = tpu.matmul %1, %2, %cst {dimension_numbers = #tpu.dot_dimension_numbers<[1], [0], [0], [1], [0, 0, 1, 1], [], []>} : vector<16x384xbf16>, vector<384x512xbf16>, vector<16x512xf32> -> vector<16x512xf32>
    %c0_3 = arith.constant 0 : index
    %c0_4 = arith.constant 0 : index
    %4 = vector.load %arg3[%c0_3, %c0_4] : memref<1x1536xf32, #tpu.memory_space<vmem>>, vector<1x512xf32>
    %5 = vector.broadcast %4 : vector<1x512xf32> to vector<16x512xf32>
    %6 = arith.addf %3, %5 : vector<16x512xf32>
    %cst_5 = arith.constant 0.000000e+00 : f32
    %7 = vector.broadcast %cst_5 : f32 to vector<16x512xf32>
    %8 = arith.maximumf %6, %7 : vector<16x512xf32>
    %9 = arith.truncf %8 : vector<16x512xf32> to vector<16x512xbf16>
    %c0_6 = arith.constant 0 : index
    %c0_7 = arith.constant 0 : index
    %10 = vector.load %arg4[%c0_6, %c0_7] : memref<1536x384xbf16, #tpu.memory_space<vmem>>, vector<512x384xbf16>
    %cst_8 = arith.constant dense<0.000000e+00> : vector<16x384xf32>
    %11 = tpu.matmul %9, %10, %cst_8 {dimension_numbers = #tpu.dot_dimension_numbers<[1], [0], [0], [1], [0, 0, 1, 1], [], []>} : vector<16x512xbf16>, vector<512x384xbf16>, vector<16x384xf32> -> vector<16x384xf32>
    %c0_9 = arith.constant 0 : index
    %c0_10 = arith.constant 0 : index
    %12 = vector.load %arg7[%c0_9, %c0_10] : memref<16x384xf32, #tpu.memory_space<vmem>>, vector<16x384xf32>
    tpu.vector_store %arg7[%c0_9, %c0_10], %11 {strides = array<i32>} : memref<16x384xf32, #tpu.memory_space<vmem>>, vector<16x384xf32>,
    %c0_11 = arith.constant 0 : index
    %c512 = arith.constant 512 : index
    %13 = vector.load %arg2[%c0_11, %c512] : memref<384x1536xbf16, #tpu.memory_space<vmem>>, vector<384x512xbf16>
    %cst_12 = arith.constant dense<0.000000e+00> : vector<16x512xf32>
    %14 = tpu.matmul %1, %13, %cst_12 {dimension_numbers = #tpu.dot_dimension_numbers<[1], [0], [0], [1], [0, 0, 1, 1], [], []>} : vector<16x384xbf16>, vector<384x512xbf16>, vector<16x512xf32> -> vector<16x512xf32>
    %c0_13 = arith.constant 0 : index
    %c512_14 = arith.constant 512 : index
    %15 = vector.load %arg3[%c0_13, %c512_14] : memref<1x1536xf32, #tpu.memory_space<vmem>>, vector<1x512xf32>
    %16 = vector.broadcast %15 : vector<1x512xf32> to vector<16x512xf32>
    %17 = arith.addf %14, %16 : vector<16x512xf32>
    %cst_15 = arith.constant 0.000000e+00 : f32
    %18 = vector.broadcast %cst_15 : f32 to vector<16x512xf32>
    %19 = arith.maximumf %17, %18 : vector<16x512xf32>
    %20 = arith.truncf %19 : vector<16x512xf32> to vector<16x512xbf16>
    %c512_16 = arith.constant 512 : index
    %c0_17 = arith.constant 0 : index
    %21 = vector.load %arg4[%c512_16, %c0_17] : memref<1536x384xbf16, #tpu.memory_space<vmem>>, vector<512x384xbf16>
    %cst_18 = arith.constant dense<0.000000e+00> : vector<16x384xf32>
    %22 = tpu.matmul %20, %21, %cst_18 {dimension_numbers = #tpu.dot_dimension_numbers<[1], [0], [0], [1], [0, 0, 1, 1], [], []>} : vector<16x512xbf16>, vector<512x384xbf16>, vector<16x384xf32> -> vector<16x384xf32>
    %c0_19 = arith.constant 0 : index
    %c0_20 = arith.constant 0 : index
    %23 = vector.load %arg7[%c0_19, %c0_20] : memref<16x384xf32, #tpu.memory_space<vmem>>, vector<16x384xf32>
    %24 = arith.addf %23, %22 : vector<16x384xf32>
    %c0_21 = arith.constant 0 : index
    %c0_22 = arith.constant 0 : index
    %25 = vector.load %arg7[%c0_21, %c0_22] : memref<16x384xf32, #tpu.memory_space<vmem>>, vector<16x384xf32>
    tpu.vector_store %arg7[%c0_21, %c0_22], %24 {strides = array<i32>} : memref<16x384xf32, #tpu.memory_space<vmem>>, vector<16x384xf32>,
    %c0_23 = arith.constant 0 : index
    %c1024 = arith.constant 1024 : index
    %26 = vector.load %arg2[%c0_23, %c1024] : memref<384x1536xbf16, #tpu.memory_space<vmem>>, vector<384x512xbf16>
    %cst_24 = arith.constant dense<0.000000e+00> : vector<16x512xf32>
    %27 = tpu.matmul %1, %26, %cst_24 {dimension_numbers = #tpu.dot_dimension_numbers<[1], [0], [0], [1], [0, 0, 1, 1], [], []>} : vector<16x384xbf16>, vector<384x512xbf16>, vector<16x512xf32> -> vector<16x512xf32>
    %c0_25 = arith.constant 0 : index
    %c1024_26 = arith.constant 1024 : index
    %28 = vector.load %arg3[%c0_25, %c1024_26] : memref<1x1536xf32, #tpu.memory_space<vmem>>, vector<1x512xf32>
    %29 = vector.broadcast %28 : vector<1x512xf32> to vector<16x512xf32>
    %30 = arith.addf %27, %29 : vector<16x512xf32>
    %cst_27 = arith.constant 0.000000e+00 : f32
    %31 = vector.broadcast %cst_27 : f32 to vector<16x512xf32>
    %32 = arith.maximumf %30, %31 : vector<16x512xf32>
    %33 = arith.truncf %32 : vector<16x512xf32> to vector<16x512xbf16>
    %c1024_28 = arith.constant 1024 : index
    %c0_29 = arith.constant 0 : index
    %34 = vector.load %arg4[%c1024_28, %c0_29] : memref<1536x384xbf16, #tpu.memory_space<vmem>>, vector<512x384xbf16>
    %cst_30 = arith.constant dense<0.000000e+00> : vector<16x384xf32>
    %35 = tpu.matmul %33, %34, %cst_30 {dimension_numbers = #tpu.dot_dimension_numbers<[1], [0], [0], [1], [0, 0, 1, 1], [], []>} : vector<16x512xbf16>, vector<512x384xbf16>, vector<16x384xf32> -> vector<16x384xf32>
    %c0_31 = arith.constant 0 : index
    %c0_32 = arith.constant 0 : index
    %36 = vector.load %arg7[%c0_31, %c0_32] : memref<16x384xf32, #tpu.memory_space<vmem>>, vector<16x384xf32>
    %37 = arith.addf %36, %35 : vector<16x384xf32>
    %c0_33 = arith.constant 0 : index
    %c0_34 = arith.constant 0 : index
    %38 = vector.load %arg7[%c0_33, %c0_34] : memref<16x384xf32, #tpu.memory_space<vmem>>, vector<16x384xf32>
    tpu.vector_store %arg7[%c0_33, %c0_34], %37 {strides = array<i32>} : memref<16x384xf32, #tpu.memory_space<vmem>>, vector<16x384xf32>,
    %c0_35 = arith.constant 0 : index
    %c0_36 = arith.constant 0 : index
    %39 = vector.load %arg7[%c0_35, %c0_36] : memref<16x384xf32, #tpu.memory_space<vmem>>, vector<16x384xf32>
    %c0_37 = arith.constant 0 : index
    %c0_38 = arith.constant 0 : index
    %40 = vector.load %arg5[%c0_37, %c0_38] : memref<1x384xf32, #tpu.memory_space<vmem>>, vector<1x384xf32>
    %41 = vector.broadcast %40 : vector<1x384xf32> to vector<16x384xf32>
    %42 = arith.addf %39, %41 : vector<16x384xf32>
    %c0_39 = arith.constant 0 : index
    %c0_40 = arith.constant 0 : index
    %43 = vector.load %arg6[%c0_39, %c0_40] : memref<16x384xf32, #tpu.memory_space<vmem>>, vector<16x384xf32>
    tpu.vector_store %arg6[%c0_39, %c0_40], %42 {strides = array<i32>} : memref<16x384xf32, #tpu.memory_space<vmem>>, vector<16x384xf32>,
    return
  }
  func.func @transform_0(%arg0: i32) -> (i32, i32) {
    %c0_i32 = arith.constant 0 : i32
    %c0_i32_0 = arith.constant 0 : i32
    return %arg0, %c0_i32 : i32, i32
  }
  func.func @transform_1(%arg0: i32) -> (i32, i32) {
    %c0_i32 = arith.constant 0 : i32
    %c0_i32_0 = arith.constant 0 : i32
    %c0_i32_1 = arith.constant 0 : i32
    return %c0_i32, %c0_i32_0 : i32, i32
  }
  func.func @transform_2(%arg0: i32) -> (i32, i32) {
    %c0_i32 = arith.constant 0 : i32
    %c0_i32_0 = arith.constant 0 : i32
    %c0_i32_1 = arith.constant 0 : i32
    return %c0_i32, %c0_i32_0 : i32, i32
  }
  func.func @transform_3(%arg0: i32) -> (i32, i32) {
    %c0_i32 = arith.constant 0 : i32
    %c0_i32_0 = arith.constant 0 : i32
    %c0_i32_1 = arith.constant 0 : i32
    return %c0_i32, %c0_i32_0 : i32, i32
  }
  func.func @transform_4(%arg0: i32) -> (i32, i32) {
    %c0_i32 = arith.constant 0 : i32
    %c0_i32_0 = arith.constant 0 : i32
    %c0_i32_1 = arith.constant 0 : i32
    return %c0_i32, %c0_i32_0 : i32, i32
  }
  func.func @transform_5(%arg0: i32) -> (i32, i32) {
    %c0_i32 = arith.constant 0 : i32
    %c0_i32_0 = arith.constant 0 : i32
    return %arg0, %c0_i32 : i32, i32
  }
}

</mosaic_0001>

<llo_original>
// kernel: _feed_forward.1
$region0: #{_feed_forward.1}
  #allocation0 [shape = 'u32[]', space=smem, size = 0x4, offset = 0x4, fixed_abs, tag = 'smem constant byte address 0x4 - core index']
  #allocation1 [shape = 'u32[72,128]{1,0:T(1,128)}', space=vmem, size = 0x9000, scoped, tag = 'internal scratch']
  #allocation2 [shape = 'f32[16,384]{1,0:T(8,128)}', space=vmem, size = 0x6000, scoped, tag = 'scratch operand']
  %s0 = inlined_call_operand.hbm [shape: f32[16,384], index: 0, kind: input, shape index: {}]
  %s1 = inlined_call_operand.hbm [shape: bf16[384,1536], index: 1, kind: input, shape index: {}]
  %s2 = inlined_call_operand.hbm [shape: f32[1,1536], index: 2, kind: input, shape index: {}]
  %s3 = inlined_call_operand.hbm [shape: bf16[1536,384], index: 3, kind: input, shape index: {}]
  %s4 = inlined_call_operand.hbm [shape: f32[1,384], index: 4, kind: input, shape index: {}]
  %s5 = inlined_call_operand.hbm [shape: f32[16,384], index: 5, kind: output, shape index: {}]
  %s6 = sld [smem:[#allocation0]]
  $region50: #{_feed_forward.1} parent=0
    _
  %s8 = ssub.s32 1, %s6
  %s9 = scalar_select 0, %s8, %s6
  $region1: #{_feed_forward.1} parent=0
    #allocation3 [shape = 'u8[24576]{0}', space=vmem, size = 0x6000, scoped, tag = 'input window, operand 0, single buffered']
    #allocation4 [shape = 's32[1]{0}', space=sflag, size = 0x4, scoped, tag = 'scoped memory for _feed_forward.1']
    #allocation5 [shape = 's32[1]{0}', space=sflag, size = 0x4, scoped, tag = 'scoped memory for _feed_forward.1']
    #allocation6 [shape = 'u8[1179648]{0}', space=vmem, size = 0x120000, scoped, tag = 'input window, operand 1, single buffered']
    #allocation7 [shape = 's32[1]{0}', space=sflag, size = 0x4, scoped, tag = 'scoped memory for _feed_forward.1']
    #allocation8 [shape = 'u8[6144]{0}', space=vmem, size = 0x1800, scoped, tag = 'input window, operand 2, single buffered']
    #allocation9 [shape = 'u8[1179648]{0}', space=vmem, size = 0x120000, scoped, tag = 'input window, operand 3, single buffered']
    #allocation10 [shape = 's32[1]{0}', space=sflag, size = 0x4, scoped, tag = 'scoped memory for _feed_forward.1']
    #allocation11 [shape = 'u8[1536]{0}', space=vmem, size = 0x800, scoped, tag = 'input window, operand 4, single buffered']
    #allocation12 [shape = 'u8[24576]{0}', space=vmem, size = 0x6000, scoped, tag = 'output window, operand 0, single buffered']
    %10 = vsyncpa [#allocation4], 0
    %11 = vsyncpa [#allocation7], 0
    %12 = vsyncpa [#allocation10], 0
    %13 = vsyncpa [#allocation5], 0
    // Predicated region
    $region2: #{_feed_forward.1} parent=1 // pred_check
      _
    $region3: #{_feed_forward.1} parent=1 // pred_check_branch
      %15 = sbr.rel (0) target = $region5
    $region4: #{_feed_forward.1} parent=1 // pred_region
      %17 = vsyncadd [#allocation4], 0
      %s18 = sshll.u32 %s0, 4
      %s19 = int_to_ptr.hbm [resolvable:$true] %s18
      %s20 = sshll.u32 [#allocation3], 4
      %s21 = int_to_ptr.vmem [resolvable:$true] %s20
      %26 = dma.hbm_to_vmem [thread:$0]  %s19, 768, %s21, [#allocation4], 384, 384, 24
    $region5: #{_feed_forward.1} parent=1 // pred_fallthru
      _
    // Predicated region
    $region6: #{_feed_forward.1} parent=1 // pred_check
      _
    $region7: #{_feed_forward.1} parent=1 // pred_check_branch
      %28 = sbr.rel (0) target = $region9
    $region8: #{_feed_forward.1} parent=1 // pred_region
      %30 = vsyncadd [#allocation7], 0
      %s31 = sshll.u32 %s1, 4
      %s32 = int_to_ptr.hbm [resolvable:$true] %s31
      %s33 = sshll.u32 [#allocation6], 4
      %s34 = int_to_ptr.vmem [resolvable:$true] %s33
      %39 = dma.hbm_to_vmem [thread:$0]  %s32, 36864, %s34, [#allocation7], 768, 768, 48
    $region9: #{_feed_forward.1} parent=1 // pred_fallthru
      _
    // Predicated region
    $region10: #{_feed_forward.1} parent=1 // pred_check
      _
    $region11: #{_feed_forward.1} parent=1 // pred_check_branch
      %41 = sbr.rel (0) target = $region13
    $region12: #{_feed_forward.1} parent=1 // pred_region
      %43 = vsyncadd [#allocation7], 0
      %s45 = sshll.u32 %s2, 4
      %s46 = int_to_ptr.hbm [resolvable:$true] %s45
      %s47 = sshll.u32 [#allocation8], 4
      %s48 = int_to_ptr.vmem [resolvable:$true] %s47
      %50 = dma.hbm_to_vmem [thread:$0]  %s46, 192, %s48, [#allocation7]
    $region13: #{_feed_forward.1} parent=1 // pred_fallthru
      _
    // Predicated region
    $region14: #{_feed_forward.1} parent=1 // pred_check
      _
    $region15: #{_feed_forward.1} parent=1 // pred_check_branch
      %52 = sbr.rel (0) target = $region17
    $region16: #{_feed_forward.1} parent=1 // pred_region
      %54 = vsyncadd [#allocation10], 0
      %s55 = sshll.u32 %s3, 4
      %s56 = int_to_ptr.hbm [resolvable:$true] %s55
      %s57 = sshll.u32 [#allocation9], 4
      %s58 = int_to_ptr.vmem [resolvable:$true] %s57
      %63 = dma.hbm_to_vmem [thread:$0]  %s56, 36864, %s58, [#allocation10], 192, 192, 12
    $region17: #{_feed_forward.1} parent=1 // pred_fallthru
      _
    // Predicated region
    $region18: #{_feed_forward.1} parent=1 // pred_check
      _
    $region19: #{_feed_forward.1} parent=1 // pred_check_branch
      %65 = sbr.rel (0) target = $region21
    $region20: #{_feed_forward.1} parent=1 // pred_region
      %67 = vsyncadd [#allocation10], 0
      %s69 = sshll.u32 %s4, 4
      %s70 = int_to_ptr.hbm [resolvable:$true] %s69
      %s71 = sshll.u32 [#allocation11], 4
      %s72 = int_to_ptr.vmem [resolvable:$true] %s71
      %74 = dma.hbm_to_vmem [thread:$0]  %s70, 48, %s72, [#allocation10]
    $region21: #{_feed_forward.1} parent=1 // pred_fallthru
      _
    // Predicated region
    $region22: #{_feed_forward.1} parent=1 // pred_check
      _
    $region23: #{_feed_forward.1} parent=1 // pred_check_branch
      %76 = sbr.rel (0) target = $region25
    $region24: #{_feed_forward.1} parent=1 // pred_region
      %78 = dma.done [#allocation4], 768
    $region25: #{_feed_forward.1} parent=1 // pred_fallthru
      _
    // Predicated region
    $region26: #{_feed_forward.1} parent=1 // pred_check
      _
    $region27: #{_feed_forward.1} parent=1 // pred_check_branch
      %80 = sbr.rel (0) target = $region29
    $region28: #{_feed_forward.1} parent=1 // pred_region
      %82 = dma.done [#allocation7], 36864
    $region29: #{_feed_forward.1} parent=1 // pred_fallthru
      _
    // Predicated region
    $region30: #{_feed_forward.1} parent=1 // pred_check
      _
    $region31: #{_feed_forward.1} parent=1 // pred_check_branch
      %84 = sbr.rel (0) target = $region33
    $region32: #{_feed_forward.1} parent=1 // pred_region
      %86 = dma.done [#allocation7], 192
    $region33: #{_feed_forward.1} parent=1 // pred_fallthru
      _
    // Predicated region
    $region34: #{_feed_forward.1} parent=1 // pred_check
      _
    $region35: #{_feed_forward.1} parent=1 // pred_check_branch
      %88 = sbr.rel (0) target = $region37
    $region36: #{_feed_forward.1} parent=1 // pred_region
      %90 = dma.done [#allocation10], 36864
    $region37: #{_feed_forward.1} parent=1 // pred_fallthru
      _
    // Predicated region
    $region38: #{_feed_forward.1} parent=1 // pred_check
      _
    $region39: #{_feed_forward.1} parent=1 // pred_check_branch
      %92 = sbr.rel (0) target = $region41
    $region40: #{_feed_forward.1} parent=1 // pred_region
      %94 = dma.done [#allocation10], 48
    $region41: #{_feed_forward.1} parent=1 // pred_fallthru
      _
    %v95 = vld [vmem:[#allocation3] sm:$0xff]
    %v96 = vld [vmem:[#allocation3 + $0x8] sm:$0xff]
    %v97 = vld [vmem:[#allocation3 + $0x10] sm:$0xff]
    %v98 = vld [vmem:[#allocation3 + $0x18] sm:$0xff]
    %v99 = vld [vmem:[#allocation3 + $0x20] sm:$0xff]
    %v100 = vld [vmem:[#allocation3 + $0x28] sm:$0xff]
    %v101 = vpack.c.bf16 %v98, %v95
    %v102 = vpack.c.bf16 %v99, %v96
    %v103 = vpack.c.bf16 %v100, %v97
    %v104 = vld [vmem:[#allocation6] sm:$0xff]
    %v105 = vld [vmem:[#allocation6 + $0x8] sm:$0xff]
    %v106 = vld [vmem:[#allocation6 + $0x30] sm:$0xff]
    %v107 = vld [vmem:[#allocation6 + $0x38] sm:$0xff]
    %v108 = vld [vmem:[#allocation6 + $0x60] sm:$0xff]
    %v109 = vld [vmem:[#allocation6 + $0x68] sm:$0xff]
    %v110 = vld [vmem:[#allocation6 + $0x90] sm:$0xff]
    %v111 = vld [vmem:[#allocation6 + $0x98] sm:$0xff]
    %v112 = vld [vmem:[#allocation6 + $0xc0] sm:$0xff]
    %v113 = vld [vmem:[#allocation6 + $0xc8] sm:$0xff]
    %v114 = vld [vmem:[#allocation6 + $0xf0] sm:$0xff]
    %v115 = vld [vmem:[#allocation6 + $0xf8] sm:$0xff]
    %v116 = vld [vmem:[#allocation6 + $0x120] sm:$0xff]
    %v117 = vld [vmem:[#allocation6 + $0x128] sm:$0xff]
    %v118 = vld [vmem:[#allocation6 + $0x150] sm:$0xff]
    %v119 = vld [vmem:[#allocation6 + $0x158] sm:$0xff]
    %v120 = vld [vmem:[#allocation6 + $0x180] sm:$0xff]
    %v121 = vld [vmem:[#allocation6 + $0x188] sm:$0xff]
    %v122 = vld [vmem:[#allocation6 + $0x1b0] sm:$0xff]
    %v123 = vld [vmem:[#allocation6 + $0x1b8] sm:$0xff]
    %v124 = vld [vmem:[#allocation6 + $0x1e0] sm:$0xff]
    %v125 = vld [vmem:[#allocation6 + $0x1e8] sm:$0xff]
    %v126 = vld [vmem:[#allocation6 + $0x210] sm:$0xff]
    %v127 = vld [vmem:[#allocation6 + $0x218] sm:$0xff]
    %v128 = vld [vmem:[#allocation6 + $0x240] sm:$0xff]
    %v129 = vld [vmem:[#allocation6 + $0x248] sm:$0xff]
    %v130 = vld [vmem:[#allocation6 + $0x270] sm:$0xff]
    %v131 = vld [vmem:[#allocation6 + $0x278] sm:$0xff]
    %v132 = vld [vmem:[#allocation6 + $0x2a0] sm:$0xff]
    %v133 = vld [vmem:[#allocation6 + $0x2a8] sm:$0xff]
    %v134 = vld [vmem:[#allocation6 + $0x2d0] sm:$0xff]
    %v135 = vld [vmem:[#allocation6 + $0x2d8] sm:$0xff]
    %v136 = vld [vmem:[#allocation6 + $0x300] sm:$0xff]
    %v137 = vld [vmem:[#allocation6 + $0x308] sm:$0xff]
    %v138 = vld [vmem:[#allocation6 + $0x330] sm:$0xff]
    %v139 = vld [vmem:[#allocation6 + $0x338] sm:$0xff]
    %v140 = vld [vmem:[#allocation6 + $0x360] sm:$0xff]
    %v141 = vld [vmem:[#allocation6 + $0x368] sm:$0xff]
    %v142 = vld [vmem:[#allocation6 + $0x390] sm:$0xff]
    %v143 = vld [vmem:[#allocation6 + $0x398] sm:$0xff]
    %v144 = vld [vmem:[#allocation6 + $0x3c0] sm:$0xff]
    %v145 = vld [vmem:[#allocation6 + $0x3c8] sm:$0xff]
    %v146 = vld [vmem:[#allocation6 + $0x3f0] sm:$0xff]
    %v147 = vld [vmem:[#allocation6 + $0x3f8] sm:$0xff]
    %v148 = vld [vmem:[#allocation6 + $0x420] sm:$0xff]
    %v149 = vld [vmem:[#allocation6 + $0x428] sm:$0xff]
    %v150 = vld [vmem:[#allocation6 + $0x450] sm:$0xff]
    %v151 = vld [vmem:[#allocation6 + $0x458] sm:$0xff]
    %v152 = vld [vmem:[#allocation6 + $0x480] sm:$0xff]
    %v153 = vld [vmem:[#allocation6 + $0x488] sm:$0xff]
    %v154 = vld [vmem:[#allocation6 + $0x4b0] sm:$0xff]
    %v155 = vld [vmem:[#allocation6 + $0x4b8] sm:$0xff]
    %v156 = vld [vmem:[#allocation6 + $0x4e0] sm:$0xff]
    %v157 = vld [vmem:[#allocation6 + $0x4e8] sm:$0xff]
    %v158 = vld [vmem:[#allocation6 + $0x510] sm:$0xff]
    %v159 = vld [vmem:[#allocation6 + $0x518] sm:$0xff]
    %v160 = vld [vmem:[#allocation6 + $0x540] sm:$0xff]
    %v161 = vld [vmem:[#allocation6 + $0x548] sm:$0xff]
    %v162 = vld [vmem:[#allocation6 + $0x570] sm:$0xff]
    %v163 = vld [vmem:[#allocation6 + $0x578] sm:$0xff]
    %v164 = vld [vmem:[#allocation6 + $0x5a0] sm:$0xff]
    %v165 = vld [vmem:[#allocation6 + $0x5a8] sm:$0xff]
    %v166 = vld [vmem:[#allocation6 + $0x5d0] sm:$0xff]
    %v167 = vld [vmem:[#allocation6 + $0x5d8] sm:$0xff]
    %v168 = vld [vmem:[#allocation6 + $0x600] sm:$0xff]
    %v169 = vld [vmem:[#allocation6 + $0x608] sm:$0xff]
    %v170 = vld [vmem:[#allocation6 + $0x630] sm:$0xff]
    %v171 = vld [vmem:[#allocation6 + $0x638] sm:$0xff]
    %v172 = vld [vmem:[#allocation6 + $0x660] sm:$0xff]
    %v173 = vld [vmem:[#allocation6 + $0x668] sm:$0xff]
    %v174 = vld [vmem:[#allocation6 + $0x690] sm:$0xff]
    %v175 = vld [vmem:[#allocation6 + $0x698] sm:$0xff]
    %v176 = vld [vmem:[#allocation6 + $0x6c0] sm:$0xff]
    %v177 = vld [vmem:[#allocation6 + $0x6c8] sm:$0xff]
    %v178 = vld [vmem:[#allocation6 + $0x6f0] sm:$0xff]
    %v179 = vld [vmem:[#allocation6 + $0x6f8] sm:$0xff]
    %v180 = vld [vmem:[#allocation6 + $0x720] sm:$0xff]
    %v181 = vld [vmem:[#allocation6 + $0x728] sm:$0xff]
    %v182 = vld [vmem:[#allocation6 + $0x750] sm:$0xff]
    %v183 = vld [vmem:[#allocation6 + $0x758] sm:$0xff]
    %v184 = vld [vmem:[#allocation6 + $0x780] sm:$0xff]
    %v185 = vld [vmem:[#allocation6 + $0x788] sm:$0xff]
    %v186 = vld [vmem:[#allocation6 + $0x7b0] sm:$0xff]
    %v187 = vld [vmem:[#allocation6 + $0x7b8] sm:$0xff]
    %v188 = vld [vmem:[#allocation6 + $0x7e0] sm:$0xff]
    %v189 = vld [vmem:[#allocation6 + $0x7e8] sm:$0xff]
    %v190 = vld [vmem:[#allocation6 + $0x810] sm:$0xff]
    %v191 = vld [vmem:[#allocation6 + $0x818] sm:$0xff]
    %v192 = vld [vmem:[#allocation6 + $0x840] sm:$0xff]
    %v193 = vld [vmem:[#allocation6 + $0x848] sm:$0xff]
    %v194 = vld [vmem:[#allocation6 + $0x870] sm:$0xff]
    %v195 = vld [vmem:[#allocation6 + $0x878] sm:$0xff]
    %v196 = vld [vmem:[#allocation6 + $0x8a0] sm:$0xff]
    %v197 = vld [vmem:[#allocation6 + $0x8a8] sm:$0xff]
    %v198 = vld [vmem:[#allocation6 + $0x8d0] sm:$0xff]
    %v199 = vld [vmem:[#allocation6 + $0x8d8] sm:$0xff]
    %v200 = vld [vmem:[#allocation8] sm:$0xf]
    %v202 = vperm.slane %v200, 0
    %v203 = vperm.slane %v200, 1
    %v204 = vperm.slane %v200, 2
    %v205 = vperm.slane %v200, 3
    %v306 = vunpack.c.l.b16 %v104
    %v307 = vunpack.c.h.b16 %v104
    %v308 = vunpack.c.l.b16 %v105
    %v309 = vunpack.c.h.b16 %v105
    %v310 = vunpack.c.l.b16 %v106
    %v311 = vunpack.c.h.b16 %v106
    %v312 = vunpack.c.l.b16 %v107
    %v313 = vunpack.c.h.b16 %v107
    %v314 = vunpack.c.l.b16 %v108
    %v315 = vunpack.c.h.b16 %v108
    %v316 = vunpack.c.l.b16 %v109
    %v317 = vunpack.c.h.b16 %v109
    %v318 = vunpack.c.l.b16 %v110
    %v319 = vunpack.c.h.b16 %v110
    %v320 = vunpack.c.l.b16 %v111
    %v321 = vunpack.c.h.b16 %v111
    %v322 = vunpack.c.l.b16 %v112
    %v323 = vunpack.c.h.b16 %v112
    %v324 = vunpack.c.l.b16 %v113
    %v325 = vunpack.c.h.b16 %v113
    %v326 = vunpack.c.l.b16 %v114
    %v327 = vunpack.c.h.b16 %v114
    %v328 = vunpack.c.l.b16 %v115
    %v329 = vunpack.c.h.b16 %v115
    %v330 = vunpack.c.l.b16 %v116
    %v331 = vunpack.c.h.b16 %v116
    %v332 = vunpack.c.l.b16 %v117
    %v333 = vunpack.c.h.b16 %v117
    %v334 = vunpack.c.l.b16 %v118
    %v335 = vunpack.c.h.b16 %v118
    %v336 = vunpack.c.l.b16 %v119
    %v337 = vunpack.c.h.b16 %v119
    %v338 = vunpack.c.l.b16 %v120
    %v339 = vunpack.c.h.b16 %v120
    %v340 = vunpack.c.l.b16 %v121
    %v341 = vunpack.c.h.b16 %v121
    %v342 = vunpack.c.l.b16 %v122
    %v343 = vunpack.c.h.b16 %v122
    %v344 = vunpack.c.l.b16 %v123
    %v345 = vunpack.c.h.b16 %v123
    %v346 = vunpack.c.l.b16 %v124
    %v347 = vunpack.c.h.b16 %v124
    %v348 = vunpack.c.l.b16 %v125
    %v349 = vunpack.c.h.b16 %v125
    %v350 = vunpack.c.l.b16 %v126
    %v351 = vunpack.c.h.b16 %v126
    %v352 = vunpack.c.l.b16 %v127
    %v353 = vunpack.c.h.b16 %v127
    %v354 = vunpack.c.l.b16 %v128
    %v355 = vunpack.c.h.b16 %v128
    %v356 = vunpack.c.l.b16 %v129
    %v357 = vunpack.c.h.b16 %v129
    %v358 = vunpack.c.l.b16 %v130
    %v359 = vunpack.c.h.b16 %v130
    %v360 = vunpack.c.l.b16 %v131
    %v361 = vunpack.c.h.b16 %v131
    %v362 = vunpack.c.l.b16 %v132
    %v363 = vunpack.c.h.b16 %v132
    %v364 = vunpack.c.l.b16 %v133
    %v365 = vunpack.c.h.b16 %v133
    %v366 = vunpack.c.l.b16 %v134
    %v367 = vunpack.c.h.b16 %v134
    %v368 = vunpack.c.l.b16 %v135
    %v369 = vunpack.c.h.b16 %v135
    %v370 = vunpack.c.l.b16 %v136
    %v371 = vunpack.c.h.b16 %v136
    %v372 = vunpack.c.l.b16 %v137
    %v373 = vunpack.c.h.b16 %v137
    %v374 = vunpack.c.l.b16 %v138
    %v375 = vunpack.c.h.b16 %v138
    %v376 = vunpack.c.l.b16 %v139
    %v377 = vunpack.c.h.b16 %v139
    %v378 = vunpack.c.l.b16 %v140
    %v379 = vunpack.c.h.b16 %v140
    %v380 = vunpack.c.l.b16 %v141
    %v381 = vunpack.c.h.b16 %v141
    %v382 = vunpack.c.l.b16 %v142
    %v383 = vunpack.c.h.b16 %v142
    %v384 = vunpack.c.l.b16 %v143
    %v385 = vunpack.c.h.b16 %v143
    %v386 = vunpack.c.l.b16 %v144
    %v387 = vunpack.c.h.b16 %v144
    %v388 = vunpack.c.l.b16 %v145
    %v389 = vunpack.c.h.b16 %v145
    %v390 = vunpack.c.l.b16 %v146
    %v391 = vunpack.c.h.b16 %v146
    %v392 = vunpack.c.l.b16 %v147
    %v393 = vunpack.c.h.b16 %v147
    %v394 = vunpack.c.l.b16 %v148
    %v395 = vunpack.c.h.b16 %v148
    %v396 = vunpack.c.l.b16 %v149
    %v397 = vunpack.c.h.b16 %v149
    %v398 = vunpack.c.l.b16 %v150
    %v399 = vunpack.c.h.b16 %v150
    %v400 = vunpack.c.l.b16 %v151
    %v401 = vunpack.c.h.b16 %v151
    %v402 = vunpack.c.l.b16 %v152
    %v403 = vunpack.c.h.b16 %v152
    %v404 = vunpack.c.l.b16 %v153
    %v405 = vunpack.c.h.b16 %v153
    %v406 = vunpack.c.l.b16 %v154
    %v407 = vunpack.c.h.b16 %v154
    %v408 = vunpack.c.l.b16 %v155
    %v409 = vunpack.c.h.b16 %v155
    %v410 = vunpack.c.l.b16 %v156
    %v411 = vunpack.c.h.b16 %v156
    %v412 = vunpack.c.l.b16 %v157
    %v413 = vunpack.c.h.b16 %v157
    %v414 = vunpack.c.l.b16 %v158
    %v415 = vunpack.c.h.b16 %v158
    %v416 = vunpack.c.l.b16 %v159
    %v417 = vunpack.c.h.b16 %v159
    %v418 = vunpack.c.l.b16 %v160
    %v419 = vunpack.c.h.b16 %v160
    %v420 = vunpack.c.l.b16 %v161
    %v421 = vunpack.c.h.b16 %v161
    %v422 = vunpack.c.l.b16 %v162
    %v423 = vunpack.c.h.b16 %v162
    %v424 = vunpack.c.l.b16 %v163
    %v425 = vunpack.c.h.b16 %v163
    %v426 = vunpack.c.l.b16 %v164
    %v427 = vunpack.c.h.b16 %v164
    %v428 = vunpack.c.l.b16 %v165
    %v429 = vunpack.c.h.b16 %v165
    %v430 = vunpack.c.l.b16 %v166
    %v431 = vunpack.c.h.b16 %v166
    %v432 = vunpack.c.l.b16 %v167
    %v433 = vunpack.c.h.b16 %v167
    %v434 = vunpack.c.l.b16 %v168
    %v435 = vunpack.c.h.b16 %v168
    %v436 = vunpack.c.l.b16 %v169
    %v437 = vunpack.c.h.b16 %v169
    %v438 = vunpack.c.l.b16 %v170
    %v439 = vunpack.c.h.b16 %v170
    %v440 = vunpack.c.l.b16 %v171
    %v441 = vunpack.c.h.b16 %v171
    %v442 = vunpack.c.l.b16 %v172
    %v443 = vunpack.c.h.b16 %v172
    %v444 = vunpack.c.l.b16 %v173
    %v445 = vunpack.c.h.b16 %v173
    %v446 = vunpack.c.l.b16 %v174
    %v447 = vunpack.c.h.b16 %v174
    %v448 = vunpack.c.l.b16 %v175
    %v449 = vunpack.c.h.b16 %v175
    %v450 = vunpack.c.l.b16 %v176
    %v451 = vunpack.c.h.b16 %v176
    %v452 = vunpack.c.l.b16 %v177
    %v453 = vunpack.c.h.b16 %v177
    %v454 = vunpack.c.l.b16 %v178
    %v455 = vunpack.c.h.b16 %v178
    %v456 = vunpack.c.l.b16 %v179
    %v457 = vunpack.c.h.b16 %v179
    %v458 = vunpack.c.l.b16 %v180
    %v459 = vunpack.c.h.b16 %v180
    %v460 = vunpack.c.l.b16 %v181
    %v461 = vunpack.c.h.b16 %v181
    %v462 = vunpack.c.l.b16 %v182
    %v463 = vunpack.c.h.b16 %v182
    %v464 = vunpack.c.l.b16 %v183
    %v465 = vunpack.c.h.b16 %v183
    %v466 = vunpack.c.l.b16 %v184
    %v467 = vunpack.c.h.b16 %v184
    %v468 = vunpack.c.l.b16 %v185
    %v469 = vunpack.c.h.b16 %v185
    %v470 = vunpack.c.l.b16 %v186
    %v471 = vunpack.c.h.b16 %v186
    %v472 = vunpack.c.l.b16 %v187
    %v473 = vunpack.c.h.b16 %v187
    %v474 = vunpack.c.l.b16 %v188
    %v475 = vunpack.c.h.b16 %v188
    %v476 = vunpack.c.l.b16 %v189
    %v477 = vunpack.c.h.b16 %v189
    %v478 = vunpack.c.l.b16 %v190
    %v479 = vunpack.c.h.b16 %v190
    %v480 = vunpack.c.l.b16 %v191
    %v481 = vunpack.c.h.b16 %v191
    %v482 = vunpack.c.l.b16 %v192
    %v483 = vunpack.c.h.b16 %v192
    %v484 = vunpack.c.l.b16 %v193
    %v485 = vunpack.c.h.b16 %v193
    %v486 = vunpack.c.l.b16 %v194
    %v487 = vunpack.c.h.b16 %v194
    %v488 = vunpack.c.l.b16 %v195
    %v489 = vunpack.c.h.b16 %v195
    %v490 = vunpack.c.l.b16 %v196
    %v491 = vunpack.c.h.b16 %v196
    %v492 = vunpack.c.l.b16 %v197
    %v493 = vunpack.c.h.b16 %v197
    %v494 = vunpack.c.l.b16 %v198
    %v495 = vunpack.c.h.b16 %v198
    %v496 = vunpack.c.l.b16 %v199
    %v497 = vunpack.c.h.b16 %v199
    %v498 = vpack.c.b16 %v310, %v306
    %v499 = vpack.c.b16 %v311, %v307
    %v500 = vpack.c.b16 %v312, %v308
    %v501 = vpack.c.b16 %v313, %v309
    %v502 = vpack.c.b16 %v318, %v314
    %v503 = vpack.c.b16 %v319, %v315
    %v504 = vpack.c.b16 %v320, %v316
    %v505 = vpack.c.b16 %v321, %v317
    %v506 = vpack.c.b16 %v326, %v322
    %v507 = vpack.c.b16 %v327, %v323
    %v508 = vpack.c.b16 %v328, %v324
    %v509 = vpack.c.b16 %v329, %v325
    %v510 = vpack.c.b16 %v334, %v330
    %v511 = vpack.c.b16 %v335, %v331
    %v512 = vpack.c.b16 %v336, %v332
    %v513 = vpack.c.b16 %v337, %v333
    %v514 = vpack.c.b16 %v342, %v338
    %v515 = vpack.c.b16 %v343, %v339
    %v516 = vpack.c.b16 %v344, %v340
    %v517 = vpack.c.b16 %v345, %v341
    %v518 = vpack.c.b16 %v350, %v346
    %v519 = vpack.c.b16 %v351, %v347
    %v520 = vpack.c.b16 %v352, %v348
    %v521 = vpack.c.b16 %v353, %v349
    %v522 = vpack.c.b16 %v358, %v354
    %v523 = vpack.c.b16 %v359, %v355
    %v524 = vpack.c.b16 %v360, %v356
    %v525 = vpack.c.b16 %v361, %v357
    %v526 = vpack.c.b16 %v366, %v362
    %v527 = vpack.c.b16 %v367, %v363
    %v528 = vpack.c.b16 %v368, %v364
    %v529 = vpack.c.b16 %v369, %v365
    %v530 = vpack.c.b16 %v374, %v370
    %v531 = vpack.c.b16 %v375, %v371
    %v532 = vpack.c.b16 %v376, %v372
    %v533 = vpack.c.b16 %v377, %v373
    %v534 = vpack.c.b16 %v382, %v378
    %v535 = vpack.c.b16 %v383, %v379
    %v536 = vpack.c.b16 %v384, %v380
    %v537 = vpack.c.b16 %v385, %v381
    %v538 = vpack.c.b16 %v390, %v386
    %v539 = vpack.c.b16 %v391, %v387
    %v540 = vpack.c.b16 %v392, %v388
    %v541 = vpack.c.b16 %v393, %v389
    %v542 = vpack.c.b16 %v398, %v394
    %v543 = vpack.c.b16 %v399, %v395
    %v544 = vpack.c.b16 %v400, %v396
    %v545 = vpack.c.b16 %v401, %v397
    %v546 = vpack.c.b16 %v406, %v402
    %v547 = vpack.c.b16 %v407, %v403
    %v548 = vpack.c.b16 %v408, %v404
    %v549 = vpack.c.b16 %v409, %v405
    %v550 = vpack.c.b16 %v414, %v410
    %v551 = vpack.c.b16 %v415, %v411
    %v552 = vpack.c.b16 %v416, %v412
    %v553 = vpack.c.b16 %v417, %v413
    %v554 = vpack.c.b16 %v422, %v418
    %v555 = vpack.c.b16 %v423, %v419
    %v556 = vpack.c.b16 %v424, %v420
    %v557 = vpack.c.b16 %v425, %v421
    %v558 = vpack.c.b16 %v430, %v426
    %v559 = vpack.c.b16 %v431, %v427
    %v560 = vpack.c.b16 %v432, %v428
    %v561 = vpack.c.b16 %v433, %v429
    %v562 = vpack.c.b16 %v438, %v434
    %v563 = vpack.c.b16 %v439, %v435
    %v564 = vpack.c.b16 %v440, %v436
    %v565 = vpack.c.b16 %v441, %v437
    %v566 = vpack.c.b16 %v446, %v442
    %v567 = vpack.c.b16 %v447, %v443
    %v568 = vpack.c.b16 %v448, %v444
    %v569 = vpack.c.b16 %v449, %v445
    %v570 = vpack.c.b16 %v454, %v450
    %v571 = vpack.c.b16 %v455, %v451
    %v572 = vpack.c.b16 %v456, %v452
    %v573 = vpack.c.b16 %v457, %v453
    %v574 = vpack.c.b16 %v462, %v458
    %v575 = vpack.c.b16 %v463, %v459
    %v576 = vpack.c.b16 %v464, %v460
    %v577 = vpack.c.b16 %v465, %v461
    %v578 = vpack.c.b16 %v470, %v466
    %v579 = vpack.c.b16 %v471, %v467
    %v580 = vpack.c.b16 %v472, %v468
    %v581 = vpack.c.b16 %v473, %v469
    %v582 = vpack.c.b16 %v478, %v474
    %v583 = vpack.c.b16 %v479, %v475
    %v584 = vpack.c.b16 %v480, %v476
    %v585 = vpack.c.b16 %v481, %v477
    %v586 = vpack.c.b16 %v486, %v482
    %v587 = vpack.c.b16 %v487, %v483
    %v588 = vpack.c.b16 %v488, %v484
    %v589 = vpack.c.b16 %v489, %v485
    %v590 = vpack.c.b16 %v494, %v490
    %v591 = vpack.c.b16 %v495, %v491
    %v592 = vpack.c.b16 %v496, %v492
    %v593 = vpack.c.b16 %v497, %v493
    %690 = vmatpush.bf16.msra.mxu0 %v526
    %691 = vmatpush.bf16.msra.mxu0 %v522
    %692 = vmatpush.bf16.msra.mxu0 %v518
    %693 = vmatpush.bf16.msra.mxu0 %v514
    %694 = vmatpush.bf16.msra.mxu0 %v510
    %695 = vmatpush.bf16.msra.mxu0 %v506
    %696 = vmatpush.bf16.msra.mxu0 %v502
    %697 = vmatpush.bf16.msra.mxu0 %v498
    %698 = vmatmul.bf16.gmra.mxu0 %v101
    %v699 = vpop.f32.mrf.mxu0
    %v700 = vadd.f32 %v202, %v699
    %v701 = vpop.f32.mrf.mxu0
    %v702 = vadd.f32 %v202, %v701
    %703 = vdwg.mxu0
    %704 = vmatpush.bf16.msra.mxu0 %v558
    %705 = vmatpush.bf16.msra.mxu0 %v554
    %706 = vmatpush.bf16.msra.mxu0 %v550
    %707 = vmatpush.bf16.msra.mxu0 %v546
    %708 = vmatpush.bf16.msra.mxu0 %v542
    %709 = vmatpush.bf16.msra.mxu0 %v538
    %710 = vmatpush.bf16.msra.mxu0 %v534
    %711 = vmatpush.bf16.msra.mxu0 %v530
    %712 = vmatmul.bf16.gmra.mxu0 %v102
    %v713 = vpop.f32.mrf.mxu0
    %v714 = vadd.f32 %v700, %v713
    %v715 = vpop.f32.mrf.mxu0
    %v716 = vadd.f32 %v702, %v715
    %717 = vdwg.mxu0
    %718 = vmatpush.bf16.msra.mxu0 %v590
    %719 = vmatpush.bf16.msra.mxu0 %v586
    %720 = vmatpush.bf16.msra.mxu0 %v582
    %721 = vmatpush.bf16.msra.mxu0 %v578
    %722 = vmatpush.bf16.msra.mxu0 %v574
    %723 = vmatpush.bf16.msra.mxu0 %v570
    %724 = vmatpush.bf16.msra.mxu0 %v566
    %725 = vmatpush.bf16.msra.mxu0 %v562
    %726 = vmatmul.bf16.gmra.mxu0 %v103
    %v727 = vpop.f32.mrf.mxu0
    %v728 = vadd.f32 %v714, %v727
    %v729 = vpop.f32.mrf.mxu0
    %v730 = vadd.f32 %v716, %v729
    %731 = vdwg.mxu0
    %732 = vmatpush.bf16.msra.mxu0 %v527
    %733 = vmatpush.bf16.msra.mxu0 %v523
    %734 = vmatpush.bf16.msra.mxu0 %v519
    %735 = vmatpush.bf16.msra.mxu0 %v515
    %736 = vmatpush.bf16.msra.mxu0 %v511
    %737 = vmatpush.bf16.msra.mxu0 %v507
    %738 = vmatpush.bf16.msra.mxu0 %v503
    %739 = vmatpush.bf16.msra.mxu0 %v499
    %740 = vmatmul.bf16.gmra.mxu0 %v101
    %v741 = vpop.f32.mrf.mxu0
    %v742 = vadd.f32 %v203, %v741
    %v743 = vpop.f32.mrf.mxu0
    %v744 = vadd.f32 %v203, %v743
    %745 = vdwg.mxu0
    %746 = vmatpush.bf16.msra.mxu0 %v559
    %747 = vmatpush.bf16.msra.mxu0 %v555
    %748 = vmatpush.bf16.msra.mxu0 %v551
    %749 = vmatpush.bf16.msra.mxu0 %v547
    %750 = vmatpush.bf16.msra.mxu0 %v543
    %751 = vmatpush.bf16.msra.mxu0 %v539
    %752 = vmatpush.bf16.msra.mxu0 %v535
    %753 = vmatpush.bf16.msra.mxu0 %v531
    %754 = vmatmul.bf16.gmra.mxu0 %v102
    %v755 = vpop.f32.mrf.mxu0
    %v756 = vadd.f32 %v742, %v755
    %v757 = vpop.f32.mrf.mxu0
    %v758 = vadd.f32 %v744, %v757
    %759 = vdwg.mxu0
    %760 = vmatpush.bf16.msra.mxu0 %v591
    %761 = vmatpush.bf16.msra.mxu0 %v587
    %762 = vmatpush.bf16.msra.mxu0 %v583
    %763 = vmatpush.bf16.msra.mxu0 %v579
    %764 = vmatpush.bf16.msra.mxu0 %v575
    %765 = vmatpush.bf16.msra.mxu0 %v571
    %766 = vmatpush.bf16.msra.mxu0 %v567
    %767 = vmatpush.bf16.msra.mxu0 %v563
    %768 = vmatmul.bf16.gmra.mxu0 %v103
    %v769 = vpop.f32.mrf.mxu0
    %v770 = vadd.f32 %v756, %v769
    %v771 = vpop.f32.mrf.mxu0
    %v772 = vadd.f32 %v758, %v771
    %773 = vdwg.mxu0
    %774 = vmatpush.bf16.msra.mxu0 %v528
    %775 = vmatpush.bf16.msra.mxu0 %v524
    %776 = vmatpush.bf16.msra.mxu0 %v520
    %777 = vmatpush.bf16.msra.mxu0 %v516
    %778 = vmatpush.bf16.msra.mxu0 %v512
    %779 = vmatpush.bf16.msra.mxu0 %v508
    %780 = vmatpush.bf16.msra.mxu0 %v504
    %781 = vmatpush.bf16.msra.mxu0 %v500
    %782 = vmatmul.bf16.gmra.mxu0 %v101
    %v783 = vpop.f32.mrf.mxu0
    %v784 = vadd.f32 %v204, %v783
    %v785 = vpop.f32.mrf.mxu0
    %v786 = vadd.f32 %v204, %v785
    %787 = vdwg.mxu0
    %788 = vmatpush.bf16.msra.mxu0 %v560
    %789 = vmatpush.bf16.msra.mxu0 %v556
    %790 = vmatpush.bf16.msra.mxu0 %v552
    %791 = vmatpush.bf16.msra.mxu0 %v548
    %792 = vmatpush.bf16.msra.mxu0 %v544
    %793 = vmatpush.bf16.msra.mxu0 %v540
    %794 = vmatpush.bf16.msra.mxu0 %v536
    %795 = vmatpush.bf16.msra.mxu0 %v532
    %796 = vmatmul.bf16.gmra.mxu0 %v102
    %v797 = vpop.f32.mrf.mxu0
    %v798 = vadd.f32 %v784, %v797
    %v799 = vpop.f32.mrf.mxu0
    %v800 = vadd.f32 %v786, %v799
    %801 = vdwg.mxu0
    %802 = vmatpush.bf16.msra.mxu0 %v592
    %803 = vmatpush.bf16.msra.mxu0 %v588
    %804 = vmatpush.bf16.msra.mxu0 %v584
    %805 = vmatpush.bf16.msra.mxu0 %v580
    %806 = vmatpush.bf16.msra.mxu0 %v576
    %807 = vmatpush.bf16.msra.mxu0 %v572
    %808 = vmatpush.bf16.msra.mxu0 %v568
    %809 = vmatpush.bf16.msra.mxu0 %v564
    %810 = vmatmul.bf16.gmra.mxu0 %v103
    %v811 = vpop.f32.mrf.mxu0
    %v812 = vadd.f32 %v798, %v811
    %v813 = vpop.f32.mrf.mxu0
    %v814 = vadd.f32 %v800, %v813
    %815 = vdwg.mxu0
    %816 = vmatpush.bf16.msra.mxu0 %v529
    %817 = vmatpush.bf16.msra.mxu0 %v525
    %818 = vmatpush.bf16.msra.mxu0 %v521
    %819 = vmatpush.bf16.msra.mxu0 %v517
    %820 = vmatpush.bf16.msra.mxu0 %v513
    %821 = vmatpush.bf16.msra.mxu0 %v509
    %822 = vmatpush.bf16.msra.mxu0 %v505
    %823 = vmatpush.bf16.msra.mxu0 %v501
    %824 = vmatmul.bf16.gmra.mxu0 %v101
    %v825 = vpop.f32.mrf.mxu0
    %v826 = vadd.f32 %v205, %v825
    %v827 = vpop.f32.mrf.mxu0
    %v828 = vadd.f32 %v205, %v827
    %829 = vdwg.mxu0
    %830 = vmatpush.bf16.msra.mxu0 %v561
    %831 = vmatpush.bf16.msra.mxu0 %v557
    %832 = vmatpush.bf16.msra.mxu0 %v553
    %833 = vmatpush.bf16.msra.mxu0 %v549
    %834 = vmatpush.bf16.msra.mxu0 %v545
    %835 = vmatpush.bf16.msra.mxu0 %v541
    %836 = vmatpush.bf16.msra.mxu0 %v537
    %837 = vmatpush.bf16.msra.mxu0 %v533
    %838 = vmatmul.bf16.gmra.mxu0 %v102
    %v839 = vpop.f32.mrf.mxu0
    %v840 = vadd.f32 %v826, %v839
    %v841 = vpop.f32.mrf.mxu0
    %v842 = vadd.f32 %v828, %v841
    %843 = vdwg.mxu0
    %844 = vmatpush.bf16.msra.mxu0 %v593
    %845 = vmatpush.bf16.msra.mxu0 %v589
    %846 = vmatpush.bf16.msra.mxu0 %v585
    %847 = vmatpush.bf16.msra.mxu0 %v581
    %848 = vmatpush.bf16.msra.mxu0 %v577
    %849 = vmatpush.bf16.msra.mxu0 %v573
    %850 = vmatpush.bf16.msra.mxu0 %v569
    %851 = vmatpush.bf16.msra.mxu0 %v565
    %852 = vmatmul.bf16.gmra.mxu0 %v103
    %v853 = vpop.f32.mrf.mxu0
    %v854 = vadd.f32 %v840, %v853
    %v855 = vpop.f32.mrf.mxu0
    %v856 = vadd.f32 %v842, %v855
    %857 = vdwg.mxu0
    %v858 = vmax.f32 %v728, 0.0
    %v859 = vmax.f32 %v770, 0.0
    %v860 = vmax.f32 %v812, 0.0
    %v861 = vmax.f32 %v854, 0.0
    %v862 = vmax.f32 %v730, 0.0
    %v863 = vmax.f32 %v772, 0.0
    %v864 = vmax.f32 %v814, 0.0
    %v865 = vmax.f32 %v856, 0.0
    %v866 = vpack.c.bf16 %v862, %v858
    %v867 = vpack.c.bf16 %v863, %v859
    %v868 = vpack.c.bf16 %v864, %v860
    %v869 = vpack.c.bf16 %v865, %v861
    %v870 = vld [vmem:[#allocation9] sm:$0xff]
    %v871 = vld [vmem:[#allocation9 + $0x8] sm:$0xf]
    %v872 = vld [vmem:[#allocation9 + $0xc] sm:$0xff]
    %v873 = vld [vmem:[#allocation9 + $0x14] sm:$0xf]
    %v874 = vld [vmem:[#allocation9 + $0x18] sm:$0xff]
    %v875 = vld [vmem:[#allocation9 + $0x20] sm:$0xf]
    %v876 = vld [vmem:[#allocation9 + $0x24] sm:$0xff]
    %v877 = vld [vmem:[#allocation9 + $0x2c] sm:$0xf]
    %v878 = vld [vmem:[#allocation9 + $0x30] sm:$0xff]
    %v879 = vld [vmem:[#allocation9 + $0x38] sm:$0xf]
    %v880 = vld [vmem:[#allocation9 + $0x3c] sm:$0xff]
    %v881 = vld [vmem:[#allocation9 + $0x44] sm:$0xf]
    %v882 = vld [vmem:[#allocation9 + $0x48] sm:$0xff]
    %v883 = vld [vmem:[#allocation9 + $0x50] sm:$0xf]
    %v884 = vld [vmem:[#allocation9 + $0x54] sm:$0xff]
    %v885 = vld [vmem:[#allocation9 + $0x5c] sm:$0xf]
    %v886 = vld [vmem:[#allocation9 + $0x60] sm:$0xff]
    %v887 = vld [vmem:[#allocation9 + $0x68] sm:$0xf]
    %v888 = vld [vmem:[#allocation9 + $0x6c] sm:$0xff]
    %v889 = vld [vmem:[#allocation9 + $0x74] sm:$0xf]
    %v890 = vld [vmem:[#allocation9 + $0x78] sm:$0xff]
    %v891 = vld [vmem:[#allocation9 + $0x80] sm:$0xf]
    %v892 = vld [vmem:[#allocation9 + $0x84] sm:$0xff]
    %v893 = vld [vmem:[#allocation9 + $0x8c] sm:$0xf]
    %v894 = vld [vmem:[#allocation9 + $0x90] sm:$0xff]
    %v895 = vld [vmem:[#allocation9 + $0x98] sm:$0xf]
    %v896 = vld [vmem:[#allocation9 + $0x9c] sm:$0xff]
    %v897 = vld [vmem:[#allocation9 + $0xa4] sm:$0xf]
    %v898 = vld [vmem:[#allocation9 + $0xa8] sm:$0xff]
    %v899 = vld [vmem:[#allocation9 + $0xb0] sm:$0xf]
    %v900 = vld [vmem:[#allocation9 + $0xb4] sm:$0xff]
    %v901 = vld [vmem:[#allocation9 + $0xbc] sm:$0xf]
    %v902 = vld [vmem:[#allocation9 + $0xc0] sm:$0xff]
    %v903 = vld [vmem:[#allocation9 + $0xc8] sm:$0xf]
    %v904 = vld [vmem:[#allocation9 + $0xcc] sm:$0xff]
    %v905 = vld [vmem:[#allocation9 + $0xd4] sm:$0xf]
    %v906 = vld [vmem:[#allocation9 + $0xd8] sm:$0xff]
    %v907 = vld [vmem:[#allocation9 + $0xe0] sm:$0xf]
    %v908 = vld [vmem:[#allocation9 + $0xe4] sm:$0xff]
    %v909 = vld [vmem:[#allocation9 + $0xec] sm:$0xf]
    %v910 = vld [vmem:[#allocation9 + $0xf0] sm:$0xff]
    %v911 = vld [vmem:[#allocation9 + $0xf8] sm:$0xf]
    %v912 = vld [vmem:[#allocation9 + $0xfc] sm:$0xff]
    %v913 = vld [vmem:[#allocation9 + $0x104] sm:$0xf]
    %v914 = vld [vmem:[#allocation9 + $0x108] sm:$0xff]
    %v915 = vld [vmem:[#allocation9 + $0x110] sm:$0xf]
    %v916 = vld [vmem:[#allocation9 + $0x114] sm:$0xff]
    %v917 = vld [vmem:[#allocation9 + $0x11c] sm:$0xf]
    %v918 = vld [vmem:[#allocation9 + $0x120] sm:$0xff]
    %v919 = vld [vmem:[#allocation9 + $0x128] sm:$0xf]
    %v920 = vld [vmem:[#allocation9 + $0x12c] sm:$0xff]
    %v921 = vld [vmem:[#allocation9 + $0x134] sm:$0xf]
    %v922 = vld [vmem:[#allocation9 + $0x138] sm:$0xff]
    %v923 = vld [vmem:[#allocation9 + $0x140] sm:$0xf]
    %v924 = vld [vmem:[#allocation9 + $0x144] sm:$0xff]
    %v925 = vld [vmem:[#allocation9 + $0x14c] sm:$0xf]
    %v926 = vld [vmem:[#allocation9 + $0x150] sm:$0xff]
    %v927 = vld [vmem:[#allocation9 + $0x158] sm:$0xf]
    %v928 = vld [vmem:[#allocation9 + $0x15c] sm:$0xff]
    %v929 = vld [vmem:[#allocation9 + $0x164] sm:$0xf]
    %v930 = vld [vmem:[#allocation9 + $0x168] sm:$0xff]
    %v931 = vld [vmem:[#allocation9 + $0x170] sm:$0xf]
    %v932 = vld [vmem:[#allocation9 + $0x174] sm:$0xff]
    %v933 = vld [vmem:[#allocation9 + $0x17c] sm:$0xf]
    %v934 = vld [vmem:[#allocation9 + $0x180] sm:$0xff]
    %v935 = vld [vmem:[#allocation9 + $0x188] sm:$0xf]
    %v936 = vld [vmem:[#allocation9 + $0x18c] sm:$0xff]
    %v937 = vld [vmem:[#allocation9 + $0x194] sm:$0xf]
    %v938 = vld [vmem:[#allocation9 + $0x198] sm:$0xff]
    %v939 = vld [vmem:[#allocation9 + $0x1a0] sm:$0xf]
    %v940 = vld [vmem:[#allocation9 + $0x1a4] sm:$0xff]
    %v941 = vld [vmem:[#allocation9 + $0x1ac] sm:$0xf]
    %v942 = vld [vmem:[#allocation9 + $0x1b0] sm:$0xff]
    %v943 = vld [vmem:[#allocation9 + $0x1b8] sm:$0xf]
    %v944 = vld [vmem:[#allocation9 + $0x1bc] sm:$0xff]
    %v945 = vld [vmem:[#allocation9 + $0x1c4] sm:$0xf]
    %v946 = vld [vmem:[#allocation9 + $0x1c8] sm:$0xff]
    %v947 = vld [vmem:[#allocation9 + $0x1d0] sm:$0xf]
    %v948 = vld [vmem:[#allocation9 + $0x1d4] sm:$0xff]
    %v949 = vld [vmem:[#allocation9 + $0x1dc] sm:$0xf]
    %v950 = vld [vmem:[#allocation9 + $0x1e0] sm:$0xff]
    %v951 = vld [vmem:[#allocation9 + $0x1e8] sm:$0xf]
    %v952 = vld [vmem:[#allocation9 + $0x1ec] sm:$0xff]
    %v953 = vld [vmem:[#allocation9 + $0x1f4] sm:$0xf]
    %v954 = vld [vmem:[#allocation9 + $0x1f8] sm:$0xff]
    %v955 = vld [vmem:[#allocation9 + $0x200] sm:$0xf]
    %v956 = vld [vmem:[#allocation9 + $0x204] sm:$0xff]
    %v957 = vld [vmem:[#allocation9 + $0x20c] sm:$0xf]
    %v958 = vld [vmem:[#allocation9 + $0x210] sm:$0xff]
    %v959 = vld [vmem:[#allocation9 + $0x218] sm:$0xf]
    %v960 = vld [vmem:[#allocation9 + $0x21c] sm:$0xff]
    %v961 = vld [vmem:[#allocation9 + $0x224] sm:$0xf]
    %v962 = vld [vmem:[#allocation9 + $0x228] sm:$0xff]
    %v963 = vld [vmem:[#allocation9 + $0x230] sm:$0xf]
    %v964 = vld [vmem:[#allocation9 + $0x234] sm:$0xff]
    %v965 = vld [vmem:[#allocation9 + $0x23c] sm:$0xf]
    %v966 = vld [vmem:[#allocation9 + $0x240] sm:$0xff]
    %v967 = vld [vmem:[#allocation9 + $0x248] sm:$0xf]
    %v968 = vld [vmem:[#allocation9 + $0x24c] sm:$0xff]
    %v969 = vld [vmem:[#allocation9 + $0x254] sm:$0xf]
    %v970 = vld [vmem:[#allocation9 + $0x258] sm:$0xff]
    %v971 = vld [vmem:[#allocation9 + $0x260] sm:$0xf]
    %v972 = vld [vmem:[#allocation9 + $0x264] sm:$0xff]
    %v973 = vld [vmem:[#allocation9 + $0x26c] sm:$0xf]
    %v974 = vld [vmem:[#allocation9 + $0x270] sm:$0xff]
    %v975 = vld [vmem:[#allocation9 + $0x278] sm:$0xf]
    %v976 = vld [vmem:[#allocation9 + $0x27c] sm:$0xff]
    %v977 = vld [vmem:[#allocation9 + $0x284] sm:$0xf]
    %v978 = vld [vmem:[#allocation9 + $0x288] sm:$0xff]
    %v979 = vld [vmem:[#allocation9 + $0x290] sm:$0xf]
    %v980 = vld [vmem:[#allocation9 + $0x294] sm:$0xff]
    %v981 = vld [vmem:[#allocation9 + $0x29c] sm:$0xf]
    %v982 = vld [vmem:[#allocation9 + $0x2a0] sm:$0xff]
    %v983 = vld [vmem:[#allocation9 + $0x2a8] sm:$0xf]
    %v984 = vld [vmem:[#allocation9 + $0x2ac] sm:$0xff]
    %v985 = vld [vmem:[#allocation9 + $0x2b4] sm:$0xf]
    %v986 = vld [vmem:[#allocation9 + $0x2b8] sm:$0xff]
    %v987 = vld [vmem:[#allocation9 + $0x2c0] sm:$0xf]
    %v988 = vld [vmem:[#allocation9 + $0x2c4] sm:$0xff]
    %v989 = vld [vmem:[#allocation9 + $0x2cc] sm:$0xf]
    %v990 = vld [vmem:[#allocation9 + $0x2d0] sm:$0xff]
    %v991 = vld [vmem:[#allocation9 + $0x2d8] sm:$0xf]
    %v992 = vld [vmem:[#allocation9 + $0x2dc] sm:$0xff]
    %v993 = vld [vmem:[#allocation9 + $0x2e4] sm:$0xf]
    %v994 = vld [vmem:[#allocation9 + $0x2e8] sm:$0xff]
    %v995 = vld [vmem:[#allocation9 + $0x2f0] sm:$0xf]
    %v996 = vld [vmem:[#allocation9 + $0x2f4] sm:$0xff]
    %v997 = vld [vmem:[#allocation9 + $0x2fc] sm:$0xf]
    %v1126 = vunpack.c.l.b16 %v870
    %v1127 = vunpack.c.h.b16 %v870
    %v1128 = vunpack.c.l.b16 %v871
    %v1129 = vunpack.c.l.b16 %v872
    %v1130 = vunpack.c.h.b16 %v872
    %v1131 = vunpack.c.l.b16 %v873
    %v1132 = vunpack.c.l.b16 %v874
    %v1133 = vunpack.c.h.b16 %v874
    %v1134 = vunpack.c.l.b16 %v875
    %v1135 = vunpack.c.l.b16 %v876
    %v1136 = vunpack.c.h.b16 %v876
    %v1137 = vunpack.c.l.b16 %v877
    %v1138 = vunpack.c.l.b16 %v878
    %v1139 = vunpack.c.h.b16 %v878
    %v1140 = vunpack.c.l.b16 %v879
    %v1141 = vunpack.c.l.b16 %v880
    %v1142 = vunpack.c.h.b16 %v880
    %v1143 = vunpack.c.l.b16 %v881
    %v1144 = vunpack.c.l.b16 %v882
    %v1145 = vunpack.c.h.b16 %v882
    %v1146 = vunpack.c.l.b16 %v883
    %v1147 = vunpack.c.l.b16 %v884
    %v1148 = vunpack.c.h.b16 %v884
    %v1149 = vunpack.c.l.b16 %v885
    %v1150 = vunpack.c.l.b16 %v886
    %v1151 = vunpack.c.h.b16 %v886
    %v1152 = vunpack.c.l.b16 %v887
    %v1153 = vunpack.c.l.b16 %v888
    %v1154 = vunpack.c.h.b16 %v888
    %v1155 = vunpack.c.l.b16 %v889
    %v1156 = vunpack.c.l.b16 %v890
    %v1157 = vunpack.c.h.b16 %v890
    %v1158 = vunpack.c.l.b16 %v891
    %v1159 = vunpack.c.l.b16 %v892
    %v1160 = vunpack.c.h.b16 %v892
    %v1161 = vunpack.c.l.b16 %v893
    %v1162 = vunpack.c.l.b16 %v894
    %v1163 = vunpack.c.h.b16 %v894
    %v1164 = vunpack.c.l.b16 %v895
    %v1165 = vunpack.c.l.b16 %v896
    %v1166 = vunpack.c.h.b16 %v896
    %v1167 = vunpack.c.l.b16 %v897
    %v1168 = vunpack.c.l.b16 %v898
    %v1169 = vunpack.c.h.b16 %v898
    %v1170 = vunpack.c.l.b16 %v899
    %v1171 = vunpack.c.l.b16 %v900
    %v1172 = vunpack.c.h.b16 %v900
    %v1173 = vunpack.c.l.b16 %v901
    %v1174 = vunpack.c.l.b16 %v902
    %v1175 = vunpack.c.h.b16 %v902
    %v1176 = vunpack.c.l.b16 %v903
    %v1177 = vunpack.c.l.b16 %v904
    %v1178 = vunpack.c.h.b16 %v904
    %v1179 = vunpack.c.l.b16 %v905
    %v1180 = vunpack.c.l.b16 %v906
    %v1181 = vunpack.c.h.b16 %v906
    %v1182 = vunpack.c.l.b16 %v907
    %v1183 = vunpack.c.l.b16 %v908
    %v1184 = vunpack.c.h.b16 %v908
    %v1185 = vunpack.c.l.b16 %v909
    %v1186 = vunpack.c.l.b16 %v910
    %v1187 = vunpack.c.h.b16 %v910
    %v1188 = vunpack.c.l.b16 %v911
    %v1189 = vunpack.c.l.b16 %v912
    %v1190 = vunpack.c.h.b16 %v912
    %v1191 = vunpack.c.l.b16 %v913
    %v1192 = vunpack.c.l.b16 %v914
    %v1193 = vunpack.c.h.b16 %v914
    %v1194 = vunpack.c.l.b16 %v915
    %v1195 = vunpack.c.l.b16 %v916
    %v1196 = vunpack.c.h.b16 %v916
    %v1197 = vunpack.c.l.b16 %v917
    %v1198 = vunpack.c.l.b16 %v918
    %v1199 = vunpack.c.h.b16 %v918
    %v1200 = vunpack.c.l.b16 %v919
    %v1201 = vunpack.c.l.b16 %v920
    %v1202 = vunpack.c.h.b16 %v920
    %v1203 = vunpack.c.l.b16 %v921
    %v1204 = vunpack.c.l.b16 %v922
    %v1205 = vunpack.c.h.b16 %v922
    %v1206 = vunpack.c.l.b16 %v923
    %v1207 = vunpack.c.l.b16 %v924
    %v1208 = vunpack.c.h.b16 %v924
    %v1209 = vunpack.c.l.b16 %v925
    %v1210 = vunpack.c.l.b16 %v926
    %v1211 = vunpack.c.h.b16 %v926
    %v1212 = vunpack.c.l.b16 %v927
    %v1213 = vunpack.c.l.b16 %v928
    %v1214 = vunpack.c.h.b16 %v928
    %v1215 = vunpack.c.l.b16 %v929
    %v1216 = vunpack.c.l.b16 %v930
    %v1217 = vunpack.c.h.b16 %v930
    %v1218 = vunpack.c.l.b16 %v931
    %v1219 = vunpack.c.l.b16 %v932
    %v1220 = vunpack.c.h.b16 %v932
    %v1221 = vunpack.c.l.b16 %v933
    %v1222 = vunpack.c.l.b16 %v934
    %v1223 = vunpack.c.h.b16 %v934
    %v1224 = vunpack.c.l.b16 %v935
    %v1225 = vunpack.c.l.b16 %v936
    %v1226 = vunpack.c.h.b16 %v936
    %v1227 = vunpack.c.l.b16 %v937
    %v1228 = vunpack.c.l.b16 %v938
    %v1229 = vunpack.c.h.b16 %v938
    %v1230 = vunpack.c.l.b16 %v939
    %v1231 = vunpack.c.l.b16 %v940
    %v1232 = vunpack.c.h.b16 %v940
    %v1233 = vunpack.c.l.b16 %v941
    %v1234 = vunpack.c.l.b16 %v942
    %v1235 = vunpack.c.h.b16 %v942
    %v1236 = vunpack.c.l.b16 %v943
    %v1237 = vunpack.c.l.b16 %v944
    %v1238 = vunpack.c.h.b16 %v944
    %v1239 = vunpack.c.l.b16 %v945
    %v1240 = vunpack.c.l.b16 %v946
    %v1241 = vunpack.c.h.b16 %v946
    %v1242 = vunpack.c.l.b16 %v947
    %v1243 = vunpack.c.l.b16 %v948
    %v1244 = vunpack.c.h.b16 %v948
    %v1245 = vunpack.c.l.b16 %v949
    %v1246 = vunpack.c.l.b16 %v950
    %v1247 = vunpack.c.h.b16 %v950
    %v1248 = vunpack.c.l.b16 %v951
    %v1249 = vunpack.c.l.b16 %v952
    %v1250 = vunpack.c.h.b16 %v952
    %v1251 = vunpack.c.l.b16 %v953
    %v1252 = vunpack.c.l.b16 %v954
    %v1253 = vunpack.c.h.b16 %v954
    %v1254 = vunpack.c.l.b16 %v955
    %v1255 = vunpack.c.l.b16 %v956
    %v1256 = vunpack.c.h.b16 %v956
    %v1257 = vunpack.c.l.b16 %v957
    %v1258 = vunpack.c.l.b16 %v958
    %v1259 = vunpack.c.h.b16 %v958
    %v1260 = vunpack.c.l.b16 %v959
    %v1261 = vunpack.c.l.b16 %v960
    %v1262 = vunpack.c.h.b16 %v960
    %v1263 = vunpack.c.l.b16 %v961
    %v1264 = vunpack.c.l.b16 %v962
    %v1265 = vunpack.c.h.b16 %v962
    %v1266 = vunpack.c.l.b16 %v963
    %v1267 = vunpack.c.l.b16 %v964
    %v1268 = vunpack.c.h.b16 %v964
    %v1269 = vunpack.c.l.b16 %v965
    %v1270 = vunpack.c.l.b16 %v966
    %v1271 = vunpack.c.h.b16 %v966
    %v1272 = vunpack.c.l.b16 %v967
    %v1273 = vunpack.c.l.b16 %v968
    %v1274 = vunpack.c.h.b16 %v968
    %v1275 = vunpack.c.l.b16 %v969
    %v1276 = vunpack.c.l.b16 %v970
    %v1277 = vunpack.c.h.b16 %v970
    %v1278 = vunpack.c.l.b16 %v971
    %v1279 = vunpack.c.l.b16 %v972
    %v1280 = vunpack.c.h.b16 %v972
    %v1281 = vunpack.c.l.b16 %v973
    %v1282 = vunpack.c.l.b16 %v974
    %v1283 = vunpack.c.h.b16 %v974
    %v1284 = vunpack.c.l.b16 %v975
    %v1285 = vunpack.c.l.b16 %v976
    %v1286 = vunpack.c.h.b16 %v976
    %v1287 = vunpack.c.l.b16 %v977
    %v1288 = vunpack.c.l.b16 %v978
    %v1289 = vunpack.c.h.b16 %v978
    %v1290 = vunpack.c.l.b16 %v979
    %v1291 = vunpack.c.l.b16 %v980
    %v1292 = vunpack.c.h.b16 %v980
    %v1293 = vunpack.c.l.b16 %v981
    %v1294 = vunpack.c.l.b16 %v982
    %v1295 = vunpack.c.h.b16 %v982
    %v1296 = vunpack.c.l.b16 %v983
    %v1297 = vunpack.c.l.b16 %v984
    %v1298 = vunpack.c.h.b16 %v984
    %v1299 = vunpack.c.l.b16 %v985
    %v1300 = vunpack.c.l.b16 %v986
    %v1301 = vunpack.c.h.b16 %v986
    %v1302 = vunpack.c.l.b16 %v987
    %v1303 = vunpack.c.l.b16 %v988
    %v1304 = vunpack.c.h.b16 %v988
    %v1305 = vunpack.c.l.b16 %v989
    %v1306 = vunpack.c.l.b16 %v990
    %v1307 = vunpack.c.h.b16 %v990
    %v1308 = vunpack.c.l.b16 %v991
    %v1309 = vunpack.c.l.b16 %v992
    %v1310 = vunpack.c.h.b16 %v992
    %v1311 = vunpack.c.l.b16 %v993
    %v1312 = vunpack.c.l.b16 %v994
    %v1313 = vunpack.c.h.b16 %v994
    %v1314 = vunpack.c.l.b16 %v995
    %v1315 = vunpack.c.l.b16 %v996
    %v1316 = vunpack.c.h.b16 %v996
    %v1317 = vunpack.c.l.b16 %v997
    %v1318 = vpack.c.b16 %v1129, %v1126
    %v1319 = vpack.c.b16 %v1130, %v1127
    %v1320 = vpack.c.b16 %v1131, %v1128
    %v1321 = vpack.c.b16 %v1135, %v1132
    %v1322 = vpack.c.b16 %v1136, %v1133
    %v1323 = vpack.c.b16 %v1137, %v1134
    %v1324 = vpack.c.b16 %v1141, %v1138
    %v1325 = vpack.c.b16 %v1142, %v1139
    %v1326 = vpack.c.b16 %v1143, %v1140
    %v1327 = vpack.c.b16 %v1147, %v1144
    %v1328 = vpack.c.b16 %v1148, %v1145
    %v1329 = vpack.c.b16 %v1149, %v1146
    %v1330 = vpack.c.b16 %v1153, %v1150
    %v1331 = vpack.c.b16 %v1154, %v1151
    %v1332 = vpack.c.b16 %v1155, %v1152
    %v1333 = vpack.c.b16 %v1159, %v1156
    %v1334 = vpack.c.b16 %v1160, %v1157
    %v1335 = vpack.c.b16 %v1161, %v1158
    %v1336 = vpack.c.b16 %v1165, %v1162
    %v1337 = vpack.c.b16 %v1166, %v1163
    %v1338 = vpack.c.b16 %v1167, %v1164
    %v1339 = vpack.c.b16 %v1171, %v1168
    %v1340 = vpack.c.b16 %v1172, %v1169
    %v1341 = vpack.c.b16 %v1173, %v1170
    %v1342 = vpack.c.b16 %v1177, %v1174
    %v1343 = vpack.c.b16 %v1178, %v1175
    %v1344 = vpack.c.b16 %v1179, %v1176
    %v1345 = vpack.c.b16 %v1183, %v1180
    %v1346 = vpack.c.b16 %v1184, %v1181
    %v1347 = vpack.c.b16 %v1185, %v1182
    %v1348 = vpack.c.b16 %v1189, %v1186
    %v1349 = vpack.c.b16 %v1190, %v1187
    %v1350 = vpack.c.b16 %v1191, %v1188
    %v1351 = vpack.c.b16 %v1195, %v1192
    %v1352 = vpack.c.b16 %v1196, %v1193
    %v1353 = vpack.c.b16 %v1197, %v1194
    %v1354 = vpack.c.b16 %v1201, %v1198
    %v1355 = vpack.c.b16 %v1202, %v1199
    %v1356 = vpack.c.b16 %v1203, %v1200
    %v1357 = vpack.c.b16 %v1207, %v1204
    %v1358 = vpack.c.b16 %v1208, %v1205
    %v1359 = vpack.c.b16 %v1209, %v1206
    %v1360 = vpack.c.b16 %v1213, %v1210
    %v1361 = vpack.c.b16 %v1214, %v1211
    %v1362 = vpack.c.b16 %v1215, %v1212
    %v1363 = vpack.c.b16 %v1219, %v1216
    %v1364 = vpack.c.b16 %v1220, %v1217
    %v1365 = vpack.c.b16 %v1221, %v1218
    %v1366 = vpack.c.b16 %v1225, %v1222
    %v1367 = vpack.c.b16 %v1226, %v1223
    %v1368 = vpack.c.b16 %v1227, %v1224
    %v1369 = vpack.c.b16 %v1231, %v1228
    %v1370 = vpack.c.b16 %v1232, %v1229
    %v1371 = vpack.c.b16 %v1233, %v1230
    %v1372 = vpack.c.b16 %v1237, %v1234
    %v1373 = vpack.c.b16 %v1238, %v1235
    %v1374 = vpack.c.b16 %v1239, %v1236
    %v1375 = vpack.c.b16 %v1243, %v1240
    %v1376 = vpack.c.b16 %v1244, %v1241
    %v1377 = vpack.c.b16 %v1245, %v1242
    %v1378 = vpack.c.b16 %v1249, %v1246
    %v1379 = vpack.c.b16 %v1250, %v1247
    %v1380 = vpack.c.b16 %v1251, %v1248
    %v1381 = vpack.c.b16 %v1255, %v1252
    %v1382 = vpack.c.b16 %v1256, %v1253
    %v1383 = vpack.c.b16 %v1257, %v1254
    %v1384 = vpack.c.b16 %v1261, %v1258
    %v1385 = vpack.c.b16 %v1262, %v1259
    %v1386 = vpack.c.b16 %v1263, %v1260
    %v1387 = vpack.c.b16 %v1267, %v1264
    %v1388 = vpack.c.b16 %v1268, %v1265
    %v1389 = vpack.c.b16 %v1269, %v1266
    %v1390 = vpack.c.b16 %v1273, %v1270
    %v1391 = vpack.c.b16 %v1274, %v1271
    %v1392 = vpack.c.b16 %v1275, %v1272
    %v1393 = vpack.c.b16 %v1279, %v1276
    %v1394 = vpack.c.b16 %v1280, %v1277
    %v1395 = vpack.c.b16 %v1281, %v1278
    %v1396 = vpack.c.b16 %v1285, %v1282
    %v1397 = vpack.c.b16 %v1286, %v1283
    %v1398 = vpack.c.b16 %v1287, %v1284
    %v1399 = vpack.c.b16 %v1291, %v1288
    %v1400 = vpack.c.b16 %v1292, %v1289
    %v1401 = vpack.c.b16 %v1293, %v1290
    %v1402 = vpack.c.b16 %v1297, %v1294
    %v1403 = vpack.c.b16 %v1298, %v1295
    %v1404 = vpack.c.b16 %v1299, %v1296
    %v1405 = vpack.c.b16 %v1303, %v1300
    %v1406 = vpack.c.b16 %v1304, %v1301
    %v1407 = vpack.c.b16 %v1305, %v1302
    %v1408 = vpack.c.b16 %v1309, %v1306
    %v1409 = vpack.c.b16 %v1310, %v1307
    %v1410 = vpack.c.b16 %v1311, %v1308
    %v1411 = vpack.c.b16 %v1315, %v1312
    %v1412 = vpack.c.b16 %v1316, %v1313
    %v1413 = vpack.c.b16 %v1317, %v1314
    %1510 = vmatpush.bf16.msra.mxu0 %v1339
    %1511 = vmatpush.bf16.msra.mxu0 %v1336
    %1512 = vmatpush.bf16.msra.mxu0 %v1333
    %1513 = vmatpush.bf16.msra.mxu0 %v1330
    %1514 = vmatpush.bf16.msra.mxu0 %v1327
    %1515 = vmatpush.bf16.msra.mxu0 %v1324
    %1516 = vmatpush.bf16.msra.mxu0 %v1321
    %1517 = vmatpush.bf16.msra.mxu0 %v1318
    %1518 = vmatmul.bf16.gmra.mxu0 %v866
    %v1519 = vpop.f32.mrf.mxu0
    %v1520 = vadd.f32 0.0, %v1519
    %v1521 = vpop.f32.mrf.mxu0
    %v1522 = vadd.f32 0.0, %v1521
    %1523 = vdwg.mxu0
    %1524 = vmatpush.bf16.msra.mxu0 %v1363
    %1525 = vmatpush.bf16.msra.mxu0 %v1360
    %1526 = vmatpush.bf16.msra.mxu0 %v1357
    %1527 = vmatpush.bf16.msra.mxu0 %v1354
    %1528 = vmatpush.bf16.msra.mxu0 %v1351
    %1529 = vmatpush.bf16.msra.mxu0 %v1348
    %1530 = vmatpush.bf16.msra.mxu0 %v1345
    %1531 = vmatpush.bf16.msra.mxu0 %v1342
    %1532 = vmatmul.bf16.gmra.mxu0 %v867
    %v1533 = vpop.f32.mrf.mxu0
    %v1534 = vadd.f32 %v1520, %v1533
    %v1535 = vpop.f32.mrf.mxu0
    %v1536 = vadd.f32 %v1522, %v1535
    %1537 = vdwg.mxu0
    %1538 = vmatpush.bf16.msra.mxu0 %v1387
    %1539 = vmatpush.bf16.msra.mxu0 %v1384
    %1540 = vmatpush.bf16.msra.mxu0 %v1381
    %1541 = vmatpush.bf16.msra.mxu0 %v1378
    %1542 = vmatpush.bf16.msra.mxu0 %v1375
    %1543 = vmatpush.bf16.msra.mxu0 %v1372
    %1544 = vmatpush.bf16.msra.mxu0 %v1369
    %1545 = vmatpush.bf16.msra.mxu0 %v1366
    %1546 = vmatmul.bf16.gmra.mxu0 %v868
    %v1547 = vpop.f32.mrf.mxu0
    %v1548 = vadd.f32 %v1534, %v1547
    %v1549 = vpop.f32.mrf.mxu0
    %v1550 = vadd.f32 %v1536, %v1549
    %1551 = vdwg.mxu0
    %1552 = vmatpush.bf16.msra.mxu0 %v1411
    %1553 = vmatpush.bf16.msra.mxu0 %v1408
    %1554 = vmatpush.bf16.msra.mxu0 %v1405
    %1555 = vmatpush.bf16.msra.mxu0 %v1402
    %1556 = vmatpush.bf16.msra.mxu0 %v1399
    %1557 = vmatpush.bf16.msra.mxu0 %v1396
    %1558 = vmatpush.bf16.msra.mxu0 %v1393
    %1559 = vmatpush.bf16.msra.mxu0 %v1390
    %1560 = vmatmul.bf16.gmra.mxu0 %v869
    %v1561 = vpop.f32.mrf.mxu0
    %v1562 = vadd.f32 %v1548, %v1561
    %v1563 = vpop.f32.mrf.mxu0
    %v1564 = vadd.f32 %v1550, %v1563
    %1565 = vdwg.mxu0
    %1566 = vmatpush.bf16.msra.mxu0 %v1340
    %1567 = vmatpush.bf16.msra.mxu0 %v1337
    %1568 = vmatpush.bf16.msra.mxu0 %v1334
    %1569 = vmatpush.bf16.msra.mxu0 %v1331
    %1570 = vmatpush.bf16.msra.mxu0 %v1328
    %1571 = vmatpush.bf16.msra.mxu0 %v1325
    %1572 = vmatpush.bf16.msra.mxu0 %v1322
    %1573 = vmatpush.bf16.msra.mxu0 %v1319
    %1574 = vmatmul.bf16.gmra.mxu0 %v866
    %v1575 = vpop.f32.mrf.mxu0
    %v1576 = vadd.f32 0.0, %v1575
    %v1577 = vpop.f32.mrf.mxu0
    %v1578 = vadd.f32 0.0, %v1577
    %1579 = vdwg.mxu0
    %1580 = vmatpush.bf16.msra.mxu0 %v1364
    %1581 = vmatpush.bf16.msra.mxu0 %v1361
    %1582 = vmatpush.bf16.msra.mxu0 %v1358
    %1583 = vmatpush.bf16.msra.mxu0 %v1355
    %1584 = vmatpush.bf16.msra.mxu0 %v1352
    %1585 = vmatpush.bf16.msra.mxu0 %v1349
    %1586 = vmatpush.bf16.msra.mxu0 %v1346
    %1587 = vmatpush.bf16.msra.mxu0 %v1343
    %1588 = vmatmul.bf16.gmra.mxu0 %v867
    %v1589 = vpop.f32.mrf.mxu0
    %v1590 = vadd.f32 %v1576, %v1589
    %v1591 = vpop.f32.mrf.mxu0
    %v1592 = vadd.f32 %v1578, %v1591
    %1593 = vdwg.mxu0
    %1594 = vmatpush.bf16.msra.mxu0 %v1388
    %1595 = vmatpush.bf16.msra.mxu0 %v1385
    %1596 = vmatpush.bf16.msra.mxu0 %v1382
    %1597 = vmatpush.bf16.msra.mxu0 %v1379
    %1598 = vmatpush.bf16.msra.mxu0 %v1376
    %1599 = vmatpush.bf16.msra.mxu0 %v1373
    %1600 = vmatpush.bf16.msra.mxu0 %v1370
    %1601 = vmatpush.bf16.msra.mxu0 %v1367
    %1602 = vmatmul.bf16.gmra.mxu0 %v868
    %v1603 = vpop.f32.mrf.mxu0
    %v1604 = vadd.f32 %v1590, %v1603
    %v1605 = vpop.f32.mrf.mxu0
    %v1606 = vadd.f32 %v1592, %v1605
    %1607 = vdwg.mxu0
    %1608 = vmatpush.bf16.msra.mxu0 %v1412
    %1609 = vmatpush.bf16.msra.mxu0 %v1409
    %1610 = vmatpush.bf16.msra.mxu0 %v1406
    %1611 = vmatpush.bf16.msra.mxu0 %v1403
    %1612 = vmatpush.bf16.msra.mxu0 %v1400
    %1613 = vmatpush.bf16.msra.mxu0 %v1397
    %1614 = vmatpush.bf16.msra.mxu0 %v1394
    %1615 = vmatpush.bf16.msra.mxu0 %v1391
    %1616 = vmatmul.bf16.gmra.mxu0 %v869
    %v1617 = vpop.f32.mrf.mxu0
    %v1618 = vadd.f32 %v1604, %v1617
    %v1619 = vpop.f32.mrf.mxu0
    %v1620 = vadd.f32 %v1606, %v1619
    %1621 = vdwg.mxu0
    %1622 = vmatpush.bf16.msra.mxu0 %v1341
    %1623 = vmatpush.bf16.msra.mxu0 %v1338
    %1624 = vmatpush.bf16.msra.mxu0 %v1335
    %1625 = vmatpush.bf16.msra.mxu0 %v1332
    %1626 = vmatpush.bf16.msra.mxu0 %v1329
    %1627 = vmatpush.bf16.msra.mxu0 %v1326
    %1628 = vmatpush.bf16.msra.mxu0 %v1323
    %1629 = vmatpush.bf16.msra.mxu0 %v1320
    %1630 = vmatmul.bf16.gmra.mxu0 %v866
    %v1631 = vpop.f32.mrf.mxu0
    %v1632 = vadd.f32 0.0, %v1631
    %v1633 = vpop.f32.mrf.mxu0
    %v1634 = vadd.f32 0.0, %v1633
    %1635 = vdwg.mxu0
    %1636 = vmatpush.bf16.msra.mxu0 %v1365
    %1637 = vmatpush.bf16.msra.mxu0 %v1362
    %1638 = vmatpush.bf16.msra.mxu0 %v1359
    %1639 = vmatpush.bf16.msra.mxu0 %v1356
    %1640 = vmatpush.bf16.msra.mxu0 %v1353
    %1641 = vmatpush.bf16.msra.mxu0 %v1350
    %1642 = vmatpush.bf16.msra.mxu0 %v1347
    %1643 = vmatpush.bf16.msra.mxu0 %v1344
    %1644 = vmatmul.bf16.gmra.mxu0 %v867
    %v1645 = vpop.f32.mrf.mxu0
    %v1646 = vadd.f32 %v1632, %v1645
    %v1647 = vpop.f32.mrf.mxu0
    %v1648 = vadd.f32 %v1634, %v1647
    %1649 = vdwg.mxu0
    %1650 = vmatpush.bf16.msra.mxu0 %v1389
    %1651 = vmatpush.bf16.msra.mxu0 %v1386
    %1652 = vmatpush.bf16.msra.mxu0 %v1383
    %1653 = vmatpush.bf16.msra.mxu0 %v1380
    %1654 = vmatpush.bf16.msra.mxu0 %v1377
    %1655 = vmatpush.bf16.msra.mxu0 %v1374
    %1656 = vmatpush.bf16.msra.mxu0 %v1371
    %1657 = vmatpush.bf16.msra.mxu0 %v1368
    %1658 = vmatmul.bf16.gmra.mxu0 %v868
    %v1659 = vpop.f32.mrf.mxu0
    %v1660 = vadd.f32 %v1646, %v1659
    %v1661 = vpop.f32.mrf.mxu0
    %v1662 = vadd.f32 %v1648, %v1661
    %1663 = vdwg.mxu0
    %1664 = vmatpush.bf16.msra.mxu0 %v1413
    %1665 = vmatpush.bf16.msra.mxu0 %v1410
    %1666 = vmatpush.bf16.msra.mxu0 %v1407
    %1667 = vmatpush.bf16.msra.mxu0 %v1404
    %1668 = vmatpush.bf16.msra.mxu0 %v1401
    %1669 = vmatpush.bf16.msra.mxu0 %v1398
    %1670 = vmatpush.bf16.msra.mxu0 %v1395
    %1671 = vmatpush.bf16.msra.mxu0 %v1392
    %1672 = vmatmul.bf16.gmra.mxu0 %v869
    %v1673 = vpop.f32.mrf.mxu0
    %v1674 = vadd.f32 %v1660, %v1673
    %v1675 = vpop.f32.mrf.mxu0
    %v1676 = vadd.f32 %v1662, %v1675
    %1677 = vdwg.mxu0
    %1678 = vst [vmem:[#allocation2] sm:$0xff] %v1562
    %1679 = vst [vmem:[#allocation2 + $0x8] sm:$0xff] %v1618
    %1680 = vst [vmem:[#allocation2 + $0x10] sm:$0xff] %v1674
    %1681 = vst [vmem:[#allocation2 + $0x18] sm:$0xff] %v1564
    %1682 = vst [vmem:[#allocation2 + $0x20] sm:$0xff] %v1620
    %1683 = vst [vmem:[#allocation2 + $0x28] sm:$0xff] %v1676
    %v1684 = vld [vmem:[#allocation6 + $0x10] sm:$0xff]
    %v1685 = vld [vmem:[#allocation6 + $0x18] sm:$0xff]
    %v1686 = vld [vmem:[#allocation6 + $0x40] sm:$0xff]
    %v1687 = vld [vmem:[#allocation6 + $0x48] sm:$0xff]
    %v1688 = vld [vmem:[#allocation6 + $0x70] sm:$0xff]
    %v1689 = vld [vmem:[#allocation6 + $0x78] sm:$0xff]
    %v1690 = vld [vmem:[#allocation6 + $0xa0] sm:$0xff]
    %v1691 = vld [vmem:[#allocation6 + $0xa8] sm:$0xff]
    %v1692 = vld [vmem:[#allocation6 + $0xd0] sm:$0xff]
    %v1693 = vld [vmem:[#allocation6 + $0xd8] sm:$0xff]
    %v1694 = vld [vmem:[#allocation6 + $0x100] sm:$0xff]
    %v1695 = vld [vmem:[#allocation6 + $0x108] sm:$0xff]
    %v1696 = vld [vmem:[#allocation6 + $0x130] sm:$0xff]
    %v1697 = vld [vmem:[#allocation6 + $0x138] sm:$0xff]
    %v1698 = vld [vmem:[#allocation6 + $0x160] sm:$0xff]
    %v1699 = vld [vmem:[#allocation6 + $0x168] sm:$0xff]
    %v1700 = vld [vmem:[#allocation6 + $0x190] sm:$0xff]
    %v1701 = vld [vmem:[#allocation6 + $0x198] sm:$0xff]
    %v1702 = vld [vmem:[#allocation6 + $0x1c0] sm:$0xff]
    %v1703 = vld [vmem:[#allocation6 + $0x1c8] sm:$0xff]
    %v1704 = vld [vmem:[#allocation6 + $0x1f0] sm:$0xff]
    %v1705 = vld [vmem:[#allocation6 + $0x1f8] sm:$0xff]
    %v1706 = vld [vmem:[#allocation6 + $0x220] sm:$0xff]
    %v1707 = vld [vmem:[#allocation6 + $0x228] sm:$0xff]
    %v1708 = vld [vmem:[#allocation6 + $0x250] sm:$0xff]
    %v1709 = vld [vmem:[#allocation6 + $0x258] sm:$0xff]
    %v1710 = vld [vmem:[#allocation6 + $0x280] sm:$0xff]
    %v1711 = vld [vmem:[#allocation6 + $0x288] sm:$0xff]
    %v1712 = vld [vmem:[#allocation6 + $0x2b0] sm:$0xff]
    %v1713 = vld [vmem:[#allocation6 + $0x2b8] sm:$0xff]
    %v1714 = vld [vmem:[#allocation6 + $0x2e0] sm:$0xff]
    %v1715 = vld [vmem:[#allocation6 + $0x2e8] sm:$0xff]
    %v1716 = vld [vmem:[#allocation6 + $0x310] sm:$0xff]
    %v1717 = vld [vmem:[#allocation6 + $0x318] sm:$0xff]
    %v1718 = vld [vmem:[#allocation6 + $0x340] sm:$0xff]
    %v1719 = vld [vmem:[#allocation6 + $0x348] sm:$0xff]
    %v1720 = vld [vmem:[#allocation6 + $0x370] sm:$0xff]
    %v1721 = vld [vmem:[#allocation6 + $0x378] sm:$0xff]
    %v1722 = vld [vmem:[#allocation6 + $0x3a0] sm:$0xff]
    %v1723 = vld [vmem:[#allocation6 + $0x3a8] sm:$0xff]
    %v1724 = vld [vmem:[#allocation6 + $0x3d0] sm:$0xff]
    %v1725 = vld [vmem:[#allocation6 + $0x3d8] sm:$0xff]
    %v1726 = vld [vmem:[#allocation6 + $0x400] sm:$0xff]
    %v1727 = vld [vmem:[#allocation6 + $0x408] sm:$0xff]
    %v1728 = vld [vmem:[#allocation6 + $0x430] sm:$0xff]
    %v1729 = vld [vmem:[#allocation6 + $0x438] sm:$0xff]
    %v1730 = vld [vmem:[#allocation6 + $0x460] sm:$0xff]
    %v1731 = vld [vmem:[#allocation6 + $0x468] sm:$0xff]
    %v1732 = vld [vmem:[#allocation6 + $0x490] sm:$0xff]
    %v1733 = vld [vmem:[#allocation6 + $0x498] sm:$0xff]
    %v1734 = vld [vmem:[#allocation6 + $0x4c0] sm:$0xff]
    %v1735 = vld [vmem:[#allocation6 + $0x4c8] sm:$0xff]
    %v1736 = vld [vmem:[#allocation6 + $0x4f0] sm:$0xff]
    %v1737 = vld [vmem:[#allocation6 + $0x4f8] sm:$0xff]
    %v1738 = vld [vmem:[#allocation6 + $0x520] sm:$0xff]
    %v1739 = vld [vmem:[#allocation6 + $0x528] sm:$0xff]
    %v1740 = vld [vmem:[#allocation6 + $0x550] sm:$0xff]
    %v1741 = vld [vmem:[#allocation6 + $0x558] sm:$0xff]
    %v1742 = vld [vmem:[#allocation6 + $0x580] sm:$0xff]
    %v1743 = vld [vmem:[#allocation6 + $0x588] sm:$0xff]
    %v1744 = vld [vmem:[#allocation6 + $0x5b0] sm:$0xff]
    %v1745 = vld [vmem:[#allocation6 + $0x5b8] sm:$0xff]
    %v1746 = vld [vmem:[#allocation6 + $0x5e0] sm:$0xff]
    %v1747 = vld [vmem:[#allocation6 + $0x5e8] sm:$0xff]
    %v1748 = vld [vmem:[#allocation6 + $0x610] sm:$0xff]
    %v1749 = vld [vmem:[#allocation6 + $0x618] sm:$0xff]
    %v1750 = vld [vmem:[#allocation6 + $0x640] sm:$0xff]
    %v1751 = vld [vmem:[#allocation6 + $0x648] sm:$0xff]
    %v1752 = vld [vmem:[#allocation6 + $0x670] sm:$0xff]
    %v1753 = vld [vmem:[#allocation6 + $0x678] sm:$0xff]
    %v1754 = vld [vmem:[#allocation6 + $0x6a0] sm:$0xff]
    %v1755 = vld [vmem:[#allocation6 + $0x6a8] sm:$0xff]
    %v1756 = vld [vmem:[#allocation6 + $0x6d0] sm:$0xff]
    %v1757 = vld [vmem:[#allocation6 + $0x6d8] sm:$0xff]
    %v1758 = vld [vmem:[#allocation6 + $0x700] sm:$0xff]
    %v1759 = vld [vmem:[#allocation6 + $0x708] sm:$0xff]
    %v1760 = vld [vmem:[#allocation6 + $0x730] sm:$0xff]
    %v1761 = vld [vmem:[#allocation6 + $0x738] sm:$0xff]
    %v1762 = vld [vmem:[#allocation6 + $0x760] sm:$0xff]
    %v1763 = vld [vmem:[#allocation6 + $0x768] sm:$0xff]
    %v1764 = vld [vmem:[#allocation6 + $0x790] sm:$0xff]
    %v1765 = vld [vmem:[#allocation6 + $0x798] sm:$0xff]
    %v1766 = vld [vmem:[#allocation6 + $0x7c0] sm:$0xff]
    %v1767 = vld [vmem:[#allocation6 + $0x7c8] sm:$0xff]
    %v1768 = vld [vmem:[#allocation6 + $0x7f0] sm:$0xff]
    %v1769 = vld [vmem:[#allocation6 + $0x7f8] sm:$0xff]
    %v1770 = vld [vmem:[#allocation6 + $0x820] sm:$0xff]
    %v1771 = vld [vmem:[#allocation6 + $0x828] sm:$0xff]
    %v1772 = vld [vmem:[#allocation6 + $0x850] sm:$0xff]
    %v1773 = vld [vmem:[#allocation6 + $0x858] sm:$0xff]
    %v1774 = vld [vmem:[#allocation6 + $0x880] sm:$0xff]
    %v1775 = vld [vmem:[#allocation6 + $0x888] sm:$0xff]
    %v1776 = vld [vmem:[#allocation6 + $0x8b0] sm:$0xff]
    %v1777 = vld [vmem:[#allocation6 + $0x8b8] sm:$0xff]
    %v1778 = vld [vmem:[#allocation6 + $0x8e0] sm:$0xff]
    %v1779 = vld [vmem:[#allocation6 + $0x8e8] sm:$0xff]
    %v1780 = vld [vmem:[#allocation8 + $0x4] sm:$0xf]
    %v1782 = vperm.slane %v1780, 0
    %v1783 = vperm.slane %v1780, 1
    %v1784 = vperm.slane %v1780, 2
    %v1785 = vperm.slane %v1780, 3
    %v1886 = vunpack.c.l.b16 %v1684
    %v1887 = vunpack.c.h.b16 %v1684
    %v1888 = vunpack.c.l.b16 %v1685
    %v1889 = vunpack.c.h.b16 %v1685
    %v1890 = vunpack.c.l.b16 %v1686
    %v1891 = vunpack.c.h.b16 %v1686
    %v1892 = vunpack.c.l.b16 %v1687
    %v1893 = vunpack.c.h.b16 %v1687
    %v1894 = vunpack.c.l.b16 %v1688
    %v1895 = vunpack.c.h.b16 %v1688
    %v1896 = vunpack.c.l.b16 %v1689
    %v1897 = vunpack.c.h.b16 %v1689
    %v1898 = vunpack.c.l.b16 %v1690
    %v1899 = vunpack.c.h.b16 %v1690
    %v1900 = vunpack.c.l.b16 %v1691
    %v1901 = vunpack.c.h.b16 %v1691
    %v1902 = vunpack.c.l.b16 %v1692
    %v1903 = vunpack.c.h.b16 %v1692
    %v1904 = vunpack.c.l.b16 %v1693
    %v1905 = vunpack.c.h.b16 %v1693
    %v1906 = vunpack.c.l.b16 %v1694
    %v1907 = vunpack.c.h.b16 %v1694
    %v1908 = vunpack.c.l.b16 %v1695
    %v1909 = vunpack.c.h.b16 %v1695
    %v1910 = vunpack.c.l.b16 %v1696
    %v1911 = vunpack.c.h.b16 %v1696
    %v1912 = vunpack.c.l.b16 %v1697
    %v1913 = vunpack.c.h.b16 %v1697
    %v1914 = vunpack.c.l.b16 %v1698
    %v1915 = vunpack.c.h.b16 %v1698
    %v1916 = vunpack.c.l.b16 %v1699
    %v1917 = vunpack.c.h.b16 %v1699
    %v1918 = vunpack.c.l.b16 %v1700
    %v1919 = vunpack.c.h.b16 %v1700
    %v1920 = vunpack.c.l.b16 %v1701
    %v1921 = vunpack.c.h.b16 %v1701
    %v1922 = vunpack.c.l.b16 %v1702
    %v1923 = vunpack.c.h.b16 %v1702
    %v1924 = vunpack.c.l.b16 %v1703
    %v1925 = vunpack.c.h.b16 %v1703
    %v1926 = vunpack.c.l.b16 %v1704
    %v1927 = vunpack.c.h.b16 %v1704
    %v1928 = vunpack.c.l.b16 %v1705
    %v1929 = vunpack.c.h.b16 %v1705
    %v1930 = vunpack.c.l.b16 %v1706
    %v1931 = vunpack.c.h.b16 %v1706
    %v1932 = vunpack.c.l.b16 %v1707
    %v1933 = vunpack.c.h.b16 %v1707
    %v1934 = vunpack.c.l.b16 %v1708
    %v1935 = vunpack.c.h.b16 %v1708
    %v1936 = vunpack.c.l.b16 %v1709
    %v1937 = vunpack.c.h.b16 %v1709
    %v1938 = vunpack.c.l.b16 %v1710
    %v1939 = vunpack.c.h.b16 %v1710
    %v1940 = vunpack.c.l.b16 %v1711
    %v1941 = vunpack.c.h.b16 %v1711
    %v1942 = vunpack.c.l.b16 %v1712
    %v1943 = vunpack.c.h.b16 %v1712
    %v1944 = vunpack.c.l.b16 %v1713
    %v1945 = vunpack.c.h.b16 %v1713
    %v1946 = vunpack.c.l.b16 %v1714
    %v1947 = vunpack.c.h.b16 %v1714
    %v1948 = vunpack.c.l.b16 %v1715
    %v1949 = vunpack.c.h.b16 %v1715
    %v1950 = vunpack.c.l.b16 %v1716
    %v1951 = vunpack.c.h.b16 %v1716
    %v1952 = vunpack.c.l.b16 %v1717
    %v1953 = vunpack.c.h.b16 %v1717
    %v1954 = vunpack.c.l.b16 %v1718
    %v1955 = vunpack.c.h.b16 %v1718
    %v1956 = vunpack.c.l.b16 %v1719
    %v1957 = vunpack.c.h.b16 %v1719
    %v1958 = vunpack.c.l.b16 %v1720
    %v1959 = vunpack.c.h.b16 %v1720
    %v1960 = vunpack.c.l.b16 %v1721
    %v1961 = vunpack.c.h.b16 %v1721
    %v1962 = vunpack.c.l.b16 %v1722
    %v1963 = vunpack.c.h.b16 %v1722
    %v1964 = vunpack.c.l.b16 %v1723
    %v1965 = vunpack.c.h.b16 %v1723
    %v1966 = vunpack.c.l.b16 %v1724
    %v1967 = vunpack.c.h.b16 %v1724
    %v1968 = vunpack.c.l.b16 %v1725
    %v1969 = vunpack.c.h.b16 %v1725
    %v1970 = vunpack.c.l.b16 %v1726
    %v1971 = vunpack.c.h.b16 %v1726
    %v1972 = vunpack.c.l.b16 %v1727
    %v1973 = vunpack.c.h.b16 %v1727
    %v1974 = vunpack.c.l.b16 %v1728
    %v1975 = vunpack.c.h.b16 %v1728
    %v1976 = vunpack.c.l.b16 %v1729
    %v1977 = vunpack.c.h.b16 %v1729
    %v1978 = vunpack.c.l.b16 %v1730
    %v1979 = vunpack.c.h.b16 %v1730
    %v1980 = vunpack.c.l.b16 %v1731
    %v1981 = vunpack.c.h.b16 %v1731
    %v1982 = vunpack.c.l.b16 %v1732
    %v1983 = vunpack.c.h.b16 %v1732
    %v1984 = vunpack.c.l.b16 %v1733
    %v1985 = vunpack.c.h.b16 %v1733
    %v1986 = vunpack.c.l.b16 %v1734
    %v1987 = vunpack.c.h.b16 %v1734
    %v1988 = vunpack.c.l.b16 %v1735
    %v1989 = vunpack.c.h.b16 %v1735
    %v1990 = vunpack.c.l.b16 %v1736
    %v1991 = vunpack.c.h.b16 %v1736
    %v1992 = vunpack.c.l.b16 %v1737
    %v1993 = vunpack.c.h.b16 %v1737
    %v1994 = vunpack.c.l.b16 %v1738
    %v1995 = vunpack.c.h.b16 %v1738
    %v1996 = vunpack.c.l.b16 %v1739
    %v1997 = vunpack.c.h.b16 %v1739
    %v1998 = vunpack.c.l.b16 %v1740
    %v1999 = vunpack.c.h.b16 %v1740
    %v2000 = vunpack.c.l.b16 %v1741
    %v2001 = vunpack.c.h.b16 %v1741
    %v2002 = vunpack.c.l.b16 %v1742
    %v2003 = vunpack.c.h.b16 %v1742
    %v2004 = vunpack.c.l.b16 %v1743
    %v2005 = vunpack.c.h.b16 %v1743
    %v2006 = vunpack.c.l.b16 %v1744
    %v2007 = vunpack.c.h.b16 %v1744
    %v2008 = vunpack.c.l.b16 %v1745
    %v2009 = vunpack.c.h.b16 %v1745
    %v2010 = vunpack.c.l.b16 %v1746
    %v2011 = vunpack.c.h.b16 %v1746
    %v2012 = vunpack.c.l.b16 %v1747
    %v2013 = vunpack.c.h.b16 %v1747
    %v2014 = vunpack.c.l.b16 %v1748
    %v2015 = vunpack.c.h.b16 %v1748
    %v2016 = vunpack.c.l.b16 %v1749
    %v2017 = vunpack.c.h.b16 %v1749
    %v2018 = vunpack.c.l.b16 %v1750
    %v2019 = vunpack.c.h.b16 %v1750
    %v2020 = vunpack.c.l.b16 %v1751
    %v2021 = vunpack.c.h.b16 %v1751
    %v2022 = vunpack.c.l.b16 %v1752
    %v2023 = vunpack.c.h.b16 %v1752
    %v2024 = vunpack.c.l.b16 %v1753
    %v2025 = vunpack.c.h.b16 %v1753
    %v2026 = vunpack.c.l.b16 %v1754
    %v2027 = vunpack.c.h.b16 %v1754
    %v2028 = vunpack.c.l.b16 %v1755
    %v2029 = vunpack.c.h.b16 %v1755
    %v2030 = vunpack.c.l.b16 %v1756
    %v2031 = vunpack.c.h.b16 %v1756
    %v2032 = vunpack.c.l.b16 %v1757
    %v2033 = vunpack.c.h.b16 %v1757
    %v2034 = vunpack.c.l.b16 %v1758
    %v2035 = vunpack.c.h.b16 %v1758
    %v2036 = vunpack.c.l.b16 %v1759
    %v2037 = vunpack.c.h.b16 %v1759
    %v2038 = vunpack.c.l.b16 %v1760
    %v2039 = vunpack.c.h.b16 %v1760
    %v2040 = vunpack.c.l.b16 %v1761
    %v2041 = vunpack.c.h.b16 %v1761
    %v2042 = vunpack.c.l.b16 %v1762
    %v2043 = vunpack.c.h.b16 %v1762
    %v2044 = vunpack.c.l.b16 %v1763
    %v2045 = vunpack.c.h.b16 %v1763
    %v2046 = vunpack.c.l.b16 %v1764
    %v2047 = vunpack.c.h.b16 %v1764
    %v2048 = vunpack.c.l.b16 %v1765
    %v2049 = vunpack.c.h.b16 %v1765
    %v2050 = vunpack.c.l.b16 %v1766
    %v2051 = vunpack.c.h.b16 %v1766
    %v2052 = vunpack.c.l.b16 %v1767
    %v2053 = vunpack.c.h.b16 %v1767
    %v2054 = vunpack.c.l.b16 %v1768
    %v2055 = vunpack.c.h.b16 %v1768
    %v2056 = vunpack.c.l.b16 %v1769
    %v2057 = vunpack.c.h.b16 %v1769
    %v2058 = vunpack.c.l.b16 %v1770
    %v2059 = vunpack.c.h.b16 %v1770
    %v2060 = vunpack.c.l.b16 %v1771
    %v2061 = vunpack.c.h.b16 %v1771
    %v2062 = vunpack.c.l.b16 %v1772
    %v2063 = vunpack.c.h.b16 %v1772
    %v2064 = vunpack.c.l.b16 %v1773
    %v2065 = vunpack.c.h.b16 %v1773
    %v2066 = vunpack.c.l.b16 %v1774
    %v2067 = vunpack.c.h.b16 %v1774
    %v2068 = vunpack.c.l.b16 %v1775
    %v2069 = vunpack.c.h.b16 %v1775
    %v2070 = vunpack.c.l.b16 %v1776
    %v2071 = vunpack.c.h.b16 %v1776
    %v2072 = vunpack.c.l.b16 %v1777
    %v2073 = vunpack.c.h.b16 %v1777
    %v2074 = vunpack.c.l.b16 %v1778
    %v2075 = vunpack.c.h.b16 %v1778
    %v2076 = vunpack.c.l.b16 %v1779
    %v2077 = vunpack.c.h.b16 %v1779
    %v2078 = vpack.c.b16 %v1890, %v1886
    %v2079 = vpack.c.b16 %v1891, %v1887
    %v2080 = vpack.c.b16 %v1892, %v1888
    %v2081 = vpack.c.b16 %v1893, %v1889
    %v2082 = vpack.c.b16 %v1898, %v1894
    %v2083 = vpack.c.b16 %v1899, %v1895
    %v2084 = vpack.c.b16 %v1900, %v1896
    %v2085 = vpack.c.b16 %v1901, %v1897
    %v2086 = vpack.c.b16 %v1906, %v1902
    %v2087 = vpack.c.b16 %v1907, %v1903
    %v2088 = vpack.c.b16 %v1908, %v1904
    %v2089 = vpack.c.b16 %v1909, %v1905
    %v2090 = vpack.c.b16 %v1914, %v1910
    %v2091 = vpack.c.b16 %v1915, %v1911
    %v2092 = vpack.c.b16 %v1916, %v1912
    %v2093 = vpack.c.b16 %v1917, %v1913
    %v2094 = vpack.c.b16 %v1922, %v1918
    %v2095 = vpack.c.b16 %v1923, %v1919
    %v2096 = vpack.c.b16 %v1924, %v1920
    %v2097 = vpack.c.b16 %v1925, %v1921
    %v2098 = vpack.c.b16 %v1930, %v1926
    %v2099 = vpack.c.b16 %v1931, %v1927
    %v2100 = vpack.c.b16 %v1932, %v1928
    %v2101 = vpack.c.b16 %v1933, %v1929
    %v2102 = vpack.c.b16 %v1938, %v1934
    %v2103 = vpack.c.b16 %v1939, %v1935
    %v2104 = vpack.c.b16 %v1940, %v1936
    %v2105 = vpack.c.b16 %v1941, %v1937
    %v2106 = vpack.c.b16 %v1946, %v1942
    %v2107 = vpack.c.b16 %v1947, %v1943
    %v2108 = vpack.c.b16 %v1948, %v1944
    %v2109 = vpack.c.b16 %v1949, %v1945
    %v2110 = vpack.c.b16 %v1954, %v1950
    %v2111 = vpack.c.b16 %v1955, %v1951
    %v2112 = vpack.c.b16 %v1956, %v1952
    %v2113 = vpack.c.b16 %v1957, %v1953
    %v2114 = vpack.c.b16 %v1962, %v1958
    %v2115 = vpack.c.b16 %v1963, %v1959
    %v2116 = vpack.c.b16 %v1964, %v1960
    %v2117 = vpack.c.b16 %v1965, %v1961
    %v2118 = vpack.c.b16 %v1970, %v1966
    %v2119 = vpack.c.b16 %v1971, %v1967
    %v2120 = vpack.c.b16 %v1972, %v1968
    %v2121 = vpack.c.b16 %v1973, %v1969
    %v2122 = vpack.c.b16 %v1978, %v1974
    %v2123 = vpack.c.b16 %v1979, %v1975
    %v2124 = vpack.c.b16 %v1980, %v1976
    %v2125 = vpack.c.b16 %v1981, %v1977
    %v2126 = vpack.c.b16 %v1986, %v1982
    %v2127 = vpack.c.b16 %v1987, %v1983
    %v2128 = vpack.c.b16 %v1988, %v1984
    %v2129 = vpack.c.b16 %v1989, %v1985
    %v2130 = vpack.c.b16 %v1994, %v1990
    %v2131 = vpack.c.b16 %v1995, %v1991
    %v2132 = vpack.c.b16 %v1996, %v1992
    %v2133 = vpack.c.b16 %v1997, %v1993
    %v2134 = vpack.c.b16 %v2002, %v1998
    %v2135 = vpack.c.b16 %v2003, %v1999
    %v2136 = vpack.c.b16 %v2004, %v2000
    %v2137 = vpack.c.b16 %v2005, %v2001
    %v2138 = vpack.c.b16 %v2010, %v2006
    %v2139 = vpack.c.b16 %v2011, %v2007
    %v2140 = vpack.c.b16 %v2012, %v2008
    %v2141 = vpack.c.b16 %v2013, %v2009
    %v2142 = vpack.c.b16 %v2018, %v2014
    %v2143 = vpack.c.b16 %v2019, %v2015
    %v2144 = vpack.c.b16 %v2020, %v2016
    %v2145 = vpack.c.b16 %v2021, %v2017
    %v2146 = vpack.c.b16 %v2026, %v2022
    %v2147 = vpack.c.b16 %v2027, %v2023
    %v2148 = vpack.c.b16 %v2028, %v2024
    %v2149 = vpack.c.b16 %v2029, %v2025
    %v2150 = vpack.c.b16 %v2034, %v2030
    %v2151 = vpack.c.b16 %v2035, %v2031
    %v2152 = vpack.c.b16 %v2036, %v2032
    %v2153 = vpack.c.b16 %v2037, %v2033
    %v2154 = vpack.c.b16 %v2042, %v2038
    %v2155 = vpack.c.b16 %v2043, %v2039
    %v2156 = vpack.c.b16 %v2044, %v2040
    %v2157 = vpack.c.b16 %v2045, %v2041
    %v2158 = vpack.c.b16 %v2050, %v2046
    %v2159 = vpack.c.b16 %v2051, %v2047
    %v2160 = vpack.c.b16 %v2052, %v2048
    %v2161 = vpack.c.b16 %v2053, %v2049
    %v2162 = vpack.c.b16 %v2058, %v2054
    %v2163 = vpack.c.b16 %v2059, %v2055
    %v2164 = vpack.c.b16 %v2060, %v2056
    %v2165 = vpack.c.b16 %v2061, %v2057
    %v2166 = vpack.c.b16 %v2066, %v2062
    %v2167 = vpack.c.b16 %v2067, %v2063
    %v2168 = vpack.c.b16 %v2068, %v2064
    %v2169 = vpack.c.b16 %v2069, %v2065
    %v2170 = vpack.c.b16 %v2074, %v2070
    %v2171 = vpack.c.b16 %v2075, %v2071
    %v2172 = vpack.c.b16 %v2076, %v2072
    %v2173 = vpack.c.b16 %v2077, %v2073
    %2270 = vmatpush.bf16.msra.mxu0 %v2106
    %2271 = vmatpush.bf16.msra.mxu0 %v2102
    %2272 = vmatpush.bf16.msra.mxu0 %v2098
    %2273 = vmatpush.bf16.msra.mxu0 %v2094
    %2274 = vmatpush.bf16.msra.mxu0 %v2090
    %2275 = vmatpush.bf16.msra.mxu0 %v2086
    %2276 = vmatpush.bf16.msra.mxu0 %v2082
    %2277 = vmatpush.bf16.msra.mxu0 %v2078
    %2278 = vmatmul.bf16.gmra.mxu0 %v101
    %v2279 = vpop.f32.mrf.mxu0
    %v2280 = vadd.f32 %v1782, %v2279
    %v2281 = vpop.f32.mrf.mxu0
    %v2282 = vadd.f32 %v1782, %v2281
    %2283 = vdwg.mxu0
    %2284 = vmatpush.bf16.msra.mxu0 %v2138
    %2285 = vmatpush.bf16.msra.mxu0 %v2134
    %2286 = vmatpush.bf16.msra.mxu0 %v2130
    %2287 = vmatpush.bf16.msra.mxu0 %v2126
    %2288 = vmatpush.bf16.msra.mxu0 %v2122
    %2289 = vmatpush.bf16.msra.mxu0 %v2118
    %2290 = vmatpush.bf16.msra.mxu0 %v2114
    %2291 = vmatpush.bf16.msra.mxu0 %v2110
    %2292 = vmatmul.bf16.gmra.mxu0 %v102
    %v2293 = vpop.f32.mrf.mxu0
    %v2294 = vadd.f32 %v2280, %v2293
    %v2295 = vpop.f32.mrf.mxu0
    %v2296 = vadd.f32 %v2282, %v2295
    %2297 = vdwg.mxu0
    %2298 = vmatpush.bf16.msra.mxu0 %v2170
    %2299 = vmatpush.bf16.msra.mxu0 %v2166
    %2300 = vmatpush.bf16.msra.mxu0 %v2162
    %2301 = vmatpush.bf16.msra.mxu0 %v2158
    %2302 = vmatpush.bf16.msra.mxu0 %v2154
    %2303 = vmatpush.bf16.msra.mxu0 %v2150
    %2304 = vmatpush.bf16.msra.mxu0 %v2146
    %2305 = vmatpush.bf16.msra.mxu0 %v2142
    %2306 = vmatmul.bf16.gmra.mxu0 %v103
    %v2307 = vpop.f32.mrf.mxu0
    %v2308 = vadd.f32 %v2294, %v2307
    %v2309 = vpop.f32.mrf.mxu0
    %v2310 = vadd.f32 %v2296, %v2309
    %2311 = vdwg.mxu0
    %2312 = vmatpush.bf16.msra.mxu0 %v2107
    %2313 = vmatpush.bf16.msra.mxu0 %v2103
    %2314 = vmatpush.bf16.msra.mxu0 %v2099
    %2315 = vmatpush.bf16.msra.mxu0 %v2095
    %2316 = vmatpush.bf16.msra.mxu0 %v2091
    %2317 = vmatpush.bf16.msra.mxu0 %v2087
    %2318 = vmatpush.bf16.msra.mxu0 %v2083
    %2319 = vmatpush.bf16.msra.mxu0 %v2079
    %2320 = vmatmul.bf16.gmra.mxu0 %v101
    %v2321 = vpop.f32.mrf.mxu0
    %v2322 = vadd.f32 %v1783, %v2321
    %v2323 = vpop.f32.mrf.mxu0
    %v2324 = vadd.f32 %v1783, %v2323
    %2325 = vdwg.mxu0
    %2326 = vmatpush.bf16.msra.mxu0 %v2139
    %2327 = vmatpush.bf16.msra.mxu0 %v2135
    %2328 = vmatpush.bf16.msra.mxu0 %v2131
    %2329 = vmatpush.bf16.msra.mxu0 %v2127
    %2330 = vmatpush.bf16.msra.mxu0 %v2123
    %2331 = vmatpush.bf16.msra.mxu0 %v2119
    %2332 = vmatpush.bf16.msra.mxu0 %v2115
    %2333 = vmatpush.bf16.msra.mxu0 %v2111
    %2334 = vmatmul.bf16.gmra.mxu0 %v102
    %v2335 = vpop.f32.mrf.mxu0
    %v2336 = vadd.f32 %v2322, %v2335
    %v2337 = vpop.f32.mrf.mxu0
    %v2338 = vadd.f32 %v2324, %v2337
    %2339 = vdwg.mxu0
    %2340 = vmatpush.bf16.msra.mxu0 %v2171
    %2341 = vmatpush.bf16.msra.mxu0 %v2167
    %2342 = vmatpush.bf16.msra.mxu0 %v2163
    %2343 = vmatpush.bf16.msra.mxu0 %v2159
    %2344 = vmatpush.bf16.msra.mxu0 %v2155
    %2345 = vmatpush.bf16.msra.mxu0 %v2151
    %2346 = vmatpush.bf16.msra.mxu0 %v2147
    %2347 = vmatpush.bf16.msra.mxu0 %v2143
    %2348 = vmatmul.bf16.gmra.mxu0 %v103
    %v2349 = vpop.f32.mrf.mxu0
    %v2350 = vadd.f32 %v2336, %v2349
    %v2351 = vpop.f32.mrf.mxu0
    %v2352 = vadd.f32 %v2338, %v2351
    %2353 = vdwg.mxu0
    %2354 = vmatpush.bf16.msra.mxu0 %v2108
    %2355 = vmatpush.bf16.msra.mxu0 %v2104
    %2356 = vmatpush.bf16.msra.mxu0 %v2100
    %2357 = vmatpush.bf16.msra.mxu0 %v2096
    %2358 = vmatpush.bf16.msra.mxu0 %v2092
    %2359 = vmatpush.bf16.msra.mxu0 %v2088
    %2360 = vmatpush.bf16.msra.mxu0 %v2084
    %2361 = vmatpush.bf16.msra.mxu0 %v2080
    %2362 = vmatmul.bf16.gmra.mxu0 %v101
    %v2363 = vpop.f32.mrf.mxu0
    %v2364 = vadd.f32 %v1784, %v2363
    %v2365 = vpop.f32.mrf.mxu0
    %v2366 = vadd.f32 %v1784, %v2365
    %2367 = vdwg.mxu0
    %2368 = vmatpush.bf16.msra.mxu0 %v2140
    %2369 = vmatpush.bf16.msra.mxu0 %v2136
    %2370 = vmatpush.bf16.msra.mxu0 %v2132
    %2371 = vmatpush.bf16.msra.mxu0 %v2128
    %2372 = vmatpush.bf16.msra.mxu0 %v2124
    %2373 = vmatpush.bf16.msra.mxu0 %v2120
    %2374 = vmatpush.bf16.msra.mxu0 %v2116
    %2375 = vmatpush.bf16.msra.mxu0 %v2112
    %2376 = vmatmul.bf16.gmra.mxu0 %v102
    %v2377 = vpop.f32.mrf.mxu0
    %v2378 = vadd.f32 %v2364, %v2377
    %v2379 = vpop.f32.mrf.mxu0
    %v2380 = vadd.f32 %v2366, %v2379
    %2381 = vdwg.mxu0
    %2382 = vmatpush.bf16.msra.mxu0 %v2172
    %2383 = vmatpush.bf16.msra.mxu0 %v2168
    %2384 = vmatpush.bf16.msra.mxu0 %v2164
    %2385 = vmatpush.bf16.msra.mxu0 %v2160
    %2386 = vmatpush.bf16.msra.mxu0 %v2156
    %2387 = vmatpush.bf16.msra.mxu0 %v2152
    %2388 = vmatpush.bf16.msra.mxu0 %v2148
    %2389 = vmatpush.bf16.msra.mxu0 %v2144
    %2390 = vmatmul.bf16.gmra.mxu0 %v103
    %v2391 = vpop.f32.mrf.mxu0
    %v2392 = vadd.f32 %v2378, %v2391
    %v2393 = vpop.f32.mrf.mxu0
    %v2394 = vadd.f32 %v2380, %v2393
    %2395 = vdwg.mxu0
    %2396 = vmatpush.bf16.msra.mxu0 %v2109
    %2397 = vmatpush.bf16.msra.mxu0 %v2105
    %2398 = vmatpush.bf16.msra.mxu0 %v2101
    %2399 = vmatpush.bf16.msra.mxu0 %v2097
    %2400 = vmatpush.bf16.msra.mxu0 %v2093
    %2401 = vmatpush.bf16.msra.mxu0 %v2089
    %2402 = vmatpush.bf16.msra.mxu0 %v2085
    %2403 = vmatpush.bf16.msra.mxu0 %v2081
    %2404 = vmatmul.bf16.gmra.mxu0 %v101
    %v2405 = vpop.f32.mrf.mxu0
    %v2406 = vadd.f32 %v1785, %v2405
    %v2407 = vpop.f32.mrf.mxu0
    %v2408 = vadd.f32 %v1785, %v2407
    %2409 = vdwg.mxu0
    %2410 = vmatpush.bf16.msra.mxu0 %v2141
    %2411 = vmatpush.bf16.msra.mxu0 %v2137
    %2412 = vmatpush.bf16.msra.mxu0 %v2133
    %2413 = vmatpush.bf16.msra.mxu0 %v2129
    %2414 = vmatpush.bf16.msra.mxu0 %v2125
    %2415 = vmatpush.bf16.msra.mxu0 %v2121
    %2416 = vmatpush.bf16.msra.mxu0 %v2117
    %2417 = vmatpush.bf16.msra.mxu0 %v2113
    %2418 = vmatmul.bf16.gmra.mxu0 %v102
    %v2419 = vpop.f32.mrf.mxu0
    %v2420 = vadd.f32 %v2406, %v2419
    %v2421 = vpop.f32.mrf.mxu0
    %v2422 = vadd.f32 %v2408, %v2421
    %2423 = vdwg.mxu0
    %2424 = vmatpush.bf16.msra.mxu0 %v2173
    %2425 = vmatpush.bf16.msra.mxu0 %v2169
    %2426 = vmatpush.bf16.msra.mxu0 %v2165
    %2427 = vmatpush.bf16.msra.mxu0 %v2161
    %2428 = vmatpush.bf16.msra.mxu0 %v2157
    %2429 = vmatpush.bf16.msra.mxu0 %v2153
    %2430 = vmatpush.bf16.msra.mxu0 %v2149
    %2431 = vmatpush.bf16.msra.mxu0 %v2145
    %2432 = vmatmul.bf16.gmra.mxu0 %v103
    %v2433 = vpop.f32.mrf.mxu0
    %v2434 = vadd.f32 %v2420, %v2433
    %v2435 = vpop.f32.mrf.mxu0
    %v2436 = vadd.f32 %v2422, %v2435
    %2437 = vdwg.mxu0
    %v2438 = vmax.f32 %v2308, 0.0
    %v2439 = vmax.f32 %v2350, 0.0
    %v2440 = vmax.f32 %v2392, 0.0
    %v2441 = vmax.f32 %v2434, 0.0
    %v2442 = vmax.f32 %v2310, 0.0
    %v2443 = vmax.f32 %v2352, 0.0
    %v2444 = vmax.f32 %v2394, 0.0
    %v2445 = vmax.f32 %v2436, 0.0
    %v2446 = vpack.c.bf16 %v2442, %v2438
    %v2447 = vpack.c.bf16 %v2443, %v2439
    %v2448 = vpack.c.bf16 %v2444, %v2440
    %v2449 = vpack.c.bf16 %v2445, %v2441
    %v2450 = vld [vmem:[#allocation9 + $0x300] sm:$0xff]
    %v2451 = vld [vmem:[#allocation9 + $0x308] sm:$0xf]
    %v2452 = vld [vmem:[#allocation9 + $0x30c] sm:$0xff]
    %v2453 = vld [vmem:[#allocation9 + $0x314] sm:$0xf]
    %v2454 = vld [vmem:[#allocation9 + $0x318] sm:$0xff]
    %v2455 = vld [vmem:[#allocation9 + $0x320] sm:$0xf]
    %v2456 = vld [vmem:[#allocation9 + $0x324] sm:$0xff]
    %v2457 = vld [vmem:[#allocation9 + $0x32c] sm:$0xf]
    %v2458 = vld [vmem:[#allocation9 + $0x330] sm:$0xff]
    %v2459 = vld [vmem:[#allocation9 + $0x338] sm:$0xf]
    %v2460 = vld [vmem:[#allocation9 + $0x33c] sm:$0xff]
    %v2461 = vld [vmem:[#allocation9 + $0x344] sm:$0xf]
    %v2462 = vld [vmem:[#allocation9 + $0x348] sm:$0xff]
    %v2463 = vld [vmem:[#allocation9 + $0x350] sm:$0xf]
    %v2464 = vld [vmem:[#allocation9 + $0x354] sm:$0xff]
    %v2465 = vld [vmem:[#allocation9 + $0x35c] sm:$0xf]
    %v2466 = vld [vmem:[#allocation9 + $0x360] sm:$0xff]
    %v2467 = vld [vmem:[#allocation9 + $0x368] sm:$0xf]
    %v2468 = vld [vmem:[#allocation9 + $0x36c] sm:$0xff]
    %v2469 = vld [vmem:[#allocation9 + $0x374] sm:$0xf]
    %v2470 = vld [vmem:[#allocation9 + $0x378] sm:$0xff]
    %v2471 = vld [vmem:[#allocation9 + $0x380] sm:$0xf]
    %v2472 = vld [vmem:[#allocation9 + $0x384] sm:$0xff]
    %v2473 = vld [vmem:[#allocation9 + $0x38c] sm:$0xf]
    %v2474 = vld [vmem:[#allocation9 + $0x390] sm:$0xff]
    %v2475 = vld [vmem:[#allocation9 + $0x398] sm:$0xf]
    %v2476 = vld [vmem:[#allocation9 + $0x39c] sm:$0xff]
    %v2477 = vld [vmem:[#allocation9 + $0x3a4] sm:$0xf]
    %v2478 = vld [vmem:[#allocation9 + $0x3a8] sm:$0xff]
    %v2479 = vld [vmem:[#allocation9 + $0x3b0] sm:$0xf]
    %v2480 = vld [vmem:[#allocation9 + $0x3b4] sm:$0xff]
    %v2481 = vld [vmem:[#allocation9 + $0x3bc] sm:$0xf]
    %v2482 = vld [vmem:[#allocation9 + $0x3c0] sm:$0xff]
    %v2483 = vld [vmem:[#allocation9 + $0x3c8] sm:$0xf]
    %v2484 = vld [vmem:[#allocation9 + $0x3cc] sm:$0xff]
    %v2485 = vld [vmem:[#allocation9 + $0x3d4] sm:$0xf]
    %v2486 = vld [vmem:[#allocation9 + $0x3d8] sm:$0xff]
    %v2487 = vld [vmem:[#allocation9 + $0x3e0] sm:$0xf]
    %v2488 = vld [vmem:[#allocation9 + $0x3e4] sm:$0xff]
    %v2489 = vld [vmem:[#allocation9 + $0x3ec] sm:$0xf]
    %v2490 = vld [vmem:[#allocation9 + $0x3f0] sm:$0xff]
    %v2491 = vld [vmem:[#allocation9 + $0x3f8] sm:$0xf]
    %v2492 = vld [vmem:[#allocation9 + $0x3fc] sm:$0xff]
    %v2493 = vld [vmem:[#allocation9 + $0x404] sm:$0xf]
    %v2494 = vld [vmem:[#allocation9 + $0x408] sm:$0xff]
    %v2495 = vld [vmem:[#allocation9 + $0x410] sm:$0xf]
    %v2496 = vld [vmem:[#allocation9 + $0x414] sm:$0xff]
    %v2497 = vld [vmem:[#allocation9 + $0x41c] sm:$0xf]
    %v2498 = vld [vmem:[#allocation9 + $0x420] sm:$0xff]
    %v2499 = vld [vmem:[#allocation9 + $0x428] sm:$0xf]
    %v2500 = vld [vmem:[#allocation9 + $0x42c] sm:$0xff]
    %v2501 = vld [vmem:[#allocation9 + $0x434] sm:$0xf]
    %v2502 = vld [vmem:[#allocation9 + $0x438] sm:$0xff]
    %v2503 = vld [vmem:[#allocation9 + $0x440] sm:$0xf]
    %v2504 = vld [vmem:[#allocation9 + $0x444] sm:$0xff]
    %v2505 = vld [vmem:[#allocation9 + $0x44c] sm:$0xf]
    %v2506 = vld [vmem:[#allocation9 + $0x450] sm:$0xff]
    %v2507 = vld [vmem:[#allocation9 + $0x458] sm:$0xf]
    %v2508 = vld [vmem:[#allocation9 + $0x45c] sm:$0xff]
    %v2509 = vld [vmem:[#allocation9 + $0x464] sm:$0xf]
    %v2510 = vld [vmem:[#allocation9 + $0x468] sm:$0xff]
    %v2511 = vld [vmem:[#allocation9 + $0x470] sm:$0xf]
    %v2512 = vld [vmem:[#allocation9 + $0x474] sm:$0xff]
    %v2513 = vld [vmem:[#allocation9 + $0x47c] sm:$0xf]
    %v2514 = vld [vmem:[#allocation9 + $0x480] sm:$0xff]
    %v2515 = vld [vmem:[#allocation9 + $0x488] sm:$0xf]
    %v2516 = vld [vmem:[#allocation9 + $0x48c] sm:$0xff]
    %v2517 = vld [vmem:[#allocation9 + $0x494] sm:$0xf]
    %v2518 = vld [vmem:[#allocation9 + $0x498] sm:$0xff]
    %v2519 = vld [vmem:[#allocation9 + $0x4a0] sm:$0xf]
    %v2520 = vld [vmem:[#allocation9 + $0x4a4] sm:$0xff]
    %v2521 = vld [vmem:[#allocation9 + $0x4ac] sm:$0xf]
    %v2522 = vld [vmem:[#allocation9 + $0x4b0] sm:$0xff]
    %v2523 = vld [vmem:[#allocation9 + $0x4b8] sm:$0xf]
    %v2524 = vld [vmem:[#allocation9 + $0x4bc] sm:$0xff]
    %v2525 = vld [vmem:[#allocation9 + $0x4c4] sm:$0xf]
    %v2526 = vld [vmem:[#allocation9 + $0x4c8] sm:$0xff]
    %v2527 = vld [vmem:[#allocation9 + $0x4d0] sm:$0xf]
    %v2528 = vld [vmem:[#allocation9 + $0x4d4] sm:$0xff]
    %v2529 = vld [vmem:[#allocation9 + $0x4dc] sm:$0xf]
    %v2530 = vld [vmem:[#allocation9 + $0x4e0] sm:$0xff]
    %v2531 = vld [vmem:[#allocation9 + $0x4e8] sm:$0xf]
    %v2532 = vld [vmem:[#allocation9 + $0x4ec] sm:$0xff]
    %v2533 = vld [vmem:[#allocation9 + $0x4f4] sm:$0xf]
    %v2534 = vld [vmem:[#allocation9 + $0x4f8] sm:$0xff]
    %v2535 = vld [vmem:[#allocation9 + $0x500] sm:$0xf]
    %v2536 = vld [vmem:[#allocation9 + $0x504] sm:$0xff]
    %v2537 = vld [vmem:[#allocation9 + $0x50c] sm:$0xf]
    %v2538 = vld [vmem:[#allocation9 + $0x510] sm:$0xff]
    %v2539 = vld [vmem:[#allocation9 + $0x518] sm:$0xf]
    %v2540 = vld [vmem:[#allocation9 + $0x51c] sm:$0xff]
    %v2541 = vld [vmem:[#allocation9 + $0x524] sm:$0xf]
    %v2542 = vld [vmem:[#allocation9 + $0x528] sm:$0xff]
    %v2543 = vld [vmem:[#allocation9 + $0x530] sm:$0xf]
    %v2544 = vld [vmem:[#allocation9 + $0x534] sm:$0xff]
    %v2545 = vld [vmem:[#allocation9 + $0x53c] sm:$0xf]
    %v2546 = vld [vmem:[#allocation9 + $0x540] sm:$0xff]
    %v2547 = vld [vmem:[#allocation9 + $0x548] sm:$0xf]
    %v2548 = vld [vmem:[#allocation9 + $0x54c] sm:$0xff]
    %v2549 = vld [vmem:[#allocation9 + $0x554] sm:$0xf]
    %v2550 = vld [vmem:[#allocation9 + $0x558] sm:$0xff]
    %v2551 = vld [vmem:[#allocation9 + $0x560] sm:$0xf]
    %v2552 = vld [vmem:[#allocation9 + $0x564] sm:$0xff]
    %v2553 = vld [vmem:[#allocation9 + $0x56c] sm:$0xf]
    %v2554 = vld [vmem:[#allocation9 + $0x570] sm:$0xff]
    %v2555 = vld [vmem:[#allocation9 + $0x578] sm:$0xf]
    %v2556 = vld [vmem:[#allocation9 + $0x57c] sm:$0xff]
    %v2557 = vld [vmem:[#allocation9 + $0x584] sm:$0xf]
    %v2558 = vld [vmem:[#allocation9 + $0x588] sm:$0xff]
    %v2559 = vld [vmem:[#allocation9 + $0x590] sm:$0xf]
    %v2560 = vld [vmem:[#allocation9 + $0x594] sm:$0xff]
    %v2561 = vld [vmem:[#allocation9 + $0x59c] sm:$0xf]
    %v2562 = vld [vmem:[#allocation9 + $0x5a0] sm:$0xff]
    %v2563 = vld [vmem:[#allocation9 + $0x5a8] sm:$0xf]
    %v2564 = vld [vmem:[#allocation9 + $0x5ac] sm:$0xff]
    %v2565 = vld [vmem:[#allocation9 + $0x5b4] sm:$0xf]
    %v2566 = vld [vmem:[#allocation9 + $0x5b8] sm:$0xff]
    %v2567 = vld [vmem:[#allocation9 + $0x5c0] sm:$0xf]
    %v2568 = vld [vmem:[#allocation9 + $0x5c4] sm:$0xff]
    %v2569 = vld [vmem:[#allocation9 + $0x5cc] sm:$0xf]
    %v2570 = vld [vmem:[#allocation9 + $0x5d0] sm:$0xff]
    %v2571 = vld [vmem:[#allocation9 + $0x5d8] sm:$0xf]
    %v2572 = vld [vmem:[#allocation9 + $0x5dc] sm:$0xff]
    %v2573 = vld [vmem:[#allocation9 + $0x5e4] sm:$0xf]
    %v2574 = vld [vmem:[#allocation9 + $0x5e8] sm:$0xff]
    %v2575 = vld [vmem:[#allocation9 + $0x5f0] sm:$0xf]
    %v2576 = vld [vmem:[#allocation9 + $0x5f4] sm:$0xff]
    %v2577 = vld [vmem:[#allocation9 + $0x5fc] sm:$0xf]
    %v2706 = vunpack.c.l.b16 %v2450
    %v2707 = vunpack.c.h.b16 %v2450
    %v2708 = vunpack.c.l.b16 %v2451
    %v2709 = vunpack.c.l.b16 %v2452
    %v2710 = vunpack.c.h.b16 %v2452
    %v2711 = vunpack.c.l.b16 %v2453
    %v2712 = vunpack.c.l.b16 %v2454
    %v2713 = vunpack.c.h.b16 %v2454
    %v2714 = vunpack.c.l.b16 %v2455
    %v2715 = vunpack.c.l.b16 %v2456
    %v2716 = vunpack.c.h.b16 %v2456
    %v2717 = vunpack.c.l.b16 %v2457
    %v2718 = vunpack.c.l.b16 %v2458
    %v2719 = vunpack.c.h.b16 %v2458
    %v2720 = vunpack.c.l.b16 %v2459
    %v2721 = vunpack.c.l.b16 %v2460
    %v2722 = vunpack.c.h.b16 %v2460
    %v2723 = vunpack.c.l.b16 %v2461
    %v2724 = vunpack.c.l.b16 %v2462
    %v2725 = vunpack.c.h.b16 %v2462
    %v2726 = vunpack.c.l.b16 %v2463
    %v2727 = vunpack.c.l.b16 %v2464
    %v2728 = vunpack.c.h.b16 %v2464
    %v2729 = vunpack.c.l.b16 %v2465
    %v2730 = vunpack.c.l.b16 %v2466
    %v2731 = vunpack.c.h.b16 %v2466
    %v2732 = vunpack.c.l.b16 %v2467
    %v2733 = vunpack.c.l.b16 %v2468
    %v2734 = vunpack.c.h.b16 %v2468
    %v2735 = vunpack.c.l.b16 %v2469
    %v2736 = vunpack.c.l.b16 %v2470
    %v2737 = vunpack.c.h.b16 %v2470
    %v2738 = vunpack.c.l.b16 %v2471
    %v2739 = vunpack.c.l.b16 %v2472
    %v2740 = vunpack.c.h.b16 %v2472
    %v2741 = vunpack.c.l.b16 %v2473
    %v2742 = vunpack.c.l.b16 %v2474
    %v2743 = vunpack.c.h.b16 %v2474
    %v2744 = vunpack.c.l.b16 %v2475
    %v2745 = vunpack.c.l.b16 %v2476
    %v2746 = vunpack.c.h.b16 %v2476
    %v2747 = vunpack.c.l.b16 %v2477
    %v2748 = vunpack.c.l.b16 %v2478
    %v2749 = vunpack.c.h.b16 %v2478
    %v2750 = vunpack.c.l.b16 %v2479
    %v2751 = vunpack.c.l.b16 %v2480
    %v2752 = vunpack.c.h.b16 %v2480
    %v2753 = vunpack.c.l.b16 %v2481
    %v2754 = vunpack.c.l.b16 %v2482
    %v2755 = vunpack.c.h.b16 %v2482
    %v2756 = vunpack.c.l.b16 %v2483
    %v2757 = vunpack.c.l.b16 %v2484
    %v2758 = vunpack.c.h.b16 %v2484
    %v2759 = vunpack.c.l.b16 %v2485
    %v2760 = vunpack.c.l.b16 %v2486
    %v2761 = vunpack.c.h.b16 %v2486
    %v2762 = vunpack.c.l.b16 %v2487
    %v2763 = vunpack.c.l.b16 %v2488
    %v2764 = vunpack.c.h.b16 %v2488
    %v2765 = vunpack.c.l.b16 %v2489
    %v2766 = vunpack.c.l.b16 %v2490
    %v2767 = vunpack.c.h.b16 %v2490
    %v2768 = vunpack.c.l.b16 %v2491
    %v2769 = vunpack.c.l.b16 %v2492
    %v2770 = vunpack.c.h.b16 %v2492
    %v2771 = vunpack.c.l.b16 %v2493
    %v2772 = vunpack.c.l.b16 %v2494
    %v2773 = vunpack.c.h.b16 %v2494
    %v2774 = vunpack.c.l.b16 %v2495
    %v2775 = vunpack.c.l.b16 %v2496
    %v2776 = vunpack.c.h.b16 %v2496
    %v2777 = vunpack.c.l.b16 %v2497
    %v2778 = vunpack.c.l.b16 %v2498
    %v2779 = vunpack.c.h.b16 %v2498
    %v2780 = vunpack.c.l.b16 %v2499
    %v2781 = vunpack.c.l.b16 %v2500
    %v2782 = vunpack.c.h.b16 %v2500
    %v2783 = vunpack.c.l.b16 %v2501
    %v2784 = vunpack.c.l.b16 %v2502
    %v2785 = vunpack.c.h.b16 %v2502
    %v2786 = vunpack.c.l.b16 %v2503
    %v2787 = vunpack.c.l.b16 %v2504
    %v2788 = vunpack.c.h.b16 %v2504
    %v2789 = vunpack.c.l.b16 %v2505
    %v2790 = vunpack.c.l.b16 %v2506
    %v2791 = vunpack.c.h.b16 %v2506
    %v2792 = vunpack.c.l.b16 %v2507
    %v2793 = vunpack.c.l.b16 %v2508
    %v2794 = vunpack.c.h.b16 %v2508
    %v2795 = vunpack.c.l.b16 %v2509
    %v2796 = vunpack.c.l.b16 %v2510
    %v2797 = vunpack.c.h.b16 %v2510
    %v2798 = vunpack.c.l.b16 %v2511
    %v2799 = vunpack.c.l.b16 %v2512
    %v2800 = vunpack.c.h.b16 %v2512
    %v2801 = vunpack.c.l.b16 %v2513
    %v2802 = vunpack.c.l.b16 %v2514
    %v2803 = vunpack.c.h.b16 %v2514
    %v2804 = vunpack.c.l.b16 %v2515
    %v2805 = vunpack.c.l.b16 %v2516
    %v2806 = vunpack.c.h.b16 %v2516
    %v2807 = vunpack.c.l.b16 %v2517
    %v2808 = vunpack.c.l.b16 %v2518
    %v2809 = vunpack.c.h.b16 %v2518
    %v2810 = vunpack.c.l.b16 %v2519
    %v2811 = vunpack.c.l.b16 %v2520
    %v2812 = vunpack.c.h.b16 %v2520
    %v2813 = vunpack.c.l.b16 %v2521
    %v2814 = vunpack.c.l.b16 %v2522
    %v2815 = vunpack.c.h.b16 %v2522
    %v2816 = vunpack.c.l.b16 %v2523
    %v2817 = vunpack.c.l.b16 %v2524
    %v2818 = vunpack.c.h.b16 %v2524
    %v2819 = vunpack.c.l.b16 %v2525
    %v2820 = vunpack.c.l.b16 %v2526
    %v2821 = vunpack.c.h.b16 %v2526
    %v2822 = vunpack.c.l.b16 %v2527
    %v2823 = vunpack.c.l.b16 %v2528
    %v2824 = vunpack.c.h.b16 %v2528
    %v2825 = vunpack.c.l.b16 %v2529
    %v2826 = vunpack.c.l.b16 %v2530
    %v2827 = vunpack.c.h.b16 %v2530
    %v2828 = vunpack.c.l.b16 %v2531
    %v2829 = vunpack.c.l.b16 %v2532
    %v2830 = vunpack.c.h.b16 %v2532
    %v2831 = vunpack.c.l.b16 %v2533
    %v2832 = vunpack.c.l.b16 %v2534
    %v2833 = vunpack.c.h.b16 %v2534
    %v2834 = vunpack.c.l.b16 %v2535
    %v2835 = vunpack.c.l.b16 %v2536
    %v2836 = vunpack.c.h.b16 %v2536
    %v2837 = vunpack.c.l.b16 %v2537
    %v2838 = vunpack.c.l.b16 %v2538
    %v2839 = vunpack.c.h.b16 %v2538
    %v2840 = vunpack.c.l.b16 %v2539
    %v2841 = vunpack.c.l.b16 %v2540
    %v2842 = vunpack.c.h.b16 %v2540
    %v2843 = vunpack.c.l.b16 %v2541
    %v2844 = vunpack.c.l.b16 %v2542
    %v2845 = vunpack.c.h.b16 %v2542
    %v2846 = vunpack.c.l.b16 %v2543
    %v2847 = vunpack.c.l.b16 %v2544
    %v2848 = vunpack.c.h.b16 %v2544
    %v2849 = vunpack.c.l.b16 %v2545
    %v2850 = vunpack.c.l.b16 %v2546
    %v2851 = vunpack.c.h.b16 %v2546
    %v2852 = vunpack.c.l.b16 %v2547
    %v2853 = vunpack.c.l.b16 %v2548
    %v2854 = vunpack.c.h.b16 %v2548
    %v2855 = vunpack.c.l.b16 %v2549
    %v2856 = vunpack.c.l.b16 %v2550
    %v2857 = vunpack.c.h.b16 %v2550
    %v2858 = vunpack.c.l.b16 %v2551
    %v2859 = vunpack.c.l.b16 %v2552
    %v2860 = vunpack.c.h.b16 %v2552
    %v2861 = vunpack.c.l.b16 %v2553
    %v2862 = vunpack.c.l.b16 %v2554
    %v2863 = vunpack.c.h.b16 %v2554
    %v2864 = vunpack.c.l.b16 %v2555
    %v2865 = vunpack.c.l.b16 %v2556
    %v2866 = vunpack.c.h.b16 %v2556
    %v2867 = vunpack.c.l.b16 %v2557
    %v2868 = vunpack.c.l.b16 %v2558
    %v2869 = vunpack.c.h.b16 %v2558
    %v2870 = vunpack.c.l.b16 %v2559
    %v2871 = vunpack.c.l.b16 %v2560
    %v2872 = vunpack.c.h.b16 %v2560
    %v2873 = vunpack.c.l.b16 %v2561
    %v2874 = vunpack.c.l.b16 %v2562
    %v2875 = vunpack.c.h.b16 %v2562
    %v2876 = vunpack.c.l.b16 %v2563
    %v2877 = vunpack.c.l.b16 %v2564
    %v2878 = vunpack.c.h.b16 %v2564
    %v2879 = vunpack.c.l.b16 %v2565
    %v2880 = vunpack.c.l.b16 %v2566
    %v2881 = vunpack.c.h.b16 %v2566
    %v2882 = vunpack.c.l.b16 %v2567
    %v2883 = vunpack.c.l.b16 %v2568
    %v2884 = vunpack.c.h.b16 %v2568
    %v2885 = vunpack.c.l.b16 %v2569
    %v2886 = vunpack.c.l.b16 %v2570
    %v2887 = vunpack.c.h.b16 %v2570
    %v2888 = vunpack.c.l.b16 %v2571
    %v2889 = vunpack.c.l.b16 %v2572
    %v2890 = vunpack.c.h.b16 %v2572
    %v2891 = vunpack.c.l.b16 %v2573
    %v2892 = vunpack.c.l.b16 %v2574
    %v2893 = vunpack.c.h.b16 %v2574
    %v2894 = vunpack.c.l.b16 %v2575
    %v2895 = vunpack.c.l.b16 %v2576
    %v2896 = vunpack.c.h.b16 %v2576
    %v2897 = vunpack.c.l.b16 %v2577
    %v2898 = vpack.c.b16 %v2709, %v2706
    %v2899 = vpack.c.b16 %v2710, %v2707
    %v2900 = vpack.c.b16 %v2711, %v2708
    %v2901 = vpack.c.b16 %v2715, %v2712
    %v2902 = vpack.c.b16 %v2716, %v2713
    %v2903 = vpack.c.b16 %v2717, %v2714
    %v2904 = vpack.c.b16 %v2721, %v2718
    %v2905 = vpack.c.b16 %v2722, %v2719
    %v2906 = vpack.c.b16 %v2723, %v2720
    %v2907 = vpack.c.b16 %v2727, %v2724
    %v2908 = vpack.c.b16 %v2728, %v2725
    %v2909 = vpack.c.b16 %v2729, %v2726
    %v2910 = vpack.c.b16 %v2733, %v2730
    %v2911 = vpack.c.b16 %v2734, %v2731
    %v2912 = vpack.c.b16 %v2735, %v2732
    %v2913 = vpack.c.b16 %v2739, %v2736
    %v2914 = vpack.c.b16 %v2740, %v2737
    %v2915 = vpack.c.b16 %v2741, %v2738
    %v2916 = vpack.c.b16 %v2745, %v2742
    %v2917 = vpack.c.b16 %v2746, %v2743
    %v2918 = vpack.c.b16 %v2747, %v2744
    %v2919 = vpack.c.b16 %v2751, %v2748
    %v2920 = vpack.c.b16 %v2752, %v2749
    %v2921 = vpack.c.b16 %v2753, %v2750
    %v2922 = vpack.c.b16 %v2757, %v2754
    %v2923 = vpack.c.b16 %v2758, %v2755
    %v2924 = vpack.c.b16 %v2759, %v2756
    %v2925 = vpack.c.b16 %v2763, %v2760
    %v2926 = vpack.c.b16 %v2764, %v2761
    %v2927 = vpack.c.b16 %v2765, %v2762
    %v2928 = vpack.c.b16 %v2769, %v2766
    %v2929 = vpack.c.b16 %v2770, %v2767
    %v2930 = vpack.c.b16 %v2771, %v2768
    %v2931 = vpack.c.b16 %v2775, %v2772
    %v2932 = vpack.c.b16 %v2776, %v2773
    %v2933 = vpack.c.b16 %v2777, %v2774
    %v2934 = vpack.c.b16 %v2781, %v2778
    %v2935 = vpack.c.b16 %v2782, %v2779
    %v2936 = vpack.c.b16 %v2783, %v2780
    %v2937 = vpack.c.b16 %v2787, %v2784
    %v2938 = vpack.c.b16 %v2788, %v2785
    %v2939 = vpack.c.b16 %v2789, %v2786
    %v2940 = vpack.c.b16 %v2793, %v2790
    %v2941 = vpack.c.b16 %v2794, %v2791
    %v2942 = vpack.c.b16 %v2795, %v2792
    %v2943 = vpack.c.b16 %v2799, %v2796
    %v2944 = vpack.c.b16 %v2800, %v2797
    %v2945 = vpack.c.b16 %v2801, %v2798
    %v2946 = vpack.c.b16 %v2805, %v2802
    %v2947 = vpack.c.b16 %v2806, %v2803
    %v2948 = vpack.c.b16 %v2807, %v2804
    %v2949 = vpack.c.b16 %v2811, %v2808
    %v2950 = vpack.c.b16 %v2812, %v2809
    %v2951 = vpack.c.b16 %v2813, %v2810
    %v2952 = vpack.c.b16 %v2817, %v2814
    %v2953 = vpack.c.b16 %v2818, %v2815
    %v2954 = vpack.c.b16 %v2819, %v2816
    %v2955 = vpack.c.b16 %v2823, %v2820
    %v2956 = vpack.c.b16 %v2824, %v2821
    %v2957 = vpack.c.b16 %v2825, %v2822
    %v2958 = vpack.c.b16 %v2829, %v2826
    %v2959 = vpack.c.b16 %v2830, %v2827
    %v2960 = vpack.c.b16 %v2831, %v2828
    %v2961 = vpack.c.b16 %v2835, %v2832
    %v2962 = vpack.c.b16 %v2836, %v2833
    %v2963 = vpack.c.b16 %v2837, %v2834
    %v2964 = vpack.c.b16 %v2841, %v2838
    %v2965 = vpack.c.b16 %v2842, %v2839
    %v2966 = vpack.c.b16 %v2843, %v2840
    %v2967 = vpack.c.b16 %v2847, %v2844
    %v2968 = vpack.c.b16 %v2848, %v2845
    %v2969 = vpack.c.b16 %v2849, %v2846
    %v2970 = vpack.c.b16 %v2853, %v2850
    %v2971 = vpack.c.b16 %v2854, %v2851
    %v2972 = vpack.c.b16 %v2855, %v2852
    %v2973 = vpack.c.b16 %v2859, %v2856
    %v2974 = vpack.c.b16 %v2860, %v2857
    %v2975 = vpack.c.b16 %v2861, %v2858
    %v2976 = vpack.c.b16 %v2865, %v2862
    %v2977 = vpack.c.b16 %v2866, %v2863
    %v2978 = vpack.c.b16 %v2867, %v2864
    %v2979 = vpack.c.b16 %v2871, %v2868
    %v2980 = vpack.c.b16 %v2872, %v2869
    %v2981 = vpack.c.b16 %v2873, %v2870
    %v2982 = vpack.c.b16 %v2877, %v2874
    %v2983 = vpack.c.b16 %v2878, %v2875
    %v2984 = vpack.c.b16 %v2879, %v2876
    %v2985 = vpack.c.b16 %v2883, %v2880
    %v2986 = vpack.c.b16 %v2884, %v2881
    %v2987 = vpack.c.b16 %v2885, %v2882
    %v2988 = vpack.c.b16 %v2889, %v2886
    %v2989 = vpack.c.b16 %v2890, %v2887
    %v2990 = vpack.c.b16 %v2891, %v2888
    %v2991 = vpack.c.b16 %v2895, %v2892
    %v2992 = vpack.c.b16 %v2896, %v2893
    %v2993 = vpack.c.b16 %v2897, %v2894
    %3090 = vmatpush.bf16.msra.mxu0 %v2919
    %3091 = vmatpush.bf16.msra.mxu0 %v2916
    %3092 = vmatpush.bf16.msra.mxu0 %v2913
    %3093 = vmatpush.bf16.msra.mxu0 %v2910
    %3094 = vmatpush.bf16.msra.mxu0 %v2907
    %3095 = vmatpush.bf16.msra.mxu0 %v2904
    %3096 = vmatpush.bf16.msra.mxu0 %v2901
    %3097 = vmatpush.bf16.msra.mxu0 %v2898
    %3098 = vmatmul.bf16.gmra.mxu0 %v2446
    %v3099 = vpop.f32.mrf.mxu0
    %v3100 = vadd.f32 0.0, %v3099
    %v3101 = vpop.f32.mrf.mxu0
    %v3102 = vadd.f32 0.0, %v3101
    %3103 = vdwg.mxu0
    %3104 = vmatpush.bf16.msra.mxu0 %v2943
    %3105 = vmatpush.bf16.msra.mxu0 %v2940
    %3106 = vmatpush.bf16.msra.mxu0 %v2937
    %3107 = vmatpush.bf16.msra.mxu0 %v2934
    %3108 = vmatpush.bf16.msra.mxu0 %v2931
    %3109 = vmatpush.bf16.msra.mxu0 %v2928
    %3110 = vmatpush.bf16.msra.mxu0 %v2925
    %3111 = vmatpush.bf16.msra.mxu0 %v2922
    %3112 = vmatmul.bf16.gmra.mxu0 %v2447
    %v3113 = vpop.f32.mrf.mxu0
    %v3114 = vadd.f32 %v3100, %v3113
    %v3115 = vpop.f32.mrf.mxu0
    %v3116 = vadd.f32 %v3102, %v3115
    %3117 = vdwg.mxu0
    %3118 = vmatpush.bf16.msra.mxu0 %v2967
    %3119 = vmatpush.bf16.msra.mxu0 %v2964
    %3120 = vmatpush.bf16.msra.mxu0 %v2961
    %3121 = vmatpush.bf16.msra.mxu0 %v2958
    %3122 = vmatpush.bf16.msra.mxu0 %v2955
    %3123 = vmatpush.bf16.msra.mxu0 %v2952
    %3124 = vmatpush.bf16.msra.mxu0 %v2949
    %3125 = vmatpush.bf16.msra.mxu0 %v2946
    %3126 = vmatmul.bf16.gmra.mxu0 %v2448
    %v3127 = vpop.f32.mrf.mxu0
    %v3128 = vadd.f32 %v3114, %v3127
    %v3129 = vpop.f32.mrf.mxu0
    %v3130 = vadd.f32 %v3116, %v3129
    %3131 = vdwg.mxu0
    %3132 = vmatpush.bf16.msra.mxu0 %v2991
    %3133 = vmatpush.bf16.msra.mxu0 %v2988
    %3134 = vmatpush.bf16.msra.mxu0 %v2985
    %3135 = vmatpush.bf16.msra.mxu0 %v2982
    %3136 = vmatpush.bf16.msra.mxu0 %v2979
    %3137 = vmatpush.bf16.msra.mxu0 %v2976
    %3138 = vmatpush.bf16.msra.mxu0 %v2973
    %3139 = vmatpush.bf16.msra.mxu0 %v2970
    %3140 = vmatmul.bf16.gmra.mxu0 %v2449
    %v3141 = vpop.f32.mrf.mxu0
    %v3142 = vadd.f32 %v3128, %v3141
    %v3143 = vpop.f32.mrf.mxu0
    %v3144 = vadd.f32 %v3130, %v3143
    %3145 = vdwg.mxu0
    %3146 = vmatpush.bf16.msra.mxu0 %v2920
    %3147 = vmatpush.bf16.msra.mxu0 %v2917
    %3148 = vmatpush.bf16.msra.mxu0 %v2914
    %3149 = vmatpush.bf16.msra.mxu0 %v2911
    %3150 = vmatpush.bf16.msra.mxu0 %v2908
    %3151 = vmatpush.bf16.msra.mxu0 %v2905
    %3152 = vmatpush.bf16.msra.mxu0 %v2902
    %3153 = vmatpush.bf16.msra.mxu0 %v2899
    %3154 = vmatmul.bf16.gmra.mxu0 %v2446
    %v3155 = vpop.f32.mrf.mxu0
    %v3156 = vadd.f32 0.0, %v3155
    %v3157 = vpop.f32.mrf.mxu0
    %v3158 = vadd.f32 0.0, %v3157
    %3159 = vdwg.mxu0
    %3160 = vmatpush.bf16.msra.mxu0 %v2944
    %3161 = vmatpush.bf16.msra.mxu0 %v2941
    %3162 = vmatpush.bf16.msra.mxu0 %v2938
    %3163 = vmatpush.bf16.msra.mxu0 %v2935
    %3164 = vmatpush.bf16.msra.mxu0 %v2932
    %3165 = vmatpush.bf16.msra.mxu0 %v2929
    %3166 = vmatpush.bf16.msra.mxu0 %v2926
    %3167 = vmatpush.bf16.msra.mxu0 %v2923
    %3168 = vmatmul.bf16.gmra.mxu0 %v2447
    %v3169 = vpop.f32.mrf.mxu0
    %v3170 = vadd.f32 %v3156, %v3169
    %v3171 = vpop.f32.mrf.mxu0
    %v3172 = vadd.f32 %v3158, %v3171
    %3173 = vdwg.mxu0
    %3174 = vmatpush.bf16.msra.mxu0 %v2968
    %3175 = vmatpush.bf16.msra.mxu0 %v2965
    %3176 = vmatpush.bf16.msra.mxu0 %v2962
    %3177 = vmatpush.bf16.msra.mxu0 %v2959
    %3178 = vmatpush.bf16.msra.mxu0 %v2956
    %3179 = vmatpush.bf16.msra.mxu0 %v2953
    %3180 = vmatpush.bf16.msra.mxu0 %v2950
    %3181 = vmatpush.bf16.msra.mxu0 %v2947
    %3182 = vmatmul.bf16.gmra.mxu0 %v2448
    %v3183 = vpop.f32.mrf.mxu0
    %v3184 = vadd.f32 %v3170, %v3183
    %v3185 = vpop.f32.mrf.mxu0
    %v3186 = vadd.f32 %v3172, %v3185
    %3187 = vdwg.mxu0
    %3188 = vmatpush.bf16.msra.mxu0 %v2992
    %3189 = vmatpush.bf16.msra.mxu0 %v2989
    %3190 = vmatpush.bf16.msra.mxu0 %v2986
    %3191 = vmatpush.bf16.msra.mxu0 %v2983
    %3192 = vmatpush.bf16.msra.mxu0 %v2980
    %3193 = vmatpush.bf16.msra.mxu0 %v2977
    %3194 = vmatpush.bf16.msra.mxu0 %v2974
    %3195 = vmatpush.bf16.msra.mxu0 %v2971
    %3196 = vmatmul.bf16.gmra.mxu0 %v2449
    %v3197 = vpop.f32.mrf.mxu0
    %v3198 = vadd.f32 %v3184, %v3197
    %v3199 = vpop.f32.mrf.mxu0
    %v3200 = vadd.f32 %v3186, %v3199
    %3201 = vdwg.mxu0
    %3202 = vmatpush.bf16.msra.mxu0 %v2921
    %3203 = vmatpush.bf16.msra.mxu0 %v2918
    %3204 = vmatpush.bf16.msra.mxu0 %v2915
    %3205 = vmatpush.bf16.msra.mxu0 %v2912
    %3206 = vmatpush.bf16.msra.mxu0 %v2909
    %3207 = vmatpush.bf16.msra.mxu0 %v2906
    %3208 = vmatpush.bf16.msra.mxu0 %v2903
    %3209 = vmatpush.bf16.msra.mxu0 %v2900
    %3210 = vmatmul.bf16.gmra.mxu0 %v2446
    %v3211 = vpop.f32.mrf.mxu0
    %v3212 = vadd.f32 0.0, %v3211
    %v3213 = vpop.f32.mrf.mxu0
    %v3214 = vadd.f32 0.0, %v3213
    %3215 = vdwg.mxu0
    %3216 = vmatpush.bf16.msra.mxu0 %v2945
    %3217 = vmatpush.bf16.msra.mxu0 %v2942
    %3218 = vmatpush.bf16.msra.mxu0 %v2939
    %3219 = vmatpush.bf16.msra.mxu0 %v2936
    %3220 = vmatpush.bf16.msra.mxu0 %v2933
    %3221 = vmatpush.bf16.msra.mxu0 %v2930
    %3222 = vmatpush.bf16.msra.mxu0 %v2927
    %3223 = vmatpush.bf16.msra.mxu0 %v2924
    %3224 = vmatmul.bf16.gmra.mxu0 %v2447
    %v3225 = vpop.f32.mrf.mxu0
    %v3226 = vadd.f32 %v3212, %v3225
    %v3227 = vpop.f32.mrf.mxu0
    %v3228 = vadd.f32 %v3214, %v3227
    %3229 = vdwg.mxu0
    %3230 = vmatpush.bf16.msra.mxu0 %v2969
    %3231 = vmatpush.bf16.msra.mxu0 %v2966
    %3232 = vmatpush.bf16.msra.mxu0 %v2963
    %3233 = vmatpush.bf16.msra.mxu0 %v2960
    %3234 = vmatpush.bf16.msra.mxu0 %v2957
    %3235 = vmatpush.bf16.msra.mxu0 %v2954
    %3236 = vmatpush.bf16.msra.mxu0 %v2951
    %3237 = vmatpush.bf16.msra.mxu0 %v2948
    %3238 = vmatmul.bf16.gmra.mxu0 %v2448
    %v3239 = vpop.f32.mrf.mxu0
    %v3240 = vadd.f32 %v3226, %v3239
    %v3241 = vpop.f32.mrf.mxu0
    %v3242 = vadd.f32 %v3228, %v3241
    %3243 = vdwg.mxu0
    %3244 = vmatpush.bf16.msra.mxu0 %v2993
    %3245 = vmatpush.bf16.msra.mxu0 %v2990
    %3246 = vmatpush.bf16.msra.mxu0 %v2987
    %3247 = vmatpush.bf16.msra.mxu0 %v2984
    %3248 = vmatpush.bf16.msra.mxu0 %v2981
    %3249 = vmatpush.bf16.msra.mxu0 %v2978
    %3250 = vmatpush.bf16.msra.mxu0 %v2975
    %3251 = vmatpush.bf16.msra.mxu0 %v2972
    %3252 = vmatmul.bf16.gmra.mxu0 %v2449
    %v3253 = vpop.f32.mrf.mxu0
    %v3254 = vadd.f32 %v3240, %v3253
    %v3255 = vpop.f32.mrf.mxu0
    %v3256 = vadd.f32 %v3242, %v3255
    %3257 = vdwg.mxu0
    %v3258 = vld [vmem:[#allocation2] sm:$0xff]
    %v3259 = vld [vmem:[#allocation2 + $0x8] sm:$0xff]
    %v3260 = vld [vmem:[#allocation2 + $0x10] sm:$0xff]
    %v3261 = vld [vmem:[#allocation2 + $0x18] sm:$0xff]
    %v3262 = vld [vmem:[#allocation2 + $0x20] sm:$0xff]
    %v3263 = vld [vmem:[#allocation2 + $0x28] sm:$0xff]
    %v3264 = vadd.f32 %v3258, %v3142
    %v3265 = vadd.f32 %v3259, %v3198
    %v3266 = vadd.f32 %v3260, %v3254
    %v3267 = vadd.f32 %v3261, %v3144
    %v3268 = vadd.f32 %v3262, %v3200
    %v3269 = vadd.f32 %v3263, %v3256
    %3270 = vst [vmem:[#allocation2] sm:$0xff] %v3264
    %3271 = vst [vmem:[#allocation2 + $0x8] sm:$0xff] %v3265
    %3272 = vst [vmem:[#allocation2 + $0x10] sm:$0xff] %v3266
    %3273 = vst [vmem:[#allocation2 + $0x18] sm:$0xff] %v3267
    %3274 = vst [vmem:[#allocation2 + $0x20] sm:$0xff] %v3268
    %3275 = vst [vmem:[#allocation2 + $0x28] sm:$0xff] %v3269
    %v3276 = vld [vmem:[#allocation6 + $0x20] sm:$0xff]
    %v3277 = vld [vmem:[#allocation6 + $0x28] sm:$0xff]
    %v3278 = vld [vmem:[#allocation6 + $0x50] sm:$0xff]
    %v3279 = vld [vmem:[#allocation6 + $0x58] sm:$0xff]
    %v3280 = vld [vmem:[#allocation6 + $0x80] sm:$0xff]
    %v3281 = vld [vmem:[#allocation6 + $0x88] sm:$0xff]
    %v3282 = vld [vmem:[#allocation6 + $0xb0] sm:$0xff]
    %v3283 = vld [vmem:[#allocation6 + $0xb8] sm:$0xff]
    %v3284 = vld [vmem:[#allocation6 + $0xe0] sm:$0xff]
    %v3285 = vld [vmem:[#allocation6 + $0xe8] sm:$0xff]
    %v3286 = vld [vmem:[#allocation6 + $0x110] sm:$0xff]
    %v3287 = vld [vmem:[#allocation6 + $0x118] sm:$0xff]
    %v3288 = vld [vmem:[#allocation6 + $0x140] sm:$0xff]
    %v3289 = vld [vmem:[#allocation6 + $0x148] sm:$0xff]
    %v3290 = vld [vmem:[#allocation6 + $0x170] sm:$0xff]
    %v3291 = vld [vmem:[#allocation6 + $0x178] sm:$0xff]
    %v3292 = vld [vmem:[#allocation6 + $0x1a0] sm:$0xff]
    %v3293 = vld [vmem:[#allocation6 + $0x1a8] sm:$0xff]
    %v3294 = vld [vmem:[#allocation6 + $0x1d0] sm:$0xff]
    %v3295 = vld [vmem:[#allocation6 + $0x1d8] sm:$0xff]
    %v3296 = vld [vmem:[#allocation6 + $0x200] sm:$0xff]
    %v3297 = vld [vmem:[#allocation6 + $0x208] sm:$0xff]
    %v3298 = vld [vmem:[#allocation6 + $0x230] sm:$0xff]
    %v3299 = vld [vmem:[#allocation6 + $0x238] sm:$0xff]
    %v3300 = vld [vmem:[#allocation6 + $0x260] sm:$0xff]
    %v3301 = vld [vmem:[#allocation6 + $0x268] sm:$0xff]
    %v3302 = vld [vmem:[#allocation6 + $0x290] sm:$0xff]
    %v3303 = vld [vmem:[#allocation6 + $0x298] sm:$0xff]
    %v3304 = vld [vmem:[#allocation6 + $0x2c0] sm:$0xff]
    %v3305 = vld [vmem:[#allocation6 + $0x2c8] sm:$0xff]
    %v3306 = vld [vmem:[#allocation6 + $0x2f0] sm:$0xff]
    %v3307 = vld [vmem:[#allocation6 + $0x2f8] sm:$0xff]
    %v3308 = vld [vmem:[#allocation6 + $0x320] sm:$0xff]
    %v3309 = vld [vmem:[#allocation6 + $0x328] sm:$0xff]
    %v3310 = vld [vmem:[#allocation6 + $0x350] sm:$0xff]
    %v3311 = vld [vmem:[#allocation6 + $0x358] sm:$0xff]
    %v3312 = vld [vmem:[#allocation6 + $0x380] sm:$0xff]
    %v3313 = vld [vmem:[#allocation6 + $0x388] sm:$0xff]
    %v3314 = vld [vmem:[#allocation6 + $0x3b0] sm:$0xff]
    %v3315 = vld [vmem:[#allocation6 + $0x3b8] sm:$0xff]
    %v3316 = vld [vmem:[#allocation6 + $0x3e0] sm:$0xff]
    %v3317 = vld [vmem:[#allocation6 + $0x3e8] sm:$0xff]
    %v3318 = vld [vmem:[#allocation6 + $0x410] sm:$0xff]
    %v3319 = vld [vmem:[#allocation6 + $0x418] sm:$0xff]
    %v3320 = vld [vmem:[#allocation6 + $0x440] sm:$0xff]
    %v3321 = vld [vmem:[#allocation6 + $0x448] sm:$0xff]
    %v3322 = vld [vmem:[#allocation6 + $0x470] sm:$0xff]
    %v3323 = vld [vmem:[#allocation6 + $0x478] sm:$0xff]
    %v3324 = vld [vmem:[#allocation6 + $0x4a0] sm:$0xff]
    %v3325 = vld [vmem:[#allocation6 + $0x4a8] sm:$0xff]
    %v3326 = vld [vmem:[#allocation6 + $0x4d0] sm:$0xff]
    %v3327 = vld [vmem:[#allocation6 + $0x4d8] sm:$0xff]
    %v3328 = vld [vmem:[#allocation6 + $0x500] sm:$0xff]
    %v3329 = vld [vmem:[#allocation6 + $0x508] sm:$0xff]
    %v3330 = vld [vmem:[#allocation6 + $0x530] sm:$0xff]
    %v3331 = vld [vmem:[#allocation6 + $0x538] sm:$0xff]
    %v3332 = vld [vmem:[#allocation6 + $0x560] sm:$0xff]
    %v3333 = vld [vmem:[#allocation6 + $0x568] sm:$0xff]
    %v3334 = vld [vmem:[#allocation6 + $0x590] sm:$0xff]
    %v3335 = vld [vmem:[#allocation6 + $0x598] sm:$0xff]
    %v3336 = vld [vmem:[#allocation6 + $0x5c0] sm:$0xff]
    %v3337 = vld [vmem:[#allocation6 + $0x5c8] sm:$0xff]
    %v3338 = vld [vmem:[#allocation6 + $0x5f0] sm:$0xff]
    %v3339 = vld [vmem:[#allocation6 + $0x5f8] sm:$0xff]
    %v3340 = vld [vmem:[#allocation6 + $0x620] sm:$0xff]
    %v3341 = vld [vmem:[#allocation6 + $0x628] sm:$0xff]
    %v3342 = vld [vmem:[#allocation6 + $0x650] sm:$0xff]
    %v3343 = vld [vmem:[#allocation6 + $0x658] sm:$0xff]
    %v3344 = vld [vmem:[#allocation6 + $0x680] sm:$0xff]
    %v3345 = vld [vmem:[#allocation6 + $0x688] sm:$0xff]
    %v3346 = vld [vmem:[#allocation6 + $0x6b0] sm:$0xff]
    %v3347 = vld [vmem:[#allocation6 + $0x6b8] sm:$0xff]
    %v3348 = vld [vmem:[#allocation6 + $0x6e0] sm:$0xff]
    %v3349 = vld [vmem:[#allocation6 + $0x6e8] sm:$0xff]
    %v3350 = vld [vmem:[#allocation6 + $0x710] sm:$0xff]
    %v3351 = vld [vmem:[#allocation6 + $0x718] sm:$0xff]
    %v3352 = vld [vmem:[#allocation6 + $0x740] sm:$0xff]
    %v3353 = vld [vmem:[#allocation6 + $0x748] sm:$0xff]
    %v3354 = vld [vmem:[#allocation6 + $0x770] sm:$0xff]
    %v3355 = vld [vmem:[#allocation6 + $0x778] sm:$0xff]
    %v3356 = vld [vmem:[#allocation6 + $0x7a0] sm:$0xff]
    %v3357 = vld [vmem:[#allocation6 + $0x7a8] sm:$0xff]
    %v3358 = vld [vmem:[#allocation6 + $0x7d0] sm:$0xff]
    %v3359 = vld [vmem:[#allocation6 + $0x7d8] sm:$0xff]
    %v3360 = vld [vmem:[#allocation6 + $0x800] sm:$0xff]
    %v3361 = vld [vmem:[#allocation6 + $0x808] sm:$0xff]
    %v3362 = vld [vmem:[#allocation6 + $0x830] sm:$0xff]
    %v3363 = vld [vmem:[#allocation6 + $0x838] sm:$0xff]
    %v3364 = vld [vmem:[#allocation6 + $0x860] sm:$0xff]
    %v3365 = vld [vmem:[#allocation6 + $0x868] sm:$0xff]
    %v3366 = vld [vmem:[#allocation6 + $0x890] sm:$0xff]
    %v3367 = vld [vmem:[#allocation6 + $0x898] sm:$0xff]
    %v3368 = vld [vmem:[#allocation6 + $0x8c0] sm:$0xff]
    %v3369 = vld [vmem:[#allocation6 + $0x8c8] sm:$0xff]
    %v3370 = vld [vmem:[#allocation6 + $0x8f0] sm:$0xff]
    %v3371 = vld [vmem:[#allocation6 + $0x8f8] sm:$0xff]
    %v3372 = vld [vmem:[#allocation8 + $0x8] sm:$0xf]
    %v3374 = vperm.slane %v3372, 0
    %v3375 = vperm.slane %v3372, 1
    %v3376 = vperm.slane %v3372, 2
    %v3377 = vperm.slane %v3372, 3
    %v3478 = vunpack.c.l.b16 %v3276
    %v3479 = vunpack.c.h.b16 %v3276
    %v3480 = vunpack.c.l.b16 %v3277
    %v3481 = vunpack.c.h.b16 %v3277
    %v3482 = vunpack.c.l.b16 %v3278
    %v3483 = vunpack.c.h.b16 %v3278
    %v3484 = vunpack.c.l.b16 %v3279
    %v3485 = vunpack.c.h.b16 %v3279
    %v3486 = vunpack.c.l.b16 %v3280
    %v3487 = vunpack.c.h.b16 %v3280
    %v3488 = vunpack.c.l.b16 %v3281
    %v3489 = vunpack.c.h.b16 %v3281
    %v3490 = vunpack.c.l.b16 %v3282
    %v3491 = vunpack.c.h.b16 %v3282
    %v3492 = vunpack.c.l.b16 %v3283
    %v3493 = vunpack.c.h.b16 %v3283
    %v3494 = vunpack.c.l.b16 %v3284
    %v3495 = vunpack.c.h.b16 %v3284
    %v3496 = vunpack.c.l.b16 %v3285
    %v3497 = vunpack.c.h.b16 %v3285
    %v3498 = vunpack.c.l.b16 %v3286
    %v3499 = vunpack.c.h.b16 %v3286
    %v3500 = vunpack.c.l.b16 %v3287
    %v3501 = vunpack.c.h.b16 %v3287
    %v3502 = vunpack.c.l.b16 %v3288
    %v3503 = vunpack.c.h.b16 %v3288
    %v3504 = vunpack.c.l.b16 %v3289
    %v3505 = vunpack.c.h.b16 %v3289
    %v3506 = vunpack.c.l.b16 %v3290
    %v3507 = vunpack.c.h.b16 %v3290
    %v3508 = vunpack.c.l.b16 %v3291
    %v3509 = vunpack.c.h.b16 %v3291
    %v3510 = vunpack.c.l.b16 %v3292
    %v3511 = vunpack.c.h.b16 %v3292
    %v3512 = vunpack.c.l.b16 %v3293
    %v3513 = vunpack.c.h.b16 %v3293
    %v3514 = vunpack.c.l.b16 %v3294
    %v3515 = vunpack.c.h.b16 %v3294
    %v3516 = vunpack.c.l.b16 %v3295
    %v3517 = vunpack.c.h.b16 %v3295
    %v3518 = vunpack.c.l.b16 %v3296
    %v3519 = vunpack.c.h.b16 %v3296
    %v3520 = vunpack.c.l.b16 %v3297
    %v3521 = vunpack.c.h.b16 %v3297
    %v3522 = vunpack.c.l.b16 %v3298
    %v3523 = vunpack.c.h.b16 %v3298
    %v3524 = vunpack.c.l.b16 %v3299
    %v3525 = vunpack.c.h.b16 %v3299
    %v3526 = vunpack.c.l.b16 %v3300
    %v3527 = vunpack.c.h.b16 %v3300
    %v3528 = vunpack.c.l.b16 %v3301
    %v3529 = vunpack.c.h.b16 %v3301
    %v3530 = vunpack.c.l.b16 %v3302
    %v3531 = vunpack.c.h.b16 %v3302
    %v3532 = vunpack.c.l.b16 %v3303
    %v3533 = vunpack.c.h.b16 %v3303
    %v3534 = vunpack.c.l.b16 %v3304
    %v3535 = vunpack.c.h.b16 %v3304
    %v3536 = vunpack.c.l.b16 %v3305
    %v3537 = vunpack.c.h.b16 %v3305
    %v3538 = vunpack.c.l.b16 %v3306
    %v3539 = vunpack.c.h.b16 %v3306
    %v3540 = vunpack.c.l.b16 %v3307
    %v3541 = vunpack.c.h.b16 %v3307
    %v3542 = vunpack.c.l.b16 %v3308
    %v3543 = vunpack.c.h.b16 %v3308
    %v3544 = vunpack.c.l.b16 %v3309
    %v3545 = vunpack.c.h.b16 %v3309
    %v3546 = vunpack.c.l.b16 %v3310
    %v3547 = vunpack.c.h.b16 %v3310
    %v3548 = vunpack.c.l.b16 %v3311
    %v3549 = vunpack.c.h.b16 %v3311
    %v3550 = vunpack.c.l.b16 %v3312
    %v3551 = vunpack.c.h.b16 %v3312
    %v3552 = vunpack.c.l.b16 %v3313
    %v3553 = vunpack.c.h.b16 %v3313
    %v3554 = vunpack.c.l.b16 %v3314
    %v3555 = vunpack.c.h.b16 %v3314
    %v3556 = vunpack.c.l.b16 %v3315
    %v3557 = vunpack.c.h.b16 %v3315
    %v3558 = vunpack.c.l.b16 %v3316
    %v3559 = vunpack.c.h.b16 %v3316
    %v3560 = vunpack.c.l.b16 %v3317
    %v3561 = vunpack.c.h.b16 %v3317
    %v3562 = vunpack.c.l.b16 %v3318
    %v3563 = vunpack.c.h.b16 %v3318
    %v3564 = vunpack.c.l.b16 %v3319
    %v3565 = vunpack.c.h.b16 %v3319
    %v3566 = vunpack.c.l.b16 %v3320
    %v3567 = vunpack.c.h.b16 %v3320
    %v3568 = vunpack.c.l.b16 %v3321
    %v3569 = vunpack.c.h.b16 %v3321
    %v3570 = vunpack.c.l.b16 %v3322
    %v3571 = vunpack.c.h.b16 %v3322
    %v3572 = vunpack.c.l.b16 %v3323
    %v3573 = vunpack.c.h.b16 %v3323
    %v3574 = vunpack.c.l.b16 %v3324
    %v3575 = vunpack.c.h.b16 %v3324
    %v3576 = vunpack.c.l.b16 %v3325
    %v3577 = vunpack.c.h.b16 %v3325
    %v3578 = vunpack.c.l.b16 %v3326
    %v3579 = vunpack.c.h.b16 %v3326
    %v3580 = vunpack.c.l.b16 %v3327
    %v3581 = vunpack.c.h.b16 %v3327
    %v3582 = vunpack.c.l.b16 %v3328
    %v3583 = vunpack.c.h.b16 %v3328
    %v3584 = vunpack.c.l.b16 %v3329
    %v3585 = vunpack.c.h.b16 %v3329
    %v3586 = vunpack.c.l.b16 %v3330
    %v3587 = vunpack.c.h.b16 %v3330
    %v3588 = vunpack.c.l.b16 %v3331
    %v3589 = vunpack.c.h.b16 %v3331
    %v3590 = vunpack.c.l.b16 %v3332
    %v3591 = vunpack.c.h.b16 %v3332
    %v3592 = vunpack.c.l.b16 %v3333
    %v3593 = vunpack.c.h.b16 %v3333
    %v3594 = vunpack.c.l.b16 %v3334
    %v3595 = vunpack.c.h.b16 %v3334
    %v3596 = vunpack.c.l.b16 %v3335
    %v3597 = vunpack.c.h.b16 %v3335
    %v3598 = vunpack.c.l.b16 %v3336
    %v3599 = vunpack.c.h.b16 %v3336
    %v3600 = vunpack.c.l.b16 %v3337
    %v3601 = vunpack.c.h.b16 %v3337
    %v3602 = vunpack.c.l.b16 %v3338
    %v3603 = vunpack.c.h.b16 %v3338
    %v3604 = vunpack.c.l.b16 %v3339
    %v3605 = vunpack.c.h.b16 %v3339
    %v3606 = vunpack.c.l.b16 %v3340
    %v3607 = vunpack.c.h.b16 %v3340
    %v3608 = vunpack.c.l.b16 %v3341
    %v3609 = vunpack.c.h.b16 %v3341
    %v3610 = vunpack.c.l.b16 %v3342
    %v3611 = vunpack.c.h.b16 %v3342
    %v3612 = vunpack.c.l.b16 %v3343
    %v3613 = vunpack.c.h.b16 %v3343
    %v3614 = vunpack.c.l.b16 %v3344
    %v3615 = vunpack.c.h.b16 %v3344
    %v3616 = vunpack.c.l.b16 %v3345
    %v3617 = vunpack.c.h.b16 %v3345
    %v3618 = vunpack.c.l.b16 %v3346
    %v3619 = vunpack.c.h.b16 %v3346
    %v3620 = vunpack.c.l.b16 %v3347
    %v3621 = vunpack.c.h.b16 %v3347
    %v3622 = vunpack.c.l.b16 %v3348
    %v3623 = vunpack.c.h.b16 %v3348
    %v3624 = vunpack.c.l.b16 %v3349
    %v3625 = vunpack.c.h.b16 %v3349
    %v3626 = vunpack.c.l.b16 %v3350
    %v3627 = vunpack.c.h.b16 %v3350
    %v3628 = vunpack.c.l.b16 %v3351
    %v3629 = vunpack.c.h.b16 %v3351
    %v3630 = vunpack.c.l.b16 %v3352
    %v3631 = vunpack.c.h.b16 %v3352
    %v3632 = vunpack.c.l.b16 %v3353
    %v3633 = vunpack.c.h.b16 %v3353
    %v3634 = vunpack.c.l.b16 %v3354
    %v3635 = vunpack.c.h.b16 %v3354
    %v3636 = vunpack.c.l.b16 %v3355
    %v3637 = vunpack.c.h.b16 %v3355
    %v3638 = vunpack.c.l.b16 %v3356
    %v3639 = vunpack.c.h.b16 %v3356
    %v3640 = vunpack.c.l.b16 %v3357
    %v3641 = vunpack.c.h.b16 %v3357
    %v3642 = vunpack.c.l.b16 %v3358
    %v3643 = vunpack.c.h.b16 %v3358
    %v3644 = vunpack.c.l.b16 %v3359
    %v3645 = vunpack.c.h.b16 %v3359
    %v3646 = vunpack.c.l.b16 %v3360
    %v3647 = vunpack.c.h.b16 %v3360
    %v3648 = vunpack.c.l.b16 %v3361
    %v3649 = vunpack.c.h.b16 %v3361
    %v3650 = vunpack.c.l.b16 %v3362
    %v3651 = vunpack.c.h.b16 %v3362
    %v3652 = vunpack.c.l.b16 %v3363
    %v3653 = vunpack.c.h.b16 %v3363
    %v3654 = vunpack.c.l.b16 %v3364
    %v3655 = vunpack.c.h.b16 %v3364
    %v3656 = vunpack.c.l.b16 %v3365
    %v3657 = vunpack.c.h.b16 %v3365
    %v3658 = vunpack.c.l.b16 %v3366
    %v3659 = vunpack.c.h.b16 %v3366
    %v3660 = vunpack.c.l.b16 %v3367
    %v3661 = vunpack.c.h.b16 %v3367
    %v3662 = vunpack.c.l.b16 %v3368
    %v3663 = vunpack.c.h.b16 %v3368
    %v3664 = vunpack.c.l.b16 %v3369
    %v3665 = vunpack.c.h.b16 %v3369
    %v3666 = vunpack.c.l.b16 %v3370
    %v3667 = vunpack.c.h.b16 %v3370
    %v3668 = vunpack.c.l.b16 %v3371
    %v3669 = vunpack.c.h.b16 %v3371
    %v3670 = vpack.c.b16 %v3482, %v3478
    %v3671 = vpack.c.b16 %v3483, %v3479
    %v3672 = vpack.c.b16 %v3484, %v3480
    %v3673 = vpack.c.b16 %v3485, %v3481
    %v3674 = vpack.c.b16 %v3490, %v3486
    %v3675 = vpack.c.b16 %v3491, %v3487
    %v3676 = vpack.c.b16 %v3492, %v3488
    %v3677 = vpack.c.b16 %v3493, %v3489
    %v3678 = vpack.c.b16 %v3498, %v3494
    %v3679 = vpack.c.b16 %v3499, %v3495
    %v3680 = vpack.c.b16 %v3500, %v3496
    %v3681 = vpack.c.b16 %v3501, %v3497
    %v3682 = vpack.c.b16 %v3506, %v3502
    %v3683 = vpack.c.b16 %v3507, %v3503
    %v3684 = vpack.c.b16 %v3508, %v3504
    %v3685 = vpack.c.b16 %v3509, %v3505
    %v3686 = vpack.c.b16 %v3514, %v3510
    %v3687 = vpack.c.b16 %v3515, %v3511
    %v3688 = vpack.c.b16 %v3516, %v3512
    %v3689 = vpack.c.b16 %v3517, %v3513
    %v3690 = vpack.c.b16 %v3522, %v3518
    %v3691 = vpack.c.b16 %v3523, %v3519
    %v3692 = vpack.c.b16 %v3524, %v3520
    %v3693 = vpack.c.b16 %v3525, %v3521
    %v3694 = vpack.c.b16 %v3530, %v3526
    %v3695 = vpack.c.b16 %v3531, %v3527
    %v3696 = vpack.c.b16 %v3532, %v3528
    %v3697 = vpack.c.b16 %v3533, %v3529
    %v3698 = vpack.c.b16 %v3538, %v3534
    %v3699 = vpack.c.b16 %v3539, %v3535
    %v3700 = vpack.c.b16 %v3540, %v3536
    %v3701 = vpack.c.b16 %v3541, %v3537
    %v3702 = vpack.c.b16 %v3546, %v3542
    %v3703 = vpack.c.b16 %v3547, %v3543
    %v3704 = vpack.c.b16 %v3548, %v3544
    %v3705 = vpack.c.b16 %v3549, %v3545
    %v3706 = vpack.c.b16 %v3554, %v3550
    %v3707 = vpack.c.b16 %v3555, %v3551
    %v3708 = vpack.c.b16 %v3556, %v3552
    %v3709 = vpack.c.b16 %v3557, %v3553
    %v3710 = vpack.c.b16 %v3562, %v3558
    %v3711 = vpack.c.b16 %v3563, %v3559
    %v3712 = vpack.c.b16 %v3564, %v3560
    %v3713 = vpack.c.b16 %v3565, %v3561
    %v3714 = vpack.c.b16 %v3570, %v3566
    %v3715 = vpack.c.b16 %v3571, %v3567
    %v3716 = vpack.c.b16 %v3572, %v3568
    %v3717 = vpack.c.b16 %v3573, %v3569
    %v3718 = vpack.c.b16 %v3578, %v3574
    %v3719 = vpack.c.b16 %v3579, %v3575
    %v3720 = vpack.c.b16 %v3580, %v3576
    %v3721 = vpack.c.b16 %v3581, %v3577
    %v3722 = vpack.c.b16 %v3586, %v3582
    %v3723 = vpack.c.b16 %v3587, %v3583
    %v3724 = vpack.c.b16 %v3588, %v3584
    %v3725 = vpack.c.b16 %v3589, %v3585
    %v3726 = vpack.c.b16 %v3594, %v3590
    %v3727 = vpack.c.b16 %v3595, %v3591
    %v3728 = vpack.c.b16 %v3596, %v3592
    %v3729 = vpack.c.b16 %v3597, %v3593
    %v3730 = vpack.c.b16 %v3602, %v3598
    %v3731 = vpack.c.b16 %v3603, %v3599
    %v3732 = vpack.c.b16 %v3604, %v3600
    %v3733 = vpack.c.b16 %v3605, %v3601
    %v3734 = vpack.c.b16 %v3610, %v3606
    %v3735 = vpack.c.b16 %v3611, %v3607
    %v3736 = vpack.c.b16 %v3612, %v3608
    %v3737 = vpack.c.b16 %v3613, %v3609
    %v3738 = vpack.c.b16 %v3618, %v3614
    %v3739 = vpack.c.b16 %v3619, %v3615
    %v3740 = vpack.c.b16 %v3620, %v3616
    %v3741 = vpack.c.b16 %v3621, %v3617
    %v3742 = vpack.c.b16 %v3626, %v3622
    %v3743 = vpack.c.b16 %v3627, %v3623
    %v3744 = vpack.c.b16 %v3628, %v3624
    %v3745 = vpack.c.b16 %v3629, %v3625
    %v3746 = vpack.c.b16 %v3634, %v3630
    %v3747 = vpack.c.b16 %v3635, %v3631
    %v3748 = vpack.c.b16 %v3636, %v3632
    %v3749 = vpack.c.b16 %v3637, %v3633
    %v3750 = vpack.c.b16 %v3642, %v3638
    %v3751 = vpack.c.b16 %v3643, %v3639
    %v3752 = vpack.c.b16 %v3644, %v3640
    %v3753 = vpack.c.b16 %v3645, %v3641
    %v3754 = vpack.c.b16 %v3650, %v3646
    %v3755 = vpack.c.b16 %v3651, %v3647
    %v3756 = vpack.c.b16 %v3652, %v3648
    %v3757 = vpack.c.b16 %v3653, %v3649
    %v3758 = vpack.c.b16 %v3658, %v3654
    %v3759 = vpack.c.b16 %v3659, %v3655
    %v3760 = vpack.c.b16 %v3660, %v3656
    %v3761 = vpack.c.b16 %v3661, %v3657
    %v3762 = vpack.c.b16 %v3666, %v3662
    %v3763 = vpack.c.b16 %v3667, %v3663
    %v3764 = vpack.c.b16 %v3668, %v3664
    %v3765 = vpack.c.b16 %v3669, %v3665
    %3862 = vmatpush.bf16.msra.mxu0 %v3698
    %3863 = vmatpush.bf16.msra.mxu0 %v3694
    %3864 = vmatpush.bf16.msra.mxu0 %v3690
    %3865 = vmatpush.bf16.msra.mxu0 %v3686
    %3866 = vmatpush.bf16.msra.mxu0 %v3682
    %3867 = vmatpush.bf16.msra.mxu0 %v3678
    %3868 = vmatpush.bf16.msra.mxu0 %v3674
    %3869 = vmatpush.bf16.msra.mxu0 %v3670
    %3870 = vmatmul.bf16.gmra.mxu0 %v101
    %v3871 = vpop.f32.mrf.mxu0
    %v3872 = vadd.f32 %v3374, %v3871
    %v3873 = vpop.f32.mrf.mxu0
    %v3874 = vadd.f32 %v3374, %v3873
    %3875 = vdwg.mxu0
    %3876 = vmatpush.bf16.msra.mxu0 %v3730
    %3877 = vmatpush.bf16.msra.mxu0 %v3726
    %3878 = vmatpush.bf16.msra.mxu0 %v3722
    %3879 = vmatpush.bf16.msra.mxu0 %v3718
    %3880 = vmatpush.bf16.msra.mxu0 %v3714
    %3881 = vmatpush.bf16.msra.mxu0 %v3710
    %3882 = vmatpush.bf16.msra.mxu0 %v3706
    %3883 = vmatpush.bf16.msra.mxu0 %v3702
    %3884 = vmatmul.bf16.gmra.mxu0 %v102
    %v3885 = vpop.f32.mrf.mxu0
    %v3886 = vadd.f32 %v3872, %v3885
    %v3887 = vpop.f32.mrf.mxu0
    %v3888 = vadd.f32 %v3874, %v3887
    %3889 = vdwg.mxu0
    %3890 = vmatpush.bf16.msra.mxu0 %v3762
    %3891 = vmatpush.bf16.msra.mxu0 %v3758
    %3892 = vmatpush.bf16.msra.mxu0 %v3754
    %3893 = vmatpush.bf16.msra.mxu0 %v3750
    %3894 = vmatpush.bf16.msra.mxu0 %v3746
    %3895 = vmatpush.bf16.msra.mxu0 %v3742
    %3896 = vmatpush.bf16.msra.mxu0 %v3738
    %3897 = vmatpush.bf16.msra.mxu0 %v3734
    %3898 = vmatmul.bf16.gmra.mxu0 %v103
    %v3899 = vpop.f32.mrf.mxu0
    %v3900 = vadd.f32 %v3886, %v3899
    %v3901 = vpop.f32.mrf.mxu0
    %v3902 = vadd.f32 %v3888, %v3901
    %3903 = vdwg.mxu0
    %3904 = vmatpush.bf16.msra.mxu0 %v3699
    %3905 = vmatpush.bf16.msra.mxu0 %v3695
    %3906 = vmatpush.bf16.msra.mxu0 %v3691
    %3907 = vmatpush.bf16.msra.mxu0 %v3687
    %3908 = vmatpush.bf16.msra.mxu0 %v3683
    %3909 = vmatpush.bf16.msra.mxu0 %v3679
    %3910 = vmatpush.bf16.msra.mxu0 %v3675
    %3911 = vmatpush.bf16.msra.mxu0 %v3671
    %3912 = vmatmul.bf16.gmra.mxu0 %v101
    %v3913 = vpop.f32.mrf.mxu0
    %v3914 = vadd.f32 %v3375, %v3913
    %v3915 = vpop.f32.mrf.mxu0
    %v3916 = vadd.f32 %v3375, %v3915
    %3917 = vdwg.mxu0
    %3918 = vmatpush.bf16.msra.mxu0 %v3731
    %3919 = vmatpush.bf16.msra.mxu0 %v3727
    %3920 = vmatpush.bf16.msra.mxu0 %v3723
    %3921 = vmatpush.bf16.msra.mxu0 %v3719
    %3922 = vmatpush.bf16.msra.mxu0 %v3715
    %3923 = vmatpush.bf16.msra.mxu0 %v3711
    %3924 = vmatpush.bf16.msra.mxu0 %v3707
    %3925 = vmatpush.bf16.msra.mxu0 %v3703
    %3926 = vmatmul.bf16.gmra.mxu0 %v102
    %v3927 = vpop.f32.mrf.mxu0
    %v3928 = vadd.f32 %v3914, %v3927
    %v3929 = vpop.f32.mrf.mxu0
    %v3930 = vadd.f32 %v3916, %v3929
    %3931 = vdwg.mxu0
    %3932 = vmatpush.bf16.msra.mxu0 %v3763
    %3933 = vmatpush.bf16.msra.mxu0 %v3759
    %3934 = vmatpush.bf16.msra.mxu0 %v3755
    %3935 = vmatpush.bf16.msra.mxu0 %v3751
    %3936 = vmatpush.bf16.msra.mxu0 %v3747
    %3937 = vmatpush.bf16.msra.mxu0 %v3743
    %3938 = vmatpush.bf16.msra.mxu0 %v3739
    %3939 = vmatpush.bf16.msra.mxu0 %v3735
    %3940 = vmatmul.bf16.gmra.mxu0 %v103
    %v3941 = vpop.f32.mrf.mxu0
    %v3942 = vadd.f32 %v3928, %v3941
    %v3943 = vpop.f32.mrf.mxu0
    %v3944 = vadd.f32 %v3930, %v3943
    %3945 = vdwg.mxu0
    %3946 = vmatpush.bf16.msra.mxu0 %v3700
    %3947 = vmatpush.bf16.msra.mxu0 %v3696
    %3948 = vmatpush.bf16.msra.mxu0 %v3692
    %3949 = vmatpush.bf16.msra.mxu0 %v3688
    %3950 = vmatpush.bf16.msra.mxu0 %v3684
    %3951 = vmatpush.bf16.msra.mxu0 %v3680
    %3952 = vmatpush.bf16.msra.mxu0 %v3676
    %3953 = vmatpush.bf16.msra.mxu0 %v3672
    %3954 = vmatmul.bf16.gmra.mxu0 %v101
    %v3955 = vpop.f32.mrf.mxu0
    %v3956 = vadd.f32 %v3376, %v3955
    %v3957 = vpop.f32.mrf.mxu0
    %v3958 = vadd.f32 %v3376, %v3957
    %3959 = vdwg.mxu0
    %3960 = vmatpush.bf16.msra.mxu0 %v3732
    %3961 = vmatpush.bf16.msra.mxu0 %v3728
    %3962 = vmatpush.bf16.msra.mxu0 %v3724
    %3963 = vmatpush.bf16.msra.mxu0 %v3720
    %3964 = vmatpush.bf16.msra.mxu0 %v3716
    %3965 = vmatpush.bf16.msra.mxu0 %v3712
    %3966 = vmatpush.bf16.msra.mxu0 %v3708
    %3967 = vmatpush.bf16.msra.mxu0 %v3704
    %3968 = vmatmul.bf16.gmra.mxu0 %v102
    %v3969 = vpop.f32.mrf.mxu0
    %v3970 = vadd.f32 %v3956, %v3969
    %v3971 = vpop.f32.mrf.mxu0
    %v3972 = vadd.f32 %v3958, %v3971
    %3973 = vdwg.mxu0
    %3974 = vmatpush.bf16.msra.mxu0 %v3764
    %3975 = vmatpush.bf16.msra.mxu0 %v3760
    %3976 = vmatpush.bf16.msra.mxu0 %v3756
    %3977 = vmatpush.bf16.msra.mxu0 %v3752
    %3978 = vmatpush.bf16.msra.mxu0 %v3748
    %3979 = vmatpush.bf16.msra.mxu0 %v3744
    %3980 = vmatpush.bf16.msra.mxu0 %v3740
    %3981 = vmatpush.bf16.msra.mxu0 %v3736
    %3982 = vmatmul.bf16.gmra.mxu0 %v103
    %v3983 = vpop.f32.mrf.mxu0
    %v3984 = vadd.f32 %v3970, %v3983
    %v3985 = vpop.f32.mrf.mxu0
    %v3986 = vadd.f32 %v3972, %v3985
    %3987 = vdwg.mxu0
    %3988 = vmatpush.bf16.msra.mxu0 %v3701
    %3989 = vmatpush.bf16.msra.mxu0 %v3697
    %3990 = vmatpush.bf16.msra.mxu0 %v3693
    %3991 = vmatpush.bf16.msra.mxu0 %v3689
    %3992 = vmatpush.bf16.msra.mxu0 %v3685
    %3993 = vmatpush.bf16.msra.mxu0 %v3681
    %3994 = vmatpush.bf16.msra.mxu0 %v3677
    %3995 = vmatpush.bf16.msra.mxu0 %v3673
    %3996 = vmatmul.bf16.gmra.mxu0 %v101
    %v3997 = vpop.f32.mrf.mxu0
    %v3998 = vadd.f32 %v3377, %v3997
    %v3999 = vpop.f32.mrf.mxu0
    %v4000 = vadd.f32 %v3377, %v3999
    %4001 = vdwg.mxu0
    %4002 = vmatpush.bf16.msra.mxu0 %v3733
    %4003 = vmatpush.bf16.msra.mxu0 %v3729
    %4004 = vmatpush.bf16.msra.mxu0 %v3725
    %4005 = vmatpush.bf16.msra.mxu0 %v3721
    %4006 = vmatpush.bf16.msra.mxu0 %v3717
    %4007 = vmatpush.bf16.msra.mxu0 %v3713
    %4008 = vmatpush.bf16.msra.mxu0 %v3709
    %4009 = vmatpush.bf16.msra.mxu0 %v3705
    %4010 = vmatmul.bf16.gmra.mxu0 %v102
    %v4011 = vpop.f32.mrf.mxu0
    %v4012 = vadd.f32 %v3998, %v4011
    %v4013 = vpop.f32.mrf.mxu0
    %v4014 = vadd.f32 %v4000, %v4013
    %4015 = vdwg.mxu0
    %4016 = vmatpush.bf16.msra.mxu0 %v3765
    %4017 = vmatpush.bf16.msra.mxu0 %v3761
    %4018 = vmatpush.bf16.msra.mxu0 %v3757
    %4019 = vmatpush.bf16.msra.mxu0 %v3753
    %4020 = vmatpush.bf16.msra.mxu0 %v3749
    %4021 = vmatpush.bf16.msra.mxu0 %v3745
    %4022 = vmatpush.bf16.msra.mxu0 %v3741
    %4023 = vmatpush.bf16.msra.mxu0 %v3737
    %4024 = vmatmul.bf16.gmra.mxu0 %v103
    %v4025 = vpop.f32.mrf.mxu0
    %v4026 = vadd.f32 %v4012, %v4025
    %v4027 = vpop.f32.mrf.mxu0
    %v4028 = vadd.f32 %v4014, %v4027
    %4029 = vdwg.mxu0
    %v4030 = vmax.f32 %v3900, 0.0
    %v4031 = vmax.f32 %v3942, 0.0
    %v4032 = vmax.f32 %v3984, 0.0
    %v4033 = vmax.f32 %v4026, 0.0
    %v4034 = vmax.f32 %v3902, 0.0
    %v4035 = vmax.f32 %v3944, 0.0
    %v4036 = vmax.f32 %v3986, 0.0
    %v4037 = vmax.f32 %v4028, 0.0
    %v4038 = vpack.c.bf16 %v4034, %v4030
    %v4039 = vpack.c.bf16 %v4035, %v4031
    %v4040 = vpack.c.bf16 %v4036, %v4032
    %v4041 = vpack.c.bf16 %v4037, %v4033
    %v4042 = vld [vmem:[#allocation9 + $0x600] sm:$0xff]
    %v4043 = vld [vmem:[#allocation9 + $0x608] sm:$0xf]
    %v4044 = vld [vmem:[#allocation9 + $0x60c] sm:$0xff]
    %v4045 = vld [vmem:[#allocation9 + $0x614] sm:$0xf]
    %v4046 = vld [vmem:[#allocation9 + $0x618] sm:$0xff]
    %v4047 = vld [vmem:[#allocation9 + $0x620] sm:$0xf]
    %v4048 = vld [vmem:[#allocation9 + $0x624] sm:$0xff]
    %v4049 = vld [vmem:[#allocation9 + $0x62c] sm:$0xf]
    %v4050 = vld [vmem:[#allocation9 + $0x630] sm:$0xff]
    %v4051 = vld [vmem:[#allocation9 + $0x638] sm:$0xf]
    %v4052 = vld [vmem:[#allocation9 + $0x63c] sm:$0xff]
    %v4053 = vld [vmem:[#allocation9 + $0x644] sm:$0xf]
    %v4054 = vld [vmem:[#allocation9 + $0x648] sm:$0xff]
    %v4055 = vld [vmem:[#allocation9 + $0x650] sm:$0xf]
    %v4056 = vld [vmem:[#allocation9 + $0x654] sm:$0xff]
    %v4057 = vld [vmem:[#allocation9 + $0x65c] sm:$0xf]
    %v4058 = vld [vmem:[#allocation9 + $0x660] sm:$0xff]
    %v4059 = vld [vmem:[#allocation9 + $0x668] sm:$0xf]
    %v4060 = vld [vmem:[#allocation9 + $0x66c] sm:$0xff]
    %v4061 = vld [vmem:[#allocation9 + $0x674] sm:$0xf]
    %v4062 = vld [vmem:[#allocation9 + $0x678] sm:$0xff]
    %v4063 = vld [vmem:[#allocation9 + $0x680] sm:$0xf]
    %v4064 = vld [vmem:[#allocation9 + $0x684] sm:$0xff]
    %v4065 = vld [vmem:[#allocation9 + $0x68c] sm:$0xf]
    %v4066 = vld [vmem:[#allocation9 + $0x690] sm:$0xff]
    %v4067 = vld [vmem:[#allocation9 + $0x698] sm:$0xf]
    %v4068 = vld [vmem:[#allocation9 + $0x69c] sm:$0xff]
    %v4069 = vld [vmem:[#allocation9 + $0x6a4] sm:$0xf]
    %v4070 = vld [vmem:[#allocation9 + $0x6a8] sm:$0xff]
    %v4071 = vld [vmem:[#allocation9 + $0x6b0] sm:$0xf]
    %v4072 = vld [vmem:[#allocation9 + $0x6b4] sm:$0xff]
    %v4073 = vld [vmem:[#allocation9 + $0x6bc] sm:$0xf]
    %v4074 = vld [vmem:[#allocation9 + $0x6c0] sm:$0xff]
    %v4075 = vld [vmem:[#allocation9 + $0x6c8] sm:$0xf]
    %v4076 = vld [vmem:[#allocation9 + $0x6cc] sm:$0xff]
    %v4077 = vld [vmem:[#allocation9 + $0x6d4] sm:$0xf]
    %v4078 = vld [vmem:[#allocation9 + $0x6d8] sm:$0xff]
    %v4079 = vld [vmem:[#allocation9 + $0x6e0] sm:$0xf]
    %v4080 = vld [vmem:[#allocation9 + $0x6e4] sm:$0xff]
    %v4081 = vld [vmem:[#allocation9 + $0x6ec] sm:$0xf]
    %v4082 = vld [vmem:[#allocation9 + $0x6f0] sm:$0xff]
    %v4083 = vld [vmem:[#allocation9 + $0x6f8] sm:$0xf]
    %v4084 = vld [vmem:[#allocation9 + $0x6fc] sm:$0xff]
    %v4085 = vld [vmem:[#allocation9 + $0x704] sm:$0xf]
    %v4086 = vld [vmem:[#allocation9 + $0x708] sm:$0xff]
    %v4087 = vld [vmem:[#allocation9 + $0x710] sm:$0xf]
    %v4088 = vld [vmem:[#allocation9 + $0x714] sm:$0xff]
    %v4089 = vld [vmem:[#allocation9 + $0x71c] sm:$0xf]
    %v4090 = vld [vmem:[#allocation9 + $0x720] sm:$0xff]
    %v4091 = vld [vmem:[#allocation9 + $0x728] sm:$0xf]
    %v4092 = vld [vmem:[#allocation9 + $0x72c] sm:$0xff]
    %v4093 = vld [vmem:[#allocation9 + $0x734] sm:$0xf]
    %v4094 = vld [vmem:[#allocation9 + $0x738] sm:$0xff]
    %v4095 = vld [vmem:[#allocation9 + $0x740] sm:$0xf]
    %v4096 = vld [vmem:[#allocation9 + $0x744] sm:$0xff]
    %v4097 = vld [vmem:[#allocation9 + $0x74c] sm:$0xf]
    %v4098 = vld [vmem:[#allocation9 + $0x750] sm:$0xff]
    %v4099 = vld [vmem:[#allocation9 + $0x758] sm:$0xf]
    %v4100 = vld [vmem:[#allocation9 + $0x75c] sm:$0xff]
    %v4101 = vld [vmem:[#allocation9 + $0x764] sm:$0xf]
    %v4102 = vld [vmem:[#allocation9 + $0x768] sm:$0xff]
    %v4103 = vld [vmem:[#allocation9 + $0x770] sm:$0xf]
    %v4104 = vld [vmem:[#allocation9 + $0x774] sm:$0xff]
    %v4105 = vld [vmem:[#allocation9 + $0x77c] sm:$0xf]
    %v4106 = vld [vmem:[#allocation9 + $0x780] sm:$0xff]
    %v4107 = vld [vmem:[#allocation9 + $0x788] sm:$0xf]
    %v4108 = vld [vmem:[#allocation9 + $0x78c] sm:$0xff]
    %v4109 = vld [vmem:[#allocation9 + $0x794] sm:$0xf]
    %v4110 = vld [vmem:[#allocation9 + $0x798] sm:$0xff]
    %v4111 = vld [vmem:[#allocation9 + $0x7a0] sm:$0xf]
    %v4112 = vld [vmem:[#allocation9 + $0x7a4] sm:$0xff]
    %v4113 = vld [vmem:[#allocation9 + $0x7ac] sm:$0xf]
    %v4114 = vld [vmem:[#allocation9 + $0x7b0] sm:$0xff]
    %v4115 = vld [vmem:[#allocation9 + $0x7b8] sm:$0xf]
    %v4116 = vld [vmem:[#allocation9 + $0x7bc] sm:$0xff]
    %v4117 = vld [vmem:[#allocation9 + $0x7c4] sm:$0xf]
    %v4118 = vld [vmem:[#allocation9 + $0x7c8] sm:$0xff]
    %v4119 = vld [vmem:[#allocation9 + $0x7d0] sm:$0xf]
    %v4120 = vld [vmem:[#allocation9 + $0x7d4] sm:$0xff]
    %v4121 = vld [vmem:[#allocation9 + $0x7dc] sm:$0xf]
    %v4122 = vld [vmem:[#allocation9 + $0x7e0] sm:$0xff]
    %v4123 = vld [vmem:[#allocation9 + $0x7e8] sm:$0xf]
    %v4124 = vld [vmem:[#allocation9 + $0x7ec] sm:$0xff]
    %v4125 = vld [vmem:[#allocation9 + $0x7f4] sm:$0xf]
    %v4126 = vld [vmem:[#allocation9 + $0x7f8] sm:$0xff]
    %v4127 = vld [vmem:[#allocation9 + $0x800] sm:$0xf]
    %v4128 = vld [vmem:[#allocation9 + $0x804] sm:$0xff]
    %v4129 = vld [vmem:[#allocation9 + $0x80c] sm:$0xf]
    %v4130 = vld [vmem:[#allocation9 + $0x810] sm:$0xff]
    %v4131 = vld [vmem:[#allocation9 + $0x818] sm:$0xf]
    %v4132 = vld [vmem:[#allocation9 + $0x81c] sm:$0xff]
    %v4133 = vld [vmem:[#allocation9 + $0x824] sm:$0xf]
    %v4134 = vld [vmem:[#allocation9 + $0x828] sm:$0xff]
    %v4135 = vld [vmem:[#allocation9 + $0x830] sm:$0xf]
    %v4136 = vld [vmem:[#allocation9 + $0x834] sm:$0xff]
    %v4137 = vld [vmem:[#allocation9 + $0x83c] sm:$0xf]
    %v4138 = vld [vmem:[#allocation9 + $0x840] sm:$0xff]
    %v4139 = vld [vmem:[#allocation9 + $0x848] sm:$0xf]
    %v4140 = vld [vmem:[#allocation9 + $0x84c] sm:$0xff]
    %v4141 = vld [vmem:[#allocation9 + $0x854] sm:$0xf]
    %v4142 = vld [vmem:[#allocation9 + $0x858] sm:$0xff]
    %v4143 = vld [vmem:[#allocation9 + $0x860] sm:$0xf]
    %v4144 = vld [vmem:[#allocation9 + $0x864] sm:$0xff]
    %v4145 = vld [vmem:[#allocation9 + $0x86c] sm:$0xf]
    %v4146 = vld [vmem:[#allocation9 + $0x870] sm:$0xff]
    %v4147 = vld [vmem:[#allocation9 + $0x878] sm:$0xf]
    %v4148 = vld [vmem:[#allocation9 + $0x87c] sm:$0xff]
    %v4149 = vld [vmem:[#allocation9 + $0x884] sm:$0xf]
    %v4150 = vld [vmem:[#allocation9 + $0x888] sm:$0xff]
    %v4151 = vld [vmem:[#allocation9 + $0x890] sm:$0xf]
    %v4152 = vld [vmem:[#allocation9 + $0x894] sm:$0xff]
    %v4153 = vld [vmem:[#allocation9 + $0x89c] sm:$0xf]
    %v4154 = vld [vmem:[#allocation9 + $0x8a0] sm:$0xff]
    %v4155 = vld [vmem:[#allocation9 + $0x8a8] sm:$0xf]
    %v4156 = vld [vmem:[#allocation9 + $0x8ac] sm:$0xff]
    %v4157 = vld [vmem:[#allocation9 + $0x8b4] sm:$0xf]
    %v4158 = vld [vmem:[#allocation9 + $0x8b8] sm:$0xff]
    %v4159 = vld [vmem:[#allocation9 + $0x8c0] sm:$0xf]
    %v4160 = vld [vmem:[#allocation9 + $0x8c4] sm:$0xff]
    %v4161 = vld [vmem:[#allocation9 + $0x8cc] sm:$0xf]
    %v4162 = vld [vmem:[#allocation9 + $0x8d0] sm:$0xff]
    %v4163 = vld [vmem:[#allocation9 + $0x8d8] sm:$0xf]
    %v4164 = vld [vmem:[#allocation9 + $0x8dc] sm:$0xff]
    %v4165 = vld [vmem:[#allocation9 + $0x8e4] sm:$0xf]
    %v4166 = vld [vmem:[#allocation9 + $0x8e8] sm:$0xff]
    %v4167 = vld [vmem:[#allocation9 + $0x8f0] sm:$0xf]
    %v4168 = vld [vmem:[#allocation9 + $0x8f4] sm:$0xff]
    %v4169 = vld [vmem:[#allocation9 + $0x8fc] sm:$0xf]
    %v4298 = vunpack.c.l.b16 %v4042
    %v4299 = vunpack.c.h.b16 %v4042
    %v4300 = vunpack.c.l.b16 %v4043
    %v4301 = vunpack.c.l.b16 %v4044
    %v4302 = vunpack.c.h.b16 %v4044
    %v4303 = vunpack.c.l.b16 %v4045
    %v4304 = vunpack.c.l.b16 %v4046
    %v4305 = vunpack.c.h.b16 %v4046
    %v4306 = vunpack.c.l.b16 %v4047
    %v4307 = vunpack.c.l.b16 %v4048
    %v4308 = vunpack.c.h.b16 %v4048
    %v4309 = vunpack.c.l.b16 %v4049
    %v4310 = vunpack.c.l.b16 %v4050
    %v4311 = vunpack.c.h.b16 %v4050
    %v4312 = vunpack.c.l.b16 %v4051
    %v4313 = vunpack.c.l.b16 %v4052
    %v4314 = vunpack.c.h.b16 %v4052
    %v4315 = vunpack.c.l.b16 %v4053
    %v4316 = vunpack.c.l.b16 %v4054
    %v4317 = vunpack.c.h.b16 %v4054
    %v4318 = vunpack.c.l.b16 %v4055
    %v4319 = vunpack.c.l.b16 %v4056
    %v4320 = vunpack.c.h.b16 %v4056
    %v4321 = vunpack.c.l.b16 %v4057
    %v4322 = vunpack.c.l.b16 %v4058
    %v4323 = vunpack.c.h.b16 %v4058
    %v4324 = vunpack.c.l.b16 %v4059
    %v4325 = vunpack.c.l.b16 %v4060
    %v4326 = vunpack.c.h.b16 %v4060
    %v4327 = vunpack.c.l.b16 %v4061
    %v4328 = vunpack.c.l.b16 %v4062
    %v4329 = vunpack.c.h.b16 %v4062
    %v4330 = vunpack.c.l.b16 %v4063
    %v4331 = vunpack.c.l.b16 %v4064
    %v4332 = vunpack.c.h.b16 %v4064
    %v4333 = vunpack.c.l.b16 %v4065
    %v4334 = vunpack.c.l.b16 %v4066
    %v4335 = vunpack.c.h.b16 %v4066
    %v4336 = vunpack.c.l.b16 %v4067
    %v4337 = vunpack.c.l.b16 %v4068
    %v4338 = vunpack.c.h.b16 %v4068
    %v4339 = vunpack.c.l.b16 %v4069
    %v4340 = vunpack.c.l.b16 %v4070
    %v4341 = vunpack.c.h.b16 %v4070
    %v4342 = vunpack.c.l.b16 %v4071
    %v4343 = vunpack.c.l.b16 %v4072
    %v4344 = vunpack.c.h.b16 %v4072
    %v4345 = vunpack.c.l.b16 %v4073
    %v4346 = vunpack.c.l.b16 %v4074
    %v4347 = vunpack.c.h.b16 %v4074
    %v4348 = vunpack.c.l.b16 %v4075
    %v4349 = vunpack.c.l.b16 %v4076
    %v4350 = vunpack.c.h.b16 %v4076
    %v4351 = vunpack.c.l.b16 %v4077
    %v4352 = vunpack.c.l.b16 %v4078
    %v4353 = vunpack.c.h.b16 %v4078
    %v4354 = vunpack.c.l.b16 %v4079
    %v4355 = vunpack.c.l.b16 %v4080
    %v4356 = vunpack.c.h.b16 %v4080
    %v4357 = vunpack.c.l.b16 %v4081
    %v4358 = vunpack.c.l.b16 %v4082
    %v4359 = vunpack.c.h.b16 %v4082
    %v4360 = vunpack.c.l.b16 %v4083
    %v4361 = vunpack.c.l.b16 %v4084
    %v4362 = vunpack.c.h.b16 %v4084
    %v4363 = vunpack.c.l.b16 %v4085
    %v4364 = vunpack.c.l.b16 %v4086
    %v4365 = vunpack.c.h.b16 %v4086
    %v4366 = vunpack.c.l.b16 %v4087
    %v4367 = vunpack.c.l.b16 %v4088
    %v4368 = vunpack.c.h.b16 %v4088
    %v4369 = vunpack.c.l.b16 %v4089
    %v4370 = vunpack.c.l.b16 %v4090
    %v4371 = vunpack.c.h.b16 %v4090
    %v4372 = vunpack.c.l.b16 %v4091
    %v4373 = vunpack.c.l.b16 %v4092
    %v4374 = vunpack.c.h.b16 %v4092
    %v4375 = vunpack.c.l.b16 %v4093
    %v4376 = vunpack.c.l.b16 %v4094
    %v4377 = vunpack.c.h.b16 %v4094
    %v4378 = vunpack.c.l.b16 %v4095
    %v4379 = vunpack.c.l.b16 %v4096
    %v4380 = vunpack.c.h.b16 %v4096
    %v4381 = vunpack.c.l.b16 %v4097
    %v4382 = vunpack.c.l.b16 %v4098
    %v4383 = vunpack.c.h.b16 %v4098
    %v4384 = vunpack.c.l.b16 %v4099
    %v4385 = vunpack.c.l.b16 %v4100
    %v4386 = vunpack.c.h.b16 %v4100
    %v4387 = vunpack.c.l.b16 %v4101
    %v4388 = vunpack.c.l.b16 %v4102
    %v4389 = vunpack.c.h.b16 %v4102
    %v4390 = vunpack.c.l.b16 %v4103
    %v4391 = vunpack.c.l.b16 %v4104
    %v4392 = vunpack.c.h.b16 %v4104
    %v4393 = vunpack.c.l.b16 %v4105
    %v4394 = vunpack.c.l.b16 %v4106
    %v4395 = vunpack.c.h.b16 %v4106
    %v4396 = vunpack.c.l.b16 %v4107
    %v4397 = vunpack.c.l.b16 %v4108
    %v4398 = vunpack.c.h.b16 %v4108
    %v4399 = vunpack.c.l.b16 %v4109
    %v4400 = vunpack.c.l.b16 %v4110
    %v4401 = vunpack.c.h.b16 %v4110
    %v4402 = vunpack.c.l.b16 %v4111
    %v4403 = vunpack.c.l.b16 %v4112
    %v4404 = vunpack.c.h.b16 %v4112
    %v4405 = vunpack.c.l.b16 %v4113
    %v4406 = vunpack.c.l.b16 %v4114
    %v4407 = vunpack.c.h.b16 %v4114
    %v4408 = vunpack.c.l.b16 %v4115
    %v4409 = vunpack.c.l.b16 %v4116
    %v4410 = vunpack.c.h.b16 %v4116
    %v4411 = vunpack.c.l.b16 %v4117
    %v4412 = vunpack.c.l.b16 %v4118
    %v4413 = vunpack.c.h.b16 %v4118
    %v4414 = vunpack.c.l.b16 %v4119
    %v4415 = vunpack.c.l.b16 %v4120
    %v4416 = vunpack.c.h.b16 %v4120
    %v4417 = vunpack.c.l.b16 %v4121
    %v4418 = vunpack.c.l.b16 %v4122
    %v4419 = vunpack.c.h.b16 %v4122
    %v4420 = vunpack.c.l.b16 %v4123
    %v4421 = vunpack.c.l.b16 %v4124
    %v4422 = vunpack.c.h.b16 %v4124
    %v4423 = vunpack.c.l.b16 %v4125
    %v4424 = vunpack.c.l.b16 %v4126
    %v4425 = vunpack.c.h.b16 %v4126
    %v4426 = vunpack.c.l.b16 %v4127
    %v4427 = vunpack.c.l.b16 %v4128
    %v4428 = vunpack.c.h.b16 %v4128
    %v4429 = vunpack.c.l.b16 %v4129
    %v4430 = vunpack.c.l.b16 %v4130
    %v4431 = vunpack.c.h.b16 %v4130
    %v4432 = vunpack.c.l.b16 %v4131
    %v4433 = vunpack.c.l.b16 %v4132
    %v4434 = vunpack.c.h.b16 %v4132
    %v4435 = vunpack.c.l.b16 %v4133
    %v4436 = vunpack.c.l.b16 %v4134
    %v4437 = vunpack.c.h.b16 %v4134
    %v4438 = vunpack.c.l.b16 %v4135
    %v4439 = vunpack.c.l.b16 %v4136
    %v4440 = vunpack.c.h.b16 %v4136
    %v4441 = vunpack.c.l.b16 %v4137
    %v4442 = vunpack.c.l.b16 %v4138
    %v4443 = vunpack.c.h.b16 %v4138
    %v4444 = vunpack.c.l.b16 %v4139
    %v4445 = vunpack.c.l.b16 %v4140
    %v4446 = vunpack.c.h.b16 %v4140
    %v4447 = vunpack.c.l.b16 %v4141
    %v4448 = vunpack.c.l.b16 %v4142
    %v4449 = vunpack.c.h.b16 %v4142
    %v4450 = vunpack.c.l.b16 %v4143
    %v4451 = vunpack.c.l.b16 %v4144
    %v4452 = vunpack.c.h.b16 %v4144
    %v4453 = vunpack.c.l.b16 %v4145
    %v4454 = vunpack.c.l.b16 %v4146
    %v4455 = vunpack.c.h.b16 %v4146
    %v4456 = vunpack.c.l.b16 %v4147
    %v4457 = vunpack.c.l.b16 %v4148
    %v4458 = vunpack.c.h.b16 %v4148
    %v4459 = vunpack.c.l.b16 %v4149
    %v4460 = vunpack.c.l.b16 %v4150
    %v4461 = vunpack.c.h.b16 %v4150
    %v4462 = vunpack.c.l.b16 %v4151
    %v4463 = vunpack.c.l.b16 %v4152
    %v4464 = vunpack.c.h.b16 %v4152
    %v4465 = vunpack.c.l.b16 %v4153
    %v4466 = vunpack.c.l.b16 %v4154
    %v4467 = vunpack.c.h.b16 %v4154
    %v4468 = vunpack.c.l.b16 %v4155
    %v4469 = vunpack.c.l.b16 %v4156
    %v4470 = vunpack.c.h.b16 %v4156
    %v4471 = vunpack.c.l.b16 %v4157
    %v4472 = vunpack.c.l.b16 %v4158
    %v4473 = vunpack.c.h.b16 %v4158
    %v4474 = vunpack.c.l.b16 %v4159
    %v4475 = vunpack.c.l.b16 %v4160
    %v4476 = vunpack.c.h.b16 %v4160
    %v4477 = vunpack.c.l.b16 %v4161
    %v4478 = vunpack.c.l.b16 %v4162
    %v4479 = vunpack.c.h.b16 %v4162
    %v4480 = vunpack.c.l.b16 %v4163
    %v4481 = vunpack.c.l.b16 %v4164
    %v4482 = vunpack.c.h.b16 %v4164
    %v4483 = vunpack.c.l.b16 %v4165
    %v4484 = vunpack.c.l.b16 %v4166
    %v4485 = vunpack.c.h.b16 %v4166
    %v4486 = vunpack.c.l.b16 %v4167
    %v4487 = vunpack.c.l.b16 %v4168
    %v4488 = vunpack.c.h.b16 %v4168
    %v4489 = vunpack.c.l.b16 %v4169
    %v4490 = vpack.c.b16 %v4301, %v4298
    %v4491 = vpack.c.b16 %v4302, %v4299
    %v4492 = vpack.c.b16 %v4303, %v4300
    %v4493 = vpack.c.b16 %v4307, %v4304
    %v4494 = vpack.c.b16 %v4308, %v4305
    %v4495 = vpack.c.b16 %v4309, %v4306
    %v4496 = vpack.c.b16 %v4313, %v4310
    %v4497 = vpack.c.b16 %v4314, %v4311
    %v4498 = vpack.c.b16 %v4315, %v4312
    %v4499 = vpack.c.b16 %v4319, %v4316
    %v4500 = vpack.c.b16 %v4320, %v4317
    %v4501 = vpack.c.b16 %v4321, %v4318
    %v4502 = vpack.c.b16 %v4325, %v4322
    %v4503 = vpack.c.b16 %v4326, %v4323
    %v4504 = vpack.c.b16 %v4327, %v4324
    %v4505 = vpack.c.b16 %v4331, %v4328
    %v4506 = vpack.c.b16 %v4332, %v4329
    %v4507 = vpack.c.b16 %v4333, %v4330
    %v4508 = vpack.c.b16 %v4337, %v4334
    %v4509 = vpack.c.b16 %v4338, %v4335
    %v4510 = vpack.c.b16 %v4339, %v4336
    %v4511 = vpack.c.b16 %v4343, %v4340
    %v4512 = vpack.c.b16 %v4344, %v4341
    %v4513 = vpack.c.b16 %v4345, %v4342
    %v4514 = vpack.c.b16 %v4349, %v4346
    %v4515 = vpack.c.b16 %v4350, %v4347
    %v4516 = vpack.c.b16 %v4351, %v4348
    %v4517 = vpack.c.b16 %v4355, %v4352
    %v4518 = vpack.c.b16 %v4356, %v4353
    %v4519 = vpack.c.b16 %v4357, %v4354
    %v4520 = vpack.c.b16 %v4361, %v4358
    %v4521 = vpack.c.b16 %v4362, %v4359
    %v4522 = vpack.c.b16 %v4363, %v4360
    %v4523 = vpack.c.b16 %v4367, %v4364
    %v4524 = vpack.c.b16 %v4368, %v4365
    %v4525 = vpack.c.b16 %v4369, %v4366
    %v4526 = vpack.c.b16 %v4373, %v4370
    %v4527 = vpack.c.b16 %v4374, %v4371
    %v4528 = vpack.c.b16 %v4375, %v4372
    %v4529 = vpack.c.b16 %v4379, %v4376
    %v4530 = vpack.c.b16 %v4380, %v4377
    %v4531 = vpack.c.b16 %v4381, %v4378
    %v4532 = vpack.c.b16 %v4385, %v4382
    %v4533 = vpack.c.b16 %v4386, %v4383
    %v4534 = vpack.c.b16 %v4387, %v4384
    %v4535 = vpack.c.b16 %v4391, %v4388
    %v4536 = vpack.c.b16 %v4392, %v4389
    %v4537 = vpack.c.b16 %v4393, %v4390
    %v4538 = vpack.c.b16 %v4397, %v4394
    %v4539 = vpack.c.b16 %v4398, %v4395
    %v4540 = vpack.c.b16 %v4399, %v4396
    %v4541 = vpack.c.b16 %v4403, %v4400
    %v4542 = vpack.c.b16 %v4404, %v4401
    %v4543 = vpack.c.b16 %v4405, %v4402
    %v4544 = vpack.c.b16 %v4409, %v4406
    %v4545 = vpack.c.b16 %v4410, %v4407
    %v4546 = vpack.c.b16 %v4411, %v4408
    %v4547 = vpack.c.b16 %v4415, %v4412
    %v4548 = vpack.c.b16 %v4416, %v4413
    %v4549 = vpack.c.b16 %v4417, %v4414
    %v4550 = vpack.c.b16 %v4421, %v4418
    %v4551 = vpack.c.b16 %v4422, %v4419
    %v4552 = vpack.c.b16 %v4423, %v4420
    %v4553 = vpack.c.b16 %v4427, %v4424
    %v4554 = vpack.c.b16 %v4428, %v4425
    %v4555 = vpack.c.b16 %v4429, %v4426
    %v4556 = vpack.c.b16 %v4433, %v4430
    %v4557 = vpack.c.b16 %v4434, %v4431
    %v4558 = vpack.c.b16 %v4435, %v4432
    %v4559 = vpack.c.b16 %v4439, %v4436
    %v4560 = vpack.c.b16 %v4440, %v4437
    %v4561 = vpack.c.b16 %v4441, %v4438
    %v4562 = vpack.c.b16 %v4445, %v4442
    %v4563 = vpack.c.b16 %v4446, %v4443
    %v4564 = vpack.c.b16 %v4447, %v4444
    %v4565 = vpack.c.b16 %v4451, %v4448
    %v4566 = vpack.c.b16 %v4452, %v4449
    %v4567 = vpack.c.b16 %v4453, %v4450
    %v4568 = vpack.c.b16 %v4457, %v4454
    %v4569 = vpack.c.b16 %v4458, %v4455
    %v4570 = vpack.c.b16 %v4459, %v4456
    %v4571 = vpack.c.b16 %v4463, %v4460
    %v4572 = vpack.c.b16 %v4464, %v4461
    %v4573 = vpack.c.b16 %v4465, %v4462
    %v4574 = vpack.c.b16 %v4469, %v4466
    %v4575 = vpack.c.b16 %v4470, %v4467
    %v4576 = vpack.c.b16 %v4471, %v4468
    %v4577 = vpack.c.b16 %v4475, %v4472
    %v4578 = vpack.c.b16 %v4476, %v4473
    %v4579 = vpack.c.b16 %v4477, %v4474
    %v4580 = vpack.c.b16 %v4481, %v4478
    %v4581 = vpack.c.b16 %v4482, %v4479
    %v4582 = vpack.c.b16 %v4483, %v4480
    %v4583 = vpack.c.b16 %v4487, %v4484
    %v4584 = vpack.c.b16 %v4488, %v4485
    %v4585 = vpack.c.b16 %v4489, %v4486
    %4682 = vmatpush.bf16.msra.mxu0 %v4511
    %4683 = vmatpush.bf16.msra.mxu0 %v4508
    %4684 = vmatpush.bf16.msra.mxu0 %v4505
    %4685 = vmatpush.bf16.msra.mxu0 %v4502
    %4686 = vmatpush.bf16.msra.mxu0 %v4499
    %4687 = vmatpush.bf16.msra.mxu0 %v4496
    %4688 = vmatpush.bf16.msra.mxu0 %v4493
    %4689 = vmatpush.bf16.msra.mxu0 %v4490
    %4690 = vmatmul.bf16.gmra.mxu0 %v4038
    %v4691 = vpop.f32.mrf.mxu0
    %v4692 = vadd.f32 0.0, %v4691
    %v4693 = vpop.f32.mrf.mxu0
    %v4694 = vadd.f32 0.0, %v4693
    %4695 = vdwg.mxu0
    %4696 = vmatpush.bf16.msra.mxu0 %v4535
    %4697 = vmatpush.bf16.msra.mxu0 %v4532
    %4698 = vmatpush.bf16.msra.mxu0 %v4529
    %4699 = vmatpush.bf16.msra.mxu0 %v4526
    %4700 = vmatpush.bf16.msra.mxu0 %v4523
    %4701 = vmatpush.bf16.msra.mxu0 %v4520
    %4702 = vmatpush.bf16.msra.mxu0 %v4517
    %4703 = vmatpush.bf16.msra.mxu0 %v4514
    %4704 = vmatmul.bf16.gmra.mxu0 %v4039
    %v4705 = vpop.f32.mrf.mxu0
    %v4706 = vadd.f32 %v4692, %v4705
    %v4707 = vpop.f32.mrf.mxu0
    %v4708 = vadd.f32 %v4694, %v4707
    %4709 = vdwg.mxu0
    %4710 = vmatpush.bf16.msra.mxu0 %v4559
    %4711 = vmatpush.bf16.msra.mxu0 %v4556
    %4712 = vmatpush.bf16.msra.mxu0 %v4553
    %4713 = vmatpush.bf16.msra.mxu0 %v4550
    %4714 = vmatpush.bf16.msra.mxu0 %v4547
    %4715 = vmatpush.bf16.msra.mxu0 %v4544
    %4716 = vmatpush.bf16.msra.mxu0 %v4541
    %4717 = vmatpush.bf16.msra.mxu0 %v4538
    %4718 = vmatmul.bf16.gmra.mxu0 %v4040
    %v4719 = vpop.f32.mrf.mxu0
    %v4720 = vadd.f32 %v4706, %v4719
    %v4721 = vpop.f32.mrf.mxu0
    %v4722 = vadd.f32 %v4708, %v4721
    %4723 = vdwg.mxu0
    %4724 = vmatpush.bf16.msra.mxu0 %v4583
    %4725 = vmatpush.bf16.msra.mxu0 %v4580
    %4726 = vmatpush.bf16.msra.mxu0 %v4577
    %4727 = vmatpush.bf16.msra.mxu0 %v4574
    %4728 = vmatpush.bf16.msra.mxu0 %v4571
    %4729 = vmatpush.bf16.msra.mxu0 %v4568
    %4730 = vmatpush.bf16.msra.mxu0 %v4565
    %4731 = vmatpush.bf16.msra.mxu0 %v4562
    %4732 = vmatmul.bf16.gmra.mxu0 %v4041
    %v4733 = vpop.f32.mrf.mxu0
    %v4734 = vadd.f32 %v4720, %v4733
    %v4735 = vpop.f32.mrf.mxu0
    %v4736 = vadd.f32 %v4722, %v4735
    %4737 = vdwg.mxu0
    %4738 = vmatpush.bf16.msra.mxu0 %v4512
    %4739 = vmatpush.bf16.msra.mxu0 %v4509
    %4740 = vmatpush.bf16.msra.mxu0 %v4506
    %4741 = vmatpush.bf16.msra.mxu0 %v4503
    %4742 = vmatpush.bf16.msra.mxu0 %v4500
    %4743 = vmatpush.bf16.msra.mxu0 %v4497
    %4744 = vmatpush.bf16.msra.mxu0 %v4494
    %4745 = vmatpush.bf16.msra.mxu0 %v4491
    %4746 = vmatmul.bf16.gmra.mxu0 %v4038
    %v4747 = vpop.f32.mrf.mxu0
    %v4748 = vadd.f32 0.0, %v4747
    %v4749 = vpop.f32.mrf.mxu0
    %v4750 = vadd.f32 0.0, %v4749
    %4751 = vdwg.mxu0
    %4752 = vmatpush.bf16.msra.mxu0 %v4536
    %4753 = vmatpush.bf16.msra.mxu0 %v4533
    %4754 = vmatpush.bf16.msra.mxu0 %v4530
    %4755 = vmatpush.bf16.msra.mxu0 %v4527
    %4756 = vmatpush.bf16.msra.mxu0 %v4524
    %4757 = vmatpush.bf16.msra.mxu0 %v4521
    %4758 = vmatpush.bf16.msra.mxu0 %v4518
    %4759 = vmatpush.bf16.msra.mxu0 %v4515
    %4760 = vmatmul.bf16.gmra.mxu0 %v4039
    %v4761 = vpop.f32.mrf.mxu0
    %v4762 = vadd.f32 %v4748, %v4761
    %v4763 = vpop.f32.mrf.mxu0
    %v4764 = vadd.f32 %v4750, %v4763
    %4765 = vdwg.mxu0
    %4766 = vmatpush.bf16.msra.mxu0 %v4560
    %4767 = vmatpush.bf16.msra.mxu0 %v4557
    %4768 = vmatpush.bf16.msra.mxu0 %v4554
    %4769 = vmatpush.bf16.msra.mxu0 %v4551
    %4770 = vmatpush.bf16.msra.mxu0 %v4548
    %4771 = vmatpush.bf16.msra.mxu0 %v4545
    %4772 = vmatpush.bf16.msra.mxu0 %v4542
    %4773 = vmatpush.bf16.msra.mxu0 %v4539
    %4774 = vmatmul.bf16.gmra.mxu0 %v4040
    %v4775 = vpop.f32.mrf.mxu0
    %v4776 = vadd.f32 %v4762, %v4775
    %v4777 = vpop.f32.mrf.mxu0
    %v4778 = vadd.f32 %v4764, %v4777
    %4779 = vdwg.mxu0
    %4780 = vmatpush.bf16.msra.mxu0 %v4584
    %4781 = vmatpush.bf16.msra.mxu0 %v4581
    %4782 = vmatpush.bf16.msra.mxu0 %v4578
    %4783 = vmatpush.bf16.msra.mxu0 %v4575
    %4784 = vmatpush.bf16.msra.mxu0 %v4572
    %4785 = vmatpush.bf16.msra.mxu0 %v4569
    %4786 = vmatpush.bf16.msra.mxu0 %v4566
    %4787 = vmatpush.bf16.msra.mxu0 %v4563
    %4788 = vmatmul.bf16.gmra.mxu0 %v4041
    %v4789 = vpop.f32.mrf.mxu0
    %v4790 = vadd.f32 %v4776, %v4789
    %v4791 = vpop.f32.mrf.mxu0
    %v4792 = vadd.f32 %v4778, %v4791
    %4793 = vdwg.mxu0
    %4794 = vmatpush.bf16.msra.mxu0 %v4513
    %4795 = vmatpush.bf16.msra.mxu0 %v4510
    %4796 = vmatpush.bf16.msra.mxu0 %v4507
    %4797 = vmatpush.bf16.msra.mxu0 %v4504
    %4798 = vmatpush.bf16.msra.mxu0 %v4501
    %4799 = vmatpush.bf16.msra.mxu0 %v4498
    %4800 = vmatpush.bf16.msra.mxu0 %v4495
    %4801 = vmatpush.bf16.msra.mxu0 %v4492
    %4802 = vmatmul.bf16.gmra.mxu0 %v4038
    %v4803 = vpop.f32.mrf.mxu0
    %v4804 = vadd.f32 0.0, %v4803
    %v4805 = vpop.f32.mrf.mxu0
    %v4806 = vadd.f32 0.0, %v4805
    %4807 = vdwg.mxu0
    %4808 = vmatpush.bf16.msra.mxu0 %v4537
    %4809 = vmatpush.bf16.msra.mxu0 %v4534
    %4810 = vmatpush.bf16.msra.mxu0 %v4531
    %4811 = vmatpush.bf16.msra.mxu0 %v4528
    %4812 = vmatpush.bf16.msra.mxu0 %v4525
    %4813 = vmatpush.bf16.msra.mxu0 %v4522
    %4814 = vmatpush.bf16.msra.mxu0 %v4519
    %4815 = vmatpush.bf16.msra.mxu0 %v4516
    %4816 = vmatmul.bf16.gmra.mxu0 %v4039
    %v4817 = vpop.f32.mrf.mxu0
    %v4818 = vadd.f32 %v4804, %v4817
    %v4819 = vpop.f32.mrf.mxu0
    %v4820 = vadd.f32 %v4806, %v4819
    %4821 = vdwg.mxu0
    %4822 = vmatpush.bf16.msra.mxu0 %v4561
    %4823 = vmatpush.bf16.msra.mxu0 %v4558
    %4824 = vmatpush.bf16.msra.mxu0 %v4555
    %4825 = vmatpush.bf16.msra.mxu0 %v4552
    %4826 = vmatpush.bf16.msra.mxu0 %v4549
    %4827 = vmatpush.bf16.msra.mxu0 %v4546
    %4828 = vmatpush.bf16.msra.mxu0 %v4543
    %4829 = vmatpush.bf16.msra.mxu0 %v4540
    %4830 = vmatmul.bf16.gmra.mxu0 %v4040
    %v4831 = vpop.f32.mrf.mxu0
    %v4832 = vadd.f32 %v4818, %v4831
    %v4833 = vpop.f32.mrf.mxu0
    %v4834 = vadd.f32 %v4820, %v4833
    %4835 = vdwg.mxu0
    %4836 = vmatpush.bf16.msra.mxu0 %v4585
    %4837 = vmatpush.bf16.msra.mxu0 %v4582
    %4838 = vmatpush.bf16.msra.mxu0 %v4579
    %4839 = vmatpush.bf16.msra.mxu0 %v4576
    %4840 = vmatpush.bf16.msra.mxu0 %v4573
    %4841 = vmatpush.bf16.msra.mxu0 %v4570
    %4842 = vmatpush.bf16.msra.mxu0 %v4567
    %4843 = vmatpush.bf16.msra.mxu0 %v4564
    %4844 = vmatmul.bf16.gmra.mxu0 %v4041
    %v4845 = vpop.f32.mrf.mxu0
    %v4846 = vadd.f32 %v4832, %v4845
    %v4847 = vpop.f32.mrf.mxu0
    %v4848 = vadd.f32 %v4834, %v4847
    %4849 = vdwg.mxu0
    %v4850 = vld [vmem:[#allocation2] sm:$0xff]
    %v4851 = vld [vmem:[#allocation2 + $0x8] sm:$0xff]
    %v4852 = vld [vmem:[#allocation2 + $0x10] sm:$0xff]
    %v4853 = vld [vmem:[#allocation2 + $0x18] sm:$0xff]
    %v4854 = vld [vmem:[#allocation2 + $0x20] sm:$0xff]
    %v4855 = vld [vmem:[#allocation2 + $0x28] sm:$0xff]
    %v4856 = vadd.f32 %v4850, %v4734
    %v4857 = vadd.f32 %v4851, %v4790
    %v4858 = vadd.f32 %v4852, %v4846
    %v4859 = vadd.f32 %v4853, %v4736
    %v4860 = vadd.f32 %v4854, %v4792
    %v4861 = vadd.f32 %v4855, %v4848
    %4862 = vst [vmem:[#allocation2] sm:$0xff] %v4856
    %4863 = vst [vmem:[#allocation2 + $0x8] sm:$0xff] %v4857
    %4864 = vst [vmem:[#allocation2 + $0x10] sm:$0xff] %v4858
    %4865 = vst [vmem:[#allocation2 + $0x18] sm:$0xff] %v4859
    %4866 = vst [vmem:[#allocation2 + $0x20] sm:$0xff] %v4860
    %4867 = vst [vmem:[#allocation2 + $0x28] sm:$0xff] %v4861
    %v4868 = vld [vmem:[#allocation2] sm:$0xff]
    %v4869 = vld [vmem:[#allocation2 + $0x8] sm:$0xff]
    %v4870 = vld [vmem:[#allocation2 + $0x10] sm:$0xff]
    %v4871 = vld [vmem:[#allocation2 + $0x18] sm:$0xff]
    %v4872 = vld [vmem:[#allocation2 + $0x20] sm:$0xff]
    %v4873 = vld [vmem:[#allocation2 + $0x28] sm:$0xff]
    %v4874 = vld [vmem:[#allocation11] sm:$0x7]
    %v4876 = vperm.slane %v4874, 0
    %v4877 = vperm.slane %v4874, 1
    %v4878 = vperm.slane %v4874, 2
    %v4882 = vadd.f32 %v4868, %v4876
    %v4883 = vadd.f32 %v4869, %v4877
    %v4884 = vadd.f32 %v4870, %v4878
    %v4885 = vadd.f32 %v4871, %v4876
    %v4886 = vadd.f32 %v4872, %v4877
    %v4887 = vadd.f32 %v4873, %v4878
    %4888 = vst [vmem:[#allocation12] sm:$0xff] %v4882
    %4889 = vst [vmem:[#allocation12 + $0x8] sm:$0xff] %v4883
    %4890 = vst [vmem:[#allocation12 + $0x10] sm:$0xff] %v4884
    %4891 = vst [vmem:[#allocation12 + $0x18] sm:$0xff] %v4885
    %4892 = vst [vmem:[#allocation12 + $0x20] sm:$0xff] %v4886
    %4893 = vst [vmem:[#allocation12 + $0x28] sm:$0xff] %v4887
    // Predicated region
    $region42: #{_feed_forward.1} parent=1 // pred_check
      _
    $region43: #{_feed_forward.1} parent=1 // pred_check_branch
      %4895 = sbr.rel (0) target = $region45
    $region44: #{_feed_forward.1} parent=1 // pred_region
      %4897 = vsyncadd [#allocation5], 0
      %s4898 = sshll.u32 [#allocation12], 4
      %s4899 = int_to_ptr.vmem [resolvable:$true] %s4898
      %s4900 = sshll.u32 %s5, 4
      %s4901 = int_to_ptr.hbm [resolvable:$true] %s4900
      %4906 = dma.vmem_to_hbm [thread:$0]  %s4899, 768, %s4901, [#allocation5], 384, 384, 24
    $region45: #{_feed_forward.1} parent=1 // pred_fallthru
      _
    // Predicated region
    $region46: #{_feed_forward.1} parent=1 // pred_check
      _
    $region47: #{_feed_forward.1} parent=1 // pred_check_branch
      %4908 = sbr.rel (0) target = $region49
    $region48: #{_feed_forward.1} parent=1 // pred_region
      %4910 = dma.done [#allocation5], 768
    $region49: #{_feed_forward.1} parent=1 // pred_fallthru
      _
    %4911 = vsyncpa [#allocation4], 1
    %4912 = vsyncpa [#allocation7], 1
    %4913 = vsyncpa [#allocation10], 1
    %4914 = vsyncpa [#allocation5], 1

// kernel: _feed_forward.1
$region0: #{_feed_forward.1}
  #allocation0 [shape = 'u32[]', space=smem, size = 0x4, offset = 0x4, fixed_abs, tag = 'smem constant byte address 0x4 - core index']
  #allocation1 [shape = 'u32[72,128]{1,0:T(1,128)}', space=vmem, size = 0x9000, scoped, tag = 'internal scratch']
  #allocation2 [shape = 'f32[16,384]{1,0:T(8,128)}', space=vmem, size = 0x6000, scoped, tag = 'scratch operand']
  %s0 = inlined_call_operand.hbm [shape: f32[16,384], index: 0, kind: input, shape index: {}]
  %s1 = inlined_call_operand.hbm [shape: bf16[384,1536], index: 1, kind: input, shape index: {}]
  %s2 = inlined_call_operand.hbm [shape: f32[1,1536], index: 2, kind: input, shape index: {}]
  %s3 = inlined_call_operand.hbm [shape: bf16[1536,384], index: 3, kind: input, shape index: {}]
  %s4 = inlined_call_operand.hbm [shape: f32[1,384], index: 4, kind: input, shape index: {}]
  %s5 = inlined_call_operand.hbm [shape: f32[16,384], index: 5, kind: output, shape index: {}]
  %s6 = sld [smem:[#allocation0]]
  $region50: #{_feed_forward.1} parent=0
    _
  %s8 = ssub.s32 1, %s6
  %s9 = scalar_select 0, %s8, %s6
  $region1: #{_feed_forward.1} parent=0
    #allocation3 [shape = 'u8[24576]{0}', space=vmem, size = 0x6000, scoped, tag = 'input window, operand 0, single buffered']
    #allocation4 [shape = 's32[1]{0}', space=sflag, size = 0x4, scoped, tag = 'scoped memory for _feed_forward.1']
    #allocation5 [shape = 's32[1]{0}', space=sflag, size = 0x4, scoped, tag = 'scoped memory for _feed_forward.1']
    #allocation6 [shape = 'u8[1179648]{0}', space=vmem, size = 0x120000, scoped, tag = 'input window, operand 1, single buffered']
    #allocation7 [shape = 's32[1]{0}', space=sflag, size = 0x4, scoped, tag = 'scoped memory for _feed_forward.1']
    #allocation8 [shape = 'u8[6144]{0}', space=vmem, size = 0x1800, scoped, tag = 'input window, operand 2, single buffered']
    #allocation9 [shape = 'u8[1179648]{0}', space=vmem, size = 0x120000, scoped, tag = 'input window, operand 3, single buffered']
    #allocation10 [shape = 's32[1]{0}', space=sflag, size = 0x4, scoped, tag = 'scoped memory for _feed_forward.1']
    #allocation11 [shape = 'u8[1536]{0}', space=vmem, size = 0x800, scoped, tag = 'input window, operand 4, single buffered']
    #allocation12 [shape = 'u8[24576]{0}', space=vmem, size = 0x6000, scoped, tag = 'output window, operand 0, single buffered']
    %10 = vsyncpa [#allocation4], 0
    %11 = vsyncpa [#allocation7], 0
    %12 = vsyncpa [#allocation10], 0
    %13 = vsyncpa [#allocation5], 0
    // Predicated region
    $region2: #{_feed_forward.1} parent=1 // pred_check
      _
    $region3: #{_feed_forward.1} parent=1 // pred_check_branch
      %15 = sbr.rel (0) target = $region5
    $region4: #{_feed_forward.1} parent=1 // pred_region
      %17 = vsyncadd [#allocation4], 0
      %s18 = sshll.u32 %s0, 4
      %s19 = int_to_ptr.hbm [resolvable:$true] %s18
      %s20 = sshll.u32 [#allocation3], 4
      %s21 = int_to_ptr.vmem [resolvable:$true] %s20
      %26 = dma.hbm_to_vmem [thread:$0]  %s19, 768, %s21, [#allocation4], 384, 384, 24
    $region5: #{_feed_forward.1} parent=1 // pred_fallthru
      _
    // Predicated region
    $region6: #{_feed_forward.1} parent=1 // pred_check
      _
    $region7: #{_feed_forward.1} parent=1 // pred_check_branch
      %28 = sbr.rel (0) target = $region9
    $region8: #{_feed_forward.1} parent=1 // pred_region
      %30 = vsyncadd [#allocation7], 0
      %s31 = sshll.u32 %s1, 4
      %s32 = int_to_ptr.hbm [resolvable:$true] %s31
      %s33 = sshll.u32 [#allocation6], 4
      %s34 = int_to_ptr.vmem [resolvable:$true] %s33
      %39 = dma.hbm_to_vmem [thread:$0]  %s32, 36864, %s34, [#allocation7], 768, 768, 48
    $region9: #{_feed_forward.1} parent=1 // pred_fallthru
      _
    // Predicated region
    $region10: #{_feed_forward.1} parent=1 // pred_check
      _
    $region11: #{_feed_forward.1} parent=1 // pred_check_branch
      %41 = sbr.rel (0) target = $region13
    $region12: #{_feed_forward.1} parent=1 // pred_region
      %43 = vsyncadd [#allocation7], 0
      %s45 = sshll.u32 %s2, 4
      %s46 = int_to_ptr.hbm [resolvable:$true] %s45
      %s47 = sshll.u32 [#allocation8], 4
      %s48 = int_to_ptr.vmem [resolvable:$true] %s47
      %50 = dma.hbm_to_vmem [thread:$0]  %s46, 192, %s48, [#allocation7]
    $region13: #{_feed_forward.1} parent=1 // pred_fallthru
      _
    // Predicated region
    $region14: #{_feed_forward.1} parent=1 // pred_check
      _
    $region15: #{_feed_forward.1} parent=1 // pred_check_branch
      %52 = sbr.rel (0) target = $region17
    $region16: #{_feed_forward.1} parent=1 // pred_region
      %54 = vsyncadd [#allocation10], 0
      %s55 = sshll.u32 %s3, 4
      %s56 = int_to_ptr.hbm [resolvable:$true] %s55
      %s57 = sshll.u32 [#allocation9], 4
      %s58 = int_to_ptr.vmem [resolvable:$true] %s57
      %63 = dma.hbm_to_vmem [thread:$0]  %s56, 36864, %s58, [#allocation10], 192, 192, 12
    $region17: #{_feed_forward.1} parent=1 // pred_fallthru
      _
    // Predicated region
    $region18: #{_feed_forward.1} parent=1 // pred_check
      _
    $region19: #{_feed_forward.1} parent=1 // pred_check_branch
      %65 = sbr.rel (0) target = $region21
    $region20: #{_feed_forward.1} parent=1 // pred_region
      %67 = vsyncadd [#allocation10], 0
      %s69 = sshll.u32 %s4, 4
      %s70 = int_to_ptr.hbm [resolvable:$true] %s69
      %s71 = sshll.u32 [#allocation11], 4
      %s72 = int_to_ptr.vmem [resolvable:$true] %s71
      %74 = dma.hbm_to_vmem [thread:$0]  %s70, 48, %s72, [#allocation10]
    $region21: #{_feed_forward.1} parent=1 // pred_fallthru
      _
    // Predicated region
    $region22: #{_feed_forward.1} parent=1 // pred_check
      _
    $region23: #{_feed_forward.1} parent=1 // pred_check_branch
      %76 = sbr.rel (0) target = $region25
    $region24: #{_feed_forward.1} parent=1 // pred_region
      %78 = dma.done [#allocation4], 768
    $region25: #{_feed_forward.1} parent=1 // pred_fallthru
      _
    // Predicated region
    $region26: #{_feed_forward.1} parent=1 // pred_check
      _
    $region27: #{_feed_forward.1} parent=1 // pred_check_branch
      %80 = sbr.rel (0) target = $region29
    $region28: #{_feed_forward.1} parent=1 // pred_region
      %82 = dma.done [#allocation7], 36864
    $region29: #{_feed_forward.1} parent=1 // pred_fallthru
      _
    // Predicated region
    $region30: #{_feed_forward.1} parent=1 // pred_check
      _
    $region31: #{_feed_forward.1} parent=1 // pred_check_branch
      %84 = sbr.rel (0) target = $region33
    $region32: #{_feed_forward.1} parent=1 // pred_region
      %86 = dma.done [#allocation7], 192
    $region33: #{_feed_forward.1} parent=1 // pred_fallthru
      _
    // Predicated region
    $region34: #{_feed_forward.1} parent=1 // pred_check
      _
    $region35: #{_feed_forward.1} parent=1 // pred_check_branch
      %88 = sbr.rel (0) target = $region37
    $region36: #{_feed_forward.1} parent=1 // pred_region
      %90 = dma.done [#allocation10], 36864
    $region37: #{_feed_forward.1} parent=1 // pred_fallthru
      _
    // Predicated region
    $region38: #{_feed_forward.1} parent=1 // pred_check
      _
    $region39: #{_feed_forward.1} parent=1 // pred_check_branch
      %92 = sbr.rel (0) target = $region41
    $region40: #{_feed_forward.1} parent=1 // pred_region
      %94 = dma.done [#allocation10], 48
    $region41: #{_feed_forward.1} parent=1 // pred_fallthru
      _
    %v95 = vld [vmem:[#allocation3] sm:$0xff]
    %v96 = vld [vmem:[#allocation3 + $0x8] sm:$0xff]
    %v97 = vld [vmem:[#allocation3 + $0x10] sm:$0xff]
    %v98 = vld [vmem:[#allocation3 + $0x18] sm:$0xff]
    %v99 = vld [vmem:[#allocation3 + $0x20] sm:$0xff]
    %v100 = vld [vmem:[#allocation3 + $0x28] sm:$0xff]
    %v101 = vpack.c.bf16 %v98, %v95
    %v102 = vpack.c.bf16 %v99, %v96
    %v103 = vpack.c.bf16 %v100, %v97
    %v104 = vld [vmem:[#allocation6] sm:$0xff]
    %v105 = vld [vmem:[#allocation6 + $0x8] sm:$0xff]
    %v106 = vld [vmem:[#allocation6 + $0x30] sm:$0xff]
    %v107 = vld [vmem:[#allocation6 + $0x38] sm:$0xff]
    %v108 = vld [vmem:[#allocation6 + $0x60] sm:$0xff]
    %v109 = vld [vmem:[#allocation6 + $0x68] sm:$0xff]
    %v110 = vld [vmem:[#allocation6 + $0x90] sm:$0xff]
    %v111 = vld [vmem:[#allocation6 + $0x98] sm:$0xff]
    %v112 = vld [vmem:[#allocation6 + $0xc0] sm:$0xff]
    %v113 = vld [vmem:[#allocation6 + $0xc8] sm:$0xff]
    %v114 = vld [vmem:[#allocation6 + $0xf0] sm:$0xff]
    %v115 = vld [vmem:[#allocation6 + $0xf8] sm:$0xff]
    %v116 = vld [vmem:[#allocation6 + $0x120] sm:$0xff]
    %v117 = vld [vmem:[#allocation6 + $0x128] sm:$0xff]
    %v118 = vld [vmem:[#allocation6 + $0x150] sm:$0xff]
    %v119 = vld [vmem:[#allocation6 + $0x158] sm:$0xff]
    %v120 = vld [vmem:[#allocation6 + $0x180] sm:$0xff]
    %v121 = vld [vmem:[#allocation6 + $0x188] sm:$0xff]
    %v122 = vld [vmem:[#allocation6 + $0x1b0] sm:$0xff]
    %v123 = vld [vmem:[#allocation6 + $0x1b8] sm:$0xff]
    %v124 = vld [vmem:[#allocation6 + $0x1e0] sm:$0xff]
    %v125 = vld [vmem:[#allocation6 + $0x1e8] sm:$0xff]
    %v126 = vld [vmem:[#allocation6 + $0x210] sm:$0xff]
    %v127 = vld [vmem:[#allocation6 + $0x218] sm:$0xff]
    %v128 = vld [vmem:[#allocation6 + $0x240] sm:$0xff]
    %v129 = vld [vmem:[#allocation6 + $0x248] sm:$0xff]
    %v130 = vld [vmem:[#allocation6 + $0x270] sm:$0xff]
    %v131 = vld [vmem:[#allocation6 + $0x278] sm:$0xff]
    %v132 = vld [vmem:[#allocation6 + $0x2a0] sm:$0xff]
    %v133 = vld [vmem:[#allocation6 + $0x2a8] sm:$0xff]
    %v134 = vld [vmem:[#allocation6 + $0x2d0] sm:$0xff]
    %v135 = vld [vmem:[#allocation6 + $0x2d8] sm:$0xff]
    %v136 = vld [vmem:[#allocation6 + $0x300] sm:$0xff]
    %v137 = vld [vmem:[#allocation6 + $0x308] sm:$0xff]
    %v138 = vld [vmem:[#allocation6 + $0x330] sm:$0xff]
    %v139 = vld [vmem:[#allocation6 + $0x338] sm:$0xff]
    %v140 = vld [vmem:[#allocation6 + $0x360] sm:$0xff]
    %v141 = vld [vmem:[#allocation6 + $0x368] sm:$0xff]
    %v142 = vld [vmem:[#allocation6 + $0x390] sm:$0xff]
    %v143 = vld [vmem:[#allocation6 + $0x398] sm:$0xff]
    %v144 = vld [vmem:[#allocation6 + $0x3c0] sm:$0xff]
    %v145 = vld [vmem:[#allocation6 + $0x3c8] sm:$0xff]
    %v146 = vld [vmem:[#allocation6 + $0x3f0] sm:$0xff]
    %v147 = vld [vmem:[#allocation6 + $0x3f8] sm:$0xff]
    %v148 = vld [vmem:[#allocation6 + $0x420] sm:$0xff]
    %v149 = vld [vmem:[#allocation6 + $0x428] sm:$0xff]
    %v150 = vld [vmem:[#allocation6 + $0x450] sm:$0xff]
    %v151 = vld [vmem:[#allocation6 + $0x458] sm:$0xff]
    %v152 = vld [vmem:[#allocation6 + $0x480] sm:$0xff]
    %v153 = vld [vmem:[#allocation6 + $0x488] sm:$0xff]
    %v154 = vld [vmem:[#allocation6 + $0x4b0] sm:$0xff]
    %v155 = vld [vmem:[#allocation6 + $0x4b8] sm:$0xff]
    %v156 = vld [vmem:[#allocation6 + $0x4e0] sm:$0xff]
    %v157 = vld [vmem:[#allocation6 + $0x4e8] sm:$0xff]
    %v158 = vld [vmem:[#allocation6 + $0x510] sm:$0xff]
    %v159 = vld [vmem:[#allocation6 + $0x518] sm:$0xff]
    %v160 = vld [vmem:[#allocation6 + $0x540] sm:$0xff]
    %v161 = vld [vmem:[#allocation6 + $0x548] sm:$0xff]
    %v162 = vld [vmem:[#allocation6 + $0x570] sm:$0xff]
    %v163 = vld [vmem:[#allocation6 + $0x578] sm:$0xff]
    %v164 = vld [vmem:[#allocation6 + $0x5a0] sm:$0xff]
    %v165 = vld [vmem:[#allocation6 + $0x5a8] sm:$0xff]
    %v166 = vld [vmem:[#allocation6 + $0x5d0] sm:$0xff]
    %v167 = vld [vmem:[#allocation6 + $0x5d8] sm:$0xff]
    %v168 = vld [vmem:[#allocation6 + $0x600] sm:$0xff]
    %v169 = vld [vmem:[#allocation6 + $0x608] sm:$0xff]
    %v170 = vld [vmem:[#allocation6 + $0x630] sm:$0xff]
    %v171 = vld [vmem:[#allocation6 + $0x638] sm:$0xff]
    %v172 = vld [vmem:[#allocation6 + $0x660] sm:$0xff]
    %v173 = vld [vmem:[#allocation6 + $0x668] sm:$0xff]
    %v174 = vld [vmem:[#allocation6 + $0x690] sm:$0xff]
    %v175 = vld [vmem:[#allocation6 + $0x698] sm:$0xff]
    %v176 = vld [vmem:[#allocation6 + $0x6c0] sm:$0xff]
    %v177 = vld [vmem:[#allocation6 + $0x6c8] sm:$0xff]
    %v178 = vld [vmem:[#allocation6 + $0x6f0] sm:$0xff]
    %v179 = vld [vmem:[#allocation6 + $0x6f8] sm:$0xff]
    %v180 = vld [vmem:[#allocation6 + $0x720] sm:$0xff]
    %v181 = vld [vmem:[#allocation6 + $0x728] sm:$0xff]
    %v182 = vld [vmem:[#allocation6 + $0x750] sm:$0xff]
    %v183 = vld [vmem:[#allocation6 + $0x758] sm:$0xff]
    %v184 = vld [vmem:[#allocation6 + $0x780] sm:$0xff]
    %v185 = vld [vmem:[#allocation6 + $0x788] sm:$0xff]
    %v186 = vld [vmem:[#allocation6 + $0x7b0] sm:$0xff]
    %v187 = vld [vmem:[#allocation6 + $0x7b8] sm:$0xff]
    %v188 = vld [vmem:[#allocation6 + $0x7e0] sm:$0xff]
    %v189 = vld [vmem:[#allocation6 + $0x7e8] sm:$0xff]
    %v190 = vld [vmem:[#allocation6 + $0x810] sm:$0xff]
    %v191 = vld [vmem:[#allocation6 + $0x818] sm:$0xff]
    %v192 = vld [vmem:[#allocation6 + $0x840] sm:$0xff]
    %v193 = vld [vmem:[#allocation6 + $0x848] sm:$0xff]
    %v194 = vld [vmem:[#allocation6 + $0x870] sm:$0xff]
    %v195 = vld [vmem:[#allocation6 + $0x878] sm:$0xff]
    %v196 = vld [vmem:[#allocation6 + $0x8a0] sm:$0xff]
    %v197 = vld [vmem:[#allocation6 + $0x8a8] sm:$0xff]
    %v198 = vld [vmem:[#allocation6 + $0x8d0] sm:$0xff]
    %v199 = vld [vmem:[#allocation6 + $0x8d8] sm:$0xff]
    %v200 = vld [vmem:[#allocation8] sm:$0xf]
    %v202 = vperm.slane %v200, 0
    %v203 = vperm.slane %v200, 1
    %v204 = vperm.slane %v200, 2
    %v205 = vperm.slane %v200, 3
    %v306 = vunpack.c.l.b16 %v104
    %v307 = vunpack.c.h.b16 %v104
    %v308 = vunpack.c.l.b16 %v105
    %v309 = vunpack.c.h.b16 %v105
    %v310 = vunpack.c.l.b16 %v106
    %v311 = vunpack.c.h.b16 %v106
    %v312 = vunpack.c.l.b16 %v107
    %v313 = vunpack.c.h.b16 %v107
    %v314 = vunpack.c.l.b16 %v108
    %v315 = vunpack.c.h.b16 %v108
    %v316 = vunpack.c.l.b16 %v109
    %v317 = vunpack.c.h.b16 %v109
    %v318 = vunpack.c.l.b16 %v110
    %v319 = vunpack.c.h.b16 %v110
    %v320 = vunpack.c.l.b16 %v111
    %v321 = vunpack.c.h.b16 %v111
    %v322 = vunpack.c.l.b16 %v112
    %v323 = vunpack.c.h.b16 %v112
    %v324 = vunpack.c.l.b16 %v113
    %v325 = vunpack.c.h.b16 %v113
    %v326 = vunpack.c.l.b16 %v114
    %v327 = vunpack.c.h.b16 %v114
    %v328 = vunpack.c.l.b16 %v115
    %v329 = vunpack.c.h.b16 %v115
    %v330 = vunpack.c.l.b16 %v116
    %v331 = vunpack.c.h.b16 %v116
    %v332 = vunpack.c.l.b16 %v117
    %v333 = vunpack.c.h.b16 %v117
    %v334 = vunpack.c.l.b16 %v118
    %v335 = vunpack.c.h.b16 %v118
    %v336 = vunpack.c.l.b16 %v119
    %v337 = vunpack.c.h.b16 %v119
    %v338 = vunpack.c.l.b16 %v120
    %v339 = vunpack.c.h.b16 %v120
    %v340 = vunpack.c.l.b16 %v121
    %v341 = vunpack.c.h.b16 %v121
    %v342 = vunpack.c.l.b16 %v122
    %v343 = vunpack.c.h.b16 %v122
    %v344 = vunpack.c.l.b16 %v123
    %v345 = vunpack.c.h.b16 %v123
    %v346 = vunpack.c.l.b16 %v124
    %v347 = vunpack.c.h.b16 %v124
    %v348 = vunpack.c.l.b16 %v125
    %v349 = vunpack.c.h.b16 %v125
    %v350 = vunpack.c.l.b16 %v126
    %v351 = vunpack.c.h.b16 %v126
    %v352 = vunpack.c.l.b16 %v127
    %v353 = vunpack.c.h.b16 %v127
    %v354 = vunpack.c.l.b16 %v128
    %v355 = vunpack.c.h.b16 %v128
    %v356 = vunpack.c.l.b16 %v129
    %v357 = vunpack.c.h.b16 %v129
    %v358 = vunpack.c.l.b16 %v130
    %v359 = vunpack.c.h.b16 %v130
    %v360 = vunpack.c.l.b16 %v131
    %v361 = vunpack.c.h.b16 %v131
    %v362 = vunpack.c.l.b16 %v132
    %v363 = vunpack.c.h.b16 %v132
    %v364 = vunpack.c.l.b16 %v133
    %v365 = vunpack.c.h.b16 %v133
    %v366 = vunpack.c.l.b16 %v134
    %v367 = vunpack.c.h.b16 %v134
    %v368 = vunpack.c.l.b16 %v135
    %v369 = vunpack.c.h.b16 %v135
    %v370 = vunpack.c.l.b16 %v136
    %v371 = vunpack.c.h.b16 %v136
    %v372 = vunpack.c.l.b16 %v137
    %v373 = vunpack.c.h.b16 %v137
    %v374 = vunpack.c.l.b16 %v138
    %v375 = vunpack.c.h.b16 %v138
    %v376 = vunpack.c.l.b16 %v139
    %v377 = vunpack.c.h.b16 %v139
    %v378 = vunpack.c.l.b16 %v140
    %v379 = vunpack.c.h.b16 %v140
    %v380 = vunpack.c.l.b16 %v141
    %v381 = vunpack.c.h.b16 %v141
    %v382 = vunpack.c.l.b16 %v142
    %v383 = vunpack.c.h.b16 %v142
    %v384 = vunpack.c.l.b16 %v143
    %v385 = vunpack.c.h.b16 %v143
    %v386 = vunpack.c.l.b16 %v144
    %v387 = vunpack.c.h.b16 %v144
    %v388 = vunpack.c.l.b16 %v145
    %v389 = vunpack.c.h.b16 %v145
    %v390 = vunpack.c.l.b16 %v146
    %v391 = vunpack.c.h.b16 %v146
    %v392 = vunpack.c.l.b16 %v147
    %v393 = vunpack.c.h.b16 %v147
    %v394 = vunpack.c.l.b16 %v148
    %v395 = vunpack.c.h.b16 %v148
    %v396 = vunpack.c.l.b16 %v149
    %v397 = vunpack.c.h.b16 %v149
    %v398 = vunpack.c.l.b16 %v150
    %v399 = vunpack.c.h.b16 %v150
    %v400 = vunpack.c.l.b16 %v151
    %v401 = vunpack.c.h.b16 %v151
    %v402 = vunpack.c.l.b16 %v152
    %v403 = vunpack.c.h.b16 %v152
    %v404 = vunpack.c.l.b16 %v153
    %v405 = vunpack.c.h.b16 %v153
    %v406 = vunpack.c.l.b16 %v154
    %v407 = vunpack.c.h.b16 %v154
    %v408 = vunpack.c.l.b16 %v155
    %v409 = vunpack.c.h.b16 %v155
    %v410 = vunpack.c.l.b16 %v156
    %v411 = vunpack.c.h.b16 %v156
    %v412 = vunpack.c.l.b16 %v157
    %v413 = vunpack.c.h.b16 %v157
    %v414 = vunpack.c.l.b16 %v158
    %v415 = vunpack.c.h.b16 %v158
    %v416 = vunpack.c.l.b16 %v159
    %v417 = vunpack.c.h.b16 %v159
    %v418 = vunpack.c.l.b16 %v160
    %v419 = vunpack.c.h.b16 %v160
    %v420 = vunpack.c.l.b16 %v161
    %v421 = vunpack.c.h.b16 %v161
    %v422 = vunpack.c.l.b16 %v162
    %v423 = vunpack.c.h.b16 %v162
    %v424 = vunpack.c.l.b16 %v163
    %v425 = vunpack.c.h.b16 %v163
    %v426 = vunpack.c.l.b16 %v164
    %v427 = vunpack.c.h.b16 %v164
    %v428 = vunpack.c.l.b16 %v165
    %v429 = vunpack.c.h.b16 %v165
    %v430 = vunpack.c.l.b16 %v166
    %v431 = vunpack.c.h.b16 %v166
    %v432 = vunpack.c.l.b16 %v167
    %v433 = vunpack.c.h.b16 %v167
    %v434 = vunpack.c.l.b16 %v168
    %v435 = vunpack.c.h.b16 %v168
    %v436 = vunpack.c.l.b16 %v169
    %v437 = vunpack.c.h.b16 %v169
    %v438 = vunpack.c.l.b16 %v170
    %v439 = vunpack.c.h.b16 %v170
    %v440 = vunpack.c.l.b16 %v171
    %v441 = vunpack.c.h.b16 %v171
    %v442 = vunpack.c.l.b16 %v172
    %v443 = vunpack.c.h.b16 %v172
    %v444 = vunpack.c.l.b16 %v173
    %v445 = vunpack.c.h.b16 %v173
    %v446 = vunpack.c.l.b16 %v174
    %v447 = vunpack.c.h.b16 %v174
    %v448 = vunpack.c.l.b16 %v175
    %v449 = vunpack.c.h.b16 %v175
    %v450 = vunpack.c.l.b16 %v176
    %v451 = vunpack.c.h.b16 %v176
    %v452 = vunpack.c.l.b16 %v177
    %v453 = vunpack.c.h.b16 %v177
    %v454 = vunpack.c.l.b16 %v178
    %v455 = vunpack.c.h.b16 %v178
    %v456 = vunpack.c.l.b16 %v179
    %v457 = vunpack.c.h.b16 %v179
    %v458 = vunpack.c.l.b16 %v180
    %v459 = vunpack.c.h.b16 %v180
    %v460 = vunpack.c.l.b16 %v181
    %v461 = vunpack.c.h.b16 %v181
    %v462 = vunpack.c.l.b16 %v182
    %v463 = vunpack.c.h.b16 %v182
    %v464 = vunpack.c.l.b16 %v183
    %v465 = vunpack.c.h.b16 %v183
    %v466 = vunpack.c.l.b16 %v184
    %v467 = vunpack.c.h.b16 %v184
    %v468 = vunpack.c.l.b16 %v185
    %v469 = vunpack.c.h.b16 %v185
    %v470 = vunpack.c.l.b16 %v186
    %v471 = vunpack.c.h.b16 %v186
    %v472 = vunpack.c.l.b16 %v187
    %v473 = vunpack.c.h.b16 %v187
    %v474 = vunpack.c.l.b16 %v188
    %v475 = vunpack.c.h.b16 %v188
    %v476 = vunpack.c.l.b16 %v189
    %v477 = vunpack.c.h.b16 %v189
    %v478 = vunpack.c.l.b16 %v190
    %v479 = vunpack.c.h.b16 %v190
    %v480 = vunpack.c.l.b16 %v191
    %v481 = vunpack.c.h.b16 %v191
    %v482 = vunpack.c.l.b16 %v192
    %v483 = vunpack.c.h.b16 %v192
    %v484 = vunpack.c.l.b16 %v193
    %v485 = vunpack.c.h.b16 %v193
    %v486 = vunpack.c.l.b16 %v194
    %v487 = vunpack.c.h.b16 %v194
    %v488 = vunpack.c.l.b16 %v195
    %v489 = vunpack.c.h.b16 %v195
    %v490 = vunpack.c.l.b16 %v196
    %v491 = vunpack.c.h.b16 %v196
    %v492 = vunpack.c.l.b16 %v197
    %v493 = vunpack.c.h.b16 %v197
    %v494 = vunpack.c.l.b16 %v198
    %v495 = vunpack.c.h.b16 %v198
    %v496 = vunpack.c.l.b16 %v199
    %v497 = vunpack.c.h.b16 %v199
    %v498 = vpack.c.b16 %v310, %v306
    %v499 = vpack.c.b16 %v311, %v307
    %v500 = vpack.c.b16 %v312, %v308
    %v501 = vpack.c.b16 %v313, %v309
    %v502 = vpack.c.b16 %v318, %v314
    %v503 = vpack.c.b16 %v319, %v315
    %v504 = vpack.c.b16 %v320, %v316
    %v505 = vpack.c.b16 %v321, %v317
    %v506 = vpack.c.b16 %v326, %v322
    %v507 = vpack.c.b16 %v327, %v323
    %v508 = vpack.c.b16 %v328, %v324
    %v509 = vpack.c.b16 %v329, %v325
    %v510 = vpack.c.b16 %v334, %v330
    %v511 = vpack.c.b16 %v335, %v331
    %v512 = vpack.c.b16 %v336, %v332
    %v513 = vpack.c.b16 %v337, %v333
    %v514 = vpack.c.b16 %v342, %v338
    %v515 = vpack.c.b16 %v343, %v339
    %v516 = vpack.c.b16 %v344, %v340
    %v517 = vpack.c.b16 %v345, %v341
    %v518 = vpack.c.b16 %v350, %v346
    %v519 = vpack.c.b16 %v351, %v347
    %v520 = vpack.c.b16 %v352, %v348
    %v521 = vpack.c.b16 %v353, %v349
    %v522 = vpack.c.b16 %v358, %v354
    %v523 = vpack.c.b16 %v359, %v355
    %v524 = vpack.c.b16 %v360, %v356
    %v525 = vpack.c.b16 %v361, %v357
    %v526 = vpack.c.b16 %v366, %v362
    %v527 = vpack.c.b16 %v367, %v363
    %v528 = vpack.c.b16 %v368, %v364
    %v529 = vpack.c.b16 %v369, %v365
    %v530 = vpack.c.b16 %v374, %v370
    %v531 = vpack.c.b16 %v375, %v371
    %v532 = vpack.c.b16 %v376, %v372
    %v533 = vpack.c.b16 %v377, %v373
    %v534 = vpack.c.b16 %v382, %v378
    %v535 = vpack.c.b16 %v383, %v379
    %v536 = vpack.c.b16 %v384, %v380
    %v537 = vpack.c.b16 %v385, %v381
    %v538 = vpack.c.b16 %v390, %v386
    %v539 = vpack.c.b16 %v391, %v387
    %v540 = vpack.c.b16 %v392, %v388
    %v541 = vpack.c.b16 %v393, %v389
    %v542 = vpack.c.b16 %v398, %v394
    %v543 = vpack.c.b16 %v399, %v395
    %v544 = vpack.c.b16 %v400, %v396
    %v545 = vpack.c.b16 %v401, %v397
    %v546 = vpack.c.b16 %v406, %v402
    %v547 = vpack.c.b16 %v407, %v403
    %v548 = vpack.c.b16 %v408, %v404
    %v549 = vpack.c.b16 %v409, %v405
    %v550 = vpack.c.b16 %v414, %v410
    %v551 = vpack.c.b16 %v415, %v411
    %v552 = vpack.c.b16 %v416, %v412
    %v553 = vpack.c.b16 %v417, %v413
    %v554 = vpack.c.b16 %v422, %v418
    %v555 = vpack.c.b16 %v423, %v419
    %v556 = vpack.c.b16 %v424, %v420
    %v557 = vpack.c.b16 %v425, %v421
    %v558 = vpack.c.b16 %v430, %v426
    %v559 = vpack.c.b16 %v431, %v427
    %v560 = vpack.c.b16 %v432, %v428
    %v561 = vpack.c.b16 %v433, %v429
    %v562 = vpack.c.b16 %v438, %v434
    %v563 = vpack.c.b16 %v439, %v435
    %v564 = vpack.c.b16 %v440, %v436
    %v565 = vpack.c.b16 %v441, %v437
    %v566 = vpack.c.b16 %v446, %v442
    %v567 = vpack.c.b16 %v447, %v443
    %v568 = vpack.c.b16 %v448, %v444
    %v569 = vpack.c.b16 %v449, %v445
    %v570 = vpack.c.b16 %v454, %v450
    %v571 = vpack.c.b16 %v455, %v451
    %v572 = vpack.c.b16 %v456, %v452
    %v573 = vpack.c.b16 %v457, %v453
    %v574 = vpack.c.b16 %v462, %v458
    %v575 = vpack.c.b16 %v463, %v459
    %v576 = vpack.c.b16 %v464, %v460
    %v577 = vpack.c.b16 %v465, %v461
    %v578 = vpack.c.b16 %v470, %v466
    %v579 = vpack.c.b16 %v471, %v467
    %v580 = vpack.c.b16 %v472, %v468
    %v581 = vpack.c.b16 %v473, %v469
    %v582 = vpack.c.b16 %v478, %v474
    %v583 = vpack.c.b16 %v479, %v475
    %v584 = vpack.c.b16 %v480, %v476
    %v585 = vpack.c.b16 %v481, %v477
    %v586 = vpack.c.b16 %v486, %v482
    %v587 = vpack.c.b16 %v487, %v483
    %v588 = vpack.c.b16 %v488, %v484
    %v589 = vpack.c.b16 %v489, %v485
    %v590 = vpack.c.b16 %v494, %v490
    %v591 = vpack.c.b16 %v495, %v491
    %v592 = vpack.c.b16 %v496, %v492
    %v593 = vpack.c.b16 %v497, %v493
    %690 = vmatpush.bf16.msra.mxu0 %v526
    %691 = vmatpush.bf16.msra.mxu0 %v522
    %692 = vmatpush.bf16.msra.mxu0 %v518
    %693 = vmatpush.bf16.msra.mxu0 %v514
    %694 = vmatpush.bf16.msra.mxu0 %v510
    %695 = vmatpush.bf16.msra.mxu0 %v506
    %696 = vmatpush.bf16.msra.mxu0 %v502
    %697 = vmatpush.bf16.msra.mxu0 %v498
    %698 = vmatmul.bf16.gmra.mxu0 %v101
    %v699 = vpop.f32.mrf.mxu0
    %v700 = vadd.f32 %v202, %v699
    %v701 = vpop.f32.mrf.mxu0
    %v702 = vadd.f32 %v202, %v701
    %703 = vdwg.mxu0
    %704 = vmatpush.bf16.msra.mxu0 %v558
    %705 = vmatpush.bf16.msra.mxu0 %v554
    %706 = vmatpush.bf16.msra.mxu0 %v550
    %707 = vmatpush.bf16.msra.mxu0 %v546
    %708 = vmatpush.bf16.msra.mxu0 %v542
    %709 = vmatpush.bf16.msra.mxu0 %v538
    %710 = vmatpush.bf16.msra.mxu0 %v534
    %711 = vmatpush.bf16.msra.mxu0 %v530
    %712 = vmatmul.bf16.gmra.mxu0 %v102
    %v713 = vpop.f32.mrf.mxu0
    %v714 = vadd.f32 %v700, %v713
    %v715 = vpop.f32.mrf.mxu0
    %v716 = vadd.f32 %v702, %v715
    %717 = vdwg.mxu0
    %718 = vmatpush.bf16.msra.mxu0 %v590
    %719 = vmatpush.bf16.msra.mxu0 %v586
    %720 = vmatpush.bf16.msra.mxu0 %v582
    %721 = vmatpush.bf16.msra.mxu0 %v578
    %722 = vmatpush.bf16.msra.mxu0 %v574
    %723 = vmatpush.bf16.msra.mxu0 %v570
    %724 = vmatpush.bf16.msra.mxu0 %v566
    %725 = vmatpush.bf16.msra.mxu0 %v562
    %726 = vmatmul.bf16.gmra.mxu0 %v103
    %v727 = vpop.f32.mrf.mxu0
    %v728 = vadd.f32 %v714, %v727
    %v729 = vpop.f32.mrf.mxu0
    %v730 = vadd.f32 %v716, %v729
    %731 = vdwg.mxu0
    %732 = vmatpush.bf16.msra.mxu0 %v527
    %733 = vmatpush.bf16.msra.mxu0 %v523
    %734 = vmatpush.bf16.msra.mxu0 %v519
    %735 = vmatpush.bf16.msra.mxu0 %v515
    %736 = vmatpush.bf16.msra.mxu0 %v511
    %737 = vmatpush.bf16.msra.mxu0 %v507
    %738 = vmatpush.bf16.msra.mxu0 %v503
    %739 = vmatpush.bf16.msra.mxu0 %v499
    %740 = vmatmul.bf16.gmra.mxu0 %v101
    %v741 = vpop.f32.mrf.mxu0
    %v742 = vadd.f32 %v203, %v741
    %v743 = vpop.f32.mrf.mxu0
    %v744 = vadd.f32 %v203, %v743
    %745 = vdwg.mxu0
    %746 = vmatpush.bf16.msra.mxu0 %v559
    %747 = vmatpush.bf16.msra.mxu0 %v555
    %748 = vmatpush.bf16.msra.mxu0 %v551
    %749 = vmatpush.bf16.msra.mxu0 %v547
    %750 = vmatpush.bf16.msra.mxu0 %v543
    %751 = vmatpush.bf16.msra.mxu0 %v539
    %752 = vmatpush.bf16.msra.mxu0 %v535
    %753 = vmatpush.bf16.msra.mxu0 %v531
    %754 = vmatmul.bf16.gmra.mxu0 %v102
    %v755 = vpop.f32.mrf.mxu0
    %v756 = vadd.f32 %v742, %v755
    %v757 = vpop.f32.mrf.mxu0
    %v758 = vadd.f32 %v744, %v757
    %759 = vdwg.mxu0
    %760 = vmatpush.bf16.msra.mxu0 %v591
    %761 = vmatpush.bf16.msra.mxu0 %v587
    %762 = vmatpush.bf16.msra.mxu0 %v583
    %763 = vmatpush.bf16.msra.mxu0 %v579
    %764 = vmatpush.bf16.msra.mxu0 %v575
    %765 = vmatpush.bf16.msra.mxu0 %v571
    %766 = vmatpush.bf16.msra.mxu0 %v567
    %767 = vmatpush.bf16.msra.mxu0 %v563
    %768 = vmatmul.bf16.gmra.mxu0 %v103
    %v769 = vpop.f32.mrf.mxu0
    %v770 = vadd.f32 %v756, %v769
    %v771 = vpop.f32.mrf.mxu0
    %v772 = vadd.f32 %v758, %v771
    %773 = vdwg.mxu0
    %774 = vmatpush.bf16.msra.mxu0 %v528
    %775 = vmatpush.bf16.msra.mxu0 %v524
    %776 = vmatpush.bf16.msra.mxu0 %v520
    %777 = vmatpush.bf16.msra.mxu0 %v516
    %778 = vmatpush.bf16.msra.mxu0 %v512
    %779 = vmatpush.bf16.msra.mxu0 %v508
    %780 = vmatpush.bf16.msra.mxu0 %v504
    %781 = vmatpush.bf16.msra.mxu0 %v500
    %782 = vmatmul.bf16.gmra.mxu0 %v101
    %v783 = vpop.f32.mrf.mxu0
    %v784 = vadd.f32 %v204, %v783
    %v785 = vpop.f32.mrf.mxu0
    %v786 = vadd.f32 %v204, %v785
    %787 = vdwg.mxu0
    %788 = vmatpush.bf16.msra.mxu0 %v560
    %789 = vmatpush.bf16.msra.mxu0 %v556
    %790 = vmatpush.bf16.msra.mxu0 %v552
    %791 = vmatpush.bf16.msra.mxu0 %v548
    %792 = vmatpush.bf16.msra.mxu0 %v544
    %793 = vmatpush.bf16.msra.mxu0 %v540
    %794 = vmatpush.bf16.msra.mxu0 %v536
    %795 = vmatpush.bf16.msra.mxu0 %v532
    %796 = vmatmul.bf16.gmra.mxu0 %v102
    %v797 = vpop.f32.mrf.mxu0
    %v798 = vadd.f32 %v784, %v797
    %v799 = vpop.f32.mrf.mxu0
    %v800 = vadd.f32 %v786, %v799
    %801 = vdwg.mxu0
    %802 = vmatpush.bf16.msra.mxu0 %v592
    %803 = vmatpush.bf16.msra.mxu0 %v588
    %804 = vmatpush.bf16.msra.mxu0 %v584
    %805 = vmatpush.bf16.msra.mxu0 %v580
    %806 = vmatpush.bf16.msra.mxu0 %v576
    %807 = vmatpush.bf16.msra.mxu0 %v572
    %808 = vmatpush.bf16.msra.mxu0 %v568
    %809 = vmatpush.bf16.msra.mxu0 %v564
    %810 = vmatmul.bf16.gmra.mxu0 %v103
    %v811 = vpop.f32.mrf.mxu0
    %v812 = vadd.f32 %v798, %v811
    %v813 = vpop.f32.mrf.mxu0
    %v814 = vadd.f32 %v800, %v813
    %815 = vdwg.mxu0
    %816 = vmatpush.bf16.msra.mxu0 %v529
    %817 = vmatpush.bf16.msra.mxu0 %v525
    %818 = vmatpush.bf16.msra.mxu0 %v521
    %819 = vmatpush.bf16.msra.mxu0 %v517
    %820 = vmatpush.bf16.msra.mxu0 %v513
    %821 = vmatpush.bf16.msra.mxu0 %v509
    %822 = vmatpush.bf16.msra.mxu0 %v505
    %823 = vmatpush.bf16.msra.mxu0 %v501
    %824 = vmatmul.bf16.gmra.mxu0 %v101
    %v825 = vpop.f32.mrf.mxu0
    %v826 = vadd.f32 %v205, %v825
    %v827 = vpop.f32.mrf.mxu0
    %v828 = vadd.f32 %v205, %v827
    %829 = vdwg.mxu0
    %830 = vmatpush.bf16.msra.mxu0 %v561
    %831 = vmatpush.bf16.msra.mxu0 %v557
    %832 = vmatpush.bf16.msra.mxu0 %v553
    %833 = vmatpush.bf16.msra.mxu0 %v549
    %834 = vmatpush.bf16.msra.mxu0 %v545
    %835 = vmatpush.bf16.msra.mxu0 %v541
    %836 = vmatpush.bf16.msra.mxu0 %v537
    %837 = vmatpush.bf16.msra.mxu0 %v533
    %838 = vmatmul.bf16.gmra.mxu0 %v102
    %v839 = vpop.f32.mrf.mxu0
    %v840 = vadd.f32 %v826, %v839
    %v841 = vpop.f32.mrf.mxu0
    %v842 = vadd.f32 %v828, %v841
    %843 = vdwg.mxu0
    %844 = vmatpush.bf16.msra.mxu0 %v593
    %845 = vmatpush.bf16.msra.mxu0 %v589
    %846 = vmatpush.bf16.msra.mxu0 %v585
    %847 = vmatpush.bf16.msra.mxu0 %v581
    %848 = vmatpush.bf16.msra.mxu0 %v577
    %849 = vmatpush.bf16.msra.mxu0 %v573
    %850 = vmatpush.bf16.msra.mxu0 %v569
    %851 = vmatpush.bf16.msra.mxu0 %v565
    %852 = vmatmul.bf16.gmra.mxu0 %v103
    %v853 = vpop.f32.mrf.mxu0
    %v854 = vadd.f32 %v840, %v853
    %v855 = vpop.f32.mrf.mxu0
    %v856 = vadd.f32 %v842, %v855
    %857 = vdwg.mxu0
    %v858 = vmax.f32 %v728, 0.0
    %v859 = vmax.f32 %v770, 0.0
    %v860 = vmax.f32 %v812, 0.0
    %v861 = vmax.f32 %v854, 0.0
    %v862 = vmax.f32 %v730, 0.0
    %v863 = vmax.f32 %v772, 0.0
    %v864 = vmax.f32 %v814, 0.0
    %v865 = vmax.f32 %v856, 0.0
    %v866 = vpack.c.bf16 %v862, %v858
    %v867 = vpack.c.bf16 %v863, %v859
    %v868 = vpack.c.bf16 %v864, %v860
    %v869 = vpack.c.bf16 %v865, %v861
    %v870 = vld [vmem:[#allocation9] sm:$0xff]
    %v871 = vld [vmem:[#allocation9 + $0x8] sm:$0xf]
    %v872 = vld [vmem:[#allocation9 + $0xc] sm:$0xff]
    %v873 = vld [vmem:[#allocation9 + $0x14] sm:$0xf]
    %v874 = vld [vmem:[#allocation9 + $0x18] sm:$0xff]
    %v875 = vld [vmem:[#allocation9 + $0x20] sm:$0xf]
    %v876 = vld [vmem:[#allocation9 + $0x24] sm:$0xff]
    %v877 = vld [vmem:[#allocation9 + $0x2c] sm:$0xf]
    %v878 = vld [vmem:[#allocation9 + $0x30] sm:$0xff]
    %v879 = vld [vmem:[#allocation9 + $0x38] sm:$0xf]
    %v880 = vld [vmem:[#allocation9 + $0x3c] sm:$0xff]
    %v881 = vld [vmem:[#allocation9 + $0x44] sm:$0xf]
    %v882 = vld [vmem:[#allocation9 + $0x48] sm:$0xff]
    %v883 = vld [vmem:[#allocation9 + $0x50] sm:$0xf]
    %v884 = vld [vmem:[#allocation9 + $0x54] sm:$0xff]
    %v885 = vld [vmem:[#allocation9 + $0x5c] sm:$0xf]
    %v886 = vld [vmem:[#allocation9 + $0x60] sm:$0xff]
    %v887 = vld [vmem:[#allocation9 + $0x68] sm:$0xf]
    %v888 = vld [vmem:[#allocation9 + $0x6c] sm:$0xff]
    %v889 = vld [vmem:[#allocation9 + $0x74] sm:$0xf]
    %v890 = vld [vmem:[#allocation9 + $0x78] sm:$0xff]
    %v891 = vld [vmem:[#allocation9 + $0x80] sm:$0xf]
    %v892 = vld [vmem:[#allocation9 + $0x84] sm:$0xff]
    %v893 = vld [vmem:[#allocation9 + $0x8c] sm:$0xf]
    %v894 = vld [vmem:[#allocation9 + $0x90] sm:$0xff]
    %v895 = vld [vmem:[#allocation9 + $0x98] sm:$0xf]
    %v896 = vld [vmem:[#allocation9 + $0x9c] sm:$0xff]
    %v897 = vld [vmem:[#allocation9 + $0xa4] sm:$0xf]
    %v898 = vld [vmem:[#allocation9 + $0xa8] sm:$0xff]
    %v899 = vld [vmem:[#allocation9 + $0xb0] sm:$0xf]
    %v900 = vld [vmem:[#allocation9 + $0xb4] sm:$0xff]
    %v901 = vld [vmem:[#allocation9 + $0xbc] sm:$0xf]
    %v902 = vld [vmem:[#allocation9 + $0xc0] sm:$0xff]
    %v903 = vld [vmem:[#allocation9 + $0xc8] sm:$0xf]
    %v904 = vld [vmem:[#allocation9 + $0xcc] sm:$0xff]
    %v905 = vld [vmem:[#allocation9 + $0xd4] sm:$0xf]
    %v906 = vld [vmem:[#allocation9 + $0xd8] sm:$0xff]
    %v907 = vld [vmem:[#allocation9 + $0xe0] sm:$0xf]
    %v908 = vld [vmem:[#allocation9 + $0xe4] sm:$0xff]
    %v909 = vld [vmem:[#allocation9 + $0xec] sm:$0xf]
    %v910 = vld [vmem:[#allocation9 + $0xf0] sm:$0xff]
    %v911 = vld [vmem:[#allocation9 + $0xf8] sm:$0xf]
    %v912 = vld [vmem:[#allocation9 + $0xfc] sm:$0xff]
    %v913 = vld [vmem:[#allocation9 + $0x104] sm:$0xf]
    %v914 = vld [vmem:[#allocation9 + $0x108] sm:$0xff]
    %v915 = vld [vmem:[#allocation9 + $0x110] sm:$0xf]
    %v916 = vld [vmem:[#allocation9 + $0x114] sm:$0xff]
    %v917 = vld [vmem:[#allocation9 + $0x11c] sm:$0xf]
    %v918 = vld [vmem:[#allocation9 + $0x120] sm:$0xff]
    %v919 = vld [vmem:[#allocation9 + $0x128] sm:$0xf]
    %v920 = vld [vmem:[#allocation9 + $0x12c] sm:$0xff]
    %v921 = vld [vmem:[#allocation9 + $0x134] sm:$0xf]
    %v922 = vld [vmem:[#allocation9 + $0x138] sm:$0xff]
    %v923 = vld [vmem:[#allocation9 + $0x140] sm:$0xf]
    %v924 = vld [vmem:[#allocation9 + $0x144] sm:$0xff]
    %v925 = vld [vmem:[#allocation9 + $0x14c] sm:$0xf]
    %v926 = vld [vmem:[#allocation9 + $0x150] sm:$0xff]
    %v927 = vld [vmem:[#allocation9 + $0x158] sm:$0xf]
    %v928 = vld [vmem:[#allocation9 + $0x15c] sm:$0xff]
    %v929 = vld [vmem:[#allocation9 + $0x164] sm:$0xf]
    %v930 = vld [vmem:[#allocation9 + $0x168] sm:$0xff]
    %v931 = vld [vmem:[#allocation9 + $0x170] sm:$0xf]
    %v932 = vld [vmem:[#allocation9 + $0x174] sm:$0xff]
    %v933 = vld [vmem:[#allocation9 + $0x17c] sm:$0xf]
    %v934 = vld [vmem:[#allocation9 + $0x180] sm:$0xff]
    %v935 = vld [vmem:[#allocation9 + $0x188] sm:$0xf]
    %v936 = vld [vmem:[#allocation9 + $0x18c] sm:$0xff]
    %v937 = vld [vmem:[#allocation9 + $0x194] sm:$0xf]
    %v938 = vld [vmem:[#allocation9 + $0x198] sm:$0xff]
    %v939 = vld [vmem:[#allocation9 + $0x1a0] sm:$0xf]
    %v940 = vld [vmem:[#allocation9 + $0x1a4] sm:$0xff]
    %v941 = vld [vmem:[#allocation9 + $0x1ac] sm:$0xf]
    %v942 = vld [vmem:[#allocation9 + $0x1b0] sm:$0xff]
    %v943 = vld [vmem:[#allocation9 + $0x1b8] sm:$0xf]
    %v944 = vld [vmem:[#allocation9 + $0x1bc] sm:$0xff]
    %v945 = vld [vmem:[#allocation9 + $0x1c4] sm:$0xf]
    %v946 = vld [vmem:[#allocation9 + $0x1c8] sm:$0xff]
    %v947 = vld [vmem:[#allocation9 + $0x1d0] sm:$0xf]
    %v948 = vld [vmem:[#allocation9 + $0x1d4] sm:$0xff]
    %v949 = vld [vmem:[#allocation9 + $0x1dc] sm:$0xf]
    %v950 = vld [vmem:[#allocation9 + $0x1e0] sm:$0xff]
    %v951 = vld [vmem:[#allocation9 + $0x1e8] sm:$0xf]
    %v952 = vld [vmem:[#allocation9 + $0x1ec] sm:$0xff]
    %v953 = vld [vmem:[#allocation9 + $0x1f4] sm:$0xf]
    %v954 = vld [vmem:[#allocation9 + $0x1f8] sm:$0xff]
    %v955 = vld [vmem:[#allocation9 + $0x200] sm:$0xf]
    %v956 = vld [vmem:[#allocation9 + $0x204] sm:$0xff]
    %v957 = vld [vmem:[#allocation9 + $0x20c] sm:$0xf]
    %v958 = vld [vmem:[#allocation9 + $0x210] sm:$0xff]
    %v959 = vld [vmem:[#allocation9 + $0x218] sm:$0xf]
    %v960 = vld [vmem:[#allocation9 + $0x21c] sm:$0xff]
    %v961 = vld [vmem:[#allocation9 + $0x224] sm:$0xf]
    %v962 = vld [vmem:[#allocation9 + $0x228] sm:$0xff]
    %v963 = vld [vmem:[#allocation9 + $0x230] sm:$0xf]
    %v964 = vld [vmem:[#allocation9 + $0x234] sm:$0xff]
    %v965 = vld [vmem:[#allocation9 + $0x23c] sm:$0xf]
    %v966 = vld [vmem:[#allocation9 + $0x240] sm:$0xff]
    %v967 = vld [vmem:[#allocation9 + $0x248] sm:$0xf]
    %v968 = vld [vmem:[#allocation9 + $0x24c] sm:$0xff]
    %v969 = vld [vmem:[#allocation9 + $0x254] sm:$0xf]
    %v970 = vld [vmem:[#allocation9 + $0x258] sm:$0xff]
    %v971 = vld [vmem:[#allocation9 + $0x260] sm:$0xf]
    %v972 = vld [vmem:[#allocation9 + $0x264] sm:$0xff]
    %v973 = vld [vmem:[#allocation9 + $0x26c] sm:$0xf]
    %v974 = vld [vmem:[#allocation9 + $0x270] sm:$0xff]
    %v975 = vld [vmem:[#allocation9 + $0x278] sm:$0xf]
    %v976 = vld [vmem:[#allocation9 + $0x27c] sm:$0xff]
    %v977 = vld [vmem:[#allocation9 + $0x284] sm:$0xf]
    %v978 = vld [vmem:[#allocation9 + $0x288] sm:$0xff]
    %v979 = vld [vmem:[#allocation9 + $0x290] sm:$0xf]
    %v980 = vld [vmem:[#allocation9 + $0x294] sm:$0xff]
    %v981 = vld [vmem:[#allocation9 + $0x29c] sm:$0xf]
    %v982 = vld [vmem:[#allocation9 + $0x2a0] sm:$0xff]
    %v983 = vld [vmem:[#allocation9 + $0x2a8] sm:$0xf]
    %v984 = vld [vmem:[#allocation9 + $0x2ac] sm:$0xff]
    %v985 = vld [vmem:[#allocation9 + $0x2b4] sm:$0xf]
    %v986 = vld [vmem:[#allocation9 + $0x2b8] sm:$0xff]
    %v987 = vld [vmem:[#allocation9 + $0x2c0] sm:$0xf]
    %v988 = vld [vmem:[#allocation9 + $0x2c4] sm:$0xff]
    %v989 = vld [vmem:[#allocation9 + $0x2cc] sm:$0xf]
    %v990 = vld [vmem:[#allocation9 + $0x2d0] sm:$0xff]
    %v991 = vld [vmem:[#allocation9 + $0x2d8] sm:$0xf]
    %v992 = vld [vmem:[#allocation9 + $0x2dc] sm:$0xff]
    %v993 = vld [vmem:[#allocation9 + $0x2e4] sm:$0xf]
    %v994 = vld [vmem:[#allocation9 + $0x2e8] sm:$0xff]
    %v995 = vld [vmem:[#allocation9 + $0x2f0] sm:$0xf]
    %v996 = vld [vmem:[#allocation9 + $0x2f4] sm:$0xff]
    %v997 = vld [vmem:[#allocation9 + $0x2fc] sm:$0xf]
    %v1126 = vunpack.c.l.b16 %v870
    %v1127 = vunpack.c.h.b16 %v870
    %v1128 = vunpack.c.l.b16 %v871
    %v1129 = vunpack.c.l.b16 %v872
    %v1130 = vunpack.c.h.b16 %v872
    %v1131 = vunpack.c.l.b16 %v873
    %v1132 = vunpack.c.l.b16 %v874
    %v1133 = vunpack.c.h.b16 %v874
    %v1134 = vunpack.c.l.b16 %v875
    %v1135 = vunpack.c.l.b16 %v876
    %v1136 = vunpack.c.h.b16 %v876
    %v1137 = vunpack.c.l.b16 %v877
    %v1138 = vunpack.c.l.b16 %v878
    %v1139 = vunpack.c.h.b16 %v878
    %v1140 = vunpack.c.l.b16 %v879
    %v1141 = vunpack.c.l.b16 %v880
    %v1142 = vunpack.c.h.b16 %v880
    %v1143 = vunpack.c.l.b16 %v881
    %v1144 = vunpack.c.l.b16 %v882
    %v1145 = vunpack.c.h.b16 %v882
    %v1146 = vunpack.c.l.b16 %v883
    %v1147 = vunpack.c.l.b16 %v884
    %v1148 = vunpack.c.h.b16 %v884
    %v1149 = vunpack.c.l.b16 %v885
    %v1150 = vunpack.c.l.b16 %v886
    %v1151 = vunpack.c.h.b16 %v886
    %v1152 = vunpack.c.l.b16 %v887
    %v1153 = vunpack.c.l.b16 %v888
    %v1154 = vunpack.c.h.b16 %v888
    %v1155 = vunpack.c.l.b16 %v889
    %v1156 = vunpack.c.l.b16 %v890
    %v1157 = vunpack.c.h.b16 %v890
    %v1158 = vunpack.c.l.b16 %v891
    %v1159 = vunpack.c.l.b16 %v892
    %v1160 = vunpack.c.h.b16 %v892
    %v1161 = vunpack.c.l.b16 %v893
    %v1162 = vunpack.c.l.b16 %v894
    %v1163 = vunpack.c.h.b16 %v894
    %v1164 = vunpack.c.l.b16 %v895
    %v1165 = vunpack.c.l.b16 %v896
    %v1166 = vunpack.c.h.b16 %v896
    %v1167 = vunpack.c.l.b16 %v897
    %v1168 = vunpack.c.l.b16 %v898
    %v1169 = vunpack.c.h.b16 %v898
    %v1170 = vunpack.c.l.b16 %v899
    %v1171 = vunpack.c.l.b16 %v900
    %v1172 = vunpack.c.h.b16 %v900
    %v1173 = vunpack.c.l.b16 %v901
    %v1174 = vunpack.c.l.b16 %v902
    %v1175 = vunpack.c.h.b16 %v902
    %v1176 = vunpack.c.l.b16 %v903
    %v1177 = vunpack.c.l.b16 %v904
    %v1178 = vunpack.c.h.b16 %v904
    %v1179 = vunpack.c.l.b16 %v905
    %v1180 = vunpack.c.l.b16 %v906
    %v1181 = vunpack.c.h.b16 %v906
    %v1182 = vunpack.c.l.b16 %v907
    %v1183 = vunpack.c.l.b16 %v908
    %v1184 = vunpack.c.h.b16 %v908
    %v1185 = vunpack.c.l.b16 %v909
    %v1186 = vunpack.c.l.b16 %v910
    %v1187 = vunpack.c.h.b16 %v910
    %v1188 = vunpack.c.l.b16 %v911
    %v1189 = vunpack.c.l.b16 %v912
    %v1190 = vunpack.c.h.b16 %v912
    %v1191 = vunpack.c.l.b16 %v913
    %v1192 = vunpack.c.l.b16 %v914
    %v1193 = vunpack.c.h.b16 %v914
    %v1194 = vunpack.c.l.b16 %v915
    %v1195 = vunpack.c.l.b16 %v916
    %v1196 = vunpack.c.h.b16 %v916
    %v1197 = vunpack.c.l.b16 %v917
    %v1198 = vunpack.c.l.b16 %v918
    %v1199 = vunpack.c.h.b16 %v918
    %v1200 = vunpack.c.l.b16 %v919
    %v1201 = vunpack.c.l.b16 %v920
    %v1202 = vunpack.c.h.b16 %v920
    %v1203 = vunpack.c.l.b16 %v921
    %v1204 = vunpack.c.l.b16 %v922
    %v1205 = vunpack.c.h.b16 %v922
    %v1206 = vunpack.c.l.b16 %v923
    %v1207 = vunpack.c.l.b16 %v924
    %v1208 = vunpack.c.h.b16 %v924
    %v1209 = vunpack.c.l.b16 %v925
    %v1210 = vunpack.c.l.b16 %v926
    %v1211 = vunpack.c.h.b16 %v926
    %v1212 = vunpack.c.l.b16 %v927
    %v1213 = vunpack.c.l.b16 %v928
    %v1214 = vunpack.c.h.b16 %v928
    %v1215 = vunpack.c.l.b16 %v929
    %v1216 = vunpack.c.l.b16 %v930
    %v1217 = vunpack.c.h.b16 %v930
    %v1218 = vunpack.c.l.b16 %v931
    %v1219 = vunpack.c.l.b16 %v932
    %v1220 = vunpack.c.h.b16 %v932
    %v1221 = vunpack.c.l.b16 %v933
    %v1222 = vunpack.c.l.b16 %v934
    %v1223 = vunpack.c.h.b16 %v934
    %v1224 = vunpack.c.l.b16 %v935
    %v1225 = vunpack.c.l.b16 %v936
    %v1226 = vunpack.c.h.b16 %v936
    %v1227 = vunpack.c.l.b16 %v937
    %v1228 = vunpack.c.l.b16 %v938
    %v1229 = vunpack.c.h.b16 %v938
    %v1230 = vunpack.c.l.b16 %v939
    %v1231 = vunpack.c.l.b16 %v940
    %v1232 = vunpack.c.h.b16 %v940
    %v1233 = vunpack.c.l.b16 %v941
    %v1234 = vunpack.c.l.b16 %v942
    %v1235 = vunpack.c.h.b16 %v942
    %v1236 = vunpack.c.l.b16 %v943
    %v1237 = vunpack.c.l.b16 %v944
    %v1238 = vunpack.c.h.b16 %v944
    %v1239 = vunpack.c.l.b16 %v945
    %v1240 = vunpack.c.l.b16 %v946
    %v1241 = vunpack.c.h.b16 %v946
    %v1242 = vunpack.c.l.b16 %v947
    %v1243 = vunpack.c.l.b16 %v948
    %v1244 = vunpack.c.h.b16 %v948
    %v1245 = vunpack.c.l.b16 %v949
    %v1246 = vunpack.c.l.b16 %v950
    %v1247 = vunpack.c.h.b16 %v950
    %v1248 = vunpack.c.l.b16 %v951
    %v1249 = vunpack.c.l.b16 %v952
    %v1250 = vunpack.c.h.b16 %v952
    %v1251 = vunpack.c.l.b16 %v953
    %v1252 = vunpack.c.l.b16 %v954
    %v1253 = vunpack.c.h.b16 %v954
    %v1254 = vunpack.c.l.b16 %v955
    %v1255 = vunpack.c.l.b16 %v956
    %v1256 = vunpack.c.h.b16 %v956
    %v1257 = vunpack.c.l.b16 %v957
    %v1258 = vunpack.c.l.b16 %v958
    %v1259 = vunpack.c.h.b16 %v958
    %v1260 = vunpack.c.l.b16 %v959
    %v1261 = vunpack.c.l.b16 %v960
    %v1262 = vunpack.c.h.b16 %v960
    %v1263 = vunpack.c.l.b16 %v961
    %v1264 = vunpack.c.l.b16 %v962
    %v1265 = vunpack.c.h.b16 %v962
    %v1266 = vunpack.c.l.b16 %v963
    %v1267 = vunpack.c.l.b16 %v964
    %v1268 = vunpack.c.h.b16 %v964
    %v1269 = vunpack.c.l.b16 %v965
    %v1270 = vunpack.c.l.b16 %v966
    %v1271 = vunpack.c.h.b16 %v966
    %v1272 = vunpack.c.l.b16 %v967
    %v1273 = vunpack.c.l.b16 %v968
    %v1274 = vunpack.c.h.b16 %v968
    %v1275 = vunpack.c.l.b16 %v969
    %v1276 = vunpack.c.l.b16 %v970
    %v1277 = vunpack.c.h.b16 %v970
    %v1278 = vunpack.c.l.b16 %v971
    %v1279 = vunpack.c.l.b16 %v972
    %v1280 = vunpack.c.h.b16 %v972
    %v1281 = vunpack.c.l.b16 %v973
    %v1282 = vunpack.c.l.b16 %v974
    %v1283 = vunpack.c.h.b16 %v974
    %v1284 = vunpack.c.l.b16 %v975
    %v1285 = vunpack.c.l.b16 %v976
    %v1286 = vunpack.c.h.b16 %v976
    %v1287 = vunpack.c.l.b16 %v977
    %v1288 = vunpack.c.l.b16 %v978
    %v1289 = vunpack.c.h.b16 %v978
    %v1290 = vunpack.c.l.b16 %v979
    %v1291 = vunpack.c.l.b16 %v980
    %v1292 = vunpack.c.h.b16 %v980
    %v1293 = vunpack.c.l.b16 %v981
    %v1294 = vunpack.c.l.b16 %v982
    %v1295 = vunpack.c.h.b16 %v982
    %v1296 = vunpack.c.l.b16 %v983
    %v1297 = vunpack.c.l.b16 %v984
    %v1298 = vunpack.c.h.b16 %v984
    %v1299 = vunpack.c.l.b16 %v985
    %v1300 = vunpack.c.l.b16 %v986
    %v1301 = vunpack.c.h.b16 %v986
    %v1302 = vunpack.c.l.b16 %v987
    %v1303 = vunpack.c.l.b16 %v988
    %v1304 = vunpack.c.h.b16 %v988
    %v1305 = vunpack.c.l.b16 %v989
    %v1306 = vunpack.c.l.b16 %v990
    %v1307 = vunpack.c.h.b16 %v990
    %v1308 = vunpack.c.l.b16 %v991
    %v1309 = vunpack.c.l.b16 %v992
    %v1310 = vunpack.c.h.b16 %v992
    %v1311 = vunpack.c.l.b16 %v993
    %v1312 = vunpack.c.l.b16 %v994
    %v1313 = vunpack.c.h.b16 %v994
    %v1314 = vunpack.c.l.b16 %v995
    %v1315 = vunpack.c.l.b16 %v996
    %v1316 = vunpack.c.h.b16 %v996
    %v1317 = vunpack.c.l.b16 %v997
    %v1318 = vpack.c.b16 %v1129, %v1126
    %v1319 = vpack.c.b16 %v1130, %v1127
    %v1320 = vpack.c.b16 %v1131, %v1128
    %v1321 = vpack.c.b16 %v1135, %v1132
    %v1322 = vpack.c.b16 %v1136, %v1133
    %v1323 = vpack.c.b16 %v1137, %v1134
    %v1324 = vpack.c.b16 %v1141, %v1138
    %v1325 = vpack.c.b16 %v1142, %v1139
    %v1326 = vpack.c.b16 %v1143, %v1140
    %v1327 = vpack.c.b16 %v1147, %v1144
    %v1328 = vpack.c.b16 %v1148, %v1145
    %v1329 = vpack.c.b16 %v1149, %v1146
    %v1330 = vpack.c.b16 %v1153, %v1150
    %v1331 = vpack.c.b16 %v1154, %v1151
    %v1332 = vpack.c.b16 %v1155, %v1152
    %v1333 = vpack.c.b16 %v1159, %v1156
    %v1334 = vpack.c.b16 %v1160, %v1157
    %v1335 = vpack.c.b16 %v1161, %v1158
    %v1336 = vpack.c.b16 %v1165, %v1162
    %v1337 = vpack.c.b16 %v1166, %v1163
    %v1338 = vpack.c.b16 %v1167, %v1164
    %v1339 = vpack.c.b16 %v1171, %v1168
    %v1340 = vpack.c.b16 %v1172, %v1169
    %v1341 = vpack.c.b16 %v1173, %v1170
    %v1342 = vpack.c.b16 %v1177, %v1174
    %v1343 = vpack.c.b16 %v1178, %v1175
    %v1344 = vpack.c.b16 %v1179, %v1176
    %v1345 = vpack.c.b16 %v1183, %v1180
    %v1346 = vpack.c.b16 %v1184, %v1181
    %v1347 = vpack.c.b16 %v1185, %v1182
    %v1348 = vpack.c.b16 %v1189, %v1186
    %v1349 = vpack.c.b16 %v1190, %v1187
    %v1350 = vpack.c.b16 %v1191, %v1188
    %v1351 = vpack.c.b16 %v1195, %v1192
    %v1352 = vpack.c.b16 %v1196, %v1193
    %v1353 = vpack.c.b16 %v1197, %v1194
    %v1354 = vpack.c.b16 %v1201, %v1198
    %v1355 = vpack.c.b16 %v1202, %v1199
    %v1356 = vpack.c.b16 %v1203, %v1200
    %v1357 = vpack.c.b16 %v1207, %v1204
    %v1358 = vpack.c.b16 %v1208, %v1205
    %v1359 = vpack.c.b16 %v1209, %v1206
    %v1360 = vpack.c.b16 %v1213, %v1210
    %v1361 = vpack.c.b16 %v1214, %v1211
    %v1362 = vpack.c.b16 %v1215, %v1212
    %v1363 = vpack.c.b16 %v1219, %v1216
    %v1364 = vpack.c.b16 %v1220, %v1217
    %v1365 = vpack.c.b16 %v1221, %v1218
    %v1366 = vpack.c.b16 %v1225, %v1222
    %v1367 = vpack.c.b16 %v1226, %v1223
    %v1368 = vpack.c.b16 %v1227, %v1224
    %v1369 = vpack.c.b16 %v1231, %v1228
    %v1370 = vpack.c.b16 %v1232, %v1229
    %v1371 = vpack.c.b16 %v1233, %v1230
    %v1372 = vpack.c.b16 %v1237, %v1234
    %v1373 = vpack.c.b16 %v1238, %v1235
    %v1374 = vpack.c.b16 %v1239, %v1236
    %v1375 = vpack.c.b16 %v1243, %v1240
    %v1376 = vpack.c.b16 %v1244, %v1241
    %v1377 = vpack.c.b16 %v1245, %v1242
    %v1378 = vpack.c.b16 %v1249, %v1246
    %v1379 = vpack.c.b16 %v1250, %v1247
    %v1380 = vpack.c.b16 %v1251, %v1248
    %v1381 = vpack.c.b16 %v1255, %v1252
    %v1382 = vpack.c.b16 %v1256, %v1253
    %v1383 = vpack.c.b16 %v1257, %v1254
    %v1384 = vpack.c.b16 %v1261, %v1258
    %v1385 = vpack.c.b16 %v1262, %v1259
    %v1386 = vpack.c.b16 %v1263, %v1260
    %v1387 = vpack.c.b16 %v1267, %v1264
    %v1388 = vpack.c.b16 %v1268, %v1265
    %v1389 = vpack.c.b16 %v1269, %v1266
    %v1390 = vpack.c.b16 %v1273, %v1270
    %v1391 = vpack.c.b16 %v1274, %v1271
    %v1392 = vpack.c.b16 %v1275, %v1272
    %v1393 = vpack.c.b16 %v1279, %v1276
    %v1394 = vpack.c.b16 %v1280, %v1277
    %v1395 = vpack.c.b16 %v1281, %v1278
    %v1396 = vpack.c.b16 %v1285, %v1282
    %v1397 = vpack.c.b16 %v1286, %v1283
    %v1398 = vpack.c.b16 %v1287, %v1284
    %v1399 = vpack.c.b16 %v1291, %v1288
    %v1400 = vpack.c.b16 %v1292, %v1289
    %v1401 = vpack.c.b16 %v1293, %v1290
    %v1402 = vpack.c.b16 %v1297, %v1294
    %v1403 = vpack.c.b16 %v1298, %v1295
    %v1404 = vpack.c.b16 %v1299, %v1296
    %v1405 = vpack.c.b16 %v1303, %v1300
    %v1406 = vpack.c.b16 %v1304, %v1301
    %v1407 = vpack.c.b16 %v1305, %v1302
    %v1408 = vpack.c.b16 %v1309, %v1306
    %v1409 = vpack.c.b16 %v1310, %v1307
    %v1410 = vpack.c.b16 %v1311, %v1308
    %v1411 = vpack.c.b16 %v1315, %v1312
    %v1412 = vpack.c.b16 %v1316, %v1313
    %v1413 = vpack.c.b16 %v1317, %v1314
    %1510 = vmatpush.bf16.msra.mxu0 %v1339
    %1511 = vmatpush.bf16.msra.mxu0 %v1336
    %1512 = vmatpush.bf16.msra.mxu0 %v1333
    %1513 = vmatpush.bf16.msra.mxu0 %v1330
    %1514 = vmatpush.bf16.msra.mxu0 %v1327
    %1515 = vmatpush.bf16.msra.mxu0 %v1324
    %1516 = vmatpush.bf16.msra.mxu0 %v1321
    %1517 = vmatpush.bf16.msra.mxu0 %v1318
    %1518 = vmatmul.bf16.gmra.mxu0 %v866
    %v1519 = vpop.f32.mrf.mxu0
    %v1520 = vadd.f32 0.0, %v1519
    %v1521 = vpop.f32.mrf.mxu0
    %v1522 = vadd.f32 0.0, %v1521
    %1523 = vdwg.mxu0
    %1524 = vmatpush.bf16.msra.mxu0 %v1363
    %1525 = vmatpush.bf16.msra.mxu0 %v1360
    %1526 = vmatpush.bf16.msra.mxu0 %v1357
    %1527 = vmatpush.bf16.msra.mxu0 %v1354
    %1528 = vmatpush.bf16.msra.mxu0 %v1351
    %1529 = vmatpush.bf16.msra.mxu0 %v1348
    %1530 = vmatpush.bf16.msra.mxu0 %v1345
    %1531 = vmatpush.bf16.msra.mxu0 %v1342
    %1532 = vmatmul.bf16.gmra.mxu0 %v867
    %v1533 = vpop.f32.mrf.mxu0
    %v1534 = vadd.f32 %v1520, %v1533
    %v1535 = vpop.f32.mrf.mxu0
    %v1536 = vadd.f32 %v1522, %v1535
    %1537 = vdwg.mxu0
    %1538 = vmatpush.bf16.msra.mxu0 %v1387
    %1539 = vmatpush.bf16.msra.mxu0 %v1384
    %1540 = vmatpush.bf16.msra.mxu0 %v1381
    %1541 = vmatpush.bf16.msra.mxu0 %v1378
    %1542 = vmatpush.bf16.msra.mxu0 %v1375
    %1543 = vmatpush.bf16.msra.mxu0 %v1372
    %1544 = vmatpush.bf16.msra.mxu0 %v1369
    %1545 = vmatpush.bf16.msra.mxu0 %v1366
    %1546 = vmatmul.bf16.gmra.mxu0 %v868
    %v1547 = vpop.f32.mrf.mxu0
    %v1548 = vadd.f32 %v1534, %v1547
    %v1549 = vpop.f32.mrf.mxu0
    %v1550 = vadd.f32 %v1536, %v1549
    %1551 = vdwg.mxu0
    %1552 = vmatpush.bf16.msra.mxu0 %v1411
    %1553 = vmatpush.bf16.msra.mxu0 %v1408
    %1554 = vmatpush.bf16.msra.mxu0 %v1405
    %1555 = vmatpush.bf16.msra.mxu0 %v1402
    %1556 = vmatpush.bf16.msra.mxu0 %v1399
    %1557 = vmatpush.bf16.msra.mxu0 %v1396
    %1558 = vmatpush.bf16.msra.mxu0 %v1393
    %1559 = vmatpush.bf16.msra.mxu0 %v1390
    %1560 = vmatmul.bf16.gmra.mxu0 %v869
    %v1561 = vpop.f32.mrf.mxu0
    %v1562 = vadd.f32 %v1548, %v1561
    %v1563 = vpop.f32.mrf.mxu0
    %v1564 = vadd.f32 %v1550, %v1563
    %1565 = vdwg.mxu0
    %1566 = vmatpush.bf16.msra.mxu0 %v1340
    %1567 = vmatpush.bf16.msra.mxu0 %v1337
    %1568 = vmatpush.bf16.msra.mxu0 %v1334
    %1569 = vmatpush.bf16.msra.mxu0 %v1331
    %1570 = vmatpush.bf16.msra.mxu0 %v1328
    %1571 = vmatpush.bf16.msra.mxu0 %v1325
    %1572 = vmatpush.bf16.msra.mxu0 %v1322
    %1573 = vmatpush.bf16.msra.mxu0 %v1319
    %1574 = vmatmul.bf16.gmra.mxu0 %v866
    %v1575 = vpop.f32.mrf.mxu0
    %v1576 = vadd.f32 0.0, %v1575
    %v1577 = vpop.f32.mrf.mxu0
    %v1578 = vadd.f32 0.0, %v1577
    %1579 = vdwg.mxu0
    %1580 = vmatpush.bf16.msra.mxu0 %v1364
    %1581 = vmatpush.bf16.msra.mxu0 %v1361
    %1582 = vmatpush.bf16.msra.mxu0 %v1358
    %1583 = vmatpush.bf16.msra.mxu0 %v1355
    %1584 = vmatpush.bf16.msra.mxu0 %v1352
    %1585 = vmatpush.bf16.msra.mxu0 %v1349
    %1586 = vmatpush.bf16.msra.mxu0 %v1346
    %1587 = vmatpush.bf16.msra.mxu0 %v1343
    %1588 = vmatmul.bf16.gmra.mxu0 %v867
    %v1589 = vpop.f32.mrf.mxu0
    %v1590 = vadd.f32 %v1576, %v1589
    %v1591 = vpop.f32.mrf.mxu0
    %v1592 = vadd.f32 %v1578, %v1591
    %1593 = vdwg.mxu0
    %1594 = vmatpush.bf16.msra.mxu0 %v1388
    %1595 = vmatpush.bf16.msra.mxu0 %v1385
    %1596 = vmatpush.bf16.msra.mxu0 %v1382
    %1597 = vmatpush.bf16.msra.mxu0 %v1379
    %1598 = vmatpush.bf16.msra.mxu0 %v1376
    %1599 = vmatpush.bf16.msra.mxu0 %v1373
    %1600 = vmatpush.bf16.msra.mxu0 %v1370
    %1601 = vmatpush.bf16.msra.mxu0 %v1367
    %1602 = vmatmul.bf16.gmra.mxu0 %v868
    %v1603 = vpop.f32.mrf.mxu0
    %v1604 = vadd.f32 %v1590, %v1603
    %v1605 = vpop.f32.mrf.mxu0
    %v1606 = vadd.f32 %v1592, %v1605
    %1607 = vdwg.mxu0
    %1608 = vmatpush.bf16.msra.mxu0 %v1412
    %1609 = vmatpush.bf16.msra.mxu0 %v1409
    %1610 = vmatpush.bf16.msra.mxu0 %v1406
    %1611 = vmatpush.bf16.msra.mxu0 %v1403
    %1612 = vmatpush.bf16.msra.mxu0 %v1400
    %1613 = vmatpush.bf16.msra.mxu0 %v1397
    %1614 = vmatpush.bf16.msra.mxu0 %v1394
    %1615 = vmatpush.bf16.msra.mxu0 %v1391
    %1616 = vmatmul.bf16.gmra.mxu0 %v869
    %v1617 = vpop.f32.mrf.mxu0
    %v1618 = vadd.f32 %v1604, %v1617
    %v1619 = vpop.f32.mrf.mxu0
    %v1620 = vadd.f32 %v1606, %v1619
    %1621 = vdwg.mxu0
    %1622 = vmatpush.bf16.msra.mxu0 %v1341
    %1623 = vmatpush.bf16.msra.mxu0 %v1338
    %1624 = vmatpush.bf16.msra.mxu0 %v1335
    %1625 = vmatpush.bf16.msra.mxu0 %v1332
    %1626 = vmatpush.bf16.msra.mxu0 %v1329
    %1627 = vmatpush.bf16.msra.mxu0 %v1326
    %1628 = vmatpush.bf16.msra.mxu0 %v1323
    %1629 = vmatpush.bf16.msra.mxu0 %v1320
    %1630 = vmatmul.bf16.gmra.mxu0 %v866
    %v1631 = vpop.f32.mrf.mxu0
    %v1632 = vadd.f32 0.0, %v1631
    %v1633 = vpop.f32.mrf.mxu0
    %v1634 = vadd.f32 0.0, %v1633
    %1635 = vdwg.mxu0
    %1636 = vmatpush.bf16.msra.mxu0 %v1365
    %1637 = vmatpush.bf16.msra.mxu0 %v1362
    %1638 = vmatpush.bf16.msra.mxu0 %v1359
    %1639 = vmatpush.bf16.msra.mxu0 %v1356
    %1640 = vmatpush.bf16.msra.mxu0 %v1353
    %1641 = vmatpush.bf16.msra.mxu0 %v1350
    %1642 = vmatpush.bf16.msra.mxu0 %v1347
    %1643 = vmatpush.bf16.msra.mxu0 %v1344
    %1644 = vmatmul.bf16.gmra.mxu0 %v867
    %v1645 = vpop.f32.mrf.mxu0
    %v1646 = vadd.f32 %v1632, %v1645
    %v1647 = vpop.f32.mrf.mxu0
    %v1648 = vadd.f32 %v1634, %v1647
    %1649 = vdwg.mxu0
    %1650 = vmatpush.bf16.msra.mxu0 %v1389
    %1651 = vmatpush.bf16.msra.mxu0 %v1386
    %1652 = vmatpush.bf16.msra.mxu0 %v1383
    %1653 = vmatpush.bf16.msra.mxu0 %v1380
    %1654 = vmatpush.bf16.msra.mxu0 %v1377
    %1655 = vmatpush.bf16.msra.mxu0 %v1374
    %1656 = vmatpush.bf16.msra.mxu0 %v1371
    %1657 = vmatpush.bf16.msra.mxu0 %v1368
    %1658 = vmatmul.bf16.gmra.mxu0 %v868
    %v1659 = vpop.f32.mrf.mxu0
    %v1660 = vadd.f32 %v1646, %v1659
    %v1661 = vpop.f32.mrf.mxu0
    %v1662 = vadd.f32 %v1648, %v1661
    %1663 = vdwg.mxu0
    %1664 = vmatpush.bf16.msra.mxu0 %v1413
    %1665 = vmatpush.bf16.msra.mxu0 %v1410
    %1666 = vmatpush.bf16.msra.mxu0 %v1407
    %1667 = vmatpush.bf16.msra.mxu0 %v1404
    %1668 = vmatpush.bf16.msra.mxu0 %v1401
    %1669 = vmatpush.bf16.msra.mxu0 %v1398
    %1670 = vmatpush.bf16.msra.mxu0 %v1395
    %1671 = vmatpush.bf16.msra.mxu0 %v1392
    %1672 = vmatmul.bf16.gmra.mxu0 %v869
    %v1673 = vpop.f32.mrf.mxu0
    %v1674 = vadd.f32 %v1660, %v1673
    %v1675 = vpop.f32.mrf.mxu0
    %v1676 = vadd.f32 %v1662, %v1675
    %1677 = vdwg.mxu0
    %1678 = vst [vmem:[#allocation2] sm:$0xff] %v1562
    %1679 = vst [vmem:[#allocation2 + $0x8] sm:$0xff] %v1618
    %1680 = vst [vmem:[#allocation2 + $0x10] sm:$0xff] %v1674
    %1681 = vst [vmem:[#allocation2 + $0x18] sm:$0xff] %v1564
    %1682 = vst [vmem:[#allocation2 + $0x20] sm:$0xff] %v1620
    %1683 = vst [vmem:[#allocation2 + $0x28] sm:$0xff] %v1676
    %v1684 = vld [vmem:[#allocation6 + $0x10] sm:$0xff]
    %v1685 = vld [vmem:[#allocation6 + $0x18] sm:$0xff]
    %v1686 = vld [vmem:[#allocation6 + $0x40] sm:$0xff]
    %v1687 = vld [vmem:[#allocation6 + $0x48] sm:$0xff]
    %v1688 = vld [vmem:[#allocation6 + $0x70] sm:$0xff]
    %v1689 = vld [vmem:[#allocation6 + $0x78] sm:$0xff]
    %v1690 = vld [vmem:[#allocation6 + $0xa0] sm:$0xff]
    %v1691 = vld [vmem:[#allocation6 + $0xa8] sm:$0xff]
    %v1692 = vld [vmem:[#allocation6 + $0xd0] sm:$0xff]
    %v1693 = vld [vmem:[#allocation6 + $0xd8] sm:$0xff]
    %v1694 = vld [vmem:[#allocation6 + $0x100] sm:$0xff]
    %v1695 = vld [vmem:[#allocation6 + $0x108] sm:$0xff]
    %v1696 = vld [vmem:[#allocation6 + $0x130] sm:$0xff]
    %v1697 = vld [vmem:[#allocation6 + $0x138] sm:$0xff]
    %v1698 = vld [vmem:[#allocation6 + $0x160] sm:$0xff]
    %v1699 = vld [vmem:[#allocation6 + $0x168] sm:$0xff]
    %v1700 = vld [vmem:[#allocation6 + $0x190] sm:$0xff]
    %v1701 = vld [vmem:[#allocation6 + $0x198] sm:$0xff]
    %v1702 = vld [vmem:[#allocation6 + $0x1c0] sm:$0xff]
    %v1703 = vld [vmem:[#allocation6 + $0x1c8] sm:$0xff]
    %v1704 = vld [vmem:[#allocation6 + $0x1f0] sm:$0xff]
    %v1705 = vld [vmem:[#allocation6 + $0x1f8] sm:$0xff]
    %v1706 = vld [vmem:[#allocation6 + $0x220] sm:$0xff]
    %v1707 = vld [vmem:[#allocation6 + $0x228] sm:$0xff]
    %v1708 = vld [vmem:[#allocation6 + $0x250] sm:$0xff]
    %v1709 = vld [vmem:[#allocation6 + $0x258] sm:$0xff]
    %v1710 = vld [vmem:[#allocation6 + $0x280] sm:$0xff]
    %v1711 = vld [vmem:[#allocation6 + $0x288] sm:$0xff]
    %v1712 = vld [vmem:[#allocation6 + $0x2b0] sm:$0xff]
    %v1713 = vld [vmem:[#allocation6 + $0x2b8] sm:$0xff]
    %v1714 = vld [vmem:[#allocation6 + $0x2e0] sm:$0xff]
    %v1715 = vld [vmem:[#allocation6 + $0x2e8] sm:$0xff]
    %v1716 = vld [vmem:[#allocation6 + $0x310] sm:$0xff]
    %v1717 = vld [vmem:[#allocation6 + $0x318] sm:$0xff]
    %v1718 = vld [vmem:[#allocation6 + $0x340] sm:$0xff]
    %v1719 = vld [vmem:[#allocation6 + $0x348] sm:$0xff]
    %v1720 = vld [vmem:[#allocation6 + $0x370] sm:$0xff]
    %v1721 = vld [vmem:[#allocation6 + $0x378] sm:$0xff]
    %v1722 = vld [vmem:[#allocation6 + $0x3a0] sm:$0xff]
    %v1723 = vld [vmem:[#allocation6 + $0x3a8] sm:$0xff]
    %v1724 = vld [vmem:[#allocation6 + $0x3d0] sm:$0xff]
    %v1725 = vld [vmem:[#allocation6 + $0x3d8] sm:$0xff]
    %v1726 = vld [vmem:[#allocation6 + $0x400] sm:$0xff]
    %v1727 = vld [vmem:[#allocation6 + $0x408] sm:$0xff]
    %v1728 = vld [vmem:[#allocation6 + $0x430] sm:$0xff]
    %v1729 = vld [vmem:[#allocation6 + $0x438] sm:$0xff]
    %v1730 = vld [vmem:[#allocation6 + $0x460] sm:$0xff]
    %v1731 = vld [vmem:[#allocation6 + $0x468] sm:$0xff]
    %v1732 = vld [vmem:[#allocation6 + $0x490] sm:$0xff]
    %v1733 = vld [vmem:[#allocation6 + $0x498] sm:$0xff]
    %v1734 = vld [vmem:[#allocation6 + $0x4c0] sm:$0xff]
    %v1735 = vld [vmem:[#allocation6 + $0x4c8] sm:$0xff]
    %v1736 = vld [vmem:[#allocation6 + $0x4f0] sm:$0xff]
    %v1737 = vld [vmem:[#allocation6 + $0x4f8] sm:$0xff]
    %v1738 = vld [vmem:[#allocation6 + $0x520] sm:$0xff]
    %v1739 = vld [vmem:[#allocation6 + $0x528] sm:$0xff]
    %v1740 = vld [vmem:[#allocation6 + $0x550] sm:$0xff]
    %v1741 = vld [vmem:[#allocation6 + $0x558] sm:$0xff]
    %v1742 = vld [vmem:[#allocation6 + $0x580] sm:$0xff]
    %v1743 = vld [vmem:[#allocation6 + $0x588] sm:$0xff]
    %v1744 = vld [vmem:[#allocation6 + $0x5b0] sm:$0xff]
    %v1745 = vld [vmem:[#allocation6 + $0x5b8] sm:$0xff]
    %v1746 = vld [vmem:[#allocation6 + $0x5e0] sm:$0xff]
    %v1747 = vld [vmem:[#allocation6 + $0x5e8] sm:$0xff]
    %v1748 = vld [vmem:[#allocation6 + $0x610] sm:$0xff]
    %v1749 = vld [vmem:[#allocation6 + $0x618] sm:$0xff]
    %v1750 = vld [vmem:[#allocation6 + $0x640] sm:$0xff]
    %v1751 = vld [vmem:[#allocation6 + $0x648] sm:$0xff]
    %v1752 = vld [vmem:[#allocation6 + $0x670] sm:$0xff]
    %v1753 = vld [vmem:[#allocation6 + $0x678] sm:$0xff]
    %v1754 = vld [vmem:[#allocation6 + $0x6a0] sm:$0xff]
    %v1755 = vld [vmem:[#allocation6 + $0x6a8] sm:$0xff]
    %v1756 = vld [vmem:[#allocation6 + $0x6d0] sm:$0xff]
    %v1757 = vld [vmem:[#allocation6 + $0x6d8] sm:$0xff]
    %v1758 = vld [vmem:[#allocation6 + $0x700] sm:$0xff]
    %v1759 = vld [vmem:[#allocation6 + $0x708] sm:$0xff]
    %v1760 = vld [vmem:[#allocation6 + $0x730] sm:$0xff]
    %v1761 = vld [vmem:[#allocation6 + $0x738] sm:$0xff]
    %v1762 = vld [vmem:[#allocation6 + $0x760] sm:$0xff]
    %v1763 = vld [vmem:[#allocation6 + $0x768] sm:$0xff]
    %v1764 = vld [vmem:[#allocation6 + $0x790] sm:$0xff]
    %v1765 = vld [vmem:[#allocation6 + $0x798] sm:$0xff]
    %v1766 = vld [vmem:[#allocation6 + $0x7c0] sm:$0xff]
    %v1767 = vld [vmem:[#allocation6 + $0x7c8] sm:$0xff]
    %v1768 = vld [vmem:[#allocation6 + $0x7f0] sm:$0xff]
    %v1769 = vld [vmem:[#allocation6 + $0x7f8] sm:$0xff]
    %v1770 = vld [vmem:[#allocation6 + $0x820] sm:$0xff]
    %v1771 = vld [vmem:[#allocation6 + $0x828] sm:$0xff]
    %v1772 = vld [vmem:[#allocation6 + $0x850] sm:$0xff]
    %v1773 = vld [vmem:[#allocation6 + $0x858] sm:$0xff]
    %v1774 = vld [vmem:[#allocation6 + $0x880] sm:$0xff]
    %v1775 = vld [vmem:[#allocation6 + $0x888] sm:$0xff]
    %v1776 = vld [vmem:[#allocation6 + $0x8b0] sm:$0xff]
    %v1777 = vld [vmem:[#allocation6 + $0x8b8] sm:$0xff]
    %v1778 = vld [vmem:[#allocation6 + $0x8e0] sm:$0xff]
    %v1779 = vld [vmem:[#allocation6 + $0x8e8] sm:$0xff]
    %v1780 = vld [vmem:[#allocation8 + $0x4] sm:$0xf]
    %v1782 = vperm.slane %v1780, 0
    %v1783 = vperm.slane %v1780, 1
    %v1784 = vperm.slane %v1780, 2
    %v1785 = vperm.slane %v1780, 3
    %v1886 = vunpack.c.l.b16 %v1684
    %v1887 = vunpack.c.h.b16 %v1684
    %v1888 = vunpack.c.l.b16 %v1685
    %v1889 = vunpack.c.h.b16 %v1685
    %v1890 = vunpack.c.l.b16 %v1686
    %v1891 = vunpack.c.h.b16 %v1686
    %v1892 = vunpack.c.l.b16 %v1687
    %v1893 = vunpack.c.h.b16 %v1687
    %v1894 = vunpack.c.l.b16 %v1688
    %v1895 = vunpack.c.h.b16 %v1688
    %v1896 = vunpack.c.l.b16 %v1689
    %v1897 = vunpack.c.h.b16 %v1689
    %v1898 = vunpack.c.l.b16 %v1690
    %v1899 = vunpack.c.h.b16 %v1690
    %v1900 = vunpack.c.l.b16 %v1691
    %v1901 = vunpack.c.h.b16 %v1691
    %v1902 = vunpack.c.l.b16 %v1692
    %v1903 = vunpack.c.h.b16 %v1692
    %v1904 = vunpack.c.l.b16 %v1693
    %v1905 = vunpack.c.h.b16 %v1693
    %v1906 = vunpack.c.l.b16 %v1694
    %v1907 = vunpack.c.h.b16 %v1694
    %v1908 = vunpack.c.l.b16 %v1695
    %v1909 = vunpack.c.h.b16 %v1695
    %v1910 = vunpack.c.l.b16 %v1696
    %v1911 = vunpack.c.h.b16 %v1696
    %v1912 = vunpack.c.l.b16 %v1697
    %v1913 = vunpack.c.h.b16 %v1697
    %v1914 = vunpack.c.l.b16 %v1698
    %v1915 = vunpack.c.h.b16 %v1698
    %v1916 = vunpack.c.l.b16 %v1699
    %v1917 = vunpack.c.h.b16 %v1699
    %v1918 = vunpack.c.l.b16 %v1700
    %v1919 = vunpack.c.h.b16 %v1700
    %v1920 = vunpack.c.l.b16 %v1701
    %v1921 = vunpack.c.h.b16 %v1701
    %v1922 = vunpack.c.l.b16 %v1702
    %v1923 = vunpack.c.h.b16 %v1702
    %v1924 = vunpack.c.l.b16 %v1703
    %v1925 = vunpack.c.h.b16 %v1703
    %v1926 = vunpack.c.l.b16 %v1704
    %v1927 = vunpack.c.h.b16 %v1704
    %v1928 = vunpack.c.l.b16 %v1705
    %v1929 = vunpack.c.h.b16 %v1705
    %v1930 = vunpack.c.l.b16 %v1706
    %v1931 = vunpack.c.h.b16 %v1706
    %v1932 = vunpack.c.l.b16 %v1707
    %v1933 = vunpack.c.h.b16 %v1707
    %v1934 = vunpack.c.l.b16 %v1708
    %v1935 = vunpack.c.h.b16 %v1708
    %v1936 = vunpack.c.l.b16 %v1709
    %v1937 = vunpack.c.h.b16 %v1709
    %v1938 = vunpack.c.l.b16 %v1710
    %v1939 = vunpack.c.h.b16 %v1710
    %v1940 = vunpack.c.l.b16 %v1711
    %v1941 = vunpack.c.h.b16 %v1711
    %v1942 = vunpack.c.l.b16 %v1712
    %v1943 = vunpack.c.h.b16 %v1712
    %v1944 = vunpack.c.l.b16 %v1713
    %v1945 = vunpack.c.h.b16 %v1713
    %v1946 = vunpack.c.l.b16 %v1714
    %v1947 = vunpack.c.h.b16 %v1714
    %v1948 = vunpack.c.l.b16 %v1715
    %v1949 = vunpack.c.h.b16 %v1715
    %v1950 = vunpack.c.l.b16 %v1716
    %v1951 = vunpack.c.h.b16 %v1716
    %v1952 = vunpack.c.l.b16 %v1717
    %v1953 = vunpack.c.h.b16 %v1717
    %v1954 = vunpack.c.l.b16 %v1718
    %v1955 = vunpack.c.h.b16 %v1718
    %v1956 = vunpack.c.l.b16 %v1719
    %v1957 = vunpack.c.h.b16 %v1719
    %v1958 = vunpack.c.l.b16 %v1720
    %v1959 = vunpack.c.h.b16 %v1720
    %v1960 = vunpack.c.l.b16 %v1721
    %v1961 = vunpack.c.h.b16 %v1721
    %v1962 = vunpack.c.l.b16 %v1722
    %v1963 = vunpack.c.h.b16 %v1722
    %v1964 = vunpack.c.l.b16 %v1723
    %v1965 = vunpack.c.h.b16 %v1723
    %v1966 = vunpack.c.l.b16 %v1724
    %v1967 = vunpack.c.h.b16 %v1724
    %v1968 = vunpack.c.l.b16 %v1725
    %v1969 = vunpack.c.h.b16 %v1725
    %v1970 = vunpack.c.l.b16 %v1726
    %v1971 = vunpack.c.h.b16 %v1726
    %v1972 = vunpack.c.l.b16 %v1727
    %v1973 = vunpack.c.h.b16 %v1727
    %v1974 = vunpack.c.l.b16 %v1728
    %v1975 = vunpack.c.h.b16 %v1728
    %v1976 = vunpack.c.l.b16 %v1729
    %v1977 = vunpack.c.h.b16 %v1729
    %v1978 = vunpack.c.l.b16 %v1730
    %v1979 = vunpack.c.h.b16 %v1730
    %v1980 = vunpack.c.l.b16 %v1731
    %v1981 = vunpack.c.h.b16 %v1731
    %v1982 = vunpack.c.l.b16 %v1732
    %v1983 = vunpack.c.h.b16 %v1732
    %v1984 = vunpack.c.l.b16 %v1733
    %v1985 = vunpack.c.h.b16 %v1733
    %v1986 = vunpack.c.l.b16 %v1734
    %v1987 = vunpack.c.h.b16 %v1734
    %v1988 = vunpack.c.l.b16 %v1735
    %v1989 = vunpack.c.h.b16 %v1735
    %v1990 = vunpack.c.l.b16 %v1736
    %v1991 = vunpack.c.h.b16 %v1736
    %v1992 = vunpack.c.l.b16 %v1737
    %v1993 = vunpack.c.h.b16 %v1737
    %v1994 = vunpack.c.l.b16 %v1738
    %v1995 = vunpack.c.h.b16 %v1738
    %v1996 = vunpack.c.l.b16 %v1739
    %v1997 = vunpack.c.h.b16 %v1739
    %v1998 = vunpack.c.l.b16 %v1740
    %v1999 = vunpack.c.h.b16 %v1740
    %v2000 = vunpack.c.l.b16 %v1741
    %v2001 = vunpack.c.h.b16 %v1741
    %v2002 = vunpack.c.l.b16 %v1742
    %v2003 = vunpack.c.h.b16 %v1742
    %v2004 = vunpack.c.l.b16 %v1743
    %v2005 = vunpack.c.h.b16 %v1743
    %v2006 = vunpack.c.l.b16 %v1744
    %v2007 = vunpack.c.h.b16 %v1744
    %v2008 = vunpack.c.l.b16 %v1745
    %v2009 = vunpack.c.h.b16 %v1745
    %v2010 = vunpack.c.l.b16 %v1746
    %v2011 = vunpack.c.h.b16 %v1746
    %v2012 = vunpack.c.l.b16 %v1747
    %v2013 = vunpack.c.h.b16 %v1747
    %v2014 = vunpack.c.l.b16 %v1748
    %v2015 = vunpack.c.h.b16 %v1748
    %v2016 = vunpack.c.l.b16 %v1749
    %v2017 = vunpack.c.h.b16 %v1749
    %v2018 = vunpack.c.l.b16 %v1750
    %v2019 = vunpack.c.h.b16 %v1750
    %v2020 = vunpack.c.l.b16 %v1751
    %v2021 = vunpack.c.h.b16 %v1751
    %v2022 = vunpack.c.l.b16 %v1752
    %v2023 = vunpack.c.h.b16 %v1752
    %v2024 = vunpack.c.l.b16 %v1753
    %v2025 = vunpack.c.h.b16 %v1753
    %v2026 = vunpack.c.l.b16 %v1754
    %v2027 = vunpack.c.h.b16 %v1754
    %v2028 = vunpack.c.l.b16 %v1755
    %v2029 = vunpack.c.h.b16 %v1755
    %v2030 = vunpack.c.l.b16 %v1756
    %v2031 = vunpack.c.h.b16 %v1756
    %v2032 = vunpack.c.l.b16 %v1757
    %v2033 = vunpack.c.h.b16 %v1757
    %v2034 = vunpack.c.l.b16 %v1758
    %v2035 = vunpack.c.h.b16 %v1758
    %v2036 = vunpack.c.l.b16 %v1759
    %v2037 = vunpack.c.h.b16 %v1759
    %v2038 = vunpack.c.l.b16 %v1760
    %v2039 = vunpack.c.h.b16 %v1760
    %v2040 = vunpack.c.l.b16 %v1761
    %v2041 = vunpack.c.h.b16 %v1761
    %v2042 = vunpack.c.l.b16 %v1762
    %v2043 = vunpack.c.h.b16 %v1762
    %v2044 = vunpack.c.l.b16 %v1763
    %v2045 = vunpack.c.h.b16 %v1763
    %v2046 = vunpack.c.l.b16 %v1764
    %v2047 = vunpack.c.h.b16 %v1764
    %v2048 = vunpack.c.l.b16 %v1765
    %v2049 = vunpack.c.h.b16 %v1765
    %v2050 = vunpack.c.l.b16 %v1766
    %v2051 = vunpack.c.h.b16 %v1766
    %v2052 = vunpack.c.l.b16 %v1767
    %v2053 = vunpack.c.h.b16 %v1767
    %v2054 = vunpack.c.l.b16 %v1768
    %v2055 = vunpack.c.h.b16 %v1768
    %v2056 = vunpack.c.l.b16 %v1769
    %v2057 = vunpack.c.h.b16 %v1769
    %v2058 = vunpack.c.l.b16 %v1770
    %v2059 = vunpack.c.h.b16 %v1770
    %v2060 = vunpack.c.l.b16 %v1771
    %v2061 = vunpack.c.h.b16 %v1771
    %v2062 = vunpack.c.l.b16 %v1772
    %v2063 = vunpack.c.h.b16 %v1772
    %v2064 = vunpack.c.l.b16 %v1773
    %v2065 = vunpack.c.h.b16 %v1773
    %v2066 = vunpack.c.l.b16 %v1774
    %v2067 = vunpack.c.h.b16 %v1774
    %v2068 = vunpack.c.l.b16 %v1775
    %v2069 = vunpack.c.h.b16 %v1775
    %v2070 = vunpack.c.l.b16 %v1776
    %v2071 = vunpack.c.h.b16 %v1776
    %v2072 = vunpack.c.l.b16 %v1777
    %v2073 = vunpack.c.h.b16 %v1777
    %v2074 = vunpack.c.l.b16 %v1778
    %v2075 = vunpack.c.h.b16 %v1778
    %v2076 = vunpack.c.l.b16 %v1779
    %v2077 = vunpack.c.h.b16 %v1779
    %v2078 = vpack.c.b16 %v1890, %v1886
    %v2079 = vpack.c.b16 %v1891, %v1887
    %v2080 = vpack.c.b16 %v1892, %v1888
    %v2081 = vpack.c.b16 %v1893, %v1889
    %v2082 = vpack.c.b16 %v1898, %v1894
    %v2083 = vpack.c.b16 %v1899, %v1895
    %v2084 = vpack.c.b16 %v1900, %v1896
    %v2085 = vpack.c.b16 %v1901, %v1897
    %v2086 = vpack.c.b16 %v1906, %v1902
    %v2087 = vpack.c.b16 %v1907, %v1903
    %v2088 = vpack.c.b16 %v1908, %v1904
    %v2089 = vpack.c.b16 %v1909, %v1905
    %v2090 = vpack.c.b16 %v1914, %v1910
    %v2091 = vpack.c.b16 %v1915, %v1911
    %v2092 = vpack.c.b16 %v1916, %v1912
    %v2093 = vpack.c.b16 %v1917, %v1913
    %v2094 = vpack.c.b16 %v1922, %v1918
    %v2095 = vpack.c.b16 %v1923, %v1919
    %v2096 = vpack.c.b16 %v1924, %v1920
    %v2097 = vpack.c.b16 %v1925, %v1921
    %v2098 = vpack.c.b16 %v1930, %v1926
    %v2099 = vpack.c.b16 %v1931, %v1927
    %v2100 = vpack.c.b16 %v1932, %v1928
    %v2101 = vpack.c.b16 %v1933, %v1929
    %v2102 = vpack.c.b16 %v1938, %v1934
    %v2103 = vpack.c.b16 %v1939, %v1935
    %v2104 = vpack.c.b16 %v1940, %v1936
    %v2105 = vpack.c.b16 %v1941, %v1937
    %v2106 = vpack.c.b16 %v1946, %v1942
    %v2107 = vpack.c.b16 %v1947, %v1943
    %v2108 = vpack.c.b16 %v1948, %v1944
    %v2109 = vpack.c.b16 %v1949, %v1945
    %v2110 = vpack.c.b16 %v1954, %v1950
    %v2111 = vpack.c.b16 %v1955, %v1951
    %v2112 = vpack.c.b16 %v1956, %v1952
    %v2113 = vpack.c.b16 %v1957, %v1953
    %v2114 = vpack.c.b16 %v1962, %v1958
    %v2115 = vpack.c.b16 %v1963, %v1959
    %v2116 = vpack.c.b16 %v1964, %v1960
    %v2117 = vpack.c.b16 %v1965, %v1961
    %v2118 = vpack.c.b16 %v1970, %v1966
    %v2119 = vpack.c.b16 %v1971, %v1967
    %v2120 = vpack.c.b16 %v1972, %v1968
    %v2121 = vpack.c.b16 %v1973, %v1969
    %v2122 = vpack.c.b16 %v1978, %v1974
    %v2123 = vpack.c.b16 %v1979, %v1975
    %v2124 = vpack.c.b16 %v1980, %v1976
    %v2125 = vpack.c.b16 %v1981, %v1977
    %v2126 = vpack.c.b16 %v1986, %v1982
    %v2127 = vpack.c.b16 %v1987, %v1983
    %v2128 = vpack.c.b16 %v1988, %v1984
    %v2129 = vpack.c.b16 %v1989, %v1985
    %v2130 = vpack.c.b16 %v1994, %v1990
    %v2131 = vpack.c.b16 %v1995, %v1991
    %v2132 = vpack.c.b16 %v1996, %v1992
    %v2133 = vpack.c.b16 %v1997, %v1993
    %v2134 = vpack.c.b16 %v2002, %v1998
    %v2135 = vpack.c.b16 %v2003, %v1999
    %v2136 = vpack.c.b16 %v2004, %v2000
    %v2137 = vpack.c.b16 %v2005, %v2001
    %v2138 = vpack.c.b16 %v2010, %v2006
    %v2139 = vpack.c.b16 %v2011, %v2007
    %v2140 = vpack.c.b16 %v2012, %v2008
    %v2141 = vpack.c.b16 %v2013, %v2009
    %v2142 = vpack.c.b16 %v2018, %v2014
    %v2143 = vpack.c.b16 %v2019, %v2015
    %v2144 = vpack.c.b16 %v2020, %v2016
    %v2145 = vpack.c.b16 %v2021, %v2017
    %v2146 = vpack.c.b16 %v2026, %v2022
    %v2147 = vpack.c.b16 %v2027, %v2023
    %v2148 = vpack.c.b16 %v2028, %v2024
    %v2149 = vpack.c.b16 %v2029, %v2025
    %v2150 = vpack.c.b16 %v2034, %v2030
    %v2151 = vpack.c.b16 %v2035, %v2031
    %v2152 = vpack.c.b16 %v2036, %v2032
    %v2153 = vpack.c.b16 %v2037, %v2033
    %v2154 = vpack.c.b16 %v2042, %v2038
    %v2155 = vpack.c.b16 %v2043, %v2039
    %v2156 = vpack.c.b16 %v2044, %v2040
    %v2157 = vpack.c.b16 %v2045, %v2041
    %v2158 = vpack.c.b16 %v2050, %v2046
    %v2159 = vpack.c.b16 %v2051, %v2047
    %v2160 = vpack.c.b16 %v2052, %v2048
    %v2161 = vpack.c.b16 %v2053, %v2049
    %v2162 = vpack.c.b16 %v2058, %v2054
    %v2163 = vpack.c.b16 %v2059, %v2055
    %v2164 = vpack.c.b16 %v2060, %v2056
    %v2165 = vpack.c.b16 %v2061, %v2057
    %v2166 = vpack.c.b16 %v2066, %v2062
    %v2167 = vpack.c.b16 %v2067, %v2063
    %v2168 = vpack.c.b16 %v2068, %v2064
    %v2169 = vpack.c.b16 %v2069, %v2065
    %v2170 = vpack.c.b16 %v2074, %v2070
    %v2171 = vpack.c.b16 %v2075, %v2071
    %v2172 = vpack.c.b16 %v2076, %v2072
    %v2173 = vpack.c.b16 %v2077, %v2073
    %2270 = vmatpush.bf16.msra.mxu0 %v2106
    %2271 = vmatpush.bf16.msra.mxu0 %v2102
    %2272 = vmatpush.bf16.msra.mxu0 %v2098
    %2273 = vmatpush.bf16.msra.mxu0 %v2094
    %2274 = vmatpush.bf16.msra.mxu0 %v2090
    %2275 = vmatpush.bf16.msra.mxu0 %v2086
    %2276 = vmatpush.bf16.msra.mxu0 %v2082
    %2277 = vmatpush.bf16.msra.mxu0 %v2078
    %2278 = vmatmul.bf16.gmra.mxu0 %v101
    %v2279 = vpop.f32.mrf.mxu0
    %v2280 = vadd.f32 %v1782, %v2279
    %v2281 = vpop.f32.mrf.mxu0
    %v2282 = vadd.f32 %v1782, %v2281
    %2283 = vdwg.mxu0
    %2284 = vmatpush.bf16.msra.mxu0 %v2138
    %2285 = vmatpush.bf16.msra.mxu0 %v2134
    %2286 = vmatpush.bf16.msra.mxu0 %v2130
    %2287 = vmatpush.bf16.msra.mxu0 %v2126
    %2288 = vmatpush.bf16.msra.mxu0 %v2122
    %2289 = vmatpush.bf16.msra.mxu0 %v2118
    %2290 = vmatpush.bf16.msra.mxu0 %v2114
    %2291 = vmatpush.bf16.msra.mxu0 %v2110
    %2292 = vmatmul.bf16.gmra.mxu0 %v102
    %v2293 = vpop.f32.mrf.mxu0
    %v2294 = vadd.f32 %v2280, %v2293
    %v2295 = vpop.f32.mrf.mxu0
    %v2296 = vadd.f32 %v2282, %v2295
    %2297 = vdwg.mxu0
    %2298 = vmatpush.bf16.msra.mxu0 %v2170
    %2299 = vmatpush.bf16.msra.mxu0 %v2166
    %2300 = vmatpush.bf16.msra.mxu0 %v2162
    %2301 = vmatpush.bf16.msra.mxu0 %v2158
    %2302 = vmatpush.bf16.msra.mxu0 %v2154
    %2303 = vmatpush.bf16.msra.mxu0 %v2150
    %2304 = vmatpush.bf16.msra.mxu0 %v2146
    %2305 = vmatpush.bf16.msra.mxu0 %v2142
    %2306 = vmatmul.bf16.gmra.mxu0 %v103
    %v2307 = vpop.f32.mrf.mxu0
    %v2308 = vadd.f32 %v2294, %v2307
    %v2309 = vpop.f32.mrf.mxu0
    %v2310 = vadd.f32 %v2296, %v2309
    %2311 = vdwg.mxu0
    %2312 = vmatpush.bf16.msra.mxu0 %v2107
    %2313 = vmatpush.bf16.msra.mxu0 %v2103
    %2314 = vmatpush.bf16.msra.mxu0 %v2099
    %2315 = vmatpush.bf16.msra.mxu0 %v2095
    %2316 = vmatpush.bf16.msra.mxu0 %v2091
    %2317 = vmatpush.bf16.msra.mxu0 %v2087
    %2318 = vmatpush.bf16.msra.mxu0 %v2083
    %2319 = vmatpush.bf16.msra.mxu0 %v2079
    %2320 = vmatmul.bf16.gmra.mxu0 %v101
    %v2321 = vpop.f32.mrf.mxu0
    %v2322 = vadd.f32 %v1783, %v2321
    %v2323 = vpop.f32.mrf.mxu0
    %v2324 = vadd.f32 %v1783, %v2323
    %2325 = vdwg.mxu0
    %2326 = vmatpush.bf16.msra.mxu0 %v2139
    %2327 = vmatpush.bf16.msra.mxu0 %v2135
    %2328 = vmatpush.bf16.msra.mxu0 %v2131
    %2329 = vmatpush.bf16.msra.mxu0 %v2127
    %2330 = vmatpush.bf16.msra.mxu0 %v2123
    %2331 = vmatpush.bf16.msra.mxu0 %v2119
    %2332 = vmatpush.bf16.msra.mxu0 %v2115
    %2333 = vmatpush.bf16.msra.mxu0 %v2111
    %2334 = vmatmul.bf16.gmra.mxu0 %v102
    %v2335 = vpop.f32.mrf.mxu0
    %v2336 = vadd.f32 %v2322, %v2335
    %v2337 = vpop.f32.mrf.mxu0
    %v2338 = vadd.f32 %v2324, %v2337
    %2339 = vdwg.mxu0
    %2340 = vmatpush.bf16.msra.mxu0 %v2171
    %2341 = vmatpush.bf16.msra.mxu0 %v2167
    %2342 = vmatpush.bf16.msra.mxu0 %v2163
    %2343 = vmatpush.bf16.msra.mxu0 %v2159
    %2344 = vmatpush.bf16.msra.mxu0 %v2155
    %2345 = vmatpush.bf16.msra.mxu0 %v2151
    %2346 = vmatpush.bf16.msra.mxu0 %v2147
    %2347 = vmatpush.bf16.msra.mxu0 %v2143
    %2348 = vmatmul.bf16.gmra.mxu0 %v103
    %v2349 = vpop.f32.mrf.mxu0
    %v2350 = vadd.f32 %v2336, %v2349
    %v2351 = vpop.f32.mrf.mxu0
    %v2352 = vadd.f32 %v2338, %v2351
    %2353 = vdwg.mxu0
    %2354 = vmatpush.bf16.msra.mxu0 %v2108
    %2355 = vmatpush.bf16.msra.mxu0 %v2104
    %2356 = vmatpush.bf16.msra.mxu0 %v2100
    %2357 = vmatpush.bf16.msra.mxu0 %v2096
    %2358 = vmatpush.bf16.msra.mxu0 %v2092
    %2359 = vmatpush.bf16.msra.mxu0 %v2088
    %2360 = vmatpush.bf16.msra.mxu0 %v2084
    %2361 = vmatpush.bf16.msra.mxu0 %v2080
    %2362 = vmatmul.bf16.gmra.mxu0 %v101
    %v2363 = vpop.f32.mrf.mxu0
    %v2364 = vadd.f32 %v1784, %v2363
    %v2365 = vpop.f32.mrf.mxu0
    %v2366 = vadd.f32 %v1784, %v2365
    %2367 = vdwg.mxu0
    %2368 = vmatpush.bf16.msra.mxu0 %v2140
    %2369 = vmatpush.bf16.msra.mxu0 %v2136
    %2370 = vmatpush.bf16.msra.mxu0 %v2132
    %2371 = vmatpush.bf16.msra.mxu0 %v2128
    %2372 = vmatpush.bf16.msra.mxu0 %v2124
    %2373 = vmatpush.bf16.msra.mxu0 %v2120
    %2374 = vmatpush.bf16.msra.mxu0 %v2116
    %2375 = vmatpush.bf16.msra.mxu0 %v2112
    %2376 = vmatmul.bf16.gmra.mxu0 %v102
    %v2377 = vpop.f32.mrf.mxu0
    %v2378 = vadd.f32 %v2364, %v2377
    %v2379 = vpop.f32.mrf.mxu0
    %v2380 = vadd.f32 %v2366, %v2379
    %2381 = vdwg.mxu0
    %2382 = vmatpush.bf16.msra.mxu0 %v2172
    %2383 = vmatpush.bf16.msra.mxu0 %v2168
    %2384 = vmatpush.bf16.msra.mxu0 %v2164
    %2385 = vmatpush.bf16.msra.mxu0 %v2160
    %2386 = vmatpush.bf16.msra.mxu0 %v2156
    %2387 = vmatpush.bf16.msra.mxu0 %v2152
    %2388 = vmatpush.bf16.msra.mxu0 %v2148
    %2389 = vmatpush.bf16.msra.mxu0 %v2144
    %2390 = vmatmul.bf16.gmra.mxu0 %v103
    %v2391 = vpop.f32.mrf.mxu0
    %v2392 = vadd.f32 %v2378, %v2391
    %v2393 = vpop.f32.mrf.mxu0
    %v2394 = vadd.f32 %v2380, %v2393
    %2395 = vdwg.mxu0
    %2396 = vmatpush.bf16.msra.mxu0 %v2109
    %2397 = vmatpush.bf16.msra.mxu0 %v2105
    %2398 = vmatpush.bf16.msra.mxu0 %v2101
    %2399 = vmatpush.bf16.msra.mxu0 %v2097
    %2400 = vmatpush.bf16.msra.mxu0 %v2093
    %2401 = vmatpush.bf16.msra.mxu0 %v2089
    %2402 = vmatpush.bf16.msra.mxu0 %v2085
    %2403 = vmatpush.bf16.msra.mxu0 %v2081
    %2404 = vmatmul.bf16.gmra.mxu0 %v101
    %v2405 = vpop.f32.mrf.mxu0
    %v2406 = vadd.f32 %v1785, %v2405
    %v2407 = vpop.f32.mrf.mxu0
    %v2408 = vadd.f32 %v1785, %v2407
    %2409 = vdwg.mxu0
    %2410 = vmatpush.bf16.msra.mxu0 %v2141
    %2411 = vmatpush.bf16.msra.mxu0 %v2137
    %2412 = vmatpush.bf16.msra.mxu0 %v2133
    %2413 = vmatpush.bf16.msra.mxu0 %v2129
    %2414 = vmatpush.bf16.msra.mxu0 %v2125
    %2415 = vmatpush.bf16.msra.mxu0 %v2121
    %2416 = vmatpush.bf16.msra.mxu0 %v2117
    %2417 = vmatpush.bf16.msra.mxu0 %v2113
    %2418 = vmatmul.bf16.gmra.mxu0 %v102
    %v2419 = vpop.f32.mrf.mxu0
    %v2420 = vadd.f32 %v2406, %v2419
    %v2421 = vpop.f32.mrf.mxu0
    %v2422 = vadd.f32 %v2408, %v2421
    %2423 = vdwg.mxu0
    %2424 = vmatpush.bf16.msra.mxu0 %v2173
    %2425 = vmatpush.bf16.msra.mxu0 %v2169
    %2426 = vmatpush.bf16.msra.mxu0 %v2165
    %2427 = vmatpush.bf16.msra.mxu0 %v2161
    %2428 = vmatpush.bf16.msra.mxu0 %v2157
    %2429 = vmatpush.bf16.msra.mxu0 %v2153
    %2430 = vmatpush.bf16.msra.mxu0 %v2149
    %2431 = vmatpush.bf16.msra.mxu0 %v2145
    %2432 = vmatmul.bf16.gmra.mxu0 %v103
    %v2433 = vpop.f32.mrf.mxu0
    %v2434 = vadd.f32 %v2420, %v2433
    %v2435 = vpop.f32.mrf.mxu0
    %v2436 = vadd.f32 %v2422, %v2435
    %2437 = vdwg.mxu0
    %v2438 = vmax.f32 %v2308, 0.0
    %v2439 = vmax.f32 %v2350, 0.0
    %v2440 = vmax.f32 %v2392, 0.0
    %v2441 = vmax.f32 %v2434, 0.0
    %v2442 = vmax.f32 %v2310, 0.0
    %v2443 = vmax.f32 %v2352, 0.0
    %v2444 = vmax.f32 %v2394, 0.0
    %v2445 = vmax.f32 %v2436, 0.0
    %v2446 = vpack.c.bf16 %v2442, %v2438
    %v2447 = vpack.c.bf16 %v2443, %v2439
    %v2448 = vpack.c.bf16 %v2444, %v2440
    %v2449 = vpack.c.bf16 %v2445, %v2441
    %v2450 = vld [vmem:[#allocation9 + $0x300] sm:$0xff]
    %v2451 = vld [vmem:[#allocation9 + $0x308] sm:$0xf]
    %v2452 = vld [vmem:[#allocation9 + $0x30c] sm:$0xff]
    %v2453 = vld [vmem:[#allocation9 + $0x314] sm:$0xf]
    %v2454 = vld [vmem:[#allocation9 + $0x318] sm:$0xff]
    %v2455 = vld [vmem:[#allocation9 + $0x320] sm:$0xf]
    %v2456 = vld [vmem:[#allocation9 + $0x324] sm:$0xff]
    %v2457 = vld [vmem:[#allocation9 + $0x32c] sm:$0xf]
    %v2458 = vld [vmem:[#allocation9 + $0x330] sm:$0xff]
    %v2459 = vld [vmem:[#allocation9 + $0x338] sm:$0xf]
    %v2460 = vld [vmem:[#allocation9 + $0x33c] sm:$0xff]
    %v2461 = vld [vmem:[#allocation9 + $0x344] sm:$0xf]
    %v2462 = vld [vmem:[#allocation9 + $0x348] sm:$0xff]
    %v2463 = vld [vmem:[#allocation9 + $0x350] sm:$0xf]
    %v2464 = vld [vmem:[#allocation9 + $0x354] sm:$0xff]
    %v2465 = vld [vmem:[#allocation9 + $0x35c] sm:$0xf]
    %v2466 = vld [vmem:[#allocation9 + $0x360] sm:$0xff]
    %v2467 = vld [vmem:[#allocation9 + $0x368] sm:$0xf]
    %v2468 = vld [vmem:[#allocation9 + $0x36c] sm:$0xff]
    %v2469 = vld [vmem:[#allocation9 + $0x374] sm:$0xf]
    %v2470 = vld [vmem:[#allocation9 + $0x378] sm:$0xff]
    %v2471 = vld [vmem:[#allocation9 + $0x380] sm:$0xf]
    %v2472 = vld [vmem:[#allocation9 + $0x384] sm:$0xff]
    %v2473 = vld [vmem:[#allocation9 + $0x38c] sm:$0xf]
    %v2474 = vld [vmem:[#allocation9 + $0x390] sm:$0xff]
    %v2475 = vld [vmem:[#allocation9 + $0x398] sm:$0xf]
    %v2476 = vld [vmem:[#allocation9 + $0x39c] sm:$0xff]
    %v2477 = vld [vmem:[#allocation9 + $0x3a4] sm:$0xf]
    %v2478 = vld [vmem:[#allocation9 + $0x3a8] sm:$0xff]
    %v2479 = vld [vmem:[#allocation9 + $0x3b0] sm:$0xf]
    %v2480 = vld [vmem:[#allocation9 + $0x3b4] sm:$0xff]
    %v2481 = vld [vmem:[#allocation9 + $0x3bc] sm:$0xf]
    %v2482 = vld [vmem:[#allocation9 + $0x3c0] sm:$0xff]
    %v2483 = vld [vmem:[#allocation9 + $0x3c8] sm:$0xf]
    %v2484 = vld [vmem:[#allocation9 + $0x3cc] sm:$0xff]
    %v2485 = vld [vmem:[#allocation9 + $0x3d4] sm:$0xf]
    %v2486 = vld [vmem:[#allocation9 + $0x3d8] sm:$0xff]
    %v2487 = vld [vmem:[#allocation9 + $0x3e0] sm:$0xf]
    %v2488 = vld [vmem:[#allocation9 + $0x3e4] sm:$0xff]
    %v2489 = vld [vmem:[#allocation9 + $0x3ec] sm:$0xf]
    %v2490 = vld [vmem:[#allocation9 + $0x3f0] sm:$0xff]
    %v2491 = vld [vmem:[#allocation9 + $0x3f8] sm:$0xf]
    %v2492 = vld [vmem:[#allocation9 + $0x3fc] sm:$0xff]
    %v2493 = vld [vmem:[#allocation9 + $0x404] sm:$0xf]
    %v2494 = vld [vmem:[#allocation9 + $0x408] sm:$0xff]
    %v2495 = vld [vmem:[#allocation9 + $0x410] sm:$0xf]
    %v2496 = vld [vmem:[#allocation9 + $0x414] sm:$0xff]
    %v2497 = vld [vmem:[#allocation9 + $0x41c] sm:$0xf]
    %v2498 = vld [vmem:[#allocation9 + $0x420] sm:$0xff]
    %v2499 = vld [vmem:[#allocation9 + $0x428] sm:$0xf]
    %v2500 = vld [vmem:[#allocation9 + $0x42c] sm:$0xff]
    %v2501 = vld [vmem:[#allocation9 + $0x434] sm:$0xf]
    %v2502 = vld [vmem:[#allocation9 + $0x438] sm:$0xff]
    %v2503 = vld [vmem:[#allocation9 + $0x440] sm:$0xf]
    %v2504 = vld [vmem:[#allocation9 + $0x444] sm:$0xff]
    %v2505 = vld [vmem:[#allocation9 + $0x44c] sm:$0xf]
    %v2506 = vld [vmem:[#allocation9 + $0x450] sm:$0xff]
    %v2507 = vld [vmem:[#allocation9 + $0x458] sm:$0xf]
    %v2508 = vld [vmem:[#allocation9 + $0x45c] sm:$0xff]
    %v2509 = vld [vmem:[#allocation9 + $0x464] sm:$0xf]
    %v2510 = vld [vmem:[#allocation9 + $0x468] sm:$0xff]
    %v2511 = vld [vmem:[#allocation9 + $0x470] sm:$0xf]
    %v2512 = vld [vmem:[#allocation9 + $0x474] sm:$0xff]
    %v2513 = vld [vmem:[#allocation9 + $0x47c] sm:$0xf]
    %v2514 = vld [vmem:[#allocation9 + $0x480] sm:$0xff]
    %v2515 = vld [vmem:[#allocation9 + $0x488] sm:$0xf]
    %v2516 = vld [vmem:[#allocation9 + $0x48c] sm:$0xff]
    %v2517 = vld [vmem:[#allocation9 + $0x494] sm:$0xf]
    %v2518 = vld [vmem:[#allocation9 + $0x498] sm:$0xff]
    %v2519 = vld [vmem:[#allocation9 + $0x4a0] sm:$0xf]
    %v2520 = vld [vmem:[#allocation9 + $0x4a4] sm:$0xff]
    %v2521 = vld [vmem:[#allocation9 + $0x4ac] sm:$0xf]
    %v2522 = vld [vmem:[#allocation9 + $0x4b0] sm:$0xff]
    %v2523 = vld [vmem:[#allocation9 + $0x4b8] sm:$0xf]
    %v2524 = vld [vmem:[#allocation9 + $0x4bc] sm:$0xff]
    %v2525 = vld [vmem:[#allocation9 + $0x4c4] sm:$0xf]
    %v2526 = vld [vmem:[#allocation9 + $0x4c8] sm:$0xff]
    %v2527 = vld [vmem:[#allocation9 + $0x4d0] sm:$0xf]
    %v2528 = vld [vmem:[#allocation9 + $0x4d4] sm:$0xff]
    %v2529 = vld [vmem:[#allocation9 + $0x4dc] sm:$0xf]
    %v2530 = vld [vmem:[#allocation9 + $0x4e0] sm:$0xff]
    %v2531 = vld [vmem:[#allocation9 + $0x4e8] sm:$0xf]
    %v2532 = vld [vmem:[#allocation9 + $0x4ec] sm:$0xff]
    %v2533 = vld [vmem:[#allocation9 + $0x4f4] sm:$0xf]
    %v2534 = vld [vmem:[#allocation9 + $0x4f8] sm:$0xff]
    %v2535 = vld [vmem:[#allocation9 + $0x500] sm:$0xf]
    %v2536 = vld [vmem:[#allocation9 + $0x504] sm:$0xff]
    %v2537 = vld [vmem:[#allocation9 + $0x50c] sm:$0xf]
    %v2538 = vld [vmem:[#allocation9 + $0x510] sm:$0xff]
    %v2539 = vld [vmem:[#allocation9 + $0x518] sm:$0xf]
    %v2540 = vld [vmem:[#allocation9 + $0x51c] sm:$0xff]
    %v2541 = vld [vmem:[#allocation9 + $0x524] sm:$0xf]
    %v2542 = vld [vmem:[#allocation9 + $0x528] sm:$0xff]
    %v2543 = vld [vmem:[#allocation9 + $0x530] sm:$0xf]
    %v2544 = vld [vmem:[#allocation9 + $0x534] sm:$0xff]
    %v2545 = vld [vmem:[#allocation9 + $0x53c] sm:$0xf]
    %v2546 = vld [vmem:[#allocation9 + $0x540] sm:$0xff]
    %v2547 = vld [vmem:[#allocation9 + $0x548] sm:$0xf]
    %v2548 = vld [vmem:[#allocation9 + $0x54c] sm:$0xff]
    %v2549 = vld [vmem:[#allocation9 + $0x554] sm:$0xf]
    %v2550 = vld [vmem:[#allocation9 + $0x558] sm:$0xff]
    %v2551 = vld [vmem:[#allocation9 + $0x560] sm:$0xf]
    %v2552 = vld [vmem:[#allocation9 + $0x564] sm:$0xff]
    %v2553 = vld [vmem:[#allocation9 + $0x56c] sm:$0xf]
    %v2554 = vld [vmem:[#allocation9 + $0x570] sm:$0xff]
    %v2555 = vld [vmem:[#allocation9 + $0x578] sm:$0xf]
    %v2556 = vld [vmem:[#allocation9 + $0x57c] sm:$0xff]
    %v2557 = vld [vmem:[#allocation9 + $0x584] sm:$0xf]
    %v2558 = vld [vmem:[#allocation9 + $0x588] sm:$0xff]
    %v2559 = vld [vmem:[#allocation9 + $0x590] sm:$0xf]
    %v2560 = vld [vmem:[#allocation9 + $0x594] sm:$0xff]
    %v2561 = vld [vmem:[#allocation9 + $0x59c] sm:$0xf]
    %v2562 = vld [vmem:[#allocation9 + $0x5a0] sm:$0xff]
    %v2563 = vld [vmem:[#allocation9 + $0x5a8] sm:$0xf]
    %v2564 = vld [vmem:[#allocation9 + $0x5ac] sm:$0xff]
    %v2565 = vld [vmem:[#allocation9 + $0x5b4] sm:$0xf]
    %v2566 = vld [vmem:[#allocation9 + $0x5b8] sm:$0xff]
    %v2567 = vld [vmem:[#allocation9 + $0x5c0] sm:$0xf]
    %v2568 = vld [vmem:[#allocation9 + $0x5c4] sm:$0xff]
    %v2569 = vld [vmem:[#allocation9 + $0x5cc] sm:$0xf]
    %v2570 = vld [vmem:[#allocation9 + $0x5d0] sm:$0xff]
    %v2571 = vld [vmem:[#allocation9 + $0x5d8] sm:$0xf]
    %v2572 = vld [vmem:[#allocation9 + $0x5dc] sm:$0xff]
    %v2573 = vld [vmem:[#allocation9 + $0x5e4] sm:$0xf]
    %v2574 = vld [vmem:[#allocation9 + $0x5e8] sm:$0xff]
    %v2575 = vld [vmem:[#allocation9 + $0x5f0] sm:$0xf]
    %v2576 = vld [vmem:[#allocation9 + $0x5f4] sm:$0xff]
    %v2577 = vld [vmem:[#allocation9 + $0x5fc] sm:$0xf]
    %v2706 = vunpack.c.l.b16 %v2450
    %v2707 = vunpack.c.h.b16 %v2450
    %v2708 = vunpack.c.l.b16 %v2451
    %v2709 = vunpack.c.l.b16 %v2452
    %v2710 = vunpack.c.h.b16 %v2452
    %v2711 = vunpack.c.l.b16 %v2453
    %v2712 = vunpack.c.l.b16 %v2454
    %v2713 = vunpack.c.h.b16 %v2454
    %v2714 = vunpack.c.l.b16 %v2455
    %v2715 = vunpack.c.l.b16 %v2456
    %v2716 = vunpack.c.h.b16 %v2456
    %v2717 = vunpack.c.l.b16 %v2457
    %v2718 = vunpack.c.l.b16 %v2458
    %v2719 = vunpack.c.h.b16 %v2458
    %v2720 = vunpack.c.l.b16 %v2459
    %v2721 = vunpack.c.l.b16 %v2460
    %v2722 = vunpack.c.h.b16 %v2460
    %v2723 = vunpack.c.l.b16 %v2461
    %v2724 = vunpack.c.l.b16 %v2462
    %v2725 = vunpack.c.h.b16 %v2462
    %v2726 = vunpack.c.l.b16 %v2463
    %v2727 = vunpack.c.l.b16 %v2464
    %v2728 = vunpack.c.h.b16 %v2464
    %v2729 = vunpack.c.l.b16 %v2465
    %v2730 = vunpack.c.l.b16 %v2466
    %v2731 = vunpack.c.h.b16 %v2466
    %v2732 = vunpack.c.l.b16 %v2467
    %v2733 = vunpack.c.l.b16 %v2468
    %v2734 = vunpack.c.h.b16 %v2468
    %v2735 = vunpack.c.l.b16 %v2469
    %v2736 = vunpack.c.l.b16 %v2470
    %v2737 = vunpack.c.h.b16 %v2470
    %v2738 = vunpack.c.l.b16 %v2471
    %v2739 = vunpack.c.l.b16 %v2472
    %v2740 = vunpack.c.h.b16 %v2472
    %v2741 = vunpack.c.l.b16 %v2473
    %v2742 = vunpack.c.l.b16 %v2474
    %v2743 = vunpack.c.h.b16 %v2474
    %v2744 = vunpack.c.l.b16 %v2475
    %v2745 = vunpack.c.l.b16 %v2476
    %v2746 = vunpack.c.h.b16 %v2476
    %v2747 = vunpack.c.l.b16 %v2477
    %v2748 = vunpack.c.l.b16 %v2478
    %v2749 = vunpack.c.h.b16 %v2478
    %v2750 = vunpack.c.l.b16 %v2479
    %v2751 = vunpack.c.l.b16 %v2480
    %v2752 = vunpack.c.h.b16 %v2480
    %v2753 = vunpack.c.l.b16 %v2481
    %v2754 = vunpack.c.l.b16 %v2482
    %v2755 = vunpack.c.h.b16 %v2482
    %v2756 = vunpack.c.l.b16 %v2483
    %v2757 = vunpack.c.l.b16 %v2484
    %v2758 = vunpack.c.h.b16 %v2484
    %v2759 = vunpack.c.l.b16 %v2485
    %v2760 = vunpack.c.l.b16 %v2486
    %v2761 = vunpack.c.h.b16 %v2486
    %v2762 = vunpack.c.l.b16 %v2487
    %v2763 = vunpack.c.l.b16 %v2488
    %v2764 = vunpack.c.h.b16 %v2488
    %v2765 = vunpack.c.l.b16 %v2489
    %v2766 = vunpack.c.l.b16 %v2490
    %v2767 = vunpack.c.h.b16 %v2490
    %v2768 = vunpack.c.l.b16 %v2491
    %v2769 = vunpack.c.l.b16 %v2492
    %v2770 = vunpack.c.h.b16 %v2492
    %v2771 = vunpack.c.l.b16 %v2493
    %v2772 = vunpack.c.l.b16 %v2494
    %v2773 = vunpack.c.h.b16 %v2494
    %v2774 = vunpack.c.l.b16 %v2495
    %v2775 = vunpack.c.l.b16 %v2496
    %v2776 = vunpack.c.h.b16 %v2496
    %v2777 = vunpack.c.l.b16 %v2497
    %v2778 = vunpack.c.l.b16 %v2498
    %v2779 = vunpack.c.h.b16 %v2498
    %v2780 = vunpack.c.l.b16 %v2499
    %v2781 = vunpack.c.l.b16 %v2500
    %v2782 = vunpack.c.h.b16 %v2500
    %v2783 = vunpack.c.l.b16 %v2501
    %v2784 = vunpack.c.l.b16 %v2502
    %v2785 = vunpack.c.h.b16 %v2502
    %v2786 = vunpack.c.l.b16 %v2503
    %v2787 = vunpack.c.l.b16 %v2504
    %v2788 = vunpack.c.h.b16 %v2504
    %v2789 = vunpack.c.l.b16 %v2505
    %v2790 = vunpack.c.l.b16 %v2506
    %v2791 = vunpack.c.h.b16 %v2506
    %v2792 = vunpack.c.l.b16 %v2507
    %v2793 = vunpack.c.l.b16 %v2508
    %v2794 = vunpack.c.h.b16 %v2508
    %v2795 = vunpack.c.l.b16 %v2509
    %v2796 = vunpack.c.l.b16 %v2510
    %v2797 = vunpack.c.h.b16 %v2510
    %v2798 = vunpack.c.l.b16 %v2511
    %v2799 = vunpack.c.l.b16 %v2512
    %v2800 = vunpack.c.h.b16 %v2512
    %v2801 = vunpack.c.l.b16 %v2513
    %v2802 = vunpack.c.l.b16 %v2514
    %v2803 = vunpack.c.h.b16 %v2514
    %v2804 = vunpack.c.l.b16 %v2515
    %v2805 = vunpack.c.l.b16 %v2516
    %v2806 = vunpack.c.h.b16 %v2516
    %v2807 = vunpack.c.l.b16 %v2517
    %v2808 = vunpack.c.l.b16 %v2518
    %v2809 = vunpack.c.h.b16 %v2518
    %v2810 = vunpack.c.l.b16 %v2519
    %v2811 = vunpack.c.l.b16 %v2520
    %v2812 = vunpack.c.h.b16 %v2520
    %v2813 = vunpack.c.l.b16 %v2521
    %v2814 = vunpack.c.l.b16 %v2522
    %v2815 = vunpack.c.h.b16 %v2522
    %v2816 = vunpack.c.l.b16 %v2523
    %v2817 = vunpack.c.l.b16 %v2524
    %v2818 = vunpack.c.h.b16 %v2524
    %v2819 = vunpack.c.l.b16 %v2525
    %v2820 = vunpack.c.l.b16 %v2526
    %v2821 = vunpack.c.h.b16 %v2526
    %v2822 = vunpack.c.l.b16 %v2527
    %v2823 = vunpack.c.l.b16 %v2528
    %v2824 = vunpack.c.h.b16 %v2528
    %v2825 = vunpack.c.l.b16 %v2529
    %v2826 = vunpack.c.l.b16 %v2530
    %v2827 = vunpack.c.h.b16 %v2530
    %v2828 = vunpack.c.l.b16 %v2531
    %v2829 = vunpack.c.l.b16 %v2532
    %v2830 = vunpack.c.h.b16 %v2532
    %v2831 = vunpack.c.l.b16 %v2533
    %v2832 = vunpack.c.l.b16 %v2534
    %v2833 = vunpack.c.h.b16 %v2534
    %v2834 = vunpack.c.l.b16 %v2535
    %v2835 = vunpack.c.l.b16 %v2536
    %v2836 = vunpack.c.h.b16 %v2536
    %v2837 = vunpack.c.l.b16 %v2537
    %v2838 = vunpack.c.l.b16 %v2538
    %v2839 = vunpack.c.h.b16 %v2538
    %v2840 = vunpack.c.l.b16 %v2539
    %v2841 = vunpack.c.l.b16 %v2540
    %v2842 = vunpack.c.h.b16 %v2540
    %v2843 = vunpack.c.l.b16 %v2541
    %v2844 = vunpack.c.l.b16 %v2542
    %v2845 = vunpack.c.h.b16 %v2542
    %v2846 = vunpack.c.l.b16 %v2543
    %v2847 = vunpack.c.l.b16 %v2544
    %v2848 = vunpack.c.h.b16 %v2544
    %v2849 = vunpack.c.l.b16 %v2545
    %v2850 = vunpack.c.l.b16 %v2546
    %v2851 = vunpack.c.h.b16 %v2546
    %v2852 = vunpack.c.l.b16 %v2547
    %v2853 = vunpack.c.l.b16 %v2548
    %v2854 = vunpack.c.h.b16 %v2548
    %v2855 = vunpack.c.l.b16 %v2549
    %v2856 = vunpack.c.l.b16 %v2550
    %v2857 = vunpack.c.h.b16 %v2550
    %v2858 = vunpack.c.l.b16 %v2551
    %v2859 = vunpack.c.l.b16 %v2552
    %v2860 = vunpack.c.h.b16 %v2552
    %v2861 = vunpack.c.l.b16 %v2553
    %v2862 = vunpack.c.l.b16 %v2554
    %v2863 = vunpack.c.h.b16 %v2554
    %v2864 = vunpack.c.l.b16 %v2555
    %v2865 = vunpack.c.l.b16 %v2556
    %v2866 = vunpack.c.h.b16 %v2556
    %v2867 = vunpack.c.l.b16 %v2557
    %v2868 = vunpack.c.l.b16 %v2558
    %v2869 = vunpack.c.h.b16 %v2558
    %v2870 = vunpack.c.l.b16 %v2559
    %v2871 = vunpack.c.l.b16 %v2560
    %v2872 = vunpack.c.h.b16 %v2560
    %v2873 = vunpack.c.l.b16 %v2561
    %v2874 = vunpack.c.l.b16 %v2562
    %v2875 = vunpack.c.h.b16 %v2562
    %v2876 = vunpack.c.l.b16 %v2563
    %v2877 = vunpack.c.l.b16 %v2564
    %v2878 = vunpack.c.h.b16 %v2564
    %v2879 = vunpack.c.l.b16 %v2565
    %v2880 = vunpack.c.l.b16 %v2566
    %v2881 = vunpack.c.h.b16 %v2566
    %v2882 = vunpack.c.l.b16 %v2567
    %v2883 = vunpack.c.l.b16 %v2568
    %v2884 = vunpack.c.h.b16 %v2568
    %v2885 = vunpack.c.l.b16 %v2569
    %v2886 = vunpack.c.l.b16 %v2570
    %v2887 = vunpack.c.h.b16 %v2570
    %v2888 = vunpack.c.l.b16 %v2571
    %v2889 = vunpack.c.l.b16 %v2572
    %v2890 = vunpack.c.h.b16 %v2572
    %v2891 = vunpack.c.l.b16 %v2573
    %v2892 = vunpack.c.l.b16 %v2574
    %v2893 = vunpack.c.h.b16 %v2574
    %v2894 = vunpack.c.l.b16 %v2575
    %v2895 = vunpack.c.l.b16 %v2576
    %v2896 = vunpack.c.h.b16 %v2576
    %v2897 = vunpack.c.l.b16 %v2577
    %v2898 = vpack.c.b16 %v2709, %v2706
    %v2899 = vpack.c.b16 %v2710, %v2707
    %v2900 = vpack.c.b16 %v2711, %v2708
    %v2901 = vpack.c.b16 %v2715, %v2712
    %v2902 = vpack.c.b16 %v2716, %v2713
    %v2903 = vpack.c.b16 %v2717, %v2714
    %v2904 = vpack.c.b16 %v2721, %v2718
    %v2905 = vpack.c.b16 %v2722, %v2719
    %v2906 = vpack.c.b16 %v2723, %v2720
    %v2907 = vpack.c.b16 %v2727, %v2724
    %v2908 = vpack.c.b16 %v2728, %v2725
    %v2909 = vpack.c.b16 %v2729, %v2726
    %v2910 = vpack.c.b16 %v2733, %v2730
    %v2911 = vpack.c.b16 %v2734, %v2731
    %v2912 = vpack.c.b16 %v2735, %v2732
    %v2913 = vpack.c.b16 %v2739, %v2736
    %v2914 = vpack.c.b16 %v2740, %v2737
    %v2915 = vpack.c.b16 %v2741, %v2738
    %v2916 = vpack.c.b16 %v2745, %v2742
    %v2917 = vpack.c.b16 %v2746, %v2743
    %v2918 = vpack.c.b16 %v2747, %v2744
    %v2919 = vpack.c.b16 %v2751, %v2748
    %v2920 = vpack.c.b16 %v2752, %v2749
    %v2921 = vpack.c.b16 %v2753, %v2750
    %v2922 = vpack.c.b16 %v2757, %v2754
    %v2923 = vpack.c.b16 %v2758, %v2755
    %v2924 = vpack.c.b16 %v2759, %v2756
    %v2925 = vpack.c.b16 %v2763, %v2760
    %v2926 = vpack.c.b16 %v2764, %v2761
    %v2927 = vpack.c.b16 %v2765, %v2762
    %v2928 = vpack.c.b16 %v2769, %v2766
    %v2929 = vpack.c.b16 %v2770, %v2767
    %v2930 = vpack.c.b16 %v2771, %v2768
    %v2931 = vpack.c.b16 %v2775, %v2772
    %v2932 = vpack.c.b16 %v2776, %v2773
    %v2933 = vpack.c.b16 %v2777, %v2774
    %v2934 = vpack.c.b16 %v2781, %v2778
    %v2935 = vpack.c.b16 %v2782, %v2779
    %v2936 = vpack.c.b16 %v2783, %v2780
    %v2937 = vpack.c.b16 %v2787, %v2784
    %v2938 = vpack.c.b16 %v2788, %v2785
    %v2939 = vpack.c.b16 %v2789, %v2786
    %v2940 = vpack.c.b16 %v2793, %v2790
    %v2941 = vpack.c.b16 %v2794, %v2791
    %v2942 = vpack.c.b16 %v2795, %v2792
    %v2943 = vpack.c.b16 %v2799, %v2796
    %v2944 = vpack.c.b16 %v2800, %v2797
    %v2945 = vpack.c.b16 %v2801, %v2798
    %v2946 = vpack.c.b16 %v2805, %v2802
    %v2947 = vpack.c.b16 %v2806, %v2803
    %v2948 = vpack.c.b16 %v2807, %v2804
    %v2949 = vpack.c.b16 %v2811, %v2808
    %v2950 = vpack.c.b16 %v2812, %v2809
    %v2951 = vpack.c.b16 %v2813, %v2810
    %v2952 = vpack.c.b16 %v2817, %v2814
    %v2953 = vpack.c.b16 %v2818, %v2815
    %v2954 = vpack.c.b16 %v2819, %v2816
    %v2955 = vpack.c.b16 %v2823, %v2820
    %v2956 = vpack.c.b16 %v2824, %v2821
    %v2957 = vpack.c.b16 %v2825, %v2822
    %v2958 = vpack.c.b16 %v2829, %v2826
    %v2959 = vpack.c.b16 %v2830, %v2827
    %v2960 = vpack.c.b16 %v2831, %v2828
    %v2961 = vpack.c.b16 %v2835, %v2832
    %v2962 = vpack.c.b16 %v2836, %v2833
    %v2963 = vpack.c.b16 %v2837, %v2834
    %v2964 = vpack.c.b16 %v2841, %v2838
    %v2965 = vpack.c.b16 %v2842, %v2839
    %v2966 = vpack.c.b16 %v2843, %v2840
    %v2967 = vpack.c.b16 %v2847, %v2844
    %v2968 = vpack.c.b16 %v2848, %v2845
    %v2969 = vpack.c.b16 %v2849, %v2846
    %v2970 = vpack.c.b16 %v2853, %v2850
    %v2971 = vpack.c.b16 %v2854, %v2851
    %v2972 = vpack.c.b16 %v2855, %v2852
    %v2973 = vpack.c.b16 %v2859, %v2856
    %v2974 = vpack.c.b16 %v2860, %v2857
    %v2975 = vpack.c.b16 %v2861, %v2858
    %v2976 = vpack.c.b16 %v2865, %v2862
    %v2977 = vpack.c.b16 %v2866, %v2863
    %v2978 = vpack.c.b16 %v2867, %v2864
    %v2979 = vpack.c.b16 %v2871, %v2868
    %v2980 = vpack.c.b16 %v2872, %v2869
    %v2981 = vpack.c.b16 %v2873, %v2870
    %v2982 = vpack.c.b16 %v2877, %v2874
    %v2983 = vpack.c.b16 %v2878, %v2875
    %v2984 = vpack.c.b16 %v2879, %v2876
    %v2985 = vpack.c.b16 %v2883, %v2880
    %v2986 = vpack.c.b16 %v2884, %v2881
    %v2987 = vpack.c.b16 %v2885, %v2882
    %v2988 = vpack.c.b16 %v2889, %v2886
    %v2989 = vpack.c.b16 %v2890, %v2887
    %v2990 = vpack.c.b16 %v2891, %v2888
    %v2991 = vpack.c.b16 %v2895, %v2892
    %v2992 = vpack.c.b16 %v2896, %v2893
    %v2993 = vpack.c.b16 %v2897, %v2894
    %3090 = vmatpush.bf16.msra.mxu0 %v2919
    %3091 = vmatpush.bf16.msra.mxu0 %v2916
    %3092 = vmatpush.bf16.msra.mxu0 %v2913
    %3093 = vmatpush.bf16.msra.mxu0 %v2910
    %3094 = vmatpush.bf16.msra.mxu0 %v2907
    %3095 = vmatpush.bf16.msra.mxu0 %v2904
    %3096 = vmatpush.bf16.msra.mxu0 %v2901
    %3097 = vmatpush.bf16.msra.mxu0 %v2898
    %3098 = vmatmul.bf16.gmra.mxu0 %v2446
    %v3099 = vpop.f32.mrf.mxu0
    %v3100 = vadd.f32 0.0, %v3099
    %v3101 = vpop.f32.mrf.mxu0
    %v3102 = vadd.f32 0.0, %v3101
    %3103 = vdwg.mxu0
    %3104 = vmatpush.bf16.msra.mxu0 %v2943
    %3105 = vmatpush.bf16.msra.mxu0 %v2940
    %3106 = vmatpush.bf16.msra.mxu0 %v2937
    %3107 = vmatpush.bf16.msra.mxu0 %v2934
    %3108 = vmatpush.bf16.msra.mxu0 %v2931
    %3109 = vmatpush.bf16.msra.mxu0 %v2928
    %3110 = vmatpush.bf16.msra.mxu0 %v2925
    %3111 = vmatpush.bf16.msra.mxu0 %v2922
    %3112 = vmatmul.bf16.gmra.mxu0 %v2447
    %v3113 = vpop.f32.mrf.mxu0
    %v3114 = vadd.f32 %v3100, %v3113
    %v3115 = vpop.f32.mrf.mxu0
    %v3116 = vadd.f32 %v3102, %v3115
    %3117 = vdwg.mxu0
    %3118 = vmatpush.bf16.msra.mxu0 %v2967
    %3119 = vmatpush.bf16.msra.mxu0 %v2964
    %3120 = vmatpush.bf16.msra.mxu0 %v2961
    %3121 = vmatpush.bf16.msra.mxu0 %v2958
    %3122 = vmatpush.bf16.msra.mxu0 %v2955
    %3123 = vmatpush.bf16.msra.mxu0 %v2952
    %3124 = vmatpush.bf16.msra.mxu0 %v2949
    %3125 = vmatpush.bf16.msra.mxu0 %v2946
    %3126 = vmatmul.bf16.gmra.mxu0 %v2448
    %v3127 = vpop.f32.mrf.mxu0
    %v3128 = vadd.f32 %v3114, %v3127
    %v3129 = vpop.f32.mrf.mxu0
    %v3130 = vadd.f32 %v3116, %v3129
    %3131 = vdwg.mxu0
    %3132 = vmatpush.bf16.msra.mxu0 %v2991
    %3133 = vmatpush.bf16.msra.mxu0 %v2988
    %3134 = vmatpush.bf16.msra.mxu0 %v2985
    %3135 = vmatpush.bf16.msra.mxu0 %v2982
    %3136 = vmatpush.bf16.msra.mxu0 %v2979
    %3137 = vmatpush.bf16.msra.mxu0 %v2976
    %3138 = vmatpush.bf16.msra.mxu0 %v2973
    %3139 = vmatpush.bf16.msra.mxu0 %v2970
    %3140 = vmatmul.bf16.gmra.mxu0 %v2449
    %v3141 = vpop.f32.mrf.mxu0
    %v3142 = vadd.f32 %v3128, %v3141
    %v3143 = vpop.f32.mrf.mxu0
    %v3144 = vadd.f32 %v3130, %v3143
    %3145 = vdwg.mxu0
    %3146 = vmatpush.bf16.msra.mxu0 %v2920
    %3147 = vmatpush.bf16.msra.mxu0 %v2917
    %3148 = vmatpush.bf16.msra.mxu0 %v2914
    %3149 = vmatpush.bf16.msra.mxu0 %v2911
    %3150 = vmatpush.bf16.msra.mxu0 %v2908
    %3151 = vmatpush.bf16.msra.mxu0 %v2905
    %3152 = vmatpush.bf16.msra.mxu0 %v2902
    %3153 = vmatpush.bf16.msra.mxu0 %v2899
    %3154 = vmatmul.bf16.gmra.mxu0 %v2446
    %v3155 = vpop.f32.mrf.mxu0
    %v3156 = vadd.f32 0.0, %v3155
    %v3157 = vpop.f32.mrf.mxu0
    %v3158 = vadd.f32 0.0, %v3157
    %3159 = vdwg.mxu0
    %3160 = vmatpush.bf16.msra.mxu0 %v2944
    %3161 = vmatpush.bf16.msra.mxu0 %v2941
    %3162 = vmatpush.bf16.msra.mxu0 %v2938
    %3163 = vmatpush.bf16.msra.mxu0 %v2935
    %3164 = vmatpush.bf16.msra.mxu0 %v2932
    %3165 = vmatpush.bf16.msra.mxu0 %v2929
    %3166 = vmatpush.bf16.msra.mxu0 %v2926
    %3167 = vmatpush.bf16.msra.mxu0 %v2923
    %3168 = vmatmul.bf16.gmra.mxu0 %v2447
    %v3169 = vpop.f32.mrf.mxu0
    %v3170 = vadd.f32 %v3156, %v3169
    %v3171 = vpop.f32.mrf.mxu0
    %v3172 = vadd.f32 %v3158, %v3171
    %3173 = vdwg.mxu0
    %3174 = vmatpush.bf16.msra.mxu0 %v2968
    %3175 = vmatpush.bf16.msra.mxu0 %v2965
    %3176 = vmatpush.bf16.msra.mxu0 %v2962
    %3177 = vmatpush.bf16.msra.mxu0 %v2959
    %3178 = vmatpush.bf16.msra.mxu0 %v2956
    %3179 = vmatpush.bf16.msra.mxu0 %v2953
    %3180 = vmatpush.bf16.msra.mxu0 %v2950
    %3181 = vmatpush.bf16.msra.mxu0 %v2947
    %3182 = vmatmul.bf16.gmra.mxu0 %v2448
    %v3183 = vpop.f32.mrf.mxu0
    %v3184 = vadd.f32 %v3170, %v3183
    %v3185 = vpop.f32.mrf.mxu0
    %v3186 = vadd.f32 %v3172, %v3185
    %3187 = vdwg.mxu0
    %3188 = vmatpush.bf16.msra.mxu0 %v2992
    %3189 = vmatpush.bf16.msra.mxu0 %v2989
    %3190 = vmatpush.bf16.msra.mxu0 %v2986
    %3191 = vmatpush.bf16.msra.mxu0 %v2983
    %3192 = vmatpush.bf16.msra.mxu0 %v2980
    %3193 = vmatpush.bf16.msra.mxu0 %v2977
    %3194 = vmatpush.bf16.msra.mxu0 %v2974
    %3195 = vmatpush.bf16.msra.mxu0 %v2971
    %3196 = vmatmul.bf16.gmra.mxu0 %v2449
    %v3197 = vpop.f32.mrf.mxu0
    %v3198 = vadd.f32 %v3184, %v3197
    %v3199 = vpop.f32.mrf.mxu0
    %v3200 = vadd.f32 %v3186, %v3199
    %3201 = vdwg.mxu0
    %3202 = vmatpush.bf16.msra.mxu0 %v2921
    %3203 = vmatpush.bf16.msra.mxu0 %v2918
    %3204 = vmatpush.bf16.msra.mxu0 %v2915
    %3205 = vmatpush.bf16.msra.mxu0 %v2912
    %3206 = vmatpush.bf16.msra.mxu0 %v2909
    %3207 = vmatpush.bf16.msra.mxu0 %v2906
    %3208 = vmatpush.bf16.msra.mxu0 %v2903
    %3209 = vmatpush.bf16.msra.mxu0 %v2900
    %3210 = vmatmul.bf16.gmra.mxu0 %v2446
    %v3211 = vpop.f32.mrf.mxu0
    %v3212 = vadd.f32 0.0, %v3211
    %v3213 = vpop.f32.mrf.mxu0
    %v3214 = vadd.f32 0.0, %v3213
    %3215 = vdwg.mxu0
    %3216 = vmatpush.bf16.msra.mxu0 %v2945
    %3217 = vmatpush.bf16.msra.mxu0 %v2942
    %3218 = vmatpush.bf16.msra.mxu0 %v2939
    %3219 = vmatpush.bf16.msra.mxu0 %v2936
    %3220 = vmatpush.bf16.msra.mxu0 %v2933
    %3221 = vmatpush.bf16.msra.mxu0 %v2930
    %3222 = vmatpush.bf16.msra.mxu0 %v2927
    %3223 = vmatpush.bf16.msra.mxu0 %v2924
    %3224 = vmatmul.bf16.gmra.mxu0 %v2447
    %v3225 = vpop.f32.mrf.mxu0
    %v3226 = vadd.f32 %v3212, %v3225
    %v3227 = vpop.f32.mrf.mxu0
    %v3228 = vadd.f32 %v3214, %v3227
    %3229 = vdwg.mxu0
    %3230 = vmatpush.bf16.msra.mxu0 %v2969
    %3231 = vmatpush.bf16.msra.mxu0 %v2966
    %3232 = vmatpush.bf16.msra.mxu0 %v2963
    %3233 = vmatpush.bf16.msra.mxu0 %v2960
    %3234 = vmatpush.bf16.msra.mxu0 %v2957
    %3235 = vmatpush.bf16.msra.mxu0 %v2954
    %3236 = vmatpush.bf16.msra.mxu0 %v2951
    %3237 = vmatpush.bf16.msra.mxu0 %v2948
    %3238 = vmatmul.bf16.gmra.mxu0 %v2448
    %v3239 = vpop.f32.mrf.mxu0
    %v3240 = vadd.f32 %v3226, %v3239
    %v3241 = vpop.f32.mrf.mxu0
    %v3242 = vadd.f32 %v3228, %v3241
    %3243 = vdwg.mxu0
    %3244 = vmatpush.bf16.msra.mxu0 %v2993
    %3245 = vmatpush.bf16.msra.mxu0 %v2990
    %3246 = vmatpush.bf16.msra.mxu0 %v2987
    %3247 = vmatpush.bf16.msra.mxu0 %v2984
    %3248 = vmatpush.bf16.msra.mxu0 %v2981
    %3249 = vmatpush.bf16.msra.mxu0 %v2978
    %3250 = vmatpush.bf16.msra.mxu0 %v2975
    %3251 = vmatpush.bf16.msra.mxu0 %v2972
    %3252 = vmatmul.bf16.gmra.mxu0 %v2449
    %v3253 = vpop.f32.mrf.mxu0
    %v3254 = vadd.f32 %v3240, %v3253
    %v3255 = vpop.f32.mrf.mxu0
    %v3256 = vadd.f32 %v3242, %v3255
    %3257 = vdwg.mxu0
    %v3258 = vld [vmem:[#allocation2] sm:$0xff]
    %v3259 = vld [vmem:[#allocation2 + $0x8] sm:$0xff]
    %v3260 = vld [vmem:[#allocation2 + $0x10] sm:$0xff]
    %v3261 = vld [vmem:[#allocation2 + $0x18] sm:$0xff]
    %v3262 = vld [vmem:[#allocation2 + $0x20] sm:$0xff]
    %v3263 = vld [vmem:[#allocation2 + $0x28] sm:$0xff]
    %v3264 = vadd.f32 %v3258, %v3142
    %v3265 = vadd.f32 %v3259, %v3198
    %v3266 = vadd.f32 %v3260, %v3254
    %v3267 = vadd.f32 %v3261, %v3144
    %v3268 = vadd.f32 %v3262, %v3200
    %v3269 = vadd.f32 %v3263, %v3256
    %3270 = vst [vmem:[#allocation2] sm:$0xff] %v3264
    %3271 = vst [vmem:[#allocation2 + $0x8] sm:$0xff] %v3265
    %3272 = vst [vmem:[#allocation2 + $0x10] sm:$0xff] %v3266
    %3273 = vst [vmem:[#allocation2 + $0x18] sm:$0xff] %v3267
    %3274 = vst [vmem:[#allocation2 + $0x20] sm:$0xff] %v3268
    %3275 = vst [vmem:[#allocation2 + $0x28] sm:$0xff] %v3269
    %v3276 = vld [vmem:[#allocation6 + $0x20] sm:$0xff]
    %v3277 = vld [vmem:[#allocation6 + $0x28] sm:$0xff]
    %v3278 = vld [vmem:[#allocation6 + $0x50] sm:$0xff]
    %v3279 = vld [vmem:[#allocation6 + $0x58] sm:$0xff]
    %v3280 = vld [vmem:[#allocation6 + $0x80] sm:$0xff]
    %v3281 = vld [vmem:[#allocation6 + $0x88] sm:$0xff]
    %v3282 = vld [vmem:[#allocation6 + $0xb0] sm:$0xff]
    %v3283 = vld [vmem:[#allocation6 + $0xb8] sm:$0xff]
    %v3284 = vld [vmem:[#allocation6 + $0xe0] sm:$0xff]
    %v3285 = vld [vmem:[#allocation6 + $0xe8] sm:$0xff]
    %v3286 = vld [vmem:[#allocation6 + $0x110] sm:$0xff]
    %v3287 = vld [vmem:[#allocation6 + $0x118] sm:$0xff]
    %v3288 = vld [vmem:[#allocation6 + $0x140] sm:$0xff]
    %v3289 = vld [vmem:[#allocation6 + $0x148] sm:$0xff]
    %v3290 = vld [vmem:[#allocation6 + $0x170] sm:$0xff]
    %v3291 = vld [vmem:[#allocation6 + $0x178] sm:$0xff]
    %v3292 = vld [vmem:[#allocation6 + $0x1a0] sm:$0xff]
    %v3293 = vld [vmem:[#allocation6 + $0x1a8] sm:$0xff]
    %v3294 = vld [vmem:[#allocation6 + $0x1d0] sm:$0xff]
    %v3295 = vld [vmem:[#allocation6 + $0x1d8] sm:$0xff]
    %v3296 = vld [vmem:[#allocation6 + $0x200] sm:$0xff]
    %v3297 = vld [vmem:[#allocation6 + $0x208] sm:$0xff]
    %v3298 = vld [vmem:[#allocation6 + $0x230] sm:$0xff]
    %v3299 = vld [vmem:[#allocation6 + $0x238] sm:$0xff]
    %v3300 = vld [vmem:[#allocation6 + $0x260] sm:$0xff]
    %v3301 = vld [vmem:[#allocation6 + $0x268] sm:$0xff]
    %v3302 = vld [vmem:[#allocation6 + $0x290] sm:$0xff]
    %v3303 = vld [vmem:[#allocation6 + $0x298] sm:$0xff]
    %v3304 = vld [vmem:[#allocation6 + $0x2c0] sm:$0xff]
    %v3305 = vld [vmem:[#allocation6 + $0x2c8] sm:$0xff]
    %v3306 = vld [vmem:[#allocation6 + $0x2f0] sm:$0xff]
    %v3307 = vld [vmem:[#allocation6 + $0x2f8] sm:$0xff]
    %v3308 = vld [vmem:[#allocation6 + $0x320] sm:$0xff]
    %v3309 = vld [vmem:[#allocation6 + $0x328] sm:$0xff]
    %v3310 = vld [vmem:[#allocation6 + $0x350] sm:$0xff]
    %v3311 = vld [vmem:[#allocation6 + $0x358] sm:$0xff]
    %v3312 = vld [vmem:[#allocation6 + $0x380] sm:$0xff]
    %v3313 = vld [vmem:[#allocation6 + $0x388] sm:$0xff]
    %v3314 = vld [vmem:[#allocation6 + $0x3b0] sm:$0xff]
    %v3315 = vld [vmem:[#allocation6 + $0x3b8] sm:$0xff]
    %v3316 = vld [vmem:[#allocation6 + $0x3e0] sm:$0xff]
    %v3317 = vld [vmem:[#allocation6 + $0x3e8] sm:$0xff]
    %v3318 = vld [vmem:[#allocation6 + $0x410] sm:$0xff]
    %v3319 = vld [vmem:[#allocation6 + $0x418] sm:$0xff]
    %v3320 = vld [vmem:[#allocation6 + $0x440] sm:$0xff]
    %v3321 = vld [vmem:[#allocation6 + $0x448] sm:$0xff]
    %v3322 = vld [vmem:[#allocation6 + $0x470] sm:$0xff]
    %v3323 = vld [vmem:[#allocation6 + $0x478] sm:$0xff]
    %v3324 = vld [vmem:[#allocation6 + $0x4a0] sm:$0xff]
    %v3325 = vld [vmem:[#allocation6 + $0x4a8] sm:$0xff]
    %v3326 = vld [vmem:[#allocation6 + $0x4d0] sm:$0xff]
    %v3327 = vld [vmem:[#allocation6 + $0x4d8] sm:$0xff]
    %v3328 = vld [vmem:[#allocation6 + $0x500] sm:$0xff]
    %v3329 = vld [vmem:[#allocation6 + $0x508] sm:$0xff]
    %v3330 = vld [vmem:[#allocation6 + $0x530] sm:$0xff]
    %v3331 = vld [vmem:[#allocation6 + $0x538] sm:$0xff]
    %v3332 = vld [vmem:[#allocation6 + $0x560] sm:$0xff]
    %v3333 = vld [vmem:[#allocation6 + $0x568] sm:$0xff]
    %v3334 = vld [vmem:[#allocation6 + $0x590] sm:$0xff]
    %v3335 = vld [vmem:[#allocation6 + $0x598] sm:$0xff]
    %v3336 = vld [vmem:[#allocation6 + $0x5c0] sm:$0xff]
    %v3337 = vld [vmem:[#allocation6 + $0x5c8] sm:$0xff]
    %v3338 = vld [vmem:[#allocation6 + $0x5f0] sm:$0xff]
    %v3339 = vld [vmem:[#allocation6 + $0x5f8] sm:$0xff]
    %v3340 = vld [vmem:[#allocation6 + $0x620] sm:$0xff]
    %v3341 = vld [vmem:[#allocation6 + $0x628] sm:$0xff]
    %v3342 = vld [vmem:[#allocation6 + $0x650] sm:$0xff]
    %v3343 = vld [vmem:[#allocation6 + $0x658] sm:$0xff]
    %v3344 = vld [vmem:[#allocation6 + $0x680] sm:$0xff]
    %v3345 = vld [vmem:[#allocation6 + $0x688] sm:$0xff]
    %v3346 = vld [vmem:[#allocation6 + $0x6b0] sm:$0xff]
    %v3347 = vld [vmem:[#allocation6 + $0x6b8] sm:$0xff]
    %v3348 = vld [vmem:[#allocation6 + $0x6e0] sm:$0xff]
    %v3349 = vld [vmem:[#allocation6 + $0x6e8] sm:$0xff]
    %v3350 = vld [vmem:[#allocation6 + $0x710] sm:$0xff]
    %v3351 = vld [vmem:[#allocation6 + $0x718] sm:$0xff]
    %v3352 = vld [vmem:[#allocation6 + $0x740] sm:$0xff]
    %v3353 = vld [vmem:[#allocation6 + $0x748] sm:$0xff]
    %v3354 = vld [vmem:[#allocation6 + $0x770] sm:$0xff]
    %v3355 = vld [vmem:[#allocation6 + $0x778] sm:$0xff]
    %v3356 = vld [vmem:[#allocation6 + $0x7a0] sm:$0xff]
    %v3357 = vld [vmem:[#allocation6 + $0x7a8] sm:$0xff]
    %v3358 = vld [vmem:[#allocation6 + $0x7d0] sm:$0xff]
    %v3359 = vld [vmem:[#allocation6 + $0x7d8] sm:$0xff]
    %v3360 = vld [vmem:[#allocation6 + $0x800] sm:$0xff]
    %v3361 = vld [vmem:[#allocation6 + $0x808] sm:$0xff]
    %v3362 = vld [vmem:[#allocation6 + $0x830] sm:$0xff]
    %v3363 = vld [vmem:[#allocation6 + $0x838] sm:$0xff]
    %v3364 = vld [vmem:[#allocation6 + $0x860] sm:$0xff]
    %v3365 = vld [vmem:[#allocation6 + $0x868] sm:$0xff]
    %v3366 = vld [vmem:[#allocation6 + $0x890] sm:$0xff]
    %v3367 = vld [vmem:[#allocation6 + $0x898] sm:$0xff]
    %v3368 = vld [vmem:[#allocation6 + $0x8c0] sm:$0xff]
    %v3369 = vld [vmem:[#allocation6 + $0x8c8] sm:$0xff]
    %v3370 = vld [vmem:[#allocation6 + $0x8f0] sm:$0xff]
    %v3371 = vld [vmem:[#allocation6 + $0x8f8] sm:$0xff]
    %v3372 = vld [vmem:[#allocation8 + $0x8] sm:$0xf]
    %v3374 = vperm.slane %v3372, 0
    %v3375 = vperm.slane %v3372, 1
    %v3376 = vperm.slane %v3372, 2
    %v3377 = vperm.slane %v3372, 3
    %v3478 = vunpack.c.l.b16 %v3276
    %v3479 = vunpack.c.h.b16 %v3276
    %v3480 = vunpack.c.l.b16 %v3277
    %v3481 = vunpack.c.h.b16 %v3277
    %v3482 = vunpack.c.l.b16 %v3278
    %v3483 = vunpack.c.h.b16 %v3278
    %v3484 = vunpack.c.l.b16 %v3279
    %v3485 = vunpack.c.h.b16 %v3279
    %v3486 = vunpack.c.l.b16 %v3280
    %v3487 = vunpack.c.h.b16 %v3280
    %v3488 = vunpack.c.l.b16 %v3281
    %v3489 = vunpack.c.h.b16 %v3281
    %v3490 = vunpack.c.l.b16 %v3282
    %v3491 = vunpack.c.h.b16 %v3282
    %v3492 = vunpack.c.l.b16 %v3283
    %v3493 = vunpack.c.h.b16 %v3283
    %v3494 = vunpack.c.l.b16 %v3284
    %v3495 = vunpack.c.h.b16 %v3284
    %v3496 = vunpack.c.l.b16 %v3285
    %v3497 = vunpack.c.h.b16 %v3285
    %v3498 = vunpack.c.l.b16 %v3286
    %v3499 = vunpack.c.h.b16 %v3286
    %v3500 = vunpack.c.l.b16 %v3287
    %v3501 = vunpack.c.h.b16 %v3287
    %v3502 = vunpack.c.l.b16 %v3288
    %v3503 = vunpack.c.h.b16 %v3288
    %v3504 = vunpack.c.l.b16 %v3289
    %v3505 = vunpack.c.h.b16 %v3289
    %v3506 = vunpack.c.l.b16 %v3290
    %v3507 = vunpack.c.h.b16 %v3290
    %v3508 = vunpack.c.l.b16 %v3291
    %v3509 = vunpack.c.h.b16 %v3291
    %v3510 = vunpack.c.l.b16 %v3292
    %v3511 = vunpack.c.h.b16 %v3292
    %v3512 = vunpack.c.l.b16 %v3293
    %v3513 = vunpack.c.h.b16 %v3293
    %v3514 = vunpack.c.l.b16 %v3294
    %v3515 = vunpack.c.h.b16 %v3294
    %v3516 = vunpack.c.l.b16 %v3295
    %v3517 = vunpack.c.h.b16 %v3295
    %v3518 = vunpack.c.l.b16 %v3296
    %v3519 = vunpack.c.h.b16 %v3296
    %v3520 = vunpack.c.l.b16 %v3297
    %v3521 = vunpack.c.h.b16 %v3297
    %v3522 = vunpack.c.l.b16 %v3298
    %v3523 = vunpack.c.h.b16 %v3298
    %v3524 = vunpack.c.l.b16 %v3299
    %v3525 = vunpack.c.h.b16 %v3299
    %v3526 = vunpack.c.l.b16 %v3300
    %v3527 = vunpack.c.h.b16 %v3300
    %v3528 = vunpack.c.l.b16 %v3301
    %v3529 = vunpack.c.h.b16 %v3301
    %v3530 = vunpack.c.l.b16 %v3302
    %v3531 = vunpack.c.h.b16 %v3302
    %v3532 = vunpack.c.l.b16 %v3303
    %v3533 = vunpack.c.h.b16 %v3303
    %v3534 = vunpack.c.l.b16 %v3304
    %v3535 = vunpack.c.h.b16 %v3304
    %v3536 = vunpack.c.l.b16 %v3305
    %v3537 = vunpack.c.h.b16 %v3305
    %v3538 = vunpack.c.l.b16 %v3306
    %v3539 = vunpack.c.h.b16 %v3306
    %v3540 = vunpack.c.l.b16 %v3307
    %v3541 = vunpack.c.h.b16 %v3307
    %v3542 = vunpack.c.l.b16 %v3308
    %v3543 = vunpack.c.h.b16 %v3308
    %v3544 = vunpack.c.l.b16 %v3309
    %v3545 = vunpack.c.h.b16 %v3309
    %v3546 = vunpack.c.l.b16 %v3310
    %v3547 = vunpack.c.h.b16 %v3310
    %v3548 = vunpack.c.l.b16 %v3311
    %v3549 = vunpack.c.h.b16 %v3311
    %v3550 = vunpack.c.l.b16 %v3312
    %v3551 = vunpack.c.h.b16 %v3312
    %v3552 = vunpack.c.l.b16 %v3313
    %v3553 = vunpack.c.h.b16 %v3313
    %v3554 = vunpack.c.l.b16 %v3314
    %v3555 = vunpack.c.h.b16 %v3314
    %v3556 = vunpack.c.l.b16 %v3315
    %v3557 = vunpack.c.h.b16 %v3315
    %v3558 = vunpack.c.l.b16 %v3316
    %v3559 = vunpack.c.h.b16 %v3316
    %v3560 = vunpack.c.l.b16 %v3317
    %v3561 = vunpack.c.h.b16 %v3317
    %v3562 = vunpack.c.l.b16 %v3318
    %v3563 = vunpack.c.h.b16 %v3318
    %v3564 = vunpack.c.l.b16 %v3319
    %v3565 = vunpack.c.h.b16 %v3319
    %v3566 = vunpack.c.l.b16 %v3320
    %v3567 = vunpack.c.h.b16 %v3320
    %v3568 = vunpack.c.l.b16 %v3321
    %v3569 = vunpack.c.h.b16 %v3321
    %v3570 = vunpack.c.l.b16 %v3322
    %v3571 = vunpack.c.h.b16 %v3322
    %v3572 = vunpack.c.l.b16 %v3323
    %v3573 = vunpack.c.h.b16 %v3323
    %v3574 = vunpack.c.l.b16 %v3324
    %v3575 = vunpack.c.h.b16 %v3324
    %v3576 = vunpack.c.l.b16 %v3325
    %v3577 = vunpack.c.h.b16 %v3325
    %v3578 = vunpack.c.l.b16 %v3326
    %v3579 = vunpack.c.h.b16 %v3326
    %v3580 = vunpack.c.l.b16 %v3327
    %v3581 = vunpack.c.h.b16 %v3327
    %v3582 = vunpack.c.l.b16 %v3328
    %v3583 = vunpack.c.h.b16 %v3328
    %v3584 = vunpack.c.l.b16 %v3329
    %v3585 = vunpack.c.h.b16 %v3329
    %v3586 = vunpack.c.l.b16 %v3330
    %v3587 = vunpack.c.h.b16 %v3330
    %v3588 = vunpack.c.l.b16 %v3331
    %v3589 = vunpack.c.h.b16 %v3331
    %v3590 = vunpack.c.l.b16 %v3332
    %v3591 = vunpack.c.h.b16 %v3332
    %v3592 = vunpack.c.l.b16 %v3333
    %v3593 = vunpack.c.h.b16 %v3333
    %v3594 = vunpack.c.l.b16 %v3334
    %v3595 = vunpack.c.h.b16 %v3334
    %v3596 = vunpack.c.l.b16 %v3335
    %v3597 = vunpack.c.h.b16 %v3335
    %v3598 = vunpack.c.l.b16 %v3336
    %v3599 = vunpack.c.h.b16 %v3336
    %v3600 = vunpack.c.l.b16 %v3337
    %v3601 = vunpack.c.h.b16 %v3337
    %v3602 = vunpack.c.l.b16 %v3338
    %v3603 = vunpack.c.h.b16 %v3338
    %v3604 = vunpack.c.l.b16 %v3339
    %v3605 = vunpack.c.h.b16 %v3339
    %v3606 = vunpack.c.l.b16 %v3340
    %v3607 = vunpack.c.h.b16 %v3340
    %v3608 = vunpack.c.l.b16 %v3341
    %v3609 = vunpack.c.h.b16 %v3341
    %v3610 = vunpack.c.l.b16 %v3342
    %v3611 = vunpack.c.h.b16 %v3342
    %v3612 = vunpack.c.l.b16 %v3343
    %v3613 = vunpack.c.h.b16 %v3343
    %v3614 = vunpack.c.l.b16 %v3344
    %v3615 = vunpack.c.h.b16 %v3344
    %v3616 = vunpack.c.l.b16 %v3345
    %v3617 = vunpack.c.h.b16 %v3345
    %v3618 = vunpack.c.l.b16 %v3346
    %v3619 = vunpack.c.h.b16 %v3346
    %v3620 = vunpack.c.l.b16 %v3347
    %v3621 = vunpack.c.h.b16 %v3347
    %v3622 = vunpack.c.l.b16 %v3348
    %v3623 = vunpack.c.h.b16 %v3348
    %v3624 = vunpack.c.l.b16 %v3349
    %v3625 = vunpack.c.h.b16 %v3349
    %v3626 = vunpack.c.l.b16 %v3350
    %v3627 = vunpack.c.h.b16 %v3350
    %v3628 = vunpack.c.l.b16 %v3351
    %v3629 = vunpack.c.h.b16 %v3351
    %v3630 = vunpack.c.l.b16 %v3352
    %v3631 = vunpack.c.h.b16 %v3352
    %v3632 = vunpack.c.l.b16 %v3353
    %v3633 = vunpack.c.h.b16 %v3353
    %v3634 = vunpack.c.l.b16 %v3354
    %v3635 = vunpack.c.h.b16 %v3354
    %v3636 = vunpack.c.l.b16 %v3355
    %v3637 = vunpack.c.h.b16 %v3355
    %v3638 = vunpack.c.l.b16 %v3356
    %v3639 = vunpack.c.h.b16 %v3356
    %v3640 = vunpack.c.l.b16 %v3357
    %v3641 = vunpack.c.h.b16 %v3357
    %v3642 = vunpack.c.l.b16 %v3358
    %v3643 = vunpack.c.h.b16 %v3358
    %v3644 = vunpack.c.l.b16 %v3359
    %v3645 = vunpack.c.h.b16 %v3359
    %v3646 = vunpack.c.l.b16 %v3360
    %v3647 = vunpack.c.h.b16 %v3360
    %v3648 = vunpack.c.l.b16 %v3361
    %v3649 = vunpack.c.h.b16 %v3361
    %v3650 = vunpack.c.l.b16 %v3362
    %v3651 = vunpack.c.h.b16 %v3362
    %v3652 = vunpack.c.l.b16 %v3363
    %v3653 = vunpack.c.h.b16 %v3363
    %v3654 = vunpack.c.l.b16 %v3364
    %v3655 = vunpack.c.h.b16 %v3364
    %v3656 = vunpack.c.l.b16 %v3365
    %v3657 = vunpack.c.h.b16 %v3365
    %v3658 = vunpack.c.l.b16 %v3366
    %v3659 = vunpack.c.h.b16 %v3366
    %v3660 = vunpack.c.l.b16 %v3367
    %v3661 = vunpack.c.h.b16 %v3367
    %v3662 = vunpack.c.l.b16 %v3368
    %v3663 = vunpack.c.h.b16 %v3368
    %v3664 = vunpack.c.l.b16 %v3369
    %v3665 = vunpack.c.h.b16 %v3369
    %v3666 = vunpack.c.l.b16 %v3370
    %v3667 = vunpack.c.h.b16 %v3370
    %v3668 = vunpack.c.l.b16 %v3371
    %v3669 = vunpack.c.h.b16 %v3371
    %v3670 = vpack.c.b16 %v3482, %v3478
    %v3671 = vpack.c.b16 %v3483, %v3479
    %v3672 = vpack.c.b16 %v3484, %v3480
    %v3673 = vpack.c.b16 %v3485, %v3481
    %v3674 = vpack.c.b16 %v3490, %v3486
    %v3675 = vpack.c.b16 %v3491, %v3487
    %v3676 = vpack.c.b16 %v3492, %v3488
    %v3677 = vpack.c.b16 %v3493, %v3489
    %v3678 = vpack.c.b16 %v3498, %v3494
    %v3679 = vpack.c.b16 %v3499, %v3495
    %v3680 = vpack.c.b16 %v3500, %v3496
    %v3681 = vpack.c.b16 %v3501, %v3497
    %v3682 = vpack.c.b16 %v3506, %v3502
    %v3683 = vpack.c.b16 %v3507, %v3503
    %v3684 = vpack.c.b16 %v3508, %v3504
    %v3685 = vpack.c.b16 %v3509, %v3505
    %v3686 = vpack.c.b16 %v3514, %v3510
    %v3687 = vpack.c.b16 %v3515, %v3511
    %v3688 = vpack.c.b16 %v3516, %v3512
    %v3689 = vpack.c.b16 %v3517, %v3513
    %v3690 = vpack.c.b16 %v3522, %v3518
    %v3691 = vpack.c.b16 %v3523, %v3519
    %v3692 = vpack.c.b16 %v3524, %v3520
    %v3693 = vpack.c.b16 %v3525, %v3521
    %v3694 = vpack.c.b16 %v3530, %v3526
    %v3695 = vpack.c.b16 %v3531, %v3527
    %v3696 = vpack.c.b16 %v3532, %v3528
    %v3697 = vpack.c.b16 %v3533, %v3529
    %v3698 = vpack.c.b16 %v3538, %v3534
    %v3699 = vpack.c.b16 %v3539, %v3535
    %v3700 = vpack.c.b16 %v3540, %v3536
    %v3701 = vpack.c.b16 %v3541, %v3537
    %v3702 = vpack.c.b16 %v3546, %v3542
    %v3703 = vpack.c.b16 %v3547, %v3543
    %v3704 = vpack.c.b16 %v3548, %v3544
    %v3705 = vpack.c.b16 %v3549, %v3545
    %v3706 = vpack.c.b16 %v3554, %v3550
    %v3707 = vpack.c.b16 %v3555, %v3551
    %v3708 = vpack.c.b16 %v3556, %v3552
    %v3709 = vpack.c.b16 %v3557, %v3553
    %v3710 = vpack.c.b16 %v3562, %v3558
    %v3711 = vpack.c.b16 %v3563, %v3559
    %v3712 = vpack.c.b16 %v3564, %v3560
    %v3713 = vpack.c.b16 %v3565, %v3561
    %v3714 = vpack.c.b16 %v3570, %v3566
    %v3715 = vpack.c.b16 %v3571, %v3567
    %v3716 = vpack.c.b16 %v3572, %v3568
    %v3717 = vpack.c.b16 %v3573, %v3569
    %v3718 = vpack.c.b16 %v3578, %v3574
    %v3719 = vpack.c.b16 %v3579, %v3575
    %v3720 = vpack.c.b16 %v3580, %v3576
    %v3721 = vpack.c.b16 %v3581, %v3577
    %v3722 = vpack.c.b16 %v3586, %v3582
    %v3723 = vpack.c.b16 %v3587, %v3583
    %v3724 = vpack.c.b16 %v3588, %v3584
    %v3725 = vpack.c.b16 %v3589, %v3585
    %v3726 = vpack.c.b16 %v3594, %v3590
    %v3727 = vpack.c.b16 %v3595, %v3591
    %v3728 = vpack.c.b16 %v3596, %v3592
    %v3729 = vpack.c.b16 %v3597, %v3593
    %v3730 = vpack.c.b16 %v3602, %v3598
    %v3731 = vpack.c.b16 %v3603, %v3599
    %v3732 = vpack.c.b16 %v3604, %v3600
    %v3733 = vpack.c.b16 %v3605, %v3601
    %v3734 = vpack.c.b16 %v3610, %v3606
    %v3735 = vpack.c.b16 %v3611, %v3607
    %v3736 = vpack.c.b16 %v3612, %v3608
    %v3737 = vpack.c.b16 %v3613, %v3609
    %v3738 = vpack.c.b16 %v3618, %v3614
    %v3739 = vpack.c.b16 %v3619, %v3615
    %v3740 = vpack.c.b16 %v3620, %v3616
    %v3741 = vpack.c.b16 %v3621, %v3617
    %v3742 = vpack.c.b16 %v3626, %v3622
    %v3743 = vpack.c.b16 %v3627, %v3623
    %v3744 = vpack.c.b16 %v3628, %v3624
    %v3745 = vpack.c.b16 %v3629, %v3625
    %v3746 = vpack.c.b16 %v3634, %v3630
    %v3747 = vpack.c.b16 %v3635, %v3631
    %v3748 = vpack.c.b16 %v3636, %v3632
    %v3749 = vpack.c.b16 %v3637, %v3633
    %v3750 = vpack.c.b16 %v3642, %v3638
    %v3751 = vpack.c.b16 %v3643, %v3639
    %v3752 = vpack.c.b16 %v3644, %v3640
    %v3753 = vpack.c.b16 %v3645, %v3641
    %v3754 = vpack.c.b16 %v3650, %v3646
    %v3755 = vpack.c.b16 %v3651, %v3647
    %v3756 = vpack.c.b16 %v3652, %v3648
    %v3757 = vpack.c.b16 %v3653, %v3649
    %v3758 = vpack.c.b16 %v3658, %v3654
    %v3759 = vpack.c.b16 %v3659, %v3655
    %v3760 = vpack.c.b16 %v3660, %v3656
    %v3761 = vpack.c.b16 %v3661, %v3657
    %v3762 = vpack.c.b16 %v3666, %v3662
    %v3763 = vpack.c.b16 %v3667, %v3663
    %v3764 = vpack.c.b16 %v3668, %v3664
    %v3765 = vpack.c.b16 %v3669, %v3665
    %3862 = vmatpush.bf16.msra.mxu0 %v3698
    %3863 = vmatpush.bf16.msra.mxu0 %v3694
    %3864 = vmatpush.bf16.msra.mxu0 %v3690
    %3865 = vmatpush.bf16.msra.mxu0 %v3686
    %3866 = vmatpush.bf16.msra.mxu0 %v3682
    %3867 = vmatpush.bf16.msra.mxu0 %v3678
    %3868 = vmatpush.bf16.msra.mxu0 %v3674
    %3869 = vmatpush.bf16.msra.mxu0 %v3670
    %3870 = vmatmul.bf16.gmra.mxu0 %v101
    %v3871 = vpop.f32.mrf.mxu0
    %v3872 = vadd.f32 %v3374, %v3871
    %v3873 = vpop.f32.mrf.mxu0
    %v3874 = vadd.f32 %v3374, %v3873
    %3875 = vdwg.mxu0
    %3876 = vmatpush.bf16.msra.mxu0 %v3730
    %3877 = vmatpush.bf16.msra.mxu0 %v3726
    %3878 = vmatpush.bf16.msra.mxu0 %v3722
    %3879 = vmatpush.bf16.msra.mxu0 %v3718
    %3880 = vmatpush.bf16.msra.mxu0 %v3714
    %3881 = vmatpush.bf16.msra.mxu0 %v3710
    %3882 = vmatpush.bf16.msra.mxu0 %v3706
    %3883 = vmatpush.bf16.msra.mxu0 %v3702
    %3884 = vmatmul.bf16.gmra.mxu0 %v102
    %v3885 = vpop.f32.mrf.mxu0
    %v3886 = vadd.f32 %v3872, %v3885
    %v3887 = vpop.f32.mrf.mxu0
    %v3888 = vadd.f32 %v3874, %v3887
    %3889 = vdwg.mxu0
    %3890 = vmatpush.bf16.msra.mxu0 %v3762
    %3891 = vmatpush.bf16.msra.mxu0 %v3758
    %3892 = vmatpush.bf16.msra.mxu0 %v3754
    %3893 = vmatpush.bf16.msra.mxu0 %v3750
    %3894 = vmatpush.bf16.msra.mxu0 %v3746
    %3895 = vmatpush.bf16.msra.mxu0 %v3742
    %3896 = vmatpush.bf16.msra.mxu0 %v3738
    %3897 = vmatpush.bf16.msra.mxu0 %v3734
    %3898 = vmatmul.bf16.gmra.mxu0 %v103
    %v3899 = vpop.f32.mrf.mxu0
    %v3900 = vadd.f32 %v3886, %v3899
    %v3901 = vpop.f32.mrf.mxu0
    %v3902 = vadd.f32 %v3888, %v3901
    %3903 = vdwg.mxu0
    %3904 = vmatpush.bf16.msra.mxu0 %v3699
    %3905 = vmatpush.bf16.msra.mxu0 %v3695
    %3906 = vmatpush.bf16.msra.mxu0 %v3691
    %3907 = vmatpush.bf16.msra.mxu0 %v3687
    %3908 = vmatpush.bf16.msra.mxu0 %v3683
    %3909 = vmatpush.bf16.msra.mxu0 %v3679
    %3910 = vmatpush.bf16.msra.mxu0 %v3675
    %3911 = vmatpush.bf16.msra.mxu0 %v3671
    %3912 = vmatmul.bf16.gmra.mxu0 %v101
    %v3913 = vpop.f32.mrf.mxu0
    %v3914 = vadd.f32 %v3375, %v3913
    %v3915 = vpop.f32.mrf.mxu0
    %v3916 = vadd.f32 %v3375, %v3915
    %3917 = vdwg.mxu0
    %3918 = vmatpush.bf16.msra.mxu0 %v3731
    %3919 = vmatpush.bf16.msra.mxu0 %v3727
    %3920 = vmatpush.bf16.msra.mxu0 %v3723
    %3921 = vmatpush.bf16.msra.mxu0 %v3719
    %3922 = vmatpush.bf16.msra.mxu0 %v3715
    %3923 = vmatpush.bf16.msra.mxu0 %v3711
    %3924 = vmatpush.bf16.msra.mxu0 %v3707
    %3925 = vmatpush.bf16.msra.mxu0 %v3703
    %3926 = vmatmul.bf16.gmra.mxu0 %v102
    %v3927 = vpop.f32.mrf.mxu0
    %v3928 = vadd.f32 %v3914, %v3927
    %v3929 = vpop.f32.mrf.mxu0
    %v3930 = vadd.f32 %v3916, %v3929
    %3931 = vdwg.mxu0
    %3932 = vmatpush.bf16.msra.mxu0 %v3763
    %3933 = vmatpush.bf16.msra.mxu0 %v3759
    %3934 = vmatpush.bf16.msra.mxu0 %v3755
    %3935 = vmatpush.bf16.msra.mxu0 %v3751
    %3936 = vmatpush.bf16.msra.mxu0 %v3747
    %3937 = vmatpush.bf16.msra.mxu0 %v3743
    %3938 = vmatpush.bf16.msra.mxu0 %v3739
    %3939 = vmatpush.bf16.msra.mxu0 %v3735
    %3940 = vmatmul.bf16.gmra.mxu0 %v103
    %v3941 = vpop.f32.mrf.mxu0
    %v3942 = vadd.f32 %v3928, %v3941
    %v3943 = vpop.f32.mrf.mxu0
    %v3944 = vadd.f32 %v3930, %v3943
    %3945 = vdwg.mxu0
    %3946 = vmatpush.bf16.msra.mxu0 %v3700
    %3947 = vmatpush.bf16.msra.mxu0 %v3696
    %3948 = vmatpush.bf16.msra.mxu0 %v3692
    %3949 = vmatpush.bf16.msra.mxu0 %v3688
    %3950 = vmatpush.bf16.msra.mxu0 %v3684
    %3951 = vmatpush.bf16.msra.mxu0 %v3680
    %3952 = vmatpush.bf16.msra.mxu0 %v3676
    %3953 = vmatpush.bf16.msra.mxu0 %v3672
    %3954 = vmatmul.bf16.gmra.mxu0 %v101
    %v3955 = vpop.f32.mrf.mxu0
    %v3956 = vadd.f32 %v3376, %v3955
    %v3957 = vpop.f32.mrf.mxu0
    %v3958 = vadd.f32 %v3376, %v3957
    %3959 = vdwg.mxu0
    %3960 = vmatpush.bf16.msra.mxu0 %v3732
    %3961 = vmatpush.bf16.msra.mxu0 %v3728
    %3962 = vmatpush.bf16.msra.mxu0 %v3724
    %3963 = vmatpush.bf16.msra.mxu0 %v3720
    %3964 = vmatpush.bf16.msra.mxu0 %v3716
    %3965 = vmatpush.bf16.msra.mxu0 %v3712
    %3966 = vmatpush.bf16.msra.mxu0 %v3708
    %3967 = vmatpush.bf16.msra.mxu0 %v3704
    %3968 = vmatmul.bf16.gmra.mxu0 %v102
    %v3969 = vpop.f32.mrf.mxu0
    %v3970 = vadd.f32 %v3956, %v3969
    %v3971 = vpop.f32.mrf.mxu0
    %v3972 = vadd.f32 %v3958, %v3971
    %3973 = vdwg.mxu0
    %3974 = vmatpush.bf16.msra.mxu0 %v3764
    %3975 = vmatpush.bf16.msra.mxu0 %v3760
    %3976 = vmatpush.bf16.msra.mxu0 %v3756
    %3977 = vmatpush.bf16.msra.mxu0 %v3752
    %3978 = vmatpush.bf16.msra.mxu0 %v3748
    %3979 = vmatpush.bf16.msra.mxu0 %v3744
    %3980 = vmatpush.bf16.msra.mxu0 %v3740
    %3981 = vmatpush.bf16.msra.mxu0 %v3736
    %3982 = vmatmul.bf16.gmra.mxu0 %v103
    %v3983 = vpop.f32.mrf.mxu0
    %v3984 = vadd.f32 %v3970, %v3983
    %v3985 = vpop.f32.mrf.mxu0
    %v3986 = vadd.f32 %v3972, %v3985
    %3987 = vdwg.mxu0
    %3988 = vmatpush.bf16.msra.mxu0 %v3701
    %3989 = vmatpush.bf16.msra.mxu0 %v3697
    %3990 = vmatpush.bf16.msra.mxu0 %v3693
    %3991 = vmatpush.bf16.msra.mxu0 %v3689
    %3992 = vmatpush.bf16.msra.mxu0 %v3685
    %3993 = vmatpush.bf16.msra.mxu0 %v3681
    %3994 = vmatpush.bf16.msra.mxu0 %v3677
    %3995 = vmatpush.bf16.msra.mxu0 %v3673
    %3996 = vmatmul.bf16.gmra.mxu0 %v101
    %v3997 = vpop.f32.mrf.mxu0
    %v3998 = vadd.f32 %v3377, %v3997
    %v3999 = vpop.f32.mrf.mxu0
    %v4000 = vadd.f32 %v3377, %v3999
    %4001 = vdwg.mxu0
    %4002 = vmatpush.bf16.msra.mxu0 %v3733
    %4003 = vmatpush.bf16.msra.mxu0 %v3729
    %4004 = vmatpush.bf16.msra.mxu0 %v3725
    %4005 = vmatpush.bf16.msra.mxu0 %v3721
    %4006 = vmatpush.bf16.msra.mxu0 %v3717
    %4007 = vmatpush.bf16.msra.mxu0 %v3713
    %4008 = vmatpush.bf16.msra.mxu0 %v3709
    %4009 = vmatpush.bf16.msra.mxu0 %v3705
    %4010 = vmatmul.bf16.gmra.mxu0 %v102
    %v4011 = vpop.f32.mrf.mxu0
    %v4012 = vadd.f32 %v3998, %v4011
    %v4013 = vpop.f32.mrf.mxu0
    %v4014 = vadd.f32 %v4000, %v4013
    %4015 = vdwg.mxu0
    %4016 = vmatpush.bf16.msra.mxu0 %v3765
    %4017 = vmatpush.bf16.msra.mxu0 %v3761
    %4018 = vmatpush.bf16.msra.mxu0 %v3757
    %4019 = vmatpush.bf16.msra.mxu0 %v3753
    %4020 = vmatpush.bf16.msra.mxu0 %v3749
    %4021 = vmatpush.bf16.msra.mxu0 %v3745
    %4022 = vmatpush.bf16.msra.mxu0 %v3741
    %4023 = vmatpush.bf16.msra.mxu0 %v3737
    %4024 = vmatmul.bf16.gmra.mxu0 %v103
    %v4025 = vpop.f32.mrf.mxu0
    %v4026 = vadd.f32 %v4012, %v4025
    %v4027 = vpop.f32.mrf.mxu0
    %v4028 = vadd.f32 %v4014, %v4027
    %4029 = vdwg.mxu0
    %v4030 = vmax.f32 %v3900, 0.0
    %v4031 = vmax.f32 %v3942, 0.0
    %v4032 = vmax.f32 %v3984, 0.0
    %v4033 = vmax.f32 %v4026, 0.0
    %v4034 = vmax.f32 %v3902, 0.0
    %v4035 = vmax.f32 %v3944, 0.0
    %v4036 = vmax.f32 %v3986, 0.0
    %v4037 = vmax.f32 %v4028, 0.0
    %v4038 = vpack.c.bf16 %v4034, %v4030
    %v4039 = vpack.c.bf16 %v4035, %v4031
    %v4040 = vpack.c.bf16 %v4036, %v4032
    %v4041 = vpack.c.bf16 %v4037, %v4033
    %v4042 = vld [vmem:[#allocation9 + $0x600] sm:$0xff]
    %v4043 = vld [vmem:[#allocation9 + $0x608] sm:$0xf]
    %v4044 = vld [vmem:[#allocation9 + $0x60c] sm:$0xff]
    %v4045 = vld [vmem:[#allocation9 + $0x614] sm:$0xf]
    %v4046 = vld [vmem:[#allocation9 + $0x618] sm:$0xff]
    %v4047 = vld [vmem:[#allocation9 + $0x620] sm:$0xf]
    %v4048 = vld [vmem:[#allocation9 + $0x624] sm:$0xff]
    %v4049 = vld [vmem:[#allocation9 + $0x62c] sm:$0xf]
    %v4050 = vld [vmem:[#allocation9 + $0x630] sm:$0xff]
    %v4051 = vld [vmem:[#allocation9 + $0x638] sm:$0xf]
    %v4052 = vld [vmem:[#allocation9 + $0x63c] sm:$0xff]
    %v4053 = vld [vmem:[#allocation9 + $0x644] sm:$0xf]
    %v4054 = vld [vmem:[#allocation9 + $0x648] sm:$0xff]
    %v4055 = vld [vmem:[#allocation9 + $0x650] sm:$0xf]
    %v4056 = vld [vmem:[#allocation9 + $0x654] sm:$0xff]
    %v4057 = vld [vmem:[#allocation9 + $0x65c] sm:$0xf]
    %v4058 = vld [vmem:[#allocation9 + $0x660] sm:$0xff]
    %v4059 = vld [vmem:[#allocation9 + $0x668] sm:$0xf]
    %v4060 = vld [vmem:[#allocation9 + $0x66c] sm:$0xff]
    %v4061 = vld [vmem:[#allocation9 + $0x674] sm:$0xf]
    %v4062 = vld [vmem:[#allocation9 + $0x678] sm:$0xff]
    %v4063 = vld [vmem:[#allocation9 + $0x680] sm:$0xf]
    %v4064 = vld [vmem:[#allocation9 + $0x684] sm:$0xff]
    %v4065 = vld [vmem:[#allocation9 + $0x68c] sm:$0xf]
    %v4066 = vld [vmem:[#allocation9 + $0x690] sm:$0xff]
    %v4067 = vld [vmem:[#allocation9 + $0x698] sm:$0xf]
    %v4068 = vld [vmem:[#allocation9 + $0x69c] sm:$0xff]
    %v4069 = vld [vmem:[#allocation9 + $0x6a4] sm:$0xf]
    %v4070 = vld [vmem:[#allocation9 + $0x6a8] sm:$0xff]
    %v4071 = vld [vmem:[#allocation9 + $0x6b0] sm:$0xf]
    %v4072 = vld [vmem:[#allocation9 + $0x6b4] sm:$0xff]
    %v4073 = vld [vmem:[#allocation9 + $0x6bc] sm:$0xf]
    %v4074 = vld [vmem:[#allocation9 + $0x6c0] sm:$0xff]
    %v4075 = vld [vmem:[#allocation9 + $0x6c8] sm:$0xf]
    %v4076 = vld [vmem:[#allocation9 + $0x6cc] sm:$0xff]
    %v4077 = vld [vmem:[#allocation9 + $0x6d4] sm:$0xf]
    %v4078 = vld [vmem:[#allocation9 + $0x6d8] sm:$0xff]
    %v4079 = vld [vmem:[#allocation9 + $0x6e0] sm:$0xf]
    %v4080 = vld [vmem:[#allocation9 + $0x6e4] sm:$0xff]
    %v4081 = vld [vmem:[#allocation9 + $0x6ec] sm:$0xf]
    %v4082 = vld [vmem:[#allocation9 + $0x6f0] sm:$0xff]
    %v4083 = vld [vmem:[#allocation9 + $0x6f8] sm:$0xf]
    %v4084 = vld [vmem:[#allocation9 + $0x6fc] sm:$0xff]
    %v4085 = vld [vmem:[#allocation9 + $0x704] sm:$0xf]
    %v4086 = vld [vmem:[#allocation9 + $0x708] sm:$0xff]
    %v4087 = vld [vmem:[#allocation9 + $0x710] sm:$0xf]
    %v4088 = vld [vmem:[#allocation9 + $0x714] sm:$0xff]
    %v4089 = vld [vmem:[#allocation9 + $0x71c] sm:$0xf]
    %v4090 = vld [vmem:[#allocation9 + $0x720] sm:$0xff]
    %v4091 = vld [vmem:[#allocation9 + $0x728] sm:$0xf]
    %v4092 = vld [vmem:[#allocation9 + $0x72c] sm:$0xff]
    %v4093 = vld [vmem:[#allocation9 + $0x734] sm:$0xf]
    %v4094 = vld [vmem:[#allocation9 + $0x738] sm:$0xff]
    %v4095 = vld [vmem:[#allocation9 + $0x740] sm:$0xf]
    %v4096 = vld [vmem:[#allocation9 + $0x744] sm:$0xff]
    %v4097 = vld [vmem:[#allocation9 + $0x74c] sm:$0xf]
    %v4098 = vld [vmem:[#allocation9 + $0x750] sm:$0xff]
    %v4099 = vld [vmem:[#allocation9 + $0x758] sm:$0xf]
    %v4100 = vld [vmem:[#allocation9 + $0x75c] sm:$0xff]
    %v4101 = vld [vmem:[#allocation9 + $0x764] sm:$0xf]
    %v4102 = vld [vmem:[#allocation9 + $0x768] sm:$0xff]
    %v4103 = vld [vmem:[#allocation9 + $0x770] sm:$0xf]
    %v4104 = vld [vmem:[#allocation9 + $0x774] sm:$0xff]
    %v4105 = vld [vmem:[#allocation9 + $0x77c] sm:$0xf]
    %v4106 = vld [vmem:[#allocation9 + $0x780] sm:$0xff]
    %v4107 = vld [vmem:[#allocation9 + $0x788] sm:$0xf]
    %v4108 = vld [vmem:[#allocation9 + $0x78c] sm:$0xff]
    %v4109 = vld [vmem:[#allocation9 + $0x794] sm:$0xf]
    %v4110 = vld [vmem:[#allocation9 + $0x798] sm:$0xff]
    %v4111 = vld [vmem:[#allocation9 + $0x7a0] sm:$0xf]
    %v4112 = vld [vmem:[#allocation9 + $0x7a4] sm:$0xff]
    %v4113 = vld [vmem:[#allocation9 + $0x7ac] sm:$0xf]
    %v4114 = vld [vmem:[#allocation9 + $0x7b0] sm:$0xff]
    %v4115 = vld [vmem:[#allocation9 + $0x7b8] sm:$0xf]
    %v4116 = vld [vmem:[#allocation9 + $0x7bc] sm:$0xff]
    %v4117 = vld [vmem:[#allocation9 + $0x7c4] sm:$0xf]
    %v4118 = vld [vmem:[#allocation9 + $0x7c8] sm:$0xff]
    %v4119 = vld [vmem:[#allocation9 + $0x7d0] sm:$0xf]
    %v4120 = vld [vmem:[#allocation9 + $0x7d4] sm:$0xff]
    %v4121 = vld [vmem:[#allocation9 + $0x7dc] sm:$0xf]
    %v4122 = vld [vmem:[#allocation9 + $0x7e0] sm:$0xff]
    %v4123 = vld [vmem:[#allocation9 + $0x7e8] sm:$0xf]
    %v4124 = vld [vmem:[#allocation9 + $0x7ec] sm:$0xff]
    %v4125 = vld [vmem:[#allocation9 + $0x7f4] sm:$0xf]
    %v4126 = vld [vmem:[#allocation9 + $0x7f8] sm:$0xff]
    %v4127 = vld [vmem:[#allocation9 + $0x800] sm:$0xf]
    %v4128 = vld [vmem:[#allocation9 + $0x804] sm:$0xff]
    %v4129 = vld [vmem:[#allocation9 + $0x80c] sm:$0xf]
    %v4130 = vld [vmem:[#allocation9 + $0x810] sm:$0xff]
    %v4131 = vld [vmem:[#allocation9 + $0x818] sm:$0xf]
    %v4132 = vld [vmem:[#allocation9 + $0x81c] sm:$0xff]
    %v4133 = vld [vmem:[#allocation9 + $0x824] sm:$0xf]
    %v4134 = vld [vmem:[#allocation9 + $0x828] sm:$0xff]
    %v4135 = vld [vmem:[#allocation9 + $0x830] sm:$0xf]
    %v4136 = vld [vmem:[#allocation9 + $0x834] sm:$0xff]
    %v4137 = vld [vmem:[#allocation9 + $0x83c] sm:$0xf]
    %v4138 = vld [vmem:[#allocation9 + $0x840] sm:$0xff]
    %v4139 = vld [vmem:[#allocation9 + $0x848] sm:$0xf]
    %v4140 = vld [vmem:[#allocation9 + $0x84c] sm:$0xff]
    %v4141 = vld [vmem:[#allocation9 + $0x854] sm:$0xf]
    %v4142 = vld [vmem:[#allocation9 + $0x858] sm:$0xff]
    %v4143 = vld [vmem:[#allocation9 + $0x860] sm:$0xf]
    %v4144 = vld [vmem:[#allocation9 + $0x864] sm:$0xff]
    %v4145 = vld [vmem:[#allocation9 + $0x86c] sm:$0xf]
    %v4146 = vld [vmem:[#allocation9 + $0x870] sm:$0xff]
    %v4147 = vld [vmem:[#allocation9 + $0x878] sm:$0xf]
    %v4148 = vld [vmem:[#allocation9 + $0x87c] sm:$0xff]
    %v4149 = vld [vmem:[#allocation9 + $0x884] sm:$0xf]
    %v4150 = vld [vmem:[#allocation9 + $0x888] sm:$0xff]
    %v4151 = vld [vmem:[#allocation9 + $0x890] sm:$0xf]
    %v4152 = vld [vmem:[#allocation9 + $0x894] sm:$0xff]
    %v4153 = vld [vmem:[#allocation9 + $0x89c] sm:$0xf]
    %v4154 = vld [vmem:[#allocation9 + $0x8a0] sm:$0xff]
    %v4155 = vld [vmem:[#allocation9 + $0x8a8] sm:$0xf]
    %v4156 = vld [vmem:[#allocation9 + $0x8ac] sm:$0xff]
    %v4157 = vld [vmem:[#allocation9 + $0x8b4] sm:$0xf]
    %v4158 = vld [vmem:[#allocation9 + $0x8b8] sm:$0xff]
    %v4159 = vld [vmem:[#allocation9 + $0x8c0] sm:$0xf]
    %v4160 = vld [vmem:[#allocation9 + $0x8c4] sm:$0xff]
    %v4161 = vld [vmem:[#allocation9 + $0x8cc] sm:$0xf]
    %v4162 = vld [vmem:[#allocation9 + $0x8d0] sm:$0xff]
    %v4163 = vld [vmem:[#allocation9 + $0x8d8] sm:$0xf]
    %v4164 = vld [vmem:[#allocation9 + $0x8dc] sm:$0xff]
    %v4165 = vld [vmem:[#allocation9 + $0x8e4] sm:$0xf]
    %v4166 = vld [vmem:[#allocation9 + $0x8e8] sm:$0xff]
    %v4167 = vld [vmem:[#allocation9 + $0x8f0] sm:$0xf]
    %v4168 = vld [vmem:[#allocation9 + $0x8f4] sm:$0xff]
    %v4169 = vld [vmem:[#allocation9 + $0x8fc] sm:$0xf]
    %v4298 = vunpack.c.l.b16 %v4042
    %v4299 = vunpack.c.h.b16 %v4042
    %v4300 = vunpack.c.l.b16 %v4043
    %v4301 = vunpack.c.l.b16 %v4044
    %v4302 = vunpack.c.h.b16 %v4044
    %v4303 = vunpack.c.l.b16 %v4045
    %v4304 = vunpack.c.l.b16 %v4046
    %v4305 = vunpack.c.h.b16 %v4046
    %v4306 = vunpack.c.l.b16 %v4047
    %v4307 = vunpack.c.l.b16 %v4048
    %v4308 = vunpack.c.h.b16 %v4048
    %v4309 = vunpack.c.l.b16 %v4049
    %v4310 = vunpack.c.l.b16 %v4050
    %v4311 = vunpack.c.h.b16 %v4050
    %v4312 = vunpack.c.l.b16 %v4051
    %v4313 = vunpack.c.l.b16 %v4052
    %v4314 = vunpack.c.h.b16 %v4052
    %v4315 = vunpack.c.l.b16 %v4053
    %v4316 = vunpack.c.l.b16 %v4054
    %v4317 = vunpack.c.h.b16 %v4054
    %v4318 = vunpack.c.l.b16 %v4055
    %v4319 = vunpack.c.l.b16 %v4056
    %v4320 = vunpack.c.h.b16 %v4056
    %v4321 = vunpack.c.l.b16 %v4057
    %v4322 = vunpack.c.l.b16 %v4058
    %v4323 = vunpack.c.h.b16 %v4058
    %v4324 = vunpack.c.l.b16 %v4059
    %v4325 = vunpack.c.l.b16 %v4060
    %v4326 = vunpack.c.h.b16 %v4060
    %v4327 = vunpack.c.l.b16 %v4061
    %v4328 = vunpack.c.l.b16 %v4062
    %v4329 = vunpack.c.h.b16 %v4062
    %v4330 = vunpack.c.l.b16 %v4063
    %v4331 = vunpack.c.l.b16 %v4064
    %v4332 = vunpack.c.h.b16 %v4064
    %v4333 = vunpack.c.l.b16 %v4065
    %v4334 = vunpack.c.l.b16 %v4066
    %v4335 = vunpack.c.h.b16 %v4066
    %v4336 = vunpack.c.l.b16 %v4067
    %v4337 = vunpack.c.l.b16 %v4068
    %v4338 = vunpack.c.h.b16 %v4068
    %v4339 = vunpack.c.l.b16 %v4069
    %v4340 = vunpack.c.l.b16 %v4070
    %v4341 = vunpack.c.h.b16 %v4070
    %v4342 = vunpack.c.l.b16 %v4071
    %v4343 = vunpack.c.l.b16 %v4072
    %v4344 = vunpack.c.h.b16 %v4072
    %v4345 = vunpack.c.l.b16 %v4073
    %v4346 = vunpack.c.l.b16 %v4074
    %v4347 = vunpack.c.h.b16 %v4074
    %v4348 = vunpack.c.l.b16 %v4075
    %v4349 = vunpack.c.l.b16 %v4076
    %v4350 = vunpack.c.h.b16 %v4076
    %v4351 = vunpack.c.l.b16 %v4077
    %v4352 = vunpack.c.l.b16 %v4078
    %v4353 = vunpack.c.h.b16 %v4078
    %v4354 = vunpack.c.l.b16 %v4079
    %v4355 = vunpack.c.l.b16 %v4080
    %v4356 = vunpack.c.h.b16 %v4080
    %v4357 = vunpack.c.l.b16 %v4081
    %v4358 = vunpack.c.l.b16 %v4082
    %v4359 = vunpack.c.h.b16 %v4082
    %v4360 = vunpack.c.l.b16 %v4083
    %v4361 = vunpack.c.l.b16 %v4084
    %v4362 = vunpack.c.h.b16 %v4084
    %v4363 = vunpack.c.l.b16 %v4085
    %v4364 = vunpack.c.l.b16 %v4086
    %v4365 = vunpack.c.h.b16 %v4086
    %v4366 = vunpack.c.l.b16 %v4087
    %v4367 = vunpack.c.l.b16 %v4088
    %v4368 = vunpack.c.h.b16 %v4088
    %v4369 = vunpack.c.l.b16 %v4089
    %v4370 = vunpack.c.l.b16 %v4090
    %v4371 = vunpack.c.h.b16 %v4090
    %v4372 = vunpack.c.l.b16 %v4091
    %v4373 = vunpack.c.l.b16 %v4092
    %v4374 = vunpack.c.h.b16 %v4092
    %v4375 = vunpack.c.l.b16 %v4093
    %v4376 = vunpack.c.l.b16 %v4094
    %v4377 = vunpack.c.h.b16 %v4094
    %v4378 = vunpack.c.l.b16 %v4095
    %v4379 = vunpack.c.l.b16 %v4096
    %v4380 = vunpack.c.h.b16 %v4096
    %v4381 = vunpack.c.l.b16 %v4097
    %v4382 = vunpack.c.l.b16 %v4098
    %v4383 = vunpack.c.h.b16 %v4098
    %v4384 = vunpack.c.l.b16 %v4099
    %v4385 = vunpack.c.l.b16 %v4100
    %v4386 = vunpack.c.h.b16 %v4100
    %v4387 = vunpack.c.l.b16 %v4101
    %v4388 = vunpack.c.l.b16 %v4102
    %v4389 = vunpack.c.h.b16 %v4102
    %v4390 = vunpack.c.l.b16 %v4103
    %v4391 = vunpack.c.l.b16 %v4104
    %v4392 = vunpack.c.h.b16 %v4104
    %v4393 = vunpack.c.l.b16 %v4105
    %v4394 = vunpack.c.l.b16 %v4106
    %v4395 = vunpack.c.h.b16 %v4106
    %v4396 = vunpack.c.l.b16 %v4107
    %v4397 = vunpack.c.l.b16 %v4108
    %v4398 = vunpack.c.h.b16 %v4108
    %v4399 = vunpack.c.l.b16 %v4109
    %v4400 = vunpack.c.l.b16 %v4110
    %v4401 = vunpack.c.h.b16 %v4110
    %v4402 = vunpack.c.l.b16 %v4111
    %v4403 = vunpack.c.l.b16 %v4112
    %v4404 = vunpack.c.h.b16 %v4112
    %v4405 = vunpack.c.l.b16 %v4113
    %v4406 = vunpack.c.l.b16 %v4114
    %v4407 = vunpack.c.h.b16 %v4114
    %v4408 = vunpack.c.l.b16 %v4115
    %v4409 = vunpack.c.l.b16 %v4116
    %v4410 = vunpack.c.h.b16 %v4116
    %v4411 = vunpack.c.l.b16 %v4117
    %v4412 = vunpack.c.l.b16 %v4118
    %v4413 = vunpack.c.h.b16 %v4118
    %v4414 = vunpack.c.l.b16 %v4119
    %v4415 = vunpack.c.l.b16 %v4120
    %v4416 = vunpack.c.h.b16 %v4120
    %v4417 = vunpack.c.l.b16 %v4121
    %v4418 = vunpack.c.l.b16 %v4122
    %v4419 = vunpack.c.h.b16 %v4122
    %v4420 = vunpack.c.l.b16 %v4123
    %v4421 = vunpack.c.l.b16 %v4124
    %v4422 = vunpack.c.h.b16 %v4124
    %v4423 = vunpack.c.l.b16 %v4125
    %v4424 = vunpack.c.l.b16 %v4126
    %v4425 = vunpack.c.h.b16 %v4126
    %v4426 = vunpack.c.l.b16 %v4127
    %v4427 = vunpack.c.l.b16 %v4128
    %v4428 = vunpack.c.h.b16 %v4128
    %v4429 = vunpack.c.l.b16 %v4129
    %v4430 = vunpack.c.l.b16 %v4130
    %v4431 = vunpack.c.h.b16 %v4130
    %v4432 = vunpack.c.l.b16 %v4131
    %v4433 = vunpack.c.l.b16 %v4132
    %v4434 = vunpack.c.h.b16 %v4132
    %v4435 = vunpack.c.l.b16 %v4133
    %v4436 = vunpack.c.l.b16 %v4134
    %v4437 = vunpack.c.h.b16 %v4134
    %v4438 = vunpack.c.l.b16 %v4135
    %v4439 = vunpack.c.l.b16 %v4136
    %v4440 = vunpack.c.h.b16 %v4136
    %v4441 = vunpack.c.l.b16 %v4137
    %v4442 = vunpack.c.l.b16 %v4138
    %v4443 = vunpack.c.h.b16 %v4138
    %v4444 = vunpack.c.l.b16 %v4139
    %v4445 = vunpack.c.l.b16 %v4140
    %v4446 = vunpack.c.h.b16 %v4140
    %v4447 = vunpack.c.l.b16 %v4141
    %v4448 = vunpack.c.l.b16 %v4142
    %v4449 = vunpack.c.h.b16 %v4142
    %v4450 = vunpack.c.l.b16 %v4143
    %v4451 = vunpack.c.l.b16 %v4144
    %v4452 = vunpack.c.h.b16 %v4144
    %v4453 = vunpack.c.l.b16 %v4145
    %v4454 = vunpack.c.l.b16 %v4146
    %v4455 = vunpack.c.h.b16 %v4146
    %v4456 = vunpack.c.l.b16 %v4147
    %v4457 = vunpack.c.l.b16 %v4148
    %v4458 = vunpack.c.h.b16 %v4148
    %v4459 = vunpack.c.l.b16 %v4149
    %v4460 = vunpack.c.l.b16 %v4150
    %v4461 = vunpack.c.h.b16 %v4150
    %v4462 = vunpack.c.l.b16 %v4151
    %v4463 = vunpack.c.l.b16 %v4152
    %v4464 = vunpack.c.h.b16 %v4152
    %v4465 = vunpack.c.l.b16 %v4153
    %v4466 = vunpack.c.l.b16 %v4154
    %v4467 = vunpack.c.h.b16 %v4154
    %v4468 = vunpack.c.l.b16 %v4155
    %v4469 = vunpack.c.l.b16 %v4156
    %v4470 = vunpack.c.h.b16 %v4156
    %v4471 = vunpack.c.l.b16 %v4157
    %v4472 = vunpack.c.l.b16 %v4158
    %v4473 = vunpack.c.h.b16 %v4158
    %v4474 = vunpack.c.l.b16 %v4159
    %v4475 = vunpack.c.l.b16 %v4160
    %v4476 = vunpack.c.h.b16 %v4160
    %v4477 = vunpack.c.l.b16 %v4161
    %v4478 = vunpack.c.l.b16 %v4162
    %v4479 = vunpack.c.h.b16 %v4162
    %v4480 = vunpack.c.l.b16 %v4163
    %v4481 = vunpack.c.l.b16 %v4164
    %v4482 = vunpack.c.h.b16 %v4164
    %v4483 = vunpack.c.l.b16 %v4165
    %v4484 = vunpack.c.l.b16 %v4166
    %v4485 = vunpack.c.h.b16 %v4166
    %v4486 = vunpack.c.l.b16 %v4167
    %v4487 = vunpack.c.l.b16 %v4168
    %v4488 = vunpack.c.h.b16 %v4168
    %v4489 = vunpack.c.l.b16 %v4169
    %v4490 = vpack.c.b16 %v4301, %v4298
    %v4491 = vpack.c.b16 %v4302, %v4299
    %v4492 = vpack.c.b16 %v4303, %v4300
    %v4493 = vpack.c.b16 %v4307, %v4304
    %v4494 = vpack.c.b16 %v4308, %v4305
    %v4495 = vpack.c.b16 %v4309, %v4306
    %v4496 = vpack.c.b16 %v4313, %v4310
    %v4497 = vpack.c.b16 %v4314, %v4311
    %v4498 = vpack.c.b16 %v4315, %v4312
    %v4499 = vpack.c.b16 %v4319, %v4316
    %v4500 = vpack.c.b16 %v4320, %v4317
    %v4501 = vpack.c.b16 %v4321, %v4318
    %v4502 = vpack.c.b16 %v4325, %v4322
    %v4503 = vpack.c.b16 %v4326, %v4323
    %v4504 = vpack.c.b16 %v4327, %v4324
    %v4505 = vpack.c.b16 %v4331, %v4328
    %v4506 = vpack.c.b16 %v4332, %v4329
    %v4507 = vpack.c.b16 %v4333, %v4330
    %v4508 = vpack.c.b16 %v4337, %v4334
    %v4509 = vpack.c.b16 %v4338, %v4335
    %v4510 = vpack.c.b16 %v4339, %v4336
    %v4511 = vpack.c.b16 %v4343, %v4340
    %v4512 = vpack.c.b16 %v4344, %v4341
    %v4513 = vpack.c.b16 %v4345, %v4342
    %v4514 = vpack.c.b16 %v4349, %v4346
    %v4515 = vpack.c.b16 %v4350, %v4347
    %v4516 = vpack.c.b16 %v4351, %v4348
    %v4517 = vpack.c.b16 %v4355, %v4352
    %v4518 = vpack.c.b16 %v4356, %v4353
    %v4519 = vpack.c.b16 %v4357, %v4354
    %v4520 = vpack.c.b16 %v4361, %v4358
    %v4521 = vpack.c.b16 %v4362, %v4359
    %v4522 = vpack.c.b16 %v4363, %v4360
    %v4523 = vpack.c.b16 %v4367, %v4364
    %v4524 = vpack.c.b16 %v4368, %v4365
    %v4525 = vpack.c.b16 %v4369, %v4366
    %v4526 = vpack.c.b16 %v4373, %v4370
    %v4527 = vpack.c.b16 %v4374, %v4371
    %v4528 = vpack.c.b16 %v4375, %v4372
    %v4529 = vpack.c.b16 %v4379, %v4376
    %v4530 = vpack.c.b16 %v4380, %v4377
    %v4531 = vpack.c.b16 %v4381, %v4378
    %v4532 = vpack.c.b16 %v4385, %v4382
    %v4533 = vpack.c.b16 %v4386, %v4383
    %v4534 = vpack.c.b16 %v4387, %v4384
    %v4535 = vpack.c.b16 %v4391, %v4388
    %v4536 = vpack.c.b16 %v4392, %v4389
    %v4537 = vpack.c.b16 %v4393, %v4390
    %v4538 = vpack.c.b16 %v4397, %v4394
    %v4539 = vpack.c.b16 %v4398, %v4395
    %v4540 = vpack.c.b16 %v4399, %v4396
    %v4541 = vpack.c.b16 %v4403, %v4400
    %v4542 = vpack.c.b16 %v4404, %v4401
    %v4543 = vpack.c.b16 %v4405, %v4402
    %v4544 = vpack.c.b16 %v4409, %v4406
    %v4545 = vpack.c.b16 %v4410, %v4407
    %v4546 = vpack.c.b16 %v4411, %v4408
    %v4547 = vpack.c.b16 %v4415, %v4412
    %v4548 = vpack.c.b16 %v4416, %v4413
    %v4549 = vpack.c.b16 %v4417, %v4414
    %v4550 = vpack.c.b16 %v4421, %v4418
    %v4551 = vpack.c.b16 %v4422, %v4419
    %v4552 = vpack.c.b16 %v4423, %v4420
    %v4553 = vpack.c.b16 %v4427, %v4424
    %v4554 = vpack.c.b16 %v4428, %v4425
    %v4555 = vpack.c.b16 %v4429, %v4426
    %v4556 = vpack.c.b16 %v4433, %v4430
    %v4557 = vpack.c.b16 %v4434, %v4431
    %v4558 = vpack.c.b16 %v4435, %v4432
    %v4559 = vpack.c.b16 %v4439, %v4436
    %v4560 = vpack.c.b16 %v4440, %v4437
    %v4561 = vpack.c.b16 %v4441, %v4438
    %v4562 = vpack.c.b16 %v4445, %v4442
    %v4563 = vpack.c.b16 %v4446, %v4443
    %v4564 = vpack.c.b16 %v4447, %v4444
    %v4565 = vpack.c.b16 %v4451, %v4448
    %v4566 = vpack.c.b16 %v4452, %v4449
    %v4567 = vpack.c.b16 %v4453, %v4450
    %v4568 = vpack.c.b16 %v4457, %v4454
    %v4569 = vpack.c.b16 %v4458, %v4455
    %v4570 = vpack.c.b16 %v4459, %v4456
    %v4571 = vpack.c.b16 %v4463, %v4460
    %v4572 = vpack.c.b16 %v4464, %v4461
    %v4573 = vpack.c.b16 %v4465, %v4462
    %v4574 = vpack.c.b16 %v4469, %v4466
    %v4575 = vpack.c.b16 %v4470, %v4467
    %v4576 = vpack.c.b16 %v4471, %v4468
    %v4577 = vpack.c.b16 %v4475, %v4472
    %v4578 = vpack.c.b16 %v4476, %v4473
    %v4579 = vpack.c.b16 %v4477, %v4474
    %v4580 = vpack.c.b16 %v4481, %v4478
    %v4581 = vpack.c.b16 %v4482, %v4479
    %v4582 = vpack.c.b16 %v4483, %v4480
    %v4583 = vpack.c.b16 %v4487, %v4484
    %v4584 = vpack.c.b16 %v4488, %v4485
    %v4585 = vpack.c.b16 %v4489, %v4486
    %4682 = vmatpush.bf16.msra.mxu0 %v4511
    %4683 = vmatpush.bf16.msra.mxu0 %v4508
    %4684 = vmatpush.bf16.msra.mxu0 %v4505
    %4685 = vmatpush.bf16.msra.mxu0 %v4502
    %4686 = vmatpush.bf16.msra.mxu0 %v4499
    %4687 = vmatpush.bf16.msra.mxu0 %v4496
    %4688 = vmatpush.bf16.msra.mxu0 %v4493
    %4689 = vmatpush.bf16.msra.mxu0 %v4490
    %4690 = vmatmul.bf16.gmra.mxu0 %v4038
    %v4691 = vpop.f32.mrf.mxu0
    %v4692 = vadd.f32 0.0, %v4691
    %v4693 = vpop.f32.mrf.mxu0
    %v4694 = vadd.f32 0.0, %v4693
    %4695 = vdwg.mxu0
    %4696 = vmatpush.bf16.msra.mxu0 %v4535
    %4697 = vmatpush.bf16.msra.mxu0 %v4532
    %4698 = vmatpush.bf16.msra.mxu0 %v4529
    %4699 = vmatpush.bf16.msra.mxu0 %v4526
    %4700 = vmatpush.bf16.msra.mxu0 %v4523
    %4701 = vmatpush.bf16.msra.mxu0 %v4520
    %4702 = vmatpush.bf16.msra.mxu0 %v4517
    %4703 = vmatpush.bf16.msra.mxu0 %v4514
    %4704 = vmatmul.bf16.gmra.mxu0 %v4039
    %v4705 = vpop.f32.mrf.mxu0
    %v4706 = vadd.f32 %v4692, %v4705
    %v4707 = vpop.f32.mrf.mxu0
    %v4708 = vadd.f32 %v4694, %v4707
    %4709 = vdwg.mxu0
    %4710 = vmatpush.bf16.msra.mxu0 %v4559
    %4711 = vmatpush.bf16.msra.mxu0 %v4556
    %4712 = vmatpush.bf16.msra.mxu0 %v4553
    %4713 = vmatpush.bf16.msra.mxu0 %v4550
    %4714 = vmatpush.bf16.msra.mxu0 %v4547
    %4715 = vmatpush.bf16.msra.mxu0 %v4544
    %4716 = vmatpush.bf16.msra.mxu0 %v4541
    %4717 = vmatpush.bf16.msra.mxu0 %v4538
    %4718 = vmatmul.bf16.gmra.mxu0 %v4040
    %v4719 = vpop.f32.mrf.mxu0
    %v4720 = vadd.f32 %v4706, %v4719
    %v4721 = vpop.f32.mrf.mxu0
    %v4722 = vadd.f32 %v4708, %v4721
    %4723 = vdwg.mxu0
    %4724 = vmatpush.bf16.msra.mxu0 %v4583
    %4725 = vmatpush.bf16.msra.mxu0 %v4580
    %4726 = vmatpush.bf16.msra.mxu0 %v4577
    %4727 = vmatpush.bf16.msra.mxu0 %v4574
    %4728 = vmatpush.bf16.msra.mxu0 %v4571
    %4729 = vmatpush.bf16.msra.mxu0 %v4568
    %4730 = vmatpush.bf16.msra.mxu0 %v4565
    %4731 = vmatpush.bf16.msra.mxu0 %v4562
    %4732 = vmatmul.bf16.gmra.mxu0 %v4041
    %v4733 = vpop.f32.mrf.mxu0
    %v4734 = vadd.f32 %v4720, %v4733
    %v4735 = vpop.f32.mrf.mxu0
    %v4736 = vadd.f32 %v4722, %v4735
    %4737 = vdwg.mxu0
    %4738 = vmatpush.bf16.msra.mxu0 %v4512
    %4739 = vmatpush.bf16.msra.mxu0 %v4509
    %4740 = vmatpush.bf16.msra.mxu0 %v4506
    %4741 = vmatpush.bf16.msra.mxu0 %v4503
    %4742 = vmatpush.bf16.msra.mxu0 %v4500
    %4743 = vmatpush.bf16.msra.mxu0 %v4497
    %4744 = vmatpush.bf16.msra.mxu0 %v4494
    %4745 = vmatpush.bf16.msra.mxu0 %v4491
    %4746 = vmatmul.bf16.gmra.mxu0 %v4038
    %v4747 = vpop.f32.mrf.mxu0
    %v4748 = vadd.f32 0.0, %v4747
    %v4749 = vpop.f32.mrf.mxu0
    %v4750 = vadd.f32 0.0, %v4749
    %4751 = vdwg.mxu0
    %4752 = vmatpush.bf16.msra.mxu0 %v4536
    %4753 = vmatpush.bf16.msra.mxu0 %v4533
    %4754 = vmatpush.bf16.msra.mxu0 %v4530
    %4755 = vmatpush.bf16.msra.mxu0 %v4527
    %4756 = vmatpush.bf16.msra.mxu0 %v4524
    %4757 = vmatpush.bf16.msra.mxu0 %v4521
    %4758 = vmatpush.bf16.msra.mxu0 %v4518
    %4759 = vmatpush.bf16.msra.mxu0 %v4515
    %4760 = vmatmul.bf16.gmra.mxu0 %v4039
    %v4761 = vpop.f32.mrf.mxu0
    %v4762 = vadd.f32 %v4748, %v4761
    %v4763 = vpop.f32.mrf.mxu0
    %v4764 = vadd.f32 %v4750, %v4763
    %4765 = vdwg.mxu0
    %4766 = vmatpush.bf16.msra.mxu0 %v4560
    %4767 = vmatpush.bf16.msra.mxu0 %v4557
    %4768 = vmatpush.bf16.msra.mxu0 %v4554
    %4769 = vmatpush.bf16.msra.mxu0 %v4551
    %4770 = vmatpush.bf16.msra.mxu0 %v4548
    %4771 = vmatpush.bf16.msra.mxu0 %v4545
    %4772 = vmatpush.bf16.msra.mxu0 %v4542
    %4773 = vmatpush.bf16.msra.mxu0 %v4539
    %4774 = vmatmul.bf16.gmra.mxu0 %v4040
    %v4775 = vpop.f32.mrf.mxu0
    %v4776 = vadd.f32 %v4762, %v4775
    %v4777 = vpop.f32.mrf.mxu0
    %v4778 = vadd.f32 %v4764, %v4777
    %4779 = vdwg.mxu0
    %4780 = vmatpush.bf16.msra.mxu0 %v4584
    %4781 = vmatpush.bf16.msra.mxu0 %v4581
    %4782 = vmatpush.bf16.msra.mxu0 %v4578
    %4783 = vmatpush.bf16.msra.mxu0 %v4575
    %4784 = vmatpush.bf16.msra.mxu0 %v4572
    %4785 = vmatpush.bf16.msra.mxu0 %v4569
    %4786 = vmatpush.bf16.msra.mxu0 %v4566
    %4787 = vmatpush.bf16.msra.mxu0 %v4563
    %4788 = vmatmul.bf16.gmra.mxu0 %v4041
    %v4789 = vpop.f32.mrf.mxu0
    %v4790 = vadd.f32 %v4776, %v4789
    %v4791 = vpop.f32.mrf.mxu0
    %v4792 = vadd.f32 %v4778, %v4791
    %4793 = vdwg.mxu0
    %4794 = vmatpush.bf16.msra.mxu0 %v4513
    %4795 = vmatpush.bf16.msra.mxu0 %v4510
    %4796 = vmatpush.bf16.msra.mxu0 %v4507
    %4797 = vmatpush.bf16.msra.mxu0 %v4504
    %4798 = vmatpush.bf16.msra.mxu0 %v4501
    %4799 = vmatpush.bf16.msra.mxu0 %v4498
    %4800 = vmatpush.bf16.msra.mxu0 %v4495
    %4801 = vmatpush.bf16.msra.mxu0 %v4492
    %4802 = vmatmul.bf16.gmra.mxu0 %v4038
    %v4803 = vpop.f32.mrf.mxu0
    %v4804 = vadd.f32 0.0, %v4803
    %v4805 = vpop.f32.mrf.mxu0
    %v4806 = vadd.f32 0.0, %v4805
    %4807 = vdwg.mxu0
    %4808 = vmatpush.bf16.msra.mxu0 %v4537
    %4809 = vmatpush.bf16.msra.mxu0 %v4534
    %4810 = vmatpush.bf16.msra.mxu0 %v4531
    %4811 = vmatpush.bf16.msra.mxu0 %v4528
    %4812 = vmatpush.bf16.msra.mxu0 %v4525
    %4813 = vmatpush.bf16.msra.mxu0 %v4522
    %4814 = vmatpush.bf16.msra.mxu0 %v4519
    %4815 = vmatpush.bf16.msra.mxu0 %v4516
    %4816 = vmatmul.bf16.gmra.mxu0 %v4039
    %v4817 = vpop.f32.mrf.mxu0
    %v4818 = vadd.f32 %v4804, %v4817
    %v4819 = vpop.f32.mrf.mxu0
    %v4820 = vadd.f32 %v4806, %v4819
    %4821 = vdwg.mxu0
    %4822 = vmatpush.bf16.msra.mxu0 %v4561
    %4823 = vmatpush.bf16.msra.mxu0 %v4558
    %4824 = vmatpush.bf16.msra.mxu0 %v4555
    %4825 = vmatpush.bf16.msra.mxu0 %v4552
    %4826 = vmatpush.bf16.msra.mxu0 %v4549
    %4827 = vmatpush.bf16.msra.mxu0 %v4546
    %4828 = vmatpush.bf16.msra.mxu0 %v4543
    %4829 = vmatpush.bf16.msra.mxu0 %v4540
    %4830 = vmatmul.bf16.gmra.mxu0 %v4040
    %v4831 = vpop.f32.mrf.mxu0
    %v4832 = vadd.f32 %v4818, %v4831
    %v4833 = vpop.f32.mrf.mxu0
    %v4834 = vadd.f32 %v4820, %v4833
    %4835 = vdwg.mxu0
    %4836 = vmatpush.bf16.msra.mxu0 %v4585
    %4837 = vmatpush.bf16.msra.mxu0 %v4582
    %4838 = vmatpush.bf16.msra.mxu0 %v4579
    %4839 = vmatpush.bf16.msra.mxu0 %v4576
    %4840 = vmatpush.bf16.msra.mxu0 %v4573
    %4841 = vmatpush.bf16.msra.mxu0 %v4570
    %4842 = vmatpush.bf16.msra.mxu0 %v4567
    %4843 = vmatpush.bf16.msra.mxu0 %v4564
    %4844 = vmatmul.bf16.gmra.mxu0 %v4041
    %v4845 = vpop.f32.mrf.mxu0
    %v4846 = vadd.f32 %v4832, %v4845
    %v4847 = vpop.f32.mrf.mxu0
    %v4848 = vadd.f32 %v4834, %v4847
    %4849 = vdwg.mxu0
    %v4850 = vld [vmem:[#allocation2] sm:$0xff]
    %v4851 = vld [vmem:[#allocation2 + $0x8] sm:$0xff]
    %v4852 = vld [vmem:[#allocation2 + $0x10] sm:$0xff]
    %v4853 = vld [vmem:[#allocation2 + $0x18] sm:$0xff]
    %v4854 = vld [vmem:[#allocation2 + $0x20] sm:$0xff]
    %v4855 = vld [vmem:[#allocation2 + $0x28] sm:$0xff]
    %v4856 = vadd.f32 %v4850, %v4734
    %v4857 = vadd.f32 %v4851, %v4790
    %v4858 = vadd.f32 %v4852, %v4846
    %v4859 = vadd.f32 %v4853, %v4736
    %v4860 = vadd.f32 %v4854, %v4792
    %v4861 = vadd.f32 %v4855, %v4848
    %4862 = vst [vmem:[#allocation2] sm:$0xff] %v4856
    %4863 = vst [vmem:[#allocation2 + $0x8] sm:$0xff] %v4857
    %4864 = vst [vmem:[#allocation2 + $0x10] sm:$0xff] %v4858
    %4865 = vst [vmem:[#allocation2 + $0x18] sm:$0xff] %v4859
    %4866 = vst [vmem:[#allocation2 + $0x20] sm:$0xff] %v4860
    %4867 = vst [vmem:[#allocation2 + $0x28] sm:$0xff] %v4861
    %v4868 = vld [vmem:[#allocation2] sm:$0xff]
    %v4869 = vld [vmem:[#allocation2 + $0x8] sm:$0xff]
    %v4870 = vld [vmem:[#allocation2 + $0x10] sm:$0xff]
    %v4871 = vld [vmem:[#allocation2 + $0x18] sm:$0xff]
    %v4872 = vld [vmem:[#allocation2 + $0x20] sm:$0xff]
    %v4873 = vld [vmem:[#allocation2 + $0x28] sm:$0xff]
    %v4874 = vld [vmem:[#allocation11] sm:$0x7]
    %v4876 = vperm.slane %v4874, 0
    %v4877 = vperm.slane %v4874, 1
    %v4878 = vperm.slane %v4874, 2
    %v4882 = vadd.f32 %v4868, %v4876
    %v4883 = vadd.f32 %v4869, %v4877
    %v4884 = vadd.f32 %v4870, %v4878
    %v4885 = vadd.f32 %v4871, %v4876
    %v4886 = vadd.f32 %v4872, %v4877
    %v4887 = vadd.f32 %v4873, %v4878
    %4888 = vst [vmem:[#allocation12] sm:$0xff] %v4882
    %4889 = vst [vmem:[#allocation12 + $0x8] sm:$0xff] %v4883
    %4890 = vst [vmem:[#allocation12 + $0x10] sm:$0xff] %v4884
    %4891 = vst [vmem:[#allocation12 + $0x18] sm:$0xff] %v4885
    %4892 = vst [vmem:[#allocation12 + $0x20] sm:$0xff] %v4886
    %4893 = vst [vmem:[#allocation12 + $0x28] sm:$0xff] %v4887
    // Predicated region
    $region42: #{_feed_forward.1} parent=1 // pred_check
      _
    $region43: #{_feed_forward.1} parent=1 // pred_check_branch
      %4895 = sbr.rel (0) target = $region45
    $region44: #{_feed_forward.1} parent=1 // pred_region
      %4897 = vsyncadd [#allocation5], 0
      %s4898 = sshll.u32 [#allocation12], 4
      %s4899 = int_to_ptr.vmem [resolvable:$true] %s4898
      %s4900 = sshll.u32 %s5, 4
      %s4901 = int_to_ptr.hbm [resolvable:$true] %s4900
      %4906 = dma.vmem_to_hbm [thread:$0]  %s4899, 768, %s4901, [#allocation5], 384, 384, 24
    $region45: #{_feed_forward.1} parent=1 // pred_fallthru
      _
    // Predicated region
    $region46: #{_feed_forward.1} parent=1 // pred_check
      _
    $region47: #{_feed_forward.1} parent=1 // pred_check_branch
      %4908 = sbr.rel (0) target = $region49
    $region48: #{_feed_forward.1} parent=1 // pred_region
      %4910 = dma.done [#allocation5], 768
    $region49: #{_feed_forward.1} parent=1 // pred_fallthru
      _
    %4911 = vsyncpa [#allocation4], 1
    %4912 = vsyncpa [#allocation7], 1
    %4913 = vsyncpa [#allocation10], 1
    %4914 = vsyncpa [#allocation5], 1

</llo_original>
